<compile_context>
chip_gen: v5e
topology: v5e:2x2
jax: 0.10.0
libtpu: 0.0.40
codegen_flags: <defaults>
</compile_context>

<pallas_src>
import functools
import math

import jax
import jax.numpy as jnp
from jax.experimental import pallas as pl
from jax.experimental.pallas import tpu as pltpu


# ----------------------------- in-kernel helpers -----------------------------

def _layernorm(x, g, b, inv_d, eps=1e-5):
    # Masked-width LayerNorm: statistics over the *valid* feature columns only.
    # Pad columns are guaranteed zero, so full-width sum(x)/sum(x*x) already
    # equal the valid-column sums; inv_d = 1/valid_D.  var = E[x^2] - mu^2.
    mu = jnp.sum(x, axis=-1, keepdims=True) * inv_d
    ex2 = jnp.sum(x * x, axis=-1, keepdims=True) * inv_d
    var = ex2 - mu * mu
    return (x - mu) * jax.lax.rsqrt(var + eps) * g + b


def _encoder_layers(x, wqkv_a, wo_a, w1_a, w2_a, vec_a, mask_bias, *,
                    num_heads, inv_d):
    """L post-norm transformer layers on a flattened (M, D) residual stream.

    x        : (M, D) f32 (batch folded into sublanes)
    wqkv_a   : (L, D, 3D) bf16 (attention scale folded into Q at init)
    wo_a     : (L, D, D) bf16
    w1_a     : (L, D, hidden) bf16     w2_a : (L, hidden, D) bf16
    vec_a    : (L, 8, hidden) f32 packed [bqkv, bo, b1, b2, g1, be1, g2, be2]
    mask_bias: (M, M) f32 additive block-diagonal batch mask (precomputed).
    """
    L, D = wqkv_a.shape[0], wqkv_a.shape[1]
    hidden = w1_a.shape[-1]
    H = num_heads
    hd = D // H

    for l in range(L):                              # L small, statically unrolled
        vec = vec_a[l]                              # (8, hidden)
        bqkv = vec[0:1, :3 * D]
        bo, b1, b2 = vec[1:2, :D], vec[2:3, :hidden], vec[3:4, :D]
        g1, be1, g2, be2 = vec[4:5, :D], vec[5:6, :D], vec[6:7, :D], vec[7:8, :D]

        # ---- fused QKV matmul (score scale pre-folded into Q weights) ----
        qkv = jnp.dot(x.astype(jnp.bfloat16), wqkv_a[l],
                      preferred_element_type=jnp.float32) + bqkv        # (M, 3D)
        qkv_b = qkv.astype(jnp.bfloat16)                                # one cast

        # head-batched operands (H, M, hd) built from cheap lane slices
        q = jnp.stack([qkv_b[:, 0 * D + h * hd:0 * D + (h + 1) * hd]
                       for h in range(H)], axis=0)
        k = jnp.stack([qkv_b[:, 1 * D + h * hd:1 * D + (h + 1) * hd]
                       for h in range(H)], axis=0)
        v = jnp.stack([qkv_b[:, 2 * D + h * hd:2 * D + (h + 1) * hd]
                       for h in range(H)], axis=0)

        # ---- head-batched attention (scores stay f32 until exp) ----
        s = jnp.einsum("hmd,hnd->hmn", q, k,
                       preferred_element_type=jnp.float32) + mask_bias  # (H,M,M)
        s = s - jnp.max(s, axis=-1, keepdims=True)
        p = jnp.exp(s)
        p = p * pl.reciprocal(jnp.sum(p, axis=-1, keepdims=True), approx=True)
        o = jnp.einsum("hmn,hnd->hmd", p.astype(jnp.bfloat16), v,
                       preferred_element_type=jnp.float32)              # (H,M,hd)
        o_cat = jnp.concatenate([o[h] for h in range(H)], axis=-1)      # (M, D)
        attn = jnp.dot(o_cat.astype(jnp.bfloat16), wo_a[l],
                       preferred_element_type=jnp.float32) + bo

        # ---- post-norm block (BERT-style), ReLU FFN ----
        x = _layernorm(x + attn, g1, be1, inv_d)
        h1 = jnp.maximum(
            jnp.dot(x.astype(jnp.bfloat16), w1_a[l],
                    preferred_element_type=jnp.float32) + b1, 0.0)
        ffn = jnp.dot(h1.astype(jnp.bfloat16), w2_a[l],
                      preferred_element_type=jnp.float32) + b2
        x = _layernorm(x + ffn, g2, be2, inv_d)
    return x


# ------------------------------ Pallas kernels -------------------------------

def _modalities_kernel(x_ref, mask_ref, invd_ref, pw_ref, add_ref,
                       wqkv_ref, wo_ref, w1_ref, w2_ref, vec_ref,
                       ow_ref, ob_ref, o_ref, *, num_heads, B):
    """One modality (text / audio / video) per grid step."""
    inv_d = invd_ref[0]                                        # (1, 1) f32
    # input projection (text: identity, audio/video: Linear(in, hidden))
    x = jnp.dot(x_ref[0].astype(jnp.bfloat16), pw_ref[0],
                preferred_element_type=jnp.float32)            # (M, D_pad)
    # cls token + positional embedding (+ proj bias), broadcast over batch
    # inside the kernel -- no B-times HBM tiling of the slab.
    x = x + jnp.concatenate([add_ref[0]] * B, axis=0)
    x = _encoder_layers(x, wqkv_ref[0], wo_ref[0], w1_ref[0], w2_ref[0],
                        vec_ref[0], mask_ref[...],
                        num_heads=num_heads, inv_d=inv_d)
    # output projection (text: tliner, audio/video: identity)
    o = jnp.dot(x.astype(jnp.bfloat16), ow_ref[0],
                preferred_element_type=jnp.float32) + ob_ref[0]
    o_ref[0] = o.astype(o_ref.dtype)


def _fusion_heads_kernel(x_ref, mask_ref, add_ref,
                         wqkv_ref, wo_ref, w1_ref, w2_ref, vec_ref,
                         tok_ref, hw1_ref, hb1_ref, hw2_ref, hb2_ref,
                         hw3_ref, hb3_ref, fw3_ref, fb3_ref,
                         o_ref, head_ref, *, num_heads, B, S1):
    """'trans' fusion encoder + all four output heads in one kernel."""
    D = x_ref.shape[-1]
    x = x_ref[...] + jnp.concatenate([add_ref[...]] * B, axis=0)
    x = _encoder_layers(x, wqkv_ref[...], wo_ref[...], w1_ref[...], w2_ref[...],
                        vec_ref[...], mask_ref[...],
                        num_heads=num_heads, inv_d=1.0 / D)
    o_ref[...] = x.astype(o_ref.dtype)

    # fusion class token per batch element (row b*S1 of the flattened stream)
    fus_tok = jnp.concatenate([x[b * S1:b * S1 + 1, :] for b in range(B)],
                              axis=0)                            # (B, D)

    # three task heads (text / audio / video), batched over the task axis
    tok = tok_ref[...].astype(jnp.bfloat16)                      # (3, B, D)
    h1 = jnp.maximum(
        jnp.einsum("ibk,iko->ibo", tok, hw1_ref[...],
                   preferred_element_type=jnp.float32) + hb1_ref[...], 0.0)
    h2 = jnp.maximum(
        jnp.einsum("ibk,iko->ibo", h1.astype(jnp.bfloat16), hw2_ref[...],
                   preferred_element_type=jnp.float32) + hb2_ref[...], 0.0)
    s3 = jnp.einsum("ibk,iko->ibo", h2.astype(jnp.bfloat16), hw3_ref[...],
                    preferred_element_type=jnp.float32) + hb3_ref[...]  # (3,B,1)
    sf = jnp.dot(fus_tok.astype(jnp.bfloat16), fw3_ref[...],
                 preferred_element_type=jnp.float32) + fb3_ref[...]     # (B, 1)

    t = s3[0]                                       # text: no sigmoid (matches ref)
    a = jax.nn.sigmoid(s3[1]) * 2.0 - 1.0
    v = jax.nn.sigmoid(s3[2]) * 2.0 - 1.0
    m = jax.nn.sigmoid(sf) * 2.0 - 1.0
    head_ref[...] = jnp.concatenate([t, a, v, m], axis=-1)       # (B, 4)


# ------------------------------ call wrappers ---------------------------------

def _lead_map(nd):
    def imap(m):
        return (m,) + (0,) * (nd - 1)
    return imap


def _zero_map(nd):
    def imap(*_):
        return (0,) * nd
    return imap


def run_modalities(x3, mask, p, *, num_heads, B):
    """x3: (3, M, in_pad).  One grid step per modality ('parallel')."""
    n_mod, M, _ = x3.shape
    out_dim = p["ow"].shape[-1]
    args = [x3, mask, p["inv_d"], p["proj_w"], p["add"], p["wqkv"], p["wo"],
            p["w1"], p["w2"], p["vec"], p["ow"], p["ob"]]
    in_specs = [pl.BlockSpec((1,) + x3.shape[1:], _lead_map(3)),
                pl.BlockSpec(mask.shape, _zero_map(mask.ndim))]
    in_specs += [pl.BlockSpec((1,) + a.shape[1:], _lead_map(a.ndim))
                 for a in args[2:]]
    kernel = functools.partial(_modalities_kernel, num_heads=num_heads, B=B)
    return pl.pallas_call(
        kernel,
        out_shape=jax.ShapeDtypeStruct((n_mod, M, out_dim), jnp.float32),
        grid=(n_mod,),
        in_specs=in_specs,
        out_specs=pl.BlockSpec((1, M, out_dim), _lead_map(3)),
        compiler_params=pltpu.CompilerParams(
            dimension_semantics=("parallel",)),
    )(*args)


def run_fusion_and_heads(xf, mask, fp, tok, hp, *, num_heads, B, S1):
    M, D = xf.shape
    args = [xf, mask, fp["add"], fp["wqkv"], fp["wo"], fp["w1"], fp["w2"],
            fp["vec"], tok, hp["w1"], hp["b1"], hp["w2"], hp["b2"], hp["w3"],
            hp["b3"], hp["fw3"], hp["fb3"]]
    in_specs = [pl.BlockSpec(a.shape, _zero_map(a.ndim)) for a in args]
    kernel = functools.partial(_fusion_heads_kernel, num_heads=num_heads,
                               B=B, S1=S1)
    return pl.pallas_call(
        kernel,
        out_shape=(jax.ShapeDtypeStruct((M, D), jnp.float32),
                   jax.ShapeDtypeStruct((B, 4), jnp.float32)),
        grid=(1,),
        in_specs=in_specs,
        out_specs=(pl.BlockSpec((M, D), _zero_map(2)),
                   pl.BlockSpec((B, 4), _zero_map(2))),
        compiler_params=pltpu.CompilerParams(
            dimension_semantics=("arbitrary",)),
    )(*args)


# --------------------------- parameter creation ------------------------------

def _xavier(key, shape, dtype=jnp.float32):
    fan_in, fan_out = shape[-2], shape[-1]
    lim = (6.0 / (fan_in + fan_out)) ** 0.5
    return jax.random.uniform(key, shape, jnp.float32, -lim, lim).astype(dtype)


def _make_layer_weights(key, D, H, L, mlp=4):
    """Encoder layer weights at the modality's native width (scale folded)."""
    hidden = mlp * D
    hd = D // H
    ks = jax.random.split(key, 4)
    wqkv = _xavier(ks[0], (L, D, 3 * D))
    # fold the 1/sqrt(head_dim) attention scale into the Q projection
    # (biases are zero at init; if loading real weights, scale bq as well)
    wqkv = wqkv.at[:, :, :D].multiply(1.0 / math.sqrt(hd))
    wo = _xavier(ks[1], (L, D, D))
    w1 = _xavier(ks[2], (L, D, hidden))
    w2 = _xavier(ks[3], (L, hidden, D))
    return wqkv, wo, w1, w2


def _pad_layer_weights(wqkv, wo, w1, w2, *, D, Dp, H, mlp=4):
    """Embed a D-wide encoder's weights into the common Dp-wide padded layout.

    Per-head Q/K/V slices (and the matching Wo rows) are scattered into
    Dp//H-wide head slots so head-batched attention over the padded width is
    numerically identical to the original D-wide, H-head attention (all pad
    slots are zero, LN gains/biases zero on pad columns).
    """
    L = wqkv.shape[0]
    hd, hdp = D // H, Dp // H
    hidden, hiddenp = mlp * D, mlp * Dp
    wqkv_p = jnp.zeros((L, Dp, 3 * Dp), jnp.float32)
    wo_p = jnp.zeros((L, Dp, Dp), jnp.float32)
    for h in range(H):
        for blk in range(3):                       # Q, K, V blocks
            wqkv_p = wqkv_p.at[
                :, :D, blk * Dp + h * hdp:blk * Dp + h * hdp + hd].set(
                wqkv[:, :, blk * D + h * hd:blk * D + (h + 1) * hd])
        wo_p = wo_p.at[:, h * hdp:h * hdp + hd, :D].set(
            wo[:, h * hd:(h + 1) * hd, :])
    w1_p = jnp.zeros((L, Dp, hiddenp), jnp.float32).at[:, :D, :hidden].set(w1)
    w2_p = jnp.zeros((L, hiddenp, Dp), jnp.float32).at[:, :hidden, :D].set(w2)
    vec = jnp.zeros((L, 8, hiddenp), jnp.float32)
    vec = vec.at[:, 4, :D].set(1.0).at[:, 6, :D].set(1.0)   # LN gains (valid cols)
    return wqkv_p, wo_p, w1_p, w2_p, vec


def init_modalities(key, cfg, mlp=4):
    """Unified text / audio / video encoder params on a common padded width."""
    t_in, a_in, v_in = cfg["text_in"], cfg["audio_in"], cfg["video_in"]
    Dv = (cfg["text_in"], cfg["audio_hidden"], cfg["video_hidden"])
    Dp = max(Dv)
    in_pad = max(t_in, a_in, v_in)
    H, L = cfg["sub_heads"], cfg["sub_layers"]
    S1 = cfg["audio_seq"] + 1
    out_dim = cfg["text_hidden"]
    for d in Dv:
        assert d % H == 0

    k_pa, k_pv, k_tl, k_cls, k_pos, k_lay = jax.random.split(key, 6)
    k_cls = jax.random.split(k_cls, 3)
    k_pos = jax.random.split(k_pos, 3)
    k_lay = jax.random.split(k_lay, 3)

    # per-modality input projection embedded into the common padded slab
    # TODO(synk): BertTextEncoder (pretrained BERT) has no in-script equivalent;
    # text uses an identity projection into a small class-token transformer.
    pw = jnp.zeros((3, in_pad, Dp), jnp.float32)
    pw = pw.at[0, :t_in, :t_in].set(jnp.eye(t_in, dtype=jnp.float32))
    pw = pw.at[1, :a_in, :Dv[1]].set(_xavier(k_pa, (a_in, Dv[1])))
    pw = pw.at[2, :v_in, :Dv[2]].set(_xavier(k_pv, (v_in, Dv[2])))

    # cls token + positional embedding folded into one additive slab per modality:
    # row 0 = cls + pos[0]; rows 1.. = pos[1:] (+ proj bias, zero at init)
    add = jnp.zeros((3, S1, Dp), jnp.float32)
    for m in range(3):
        cls = jax.random.normal(k_cls[m], (1, Dv[m]), jnp.float32) * 0.02
        pos = jax.random.normal(k_pos[m], (S1, Dv[m]), jnp.float32) * 0.02
        rows = jnp.concatenate([cls + pos[:1], pos[1:]], axis=0)
        add = add.at[m, :, :Dv[m]].set(rows)

    stacks = {k: [] for k in ("wqkv", "wo", "w1", "w2", "vec")}
    for m in range(3):
        small = _make_layer_weights(k_lay[m], Dv[m], H, L, mlp)
        padded = _pad_layer_weights(*small, D=Dv[m], Dp=Dp, H=H, mlp=mlp)
        for name, val in zip(("wqkv", "wo", "w1", "w2", "vec"), padded):
            stacks[name].append(val)

    # per-modality output projection: text -> tliner(text_in, hidden),
    # audio/video -> identity (their encoder output is returned unprojected)
    ow = jnp.zeros((3, Dp, out_dim), jnp.float32)
    ow = ow.at[0, :t_in, :].set(_xavier(k_tl, (t_in, out_dim)))
    ow = ow.at[1, :out_dim, :].set(jnp.eye(out_dim, dtype=jnp.float32))
    ow = ow.at[2, :out_dim, :].set(jnp.eye(out_dim, dtype=jnp.float32))

    return {
        "proj_w": pw.astype(jnp.bfloat16),
        "add": add,
        "inv_d": (1.0 / jnp.array(Dv, jnp.float32)).reshape(3, 1, 1),
        "wqkv": jnp.stack(stacks["wqkv"]).astype(jnp.bfloat16),
        "wo": jnp.stack(stacks["wo"]).astype(jnp.bfloat16),
        "w1": jnp.stack(stacks["w1"]).astype(jnp.bfloat16),
        "w2": jnp.stack(stacks["w2"]).astype(jnp.bfloat16),
        "vec": jnp.stack(stacks["vec"]),
        "ow": ow.astype(jnp.bfloat16),
        "ob": jnp.zeros((3, 1, out_dim), jnp.float32),
    }


def init_fusion(key, D, H, L, S, mlp=4):
    # TODO(synk): TransFN source not provided; modeled as a class-token
    # transformer over concat([_audio, _text, _video]) at embed_dim=post_fusion_out.
    k_cls, k_pos, k_lay = jax.random.split(key, 3)
    wqkv, wo, w1, w2 = _make_layer_weights(k_lay, D, H, L, mlp)
    vec = jnp.zeros((L, 8, mlp * D), jnp.float32)
    vec = vec.at[:, 4, :D].set(1.0).at[:, 6, :D].set(1.0)
    cls = jax.random.normal(k_cls, (1, D), jnp.float32) * 0.02
    pos = jax.random.normal(k_pos, (S + 1, D), jnp.float32) * 0.02
    add = jnp.concatenate([cls + pos[:1], pos[1:]], axis=0)     # (S+1, D)
    return {"wqkv": wqkv.astype(jnp.bfloat16), "wo": wo.astype(jnp.bfloat16),
            "w1": w1.astype(jnp.bfloat16), "w2": w2.astype(jnp.bfloat16),
            "vec": vec, "add": add}


def init_heads(key, token_dim, head_dim):
    ks = jax.random.split(key, 4)
    return {
        "w1": _xavier(ks[0], (3, token_dim, head_dim), jnp.bfloat16),
        "b1": jnp.zeros((3, 1, head_dim), jnp.float32),
        "w2": _xavier(ks[1], (3, head_dim, head_dim), jnp.bfloat16),
        "b2": jnp.zeros((3, 1, head_dim), jnp.float32),
        "w3": _xavier(ks[2], (3, head_dim, 1), jnp.bfloat16),
        "b3": jnp.zeros((3, 1, 1), jnp.float32),
        "fw3": _xavier(ks[3], (token_dim, 1), jnp.bfloat16),
        "fb3": jnp.zeros((1, 1), jnp.float32),
    }


def init_v8(key, cfg):
    # the fused 3-modality grid requires a matching seq / head / layer config
    # (true for this configuration)
    assert (cfg["text_hidden"] == cfg["audio_hidden"] == cfg["video_hidden"]
            == cfg["post_fusion_out"])
    assert cfg["post_text_dim"] == cfg["post_audio_dim"] == cfg["post_video_dim"]
    assert cfg["text_seq"] == cfg["audio_seq"] == cfg["video_seq"]
    assert cfg["text_heads"] == cfg["sub_heads"]
    assert cfg["text_layers"] == cfg["sub_layers"]
    k_mod, k_fus, k_head = jax.random.split(key, 3)
    fus_seq = cfg["audio_seq"] + cfg["text_seq"] + cfg["video_seq"]
    return {
        "mod": init_modalities(k_mod, cfg),
        "fusion": init_fusion(k_fus, cfg["post_fusion_out"], cfg["fus_heads"],
                              cfg["fus_layers"], fus_seq),
        "heads": init_heads(k_head, cfg["text_hidden"], cfg["post_text_dim"]),
    }


# ------------------------------ model forward --------------------------------

def _block_mask(B, S1):
    """Additive block-diagonal batch mask (built from two 1-D iotas)."""
    r = jnp.arange(B * S1, dtype=jnp.int32) // S1
    return jnp.where(r[:, None] == r[None, :], 0.0, -1e30).astype(jnp.float32)


def v8_forward(params, cfg, text_x, audio_x, video_x):
    B = text_x.shape[0]
    S1 = cfg["text_seq"] + 1
    Dh = cfg["text_hidden"]
    mp = params["mod"]
    in_pad = mp["proj_w"].shape[1]

    def prep(x):
        # pad raw features to the common input width, prepend a zero cls row
        x = jnp.pad(x, ((0, 0), (0, 0), (0, in_pad - x.shape[-1])))
        x = jnp.concatenate([jnp.zeros((B, 1, in_pad), x.dtype), x], axis=1)
        return x.reshape(B * S1, in_pad)

    # ---- call 1: text + audio + video encoders on a 3-wide "parallel" grid ----
    x3 = jnp.stack([prep(text_x), prep(audio_x), prep(video_x)], axis=0)
    mask = _block_mask(B, S1)
    enc = run_modalities(x3, mask, mp, num_heads=cfg["sub_heads"], B=B)
    enc = enc.reshape(3, B, S1, Dh)
    text_h, _text = enc[0, :, 0, :], enc[0, :, 1:, :]
    audio_h, _audio = enc[1, :, 0, :], enc[1, :, 1:, :]
    video_h, _video = enc[2, :, 0, :], enc[2, :, 1:, :]

    # ---- call 2: 'trans' fusion encoder + all four output heads (fused) ----
    fus_seq = _audio.shape[1] + _text.shape[1] + _video.shape[1]
    S1f = fus_seq + 1
    xf = jnp.concatenate(
        [jnp.zeros((B, 1, Dh), jnp.float32), _audio, _text, _video],
        axis=1).reshape(B * S1f, Dh)
    mask_f = _block_mask(B, S1f)
    tok = jnp.stack([text_h, audio_h, video_h], axis=0)          # (3, B, Dh)
    fus_out, head_out = run_fusion_and_heads(
        xf, mask_f, params["fusion"], tok, params["heads"],
        num_heads=cfg["fus_heads"], B=B, S1=S1f)
    fus_out = fus_out.reshape(B, S1f, Dh)
    funsion_ATV, _fusion = fus_out[:, 0, :], fus_out[:, 1:, :]

    return {
        "Feature_t": _text, "Feature_a": _audio, "Feature_v": _video,
        "Fusion": _fusion, "Fusion_token": funsion_ATV,
        "Feature_t_token": text_h, "Feature_a_token": audio_h,
        "Feature_v_token": video_h,
        "M": head_out[:, 3:4], "T": head_out[:, 0:1],
        "A": head_out[:, 1:2], "V": head_out[:, 2:3],
    }


# ----------------------------------- main -------------------------------------

if __name__ == "__main__":
    cfg = dict(
        text_seq=8, audio_seq=8, video_seq=8,
        text_in=48, audio_in=40, video_in=24,
        text_hidden=32, audio_hidden=32, video_hidden=32,
        post_text_dim=16, post_audio_dim=16, post_video_dim=16,
        post_fusion_out=32,
        text_heads=4, text_layers=2,
        sub_heads=4, sub_layers=2,
        fus_heads=4, fus_layers=2,
    )
    key = jax.random.PRNGKey(0)
    kp, kt, ka, kv = jax.random.split(key, 4)
    params = init_v8(kp, cfg)

    B = 2
    text_x = jax.random.normal(kt, (B, cfg["text_seq"], cfg["text_in"]), jnp.float32)
    audio_x = jax.random.normal(ka, (B, cfg["audio_seq"], cfg["audio_in"]), jnp.float32)
    video_x = jax.random.normal(kv, (B, cfg["video_seq"], cfg["video_in"]), jnp.float32)

    fwd = jax.jit(lambda p, t, a, v: v8_forward(p, cfg, t, a, v))
    res = fwd(params, text_x, audio_x, video_x)
    jax.block_until_ready(res)
    print("KERNEL_OK")
</pallas_src>

<mosaic_0001>
module attributes {stable_mosaic.version = 11 : i64} {
  func.func @_modalities_kernel(%arg0: i32, %arg1: memref<1x18x48xf32, #tpu.memory_space<vmem>>, %arg2: memref<18x18xf32, #tpu.memory_space<vmem>>, %arg3: memref<1x1x1xf32, #tpu.memory_space<vmem>>, %arg4: memref<1x48x48xbf16, #tpu.memory_space<vmem>>, %arg5: memref<1x9x48xf32, #tpu.memory_space<vmem>>, %arg6: memref<1x2x48x144xbf16, #tpu.memory_space<vmem>>, %arg7: memref<1x2x48x48xbf16, #tpu.memory_space<vmem>>, %arg8: memref<1x2x48x192xbf16, #tpu.memory_space<vmem>>, %arg9: memref<1x2x192x48xbf16, #tpu.memory_space<vmem>>, %arg10: memref<1x2x8x192xf32, #tpu.memory_space<vmem>>, %arg11: memref<1x48x32xbf16, #tpu.memory_space<vmem>>, %arg12: memref<1x1x32xf32, #tpu.memory_space<vmem>>, %arg13: memref<1x18x32xf32, #tpu.memory_space<vmem>>) attributes {dimension_semantics = [#tpu.dimension_semantics<parallel>], iteration_bounds = array<i64: 3>, scalar_prefetch = 0 : i64, scratch_operands = 0 : i64, tpu.core_type = #tpu.core_type<tc>, window_params = [{transform_indices = @transform_0, window_bounds = array<i64: 1, 18, 48>}, {pipeline_mode = #tpu.pipeline_mode<synchronous>, transform_indices = @transform_1, window_bounds = array<i64: 18, 18>}, {transform_indices = @transform_2, window_bounds = array<i64: 1, 1, 1>}, {transform_indices = @transform_3, window_bounds = array<i64: 1, 48, 48>}, {transform_indices = @transform_4, window_bounds = array<i64: 1, 9, 48>}, {transform_indices = @transform_5, window_bounds = array<i64: 1, 2, 48, 144>}, {transform_indices = @transform_6, window_bounds = array<i64: 1, 2, 48, 48>}, {transform_indices = @transform_7, window_bounds = array<i64: 1, 2, 48, 192>}, {transform_indices = @transform_8, window_bounds = array<i64: 1, 2, 192, 48>}, {transform_indices = @transform_9, window_bounds = array<i64: 1, 2, 8, 192>}, {transform_indices = @transform_10, window_bounds = array<i64: 1, 48, 32>}, {transform_indices = @transform_11, window_bounds = array<i64: 1, 1, 32>}, {transform_indices = @transform_12, window_bounds = array<i64: 1, 18, 32>}]} {
    %c0 = arith.constant 0 : index
    %c0_0 = arith.constant 0 : index
    %c0_1 = arith.constant 0 : index
    %0 = vector.load %arg3[%c0, %c0_0, %c0_1] : memref<1x1x1xf32, #tpu.memory_space<vmem>>, vector<1x1x1xf32>
    %1 = vector.shape_cast %0 : vector<1x1x1xf32> to vector<1x1xf32>
    %c0_2 = arith.constant 0 : index
    %c0_3 = arith.constant 0 : index
    %c0_4 = arith.constant 0 : index
    %2 = vector.load %arg1[%c0_2, %c0_3, %c0_4] : memref<1x18x48xf32, #tpu.memory_space<vmem>>, vector<1x18x48xf32>
    %3 = vector.shape_cast %2 : vector<1x18x48xf32> to vector<18x48xf32>
    %4 = arith.truncf %3 : vector<18x48xf32> to vector<18x48xbf16>
    %c0_5 = arith.constant 0 : index
    %c0_6 = arith.constant 0 : index
    %c0_7 = arith.constant 0 : index
    %5 = vector.load %arg4[%c0_5, %c0_6, %c0_7] : memref<1x48x48xbf16, #tpu.memory_space<vmem>>, vector<1x48x48xbf16>
    %6 = vector.shape_cast %5 : vector<1x48x48xbf16> to vector<48x48xbf16>
    %cst = arith.constant dense<0.000000e+00> : vector<18x48xf32>
    %7 = tpu.matmul %4, %6, %cst {dimension_numbers = #tpu.dot_dimension_numbers<[1], [0], [0], [1], [0, 0, 1, 1], [], []>} : vector<18x48xbf16>, vector<48x48xbf16>, vector<18x48xf32> -> vector<18x48xf32>
    %c0_8 = arith.constant 0 : index
    %c0_9 = arith.constant 0 : index
    %c0_10 = arith.constant 0 : index
    %8 = vector.load %arg5[%c0_8, %c0_9, %c0_10] : memref<1x9x48xf32, #tpu.memory_space<vmem>>, vector<1x9x48xf32>
    %9 = vector.shape_cast %8 : vector<1x9x48xf32> to vector<9x48xf32>
    %10 = tpu.concatenate %9, %9 in 0 : vector<9x48xf32>, vector<9x48xf32> -> vector<18x48xf32>
    %11 = arith.addf %7, %10 : vector<18x48xf32>
    %c0_11 = arith.constant 0 : index
    %c0_12 = arith.constant 0 : index
    %c0_13 = arith.constant 0 : index
    %c0_14 = arith.constant 0 : index
    %12 = vector.load %arg6[%c0_11, %c0_12, %c0_13, %c0_14] : memref<1x2x48x144xbf16, #tpu.memory_space<vmem>>, vector<1x2x48x144xbf16>
    %13 = vector.shape_cast %12 : vector<1x2x48x144xbf16> to vector<2x48x144xbf16>
    %c0_15 = arith.constant 0 : index
    %c0_16 = arith.constant 0 : index
    %c0_17 = arith.constant 0 : index
    %c0_18 = arith.constant 0 : index
    %14 = vector.load %arg7[%c0_15, %c0_16, %c0_17, %c0_18] : memref<1x2x48x48xbf16, #tpu.memory_space<vmem>>, vector<1x2x48x48xbf16>
    %15 = vector.shape_cast %14 : vector<1x2x48x48xbf16> to vector<2x48x48xbf16>
    %c0_19 = arith.constant 0 : index
    %c0_20 = arith.constant 0 : index
    %c0_21 = arith.constant 0 : index
    %c0_22 = arith.constant 0 : index
    %16 = vector.load %arg8[%c0_19, %c0_20, %c0_21, %c0_22] : memref<1x2x48x192xbf16, #tpu.memory_space<vmem>>, vector<1x2x48x192xbf16>
    %17 = vector.shape_cast %16 : vector<1x2x48x192xbf16> to vector<2x48x192xbf16>
    %c0_23 = arith.constant 0 : index
    %c0_24 = arith.constant 0 : index
    %c0_25 = arith.constant 0 : index
    %c0_26 = arith.constant 0 : index
    %18 = vector.load %arg9[%c0_23, %c0_24, %c0_25, %c0_26] : memref<1x2x192x48xbf16, #tpu.memory_space<vmem>>, vector<1x2x192x48xbf16>
    %19 = vector.shape_cast %18 : vector<1x2x192x48xbf16> to vector<2x192x48xbf16>
    %c0_27 = arith.constant 0 : index
    %c0_28 = arith.constant 0 : index
    %c0_29 = arith.constant 0 : index
    %c0_30 = arith.constant 0 : index
    %20 = vector.load %arg10[%c0_27, %c0_28, %c0_29, %c0_30] : memref<1x2x8x192xf32, #tpu.memory_space<vmem>>, vector<1x2x8x192xf32>
    %21 = vector.shape_cast %20 : vector<1x2x8x192xf32> to vector<2x8x192xf32>
    %c0_31 = arith.constant 0 : index
    %c0_32 = arith.constant 0 : index
    %22 = vector.load %arg2[%c0_31, %c0_32] : memref<18x18xf32, #tpu.memory_space<vmem>>, vector<18x18xf32>
    %23 = vector.extract_strided_slice %21 {offsets = [0, 0, 0], sizes = [1, 8, 192], strides = [1, 1, 1]} : vector<2x8x192xf32> to vector<1x8x192xf32>
    %24 = vector.shape_cast %23 : vector<1x8x192xf32> to vector<8x192xf32>
    %25 = vector.extract_strided_slice %24 {offsets = [0, 0], sizes = [1, 144], strides = [1, 1]} : vector<8x192xf32> to vector<1x144xf32>
    %26 = vector.extract_strided_slice %24 {offsets = [1, 0], sizes = [1, 48], strides = [1, 1]} : vector<8x192xf32> to vector<1x48xf32>
    %27 = vector.extract_strided_slice %24 {offsets = [2, 0], sizes = [1, 192], strides = [1, 1]} : vector<8x192xf32> to vector<1x192xf32>
    %28 = vector.extract_strided_slice %24 {offsets = [3, 0], sizes = [1, 48], strides = [1, 1]} : vector<8x192xf32> to vector<1x48xf32>
    %29 = vector.extract_strided_slice %24 {offsets = [4, 0], sizes = [1, 48], strides = [1, 1]} : vector<8x192xf32> to vector<1x48xf32>
    %30 = vector.extract_strided_slice %24 {offsets = [5, 0], sizes = [1, 48], strides = [1, 1]} : vector<8x192xf32> to vector<1x48xf32>
    %31 = vector.extract_strided_slice %24 {offsets = [6, 0], sizes = [1, 48], strides = [1, 1]} : vector<8x192xf32> to vector<1x48xf32>
    %32 = vector.extract_strided_slice %24 {offsets = [7, 0], sizes = [1, 48], strides = [1, 1]} : vector<8x192xf32> to vector<1x48xf32>
    %33 = arith.truncf %11 : vector<18x48xf32> to vector<18x48xbf16>
    %34 = vector.extract_strided_slice %13 {offsets = [0, 0, 0], sizes = [1, 48, 144], strides = [1, 1, 1]} : vector<2x48x144xbf16> to vector<1x48x144xbf16>
    %35 = vector.shape_cast %34 : vector<1x48x144xbf16> to vector<48x144xbf16>
    %cst_33 = arith.constant dense<0.000000e+00> : vector<18x144xf32>
    %36 = tpu.matmul %33, %35, %cst_33 {dimension_numbers = #tpu.dot_dimension_numbers<[1], [0], [0], [1], [0, 0, 1, 1], [], []>} : vector<18x48xbf16>, vector<48x144xbf16>, vector<18x144xf32> -> vector<18x144xf32>
    %37 = vector.broadcast %25 : vector<1x144xf32> to vector<18x144xf32>
    %38 = arith.addf %36, %37 : vector<18x144xf32>
    %39 = arith.truncf %38 : vector<18x144xf32> to vector<18x144xbf16>
    %40 = vector.extract_strided_slice %39 {offsets = [0, 0], sizes = [18, 12], strides = [1, 1]} : vector<18x144xbf16> to vector<18x12xbf16>
    %41 = vector.extract_strided_slice %39 {offsets = [0, 12], sizes = [18, 12], strides = [1, 1]} : vector<18x144xbf16> to vector<18x12xbf16>
    %42 = vector.extract_strided_slice %39 {offsets = [0, 24], sizes = [18, 12], strides = [1, 1]} : vector<18x144xbf16> to vector<18x12xbf16>
    %43 = vector.extract_strided_slice %39 {offsets = [0, 36], sizes = [18, 12], strides = [1, 1]} : vector<18x144xbf16> to vector<18x12xbf16>
    %44 = vector.shape_cast %40 : vector<18x12xbf16> to vector<1x18x12xbf16>
    %45 = vector.shape_cast %41 : vector<18x12xbf16> to vector<1x18x12xbf16>
    %46 = vector.shape_cast %42 : vector<18x12xbf16> to vector<1x18x12xbf16>
    %47 = vector.shape_cast %43 : vector<18x12xbf16> to vector<1x18x12xbf16>
    %48 = tpu.concatenate %44, %45, %46, %47 in 0 : vector<1x18x12xbf16>, vector<1x18x12xbf16>, vector<1x18x12xbf16>, vector<1x18x12xbf16> -> vector<4x18x12xbf16>
    %49 = vector.extract_strided_slice %39 {offsets = [0, 48], sizes = [18, 12], strides = [1, 1]} : vector<18x144xbf16> to vector<18x12xbf16>
    %50 = vector.extract_strided_slice %39 {offsets = [0, 60], sizes = [18, 12], strides = [1, 1]} : vector<18x144xbf16> to vector<18x12xbf16>
    %51 = vector.extract_strided_slice %39 {offsets = [0, 72], sizes = [18, 12], strides = [1, 1]} : vector<18x144xbf16> to vector<18x12xbf16>
    %52 = vector.extract_strided_slice %39 {offsets = [0, 84], sizes = [18, 12], strides = [1, 1]} : vector<18x144xbf16> to vector<18x12xbf16>
    %53 = vector.shape_cast %49 : vector<18x12xbf16> to vector<1x18x12xbf16>
    %54 = vector.shape_cast %50 : vector<18x12xbf16> to vector<1x18x12xbf16>
    %55 = vector.shape_cast %51 : vector<18x12xbf16> to vector<1x18x12xbf16>
    %56 = vector.shape_cast %52 : vector<18x12xbf16> to vector<1x18x12xbf16>
    %57 = tpu.concatenate %53, %54, %55, %56 in 0 : vector<1x18x12xbf16>, vector<1x18x12xbf16>, vector<1x18x12xbf16>, vector<1x18x12xbf16> -> vector<4x18x12xbf16>
    %58 = vector.extract_strided_slice %39 {offsets = [0, 96], sizes = [18, 12], strides = [1, 1]} : vector<18x144xbf16> to vector<18x12xbf16>
    %59 = vector.extract_strided_slice %39 {offsets = [0, 108], sizes = [18, 12], strides = [1, 1]} : vector<18x144xbf16> to vector<18x12xbf16>
    %60 = vector.extract_strided_slice %39 {offsets = [0, 120], sizes = [18, 12], strides = [1, 1]} : vector<18x144xbf16> to vector<18x12xbf16>
    %61 = vector.extract_strided_slice %39 {offsets = [0, 132], sizes = [18, 12], strides = [1, 1]} : vector<18x144xbf16> to vector<18x12xbf16>
    %62 = vector.shape_cast %58 : vector<18x12xbf16> to vector<1x18x12xbf16>
    %63 = vector.shape_cast %59 : vector<18x12xbf16> to vector<1x18x12xbf16>
    %64 = vector.shape_cast %60 : vector<18x12xbf16> to vector<1x18x12xbf16>
    %65 = vector.shape_cast %61 : vector<18x12xbf16> to vector<1x18x12xbf16>
    %66 = tpu.concatenate %62, %63, %64, %65 in 0 : vector<1x18x12xbf16>, vector<1x18x12xbf16>, vector<1x18x12xbf16>, vector<1x18x12xbf16> -> vector<4x18x12xbf16>
    "tpu.trace_start"() <{level = 10 : i32, message = "hmd,hnd->hmn"}> : () -> ()
    %cst_34 = arith.constant dense<0.000000e+00> : vector<4x18x18xf32>
    %67 = tpu.matmul %48, %57, %cst_34 {dimension_numbers = #tpu.dot_dimension_numbers<[2], [2], [1], [1], [0, 0, 0, 1, 1, 1], [0], [0]>} : vector<4x18x12xbf16>, vector<4x18x12xbf16>, vector<4x18x18xf32> -> vector<4x18x18xf32>
    "tpu.trace_stop"() : () -> ()
    %68 = vector.shape_cast %22 : vector<18x18xf32> to vector<1x18x18xf32>
    %69 = vector.broadcast %68 : vector<1x18x18xf32> to vector<4x18x18xf32>
    %70 = arith.addf %67, %69 : vector<4x18x18xf32>
    %cst_35 = arith.constant dense<0xFF800000> : vector<4x18xf32>
    %71 = vector.multi_reduction <maximumf>, %70, %cst_35 [2] : vector<4x18x18xf32> to vector<4x18xf32>
    %72 = vector.shape_cast %71 : vector<4x18xf32> to vector<4x18x1xf32>
    %73 = vector.broadcast %72 : vector<4x18x1xf32> to vector<4x18x18xf32>
    %74 = arith.subf %70, %73 : vector<4x18x18xf32>
    %75 = math.exp %74 : vector<4x18x18xf32>
    %cst_36 = arith.constant dense<0.000000e+00> : vector<4x18xf32>
    %76 = vector.multi_reduction <add>, %75, %cst_36 [2] : vector<4x18x18xf32> to vector<4x18xf32>
    %77 = vector.shape_cast %76 : vector<4x18xf32> to vector<4x18x1xf32>
    %78 = tpu.reciprocal %77 {approx = true} : vector<4x18x1xf32> -> vector<4x18x1xf32>
    %79 = vector.broadcast %78 : vector<4x18x1xf32> to vector<4x18x18xf32>
    %80 = arith.mulf %75, %79 : vector<4x18x18xf32>
    %81 = arith.truncf %80 : vector<4x18x18xf32> to vector<4x18x18xbf16>
    "tpu.trace_start"() <{level = 10 : i32, message = "hmn,hnd->hmd"}> : () -> ()
    %cst_37 = arith.constant dense<0.000000e+00> : vector<4x18x12xf32>
    %82 = tpu.matmul %81, %66, %cst_37 {dimension_numbers = #tpu.dot_dimension_numbers<[2], [1], [1], [2], [0, 0, 0, 1, 1, 2], [0], [0]>} : vector<4x18x18xbf16>, vector<4x18x12xbf16>, vector<4x18x12xf32> -> vector<4x18x12xf32>
    "tpu.trace_stop"() : () -> ()
    %83 = vector.extract_strided_slice %82 {offsets = [0, 0, 0], sizes = [1, 18, 12], strides = [1, 1, 1]} : vector<4x18x12xf32> to vector<1x18x12xf32>
    %84 = vector.shape_cast %83 : vector<1x18x12xf32> to vector<18x12xf32>
    %85 = vector.extract_strided_slice %82 {offsets = [1, 0, 0], sizes = [1, 18, 12], strides = [1, 1, 1]} : vector<4x18x12xf32> to vector<1x18x12xf32>
    %86 = vector.shape_cast %85 : vector<1x18x12xf32> to vector<18x12xf32>
    %87 = vector.extract_strided_slice %82 {offsets = [2, 0, 0], sizes = [1, 18, 12], strides = [1, 1, 1]} : vector<4x18x12xf32> to vector<1x18x12xf32>
    %88 = vector.shape_cast %87 : vector<1x18x12xf32> to vector<18x12xf32>
    %89 = vector.extract_strided_slice %82 {offsets = [3, 0, 0], sizes = [1, 18, 12], strides = [1, 1, 1]} : vector<4x18x12xf32> to vector<1x18x12xf32>
    %90 = vector.shape_cast %89 : vector<1x18x12xf32> to vector<18x12xf32>
    %91 = tpu.concatenate %84, %86, %88, %90 in 1 : vector<18x12xf32>, vector<18x12xf32>, vector<18x12xf32>, vector<18x12xf32> -> vector<18x48xf32>
    %92 = arith.truncf %91 : vector<18x48xf32> to vector<18x48xbf16>
    %93 = vector.extract_strided_slice %15 {offsets = [0, 0, 0], sizes = [1, 48, 48], strides = [1, 1, 1]} : vector<2x48x48xbf16> to vector<1x48x48xbf16>
    %94 = vector.shape_cast %93 : vector<1x48x48xbf16> to vector<48x48xbf16>
    %cst_38 = arith.constant dense<0.000000e+00> : vector<18x48xf32>
    %95 = tpu.matmul %92, %94, %cst_38 {dimension_numbers = #tpu.dot_dimension_numbers<[1], [0], [0], [1], [0, 0, 1, 1], [], []>} : vector<18x48xbf16>, vector<48x48xbf16>, vector<18x48xf32> -> vector<18x48xf32>
    %96 = vector.broadcast %26 : vector<1x48xf32> to vector<18x48xf32>
    %97 = arith.addf %95, %96 : vector<18x48xf32>
    %98 = arith.addf %11, %97 : vector<18x48xf32>
    %cst_39 = arith.constant dense<0.000000e+00> : vector<18xf32>
    %99 = vector.multi_reduction <add>, %98, %cst_39 [1] : vector<18x48xf32> to vector<18xf32>
    %100 = vector.shape_cast %99 : vector<18xf32> to vector<18x1xf32>
    %101 = vector.broadcast %1 : vector<1x1xf32> to vector<18x1xf32>
    %102 = arith.mulf %100, %101 : vector<18x1xf32>
    %103 = arith.mulf %98, %98 : vector<18x48xf32>
    %cst_40 = arith.constant dense<0.000000e+00> : vector<18xf32>
    %104 = vector.multi_reduction <add>, %103, %cst_40 [1] : vector<18x48xf32> to vector<18xf32>
    %105 = vector.shape_cast %104 : vector<18xf32> to vector<18x1xf32>
    %106 = vector.broadcast %1 : vector<1x1xf32> to vector<18x1xf32>
    %107 = arith.mulf %105, %106 : vector<18x1xf32>
    %108 = arith.mulf %102, %102 : vector<18x1xf32>
    %109 = arith.subf %107, %108 : vector<18x1xf32>
    %110 = vector.broadcast %102 : vector<18x1xf32> to vector<18x48xf32>
    %111 = arith.subf %98, %110 : vector<18x48xf32>
    %cst_41 = arith.constant 9.99999974E-6 : f32
    %112 = vector.broadcast %cst_41 : f32 to vector<18x1xf32>
    %113 = arith.addf %109, %112 : vector<18x1xf32>
    %114 = math.rsqrt %113 : vector<18x1xf32>
    %115 = vector.broadcast %114 : vector<18x1xf32> to vector<18x48xf32>
    %116 = arith.mulf %111, %115 : vector<18x48xf32>
    %117 = vector.broadcast %29 : vector<1x48xf32> to vector<18x48xf32>
    %118 = arith.mulf %116, %117 : vector<18x48xf32>
    %119 = vector.broadcast %30 : vector<1x48xf32> to vector<18x48xf32>
    %120 = arith.addf %118, %119 : vector<18x48xf32>
    %121 = arith.truncf %120 : vector<18x48xf32> to vector<18x48xbf16>
    %122 = vector.extract_strided_slice %17 {offsets = [0, 0, 0], sizes = [1, 48, 192], strides = [1, 1, 1]} : vector<2x48x192xbf16> to vector<1x48x192xbf16>
    %123 = vector.shape_cast %122 : vector<1x48x192xbf16> to vector<48x192xbf16>
    %cst_42 = arith.constant dense<0.000000e+00> : vector<18x192xf32>
    %124 = tpu.matmul %121, %123, %cst_42 {dimension_numbers = #tpu.dot_dimension_numbers<[1], [0], [0], [1], [0, 0, 1, 1], [], []>} : vector<18x48xbf16>, vector<48x192xbf16>, vector<18x192xf32> -> vector<18x192xf32>
    %125 = vector.broadcast %27 : vector<1x192xf32> to vector<18x192xf32>
    %126 = arith.addf %124, %125 : vector<18x192xf32>
    %cst_43 = arith.constant 0.000000e+00 : f32
    %127 = vector.broadcast %cst_43 : f32 to vector<18x192xf32>
    %128 = arith.maximumf %126, %127 : vector<18x192xf32>
    %129 = arith.truncf %128 : vector<18x192xf32> to vector<18x192xbf16>
    %130 = vector.extract_strided_slice %19 {offsets = [0, 0, 0], sizes = [1, 192, 48], strides = [1, 1, 1]} : vector<2x192x48xbf16> to vector<1x192x48xbf16>
    %131 = vector.shape_cast %130 : vector<1x192x48xbf16> to vector<192x48xbf16>
    %cst_44 = arith.constant dense<0.000000e+00> : vector<18x48xf32>
    %132 = tpu.matmul %129, %131, %cst_44 {dimension_numbers = #tpu.dot_dimension_numbers<[1], [0], [0], [1], [0, 0, 1, 1], [], []>} : vector<18x192xbf16>, vector<192x48xbf16>, vector<18x48xf32> -> vector<18x48xf32>
    %133 = vector.broadcast %28 : vector<1x48xf32> to vector<18x48xf32>
    %134 = arith.addf %132, %133 : vector<18x48xf32>
    %135 = arith.addf %120, %134 : vector<18x48xf32>
    %cst_45 = arith.constant dense<0.000000e+00> : vector<18xf32>
    %136 = vector.multi_reduction <add>, %135, %cst_45 [1] : vector<18x48xf32> to vector<18xf32>
    %137 = vector.shape_cast %136 : vector<18xf32> to vector<18x1xf32>
    %138 = vector.broadcast %1 : vector<1x1xf32> to vector<18x1xf32>
    %139 = arith.mulf %137, %138 : vector<18x1xf32>
    %140 = arith.mulf %135, %135 : vector<18x48xf32>
    %cst_46 = arith.constant dense<0.000000e+00> : vector<18xf32>
    %141 = vector.multi_reduction <add>, %140, %cst_46 [1] : vector<18x48xf32> to vector<18xf32>
    %142 = vector.shape_cast %141 : vector<18xf32> to vector<18x1xf32>
    %143 = vector.broadcast %1 : vector<1x1xf32> to vector<18x1xf32>
    %144 = arith.mulf %142, %143 : vector<18x1xf32>
    %145 = arith.mulf %139, %139 : vector<18x1xf32>
    %146 = arith.subf %144, %145 : vector<18x1xf32>
    %147 = vector.broadcast %139 : vector<18x1xf32> to vector<18x48xf32>
    %148 = arith.subf %135, %147 : vector<18x48xf32>
    %cst_47 = arith.constant 9.99999974E-6 : f32
    %149 = vector.broadcast %cst_47 : f32 to vector<18x1xf32>
    %150 = arith.addf %146, %149 : vector<18x1xf32>
    %151 = math.rsqrt %150 : vector<18x1xf32>
    %152 = vector.broadcast %151 : vector<18x1xf32> to vector<18x48xf32>
    %153 = arith.mulf %148, %152 : vector<18x48xf32>
    %154 = vector.broadcast %31 : vector<1x48xf32> to vector<18x48xf32>
    %155 = arith.mulf %153, %154 : vector<18x48xf32>
    %156 = vector.broadcast %32 : vector<1x48xf32> to vector<18x48xf32>
    %157 = arith.addf %155, %156 : vector<18x48xf32>
    %158 = vector.extract_strided_slice %21 {offsets = [1, 0, 0], sizes = [1, 8, 192], strides = [1, 1, 1]} : vector<2x8x192xf32> to vector<1x8x192xf32>
    %159 = vector.shape_cast %158 : vector<1x8x192xf32> to vector<8x192xf32>
    %160 = vector.extract_strided_slice %159 {offsets = [0, 0], sizes = [1, 144], strides = [1, 1]} : vector<8x192xf32> to vector<1x144xf32>
    %161 = vector.extract_strided_slice %159 {offsets = [1, 0], sizes = [1, 48], strides = [1, 1]} : vector<8x192xf32> to vector<1x48xf32>
    %162 = vector.extract_strided_slice %159 {offsets = [2, 0], sizes = [1, 192], strides = [1, 1]} : vector<8x192xf32> to vector<1x192xf32>
    %163 = vector.extract_strided_slice %159 {offsets = [3, 0], sizes = [1, 48], strides = [1, 1]} : vector<8x192xf32> to vector<1x48xf32>
    %164 = vector.extract_strided_slice %159 {offsets = [4, 0], sizes = [1, 48], strides = [1, 1]} : vector<8x192xf32> to vector<1x48xf32>
    %165 = vector.extract_strided_slice %159 {offsets = [5, 0], sizes = [1, 48], strides = [1, 1]} : vector<8x192xf32> to vector<1x48xf32>
    %166 = vector.extract_strided_slice %159 {offsets = [6, 0], sizes = [1, 48], strides = [1, 1]} : vector<8x192xf32> to vector<1x48xf32>
    %167 = vector.extract_strided_slice %159 {offsets = [7, 0], sizes = [1, 48], strides = [1, 1]} : vector<8x192xf32> to vector<1x48xf32>
    %168 = arith.truncf %157 : vector<18x48xf32> to vector<18x48xbf16>
    %169 = vector.extract_strided_slice %13 {offsets = [1, 0, 0], sizes = [1, 48, 144], strides = [1, 1, 1]} : vector<2x48x144xbf16> to vector<1x48x144xbf16>
    %170 = vector.shape_cast %169 : vector<1x48x144xbf16> to vector<48x144xbf16>
    %cst_48 = arith.constant dense<0.000000e+00> : vector<18x144xf32>
    %171 = tpu.matmul %168, %170, %cst_48 {dimension_numbers = #tpu.dot_dimension_numbers<[1], [0], [0], [1], [0, 0, 1, 1], [], []>} : vector<18x48xbf16>, vector<48x144xbf16>, vector<18x144xf32> -> vector<18x144xf32>
    %172 = vector.broadcast %160 : vector<1x144xf32> to vector<18x144xf32>
    %173 = arith.addf %171, %172 : vector<18x144xf32>
    %174 = arith.truncf %173 : vector<18x144xf32> to vector<18x144xbf16>
    %175 = vector.extract_strided_slice %174 {offsets = [0, 0], sizes = [18, 12], strides = [1, 1]} : vector<18x144xbf16> to vector<18x12xbf16>
    %176 = vector.extract_strided_slice %174 {offsets = [0, 12], sizes = [18, 12], strides = [1, 1]} : vector<18x144xbf16> to vector<18x12xbf16>
    %177 = vector.extract_strided_slice %174 {offsets = [0, 24], sizes = [18, 12], strides = [1, 1]} : vector<18x144xbf16> to vector<18x12xbf16>
    %178 = vector.extract_strided_slice %174 {offsets = [0, 36], sizes = [18, 12], strides = [1, 1]} : vector<18x144xbf16> to vector<18x12xbf16>
    %179 = vector.shape_cast %175 : vector<18x12xbf16> to vector<1x18x12xbf16>
    %180 = vector.shape_cast %176 : vector<18x12xbf16> to vector<1x18x12xbf16>
    %181 = vector.shape_cast %177 : vector<18x12xbf16> to vector<1x18x12xbf16>
    %182 = vector.shape_cast %178 : vector<18x12xbf16> to vector<1x18x12xbf16>
    %183 = tpu.concatenate %179, %180, %181, %182 in 0 : vector<1x18x12xbf16>, vector<1x18x12xbf16>, vector<1x18x12xbf16>, vector<1x18x12xbf16> -> vector<4x18x12xbf16>
    %184 = vector.extract_strided_slice %174 {offsets = [0, 48], sizes = [18, 12], strides = [1, 1]} : vector<18x144xbf16> to vector<18x12xbf16>
    %185 = vector.extract_strided_slice %174 {offsets = [0, 60], sizes = [18, 12], strides = [1, 1]} : vector<18x144xbf16> to vector<18x12xbf16>
    %186 = vector.extract_strided_slice %174 {offsets = [0, 72], sizes = [18, 12], strides = [1, 1]} : vector<18x144xbf16> to vector<18x12xbf16>
    %187 = vector.extract_strided_slice %174 {offsets = [0, 84], sizes = [18, 12], strides = [1, 1]} : vector<18x144xbf16> to vector<18x12xbf16>
    %188 = vector.shape_cast %184 : vector<18x12xbf16> to vector<1x18x12xbf16>
    %189 = vector.shape_cast %185 : vector<18x12xbf16> to vector<1x18x12xbf16>
    %190 = vector.shape_cast %186 : vector<18x12xbf16> to vector<1x18x12xbf16>
    %191 = vector.shape_cast %187 : vector<18x12xbf16> to vector<1x18x12xbf16>
    %192 = tpu.concatenate %188, %189, %190, %191 in 0 : vector<1x18x12xbf16>, vector<1x18x12xbf16>, vector<1x18x12xbf16>, vector<1x18x12xbf16> -> vector<4x18x12xbf16>
    %193 = vector.extract_strided_slice %174 {offsets = [0, 96], sizes = [18, 12], strides = [1, 1]} : vector<18x144xbf16> to vector<18x12xbf16>
    %194 = vector.extract_strided_slice %174 {offsets = [0, 108], sizes = [18, 12], strides = [1, 1]} : vector<18x144xbf16> to vector<18x12xbf16>
    %195 = vector.extract_strided_slice %174 {offsets = [0, 120], sizes = [18, 12], strides = [1, 1]} : vector<18x144xbf16> to vector<18x12xbf16>
    %196 = vector.extract_strided_slice %174 {offsets = [0, 132], sizes = [18, 12], strides = [1, 1]} : vector<18x144xbf16> to vector<18x12xbf16>
    %197 = vector.shape_cast %193 : vector<18x12xbf16> to vector<1x18x12xbf16>
    %198 = vector.shape_cast %194 : vector<18x12xbf16> to vector<1x18x12xbf16>
    %199 = vector.shape_cast %195 : vector<18x12xbf16> to vector<1x18x12xbf16>
    %200 = vector.shape_cast %196 : vector<18x12xbf16> to vector<1x18x12xbf16>
    %201 = tpu.concatenate %197, %198, %199, %200 in 0 : vector<1x18x12xbf16>, vector<1x18x12xbf16>, vector<1x18x12xbf16>, vector<1x18x12xbf16> -> vector<4x18x12xbf16>
    "tpu.trace_start"() <{level = 10 : i32, message = "hmd,hnd->hmn"}> : () -> ()
    %cst_49 = arith.constant dense<0.000000e+00> : vector<4x18x18xf32>
    %202 = tpu.matmul %183, %192, %cst_49 {dimension_numbers = #tpu.dot_dimension_numbers<[2], [2], [1], [1], [0, 0, 0, 1, 1, 1], [0], [0]>} : vector<4x18x12xbf16>, vector<4x18x12xbf16>, vector<4x18x18xf32> -> vector<4x18x18xf32>
    "tpu.trace_stop"() : () -> ()
    %203 = vector.shape_cast %22 : vector<18x18xf32> to vector<1x18x18xf32>
    %204 = vector.broadcast %203 : vector<1x18x18xf32> to vector<4x18x18xf32>
    %205 = arith.addf %202, %204 : vector<4x18x18xf32>
    %cst_50 = arith.constant dense<0xFF800000> : vector<4x18xf32>
    %206 = vector.multi_reduction <maximumf>, %205, %cst_50 [2] : vector<4x18x18xf32> to vector<4x18xf32>
    %207 = vector.shape_cast %206 : vector<4x18xf32> to vector<4x18x1xf32>
    %208 = vector.broadcast %207 : vector<4x18x1xf32> to vector<4x18x18xf32>
    %209 = arith.subf %205, %208 : vector<4x18x18xf32>
    %210 = math.exp %209 : vector<4x18x18xf32>
    %cst_51 = arith.constant dense<0.000000e+00> : vector<4x18xf32>
    %211 = vector.multi_reduction <add>, %210, %cst_51 [2] : vector<4x18x18xf32> to vector<4x18xf32>
    %212 = vector.shape_cast %211 : vector<4x18xf32> to vector<4x18x1xf32>
    %213 = tpu.reciprocal %212 {approx = true} : vector<4x18x1xf32> -> vector<4x18x1xf32>
    %214 = vector.broadcast %213 : vector<4x18x1xf32> to vector<4x18x18xf32>
    %215 = arith.mulf %210, %214 : vector<4x18x18xf32>
    %216 = arith.truncf %215 : vector<4x18x18xf32> to vector<4x18x18xbf16>
    "tpu.trace_start"() <{level = 10 : i32, message = "hmn,hnd->hmd"}> : () -> ()
    %cst_52 = arith.constant dense<0.000000e+00> : vector<4x18x12xf32>
    %217 = tpu.matmul %216, %201, %cst_52 {dimension_numbers = #tpu.dot_dimension_numbers<[2], [1], [1], [2], [0, 0, 0, 1, 1, 2], [0], [0]>} : vector<4x18x18xbf16>, vector<4x18x12xbf16>, vector<4x18x12xf32> -> vector<4x18x12xf32>
    "tpu.trace_stop"() : () -> ()
    %218 = vector.extract_strided_slice %217 {offsets = [0, 0, 0], sizes = [1, 18, 12], strides = [1, 1, 1]} : vector<4x18x12xf32> to vector<1x18x12xf32>
    %219 = vector.shape_cast %218 : vector<1x18x12xf32> to vector<18x12xf32>
    %220 = vector.extract_strided_slice %217 {offsets = [1, 0, 0], sizes = [1, 18, 12], strides = [1, 1, 1]} : vector<4x18x12xf32> to vector<1x18x12xf32>
    %221 = vector.shape_cast %220 : vector<1x18x12xf32> to vector<18x12xf32>
    %222 = vector.extract_strided_slice %217 {offsets = [2, 0, 0], sizes = [1, 18, 12], strides = [1, 1, 1]} : vector<4x18x12xf32> to vector<1x18x12xf32>
    %223 = vector.shape_cast %222 : vector<1x18x12xf32> to vector<18x12xf32>
    %224 = vector.extract_strided_slice %217 {offsets = [3, 0, 0], sizes = [1, 18, 12], strides = [1, 1, 1]} : vector<4x18x12xf32> to vector<1x18x12xf32>
    %225 = vector.shape_cast %224 : vector<1x18x12xf32> to vector<18x12xf32>
    %226 = tpu.concatenate %219, %221, %223, %225 in 1 : vector<18x12xf32>, vector<18x12xf32>, vector<18x12xf32>, vector<18x12xf32> -> vector<18x48xf32>
    %227 = arith.truncf %226 : vector<18x48xf32> to vector<18x48xbf16>
    %228 = vector.extract_strided_slice %15 {offsets = [1, 0, 0], sizes = [1, 48, 48], strides = [1, 1, 1]} : vector<2x48x48xbf16> to vector<1x48x48xbf16>
    %229 = vector.shape_cast %228 : vector<1x48x48xbf16> to vector<48x48xbf16>
    %cst_53 = arith.constant dense<0.000000e+00> : vector<18x48xf32>
    %230 = tpu.matmul %227, %229, %cst_53 {dimension_numbers = #tpu.dot_dimension_numbers<[1], [0], [0], [1], [0, 0, 1, 1], [], []>} : vector<18x48xbf16>, vector<48x48xbf16>, vector<18x48xf32> -> vector<18x48xf32>
    %231 = vector.broadcast %161 : vector<1x48xf32> to vector<18x48xf32>
    %232 = arith.addf %230, %231 : vector<18x48xf32>
    %233 = arith.addf %157, %232 : vector<18x48xf32>
    %cst_54 = arith.constant dense<0.000000e+00> : vector<18xf32>
    %234 = vector.multi_reduction <add>, %233, %cst_54 [1] : vector<18x48xf32> to vector<18xf32>
    %235 = vector.shape_cast %234 : vector<18xf32> to vector<18x1xf32>
    %236 = vector.broadcast %1 : vector<1x1xf32> to vector<18x1xf32>
    %237 = arith.mulf %235, %236 : vector<18x1xf32>
    %238 = arith.mulf %233, %233 : vector<18x48xf32>
    %cst_55 = arith.constant dense<0.000000e+00> : vector<18xf32>
    %239 = vector.multi_reduction <add>, %238, %cst_55 [1] : vector<18x48xf32> to vector<18xf32>
    %240 = vector.shape_cast %239 : vector<18xf32> to vector<18x1xf32>
    %241 = vector.broadcast %1 : vector<1x1xf32> to vector<18x1xf32>
    %242 = arith.mulf %240, %241 : vector<18x1xf32>
    %243 = arith.mulf %237, %237 : vector<18x1xf32>
    %244 = arith.subf %242, %243 : vector<18x1xf32>
    %245 = vector.broadcast %237 : vector<18x1xf32> to vector<18x48xf32>
    %246 = arith.subf %233, %245 : vector<18x48xf32>
    %cst_56 = arith.constant 9.99999974E-6 : f32
    %247 = vector.broadcast %cst_56 : f32 to vector<18x1xf32>
    %248 = arith.addf %244, %247 : vector<18x1xf32>
    %249 = math.rsqrt %248 : vector<18x1xf32>
    %250 = vector.broadcast %249 : vector<18x1xf32> to vector<18x48xf32>
    %251 = arith.mulf %246, %250 : vector<18x48xf32>
    %252 = vector.broadcast %164 : vector<1x48xf32> to vector<18x48xf32>
    %253 = arith.mulf %251, %252 : vector<18x48xf32>
    %254 = vector.broadcast %165 : vector<1x48xf32> to vector<18x48xf32>
    %255 = arith.addf %253, %254 : vector<18x48xf32>
    %256 = arith.truncf %255 : vector<18x48xf32> to vector<18x48xbf16>
    %257 = vector.extract_strided_slice %17 {offsets = [1, 0, 0], sizes = [1, 48, 192], strides = [1, 1, 1]} : vector<2x48x192xbf16> to vector<1x48x192xbf16>
    %258 = vector.shape_cast %257 : vector<1x48x192xbf16> to vector<48x192xbf16>
    %cst_57 = arith.constant dense<0.000000e+00> : vector<18x192xf32>
    %259 = tpu.matmul %256, %258, %cst_57 {dimension_numbers = #tpu.dot_dimension_numbers<[1], [0], [0], [1], [0, 0, 1, 1], [], []>} : vector<18x48xbf16>, vector<48x192xbf16>, vector<18x192xf32> -> vector<18x192xf32>
    %260 = vector.broadcast %162 : vector<1x192xf32> to vector<18x192xf32>
    %261 = arith.addf %259, %260 : vector<18x192xf32>
    %cst_58 = arith.constant 0.000000e+00 : f32
    %262 = vector.broadcast %cst_58 : f32 to vector<18x192xf32>
    %263 = arith.maximumf %261, %262 : vector<18x192xf32>
    %264 = arith.truncf %263 : vector<18x192xf32> to vector<18x192xbf16>
    %265 = vector.extract_strided_slice %19 {offsets = [1, 0, 0], sizes = [1, 192, 48], strides = [1, 1, 1]} : vector<2x192x48xbf16> to vector<1x192x48xbf16>
    %266 = vector.shape_cast %265 : vector<1x192x48xbf16> to vector<192x48xbf16>
    %cst_59 = arith.constant dense<0.000000e+00> : vector<18x48xf32>
    %267 = tpu.matmul %264, %266, %cst_59 {dimension_numbers = #tpu.dot_dimension_numbers<[1], [0], [0], [1], [0, 0, 1, 1], [], []>} : vector<18x192xbf16>, vector<192x48xbf16>, vector<18x48xf32> -> vector<18x48xf32>
    %268 = vector.broadcast %163 : vector<1x48xf32> to vector<18x48xf32>
    %269 = arith.addf %267, %268 : vector<18x48xf32>
    %270 = arith.addf %255, %269 : vector<18x48xf32>
    %cst_60 = arith.constant dense<0.000000e+00> : vector<18xf32>
    %271 = vector.multi_reduction <add>, %270, %cst_60 [1] : vector<18x48xf32> to vector<18xf32>
    %272 = vector.shape_cast %271 : vector<18xf32> to vector<18x1xf32>
    %273 = vector.broadcast %1 : vector<1x1xf32> to vector<18x1xf32>
    %274 = arith.mulf %272, %273 : vector<18x1xf32>
    %275 = arith.mulf %270, %270 : vector<18x48xf32>
    %cst_61 = arith.constant dense<0.000000e+00> : vector<18xf32>
    %276 = vector.multi_reduction <add>, %275, %cst_61 [1] : vector<18x48xf32> to vector<18xf32>
    %277 = vector.shape_cast %276 : vector<18xf32> to vector<18x1xf32>
    %278 = vector.broadcast %1 : vector<1x1xf32> to vector<18x1xf32>
    %279 = arith.mulf %277, %278 : vector<18x1xf32>
    %280 = arith.mulf %274, %274 : vector<18x1xf32>
    %281 = arith.subf %279, %280 : vector<18x1xf32>
    %282 = vector.broadcast %274 : vector<18x1xf32> to vector<18x48xf32>
    %283 = arith.subf %270, %282 : vector<18x48xf32>
    %cst_62 = arith.constant 9.99999974E-6 : f32
    %284 = vector.broadcast %cst_62 : f32 to vector<18x1xf32>
    %285 = arith.addf %281, %284 : vector<18x1xf32>
    %286 = math.rsqrt %285 : vector<18x1xf32>
    %287 = vector.broadcast %286 : vector<18x1xf32> to vector<18x48xf32>
    %288 = arith.mulf %283, %287 : vector<18x48xf32>
    %289 = vector.broadcast %166 : vector<1x48xf32> to vector<18x48xf32>
    %290 = arith.mulf %288, %289 : vector<18x48xf32>
    %291 = vector.broadcast %167 : vector<1x48xf32> to vector<18x48xf32>
    %292 = arith.addf %290, %291 : vector<18x48xf32>
    %293 = arith.truncf %292 : vector<18x48xf32> to vector<18x48xbf16>
    %c0_63 = arith.constant 0 : index
    %c0_64 = arith.constant 0 : index
    %c0_65 = arith.constant 0 : index
    %294 = vector.load %arg11[%c0_63, %c0_64, %c0_65] : memref<1x48x32xbf16, #tpu.memory_space<vmem>>, vector<1x48x32xbf16>
    %295 = vector.shape_cast %294 : vector<1x48x32xbf16> to vector<48x32xbf16>
    %cst_66 = arith.constant dense<0.000000e+00> : vector<18x32xf32>
    %296 = tpu.matmul %293, %295, %cst_66 {dimension_numbers = #tpu.dot_dimension_numbers<[1], [0], [0], [1], [0, 0, 1, 1], [], []>} : vector<18x48xbf16>, vector<48x32xbf16>, vector<18x32xf32> -> vector<18x32xf32>
    %c0_67 = arith.constant 0 : index
    %c0_68 = arith.constant 0 : index
    %c0_69 = arith.constant 0 : index
    %297 = vector.load %arg12[%c0_67, %c0_68, %c0_69] : memref<1x1x32xf32, #tpu.memory_space<vmem>>, vector<1x1x32xf32>
    %298 = vector.shape_cast %297 : vector<1x1x32xf32> to vector<1x32xf32>
    %299 = vector.broadcast %298 : vector<1x32xf32> to vector<18x32xf32>
    %300 = arith.addf %296, %299 : vector<18x32xf32>
    %c0_70 = arith.constant 0 : index
    %c0_71 = arith.constant 0 : index
    %c0_72 = arith.constant 0 : index
    %301 = vector.load %arg13[%c0_70, %c0_71, %c0_72] : memref<1x18x32xf32, #tpu.memory_space<vmem>>, vector<1x18x32xf32>
    %302 = vector.shape_cast %301 : vector<1x18x32xf32> to vector<18x32xf32>
    %303 = vector.shape_cast %300 : vector<18x32xf32> to vector<1x18x32xf32>
    tpu.vector_store %arg13[%c0_70, %c0_71, %c0_72], %303 {strides = array<i32>} : memref<1x18x32xf32, #tpu.memory_space<vmem>>, vector<1x18x32xf32>,
    return
  }
  func.func @transform_0(%arg0: i32) -> (i32, i32, i32) {
    %c0_i32 = arith.constant 0 : i32
    %c0_i32_0 = arith.constant 0 : i32
    %c0_i32_1 = arith.constant 0 : i32
    return %arg0, %c0_i32, %c0_i32_0 : i32, i32, i32
  }
  func.func @transform_1(%arg0: i32) -> (i32, i32) {
    %c0_i32 = arith.constant 0 : i32
    %c0_i32_0 = arith.constant 0 : i32
    %c0_i32_1 = arith.constant 0 : i32
    return %c0_i32, %c0_i32_0 : i32, i32
  }
  func.func @transform_2(%arg0: i32) -> (i32, i32, i32) {
    %c0_i32 = arith.constant 0 : i32
    %c0_i32_0 = arith.constant 0 : i32
    %c0_i32_1 = arith.constant 0 : i32
    return %arg0, %c0_i32, %c0_i32_0 : i32, i32, i32
  }
  func.func @transform_3(%arg0: i32) -> (i32, i32, i32) {
    %c0_i32 = arith.constant 0 : i32
    %c0_i32_0 = arith.constant 0 : i32
    %c0_i32_1 = arith.constant 0 : i32
    return %arg0, %c0_i32, %c0_i32_0 : i32, i32, i32
  }
  func.func @transform_4(%arg0: i32) -> (i32, i32, i32) {
    %c0_i32 = arith.constant 0 : i32
    %c0_i32_0 = arith.constant 0 : i32
    %c0_i32_1 = arith.constant 0 : i32
    return %arg0, %c0_i32, %c0_i32_0 : i32, i32, i32
  }
  func.func @transform_5(%arg0: i32) -> (i32, i32, i32, i32) {
    %c0_i32 = arith.constant 0 : i32
    %c0_i32_0 = arith.constant 0 : i32
    %c0_i32_1 = arith.constant 0 : i32
    %c0_i32_2 = arith.constant 0 : i32
    return %arg0, %c0_i32, %c0_i32_0, %c0_i32_1 : i32, i32, i32, i32
  }
  func.func @transform_6(%arg0: i32) -> (i32, i32, i32, i32) {
    %c0_i32 = arith.constant 0 : i32
    %c0_i32_0 = arith.constant 0 : i32
    %c0_i32_1 = arith.constant 0 : i32
    %c0_i32_2 = arith.constant 0 : i32
    return %arg0, %c0_i32, %c0_i32_0, %c0_i32_1 : i32, i32, i32, i32
  }
  func.func @transform_7(%arg0: i32) -> (i32, i32, i32, i32) {
    %c0_i32 = arith.constant 0 : i32
    %c0_i32_0 = arith.constant 0 : i32
    %c0_i32_1 = arith.constant 0 : i32
    %c0_i32_2 = arith.constant 0 : i32
    return %arg0, %c0_i32, %c0_i32_0, %c0_i32_1 : i32, i32, i32, i32
  }
  func.func @transform_8(%arg0: i32) -> (i32, i32, i32, i32) {
    %c0_i32 = arith.constant 0 : i32
    %c0_i32_0 = arith.constant 0 : i32
    %c0_i32_1 = arith.constant 0 : i32
    %c0_i32_2 = arith.constant 0 : i32
    return %arg0, %c0_i32, %c0_i32_0, %c0_i32_1 : i32, i32, i32, i32
  }
  func.func @transform_9(%arg0: i32) -> (i32, i32, i32, i32) {
    %c0_i32 = arith.constant 0 : i32
    %c0_i32_0 = arith.constant 0 : i32
    %c0_i32_1 = arith.constant 0 : i32
    %c0_i32_2 = arith.constant 0 : i32
    return %arg0, %c0_i32, %c0_i32_0, %c0_i32_1 : i32, i32, i32, i32
  }
  func.func @transform_10(%arg0: i32) -> (i32, i32, i32) {
    %c0_i32 = arith.constant 0 : i32
    %c0_i32_0 = arith.constant 0 : i32
    %c0_i32_1 = arith.constant 0 : i32
    return %arg0, %c0_i32, %c0_i32_0 : i32, i32, i32
  }
  func.func @transform_11(%arg0: i32) -> (i32, i32, i32) {
    %c0_i32 = arith.constant 0 : i32
    %c0_i32_0 = arith.constant 0 : i32
    %c0_i32_1 = arith.constant 0 : i32
    return %arg0, %c0_i32, %c0_i32_0 : i32, i32, i32
  }
  func.func @transform_12(%arg0: i32) -> (i32, i32, i32) {
    %c0_i32 = arith.constant 0 : i32
    %c0_i32_0 = arith.constant 0 : i32
    %c0_i32_1 = arith.constant 0 : i32
    return %arg0, %c0_i32, %c0_i32_0 : i32, i32, i32
  }
}

module attributes {stable_mosaic.version = 11 : i64} {
  func.func @_fusion_heads_kernel(%arg0: i32, %arg1: memref<50x32xf32, #tpu.memory_space<vmem>>, %arg2: memref<50x50xf32, #tpu.memory_space<vmem>>, %arg3: memref<25x32xf32, #tpu.memory_space<vmem>>, %arg4: memref<2x32x96xbf16, #tpu.memory_space<vmem>>, %arg5: memref<2x32x32xbf16, #tpu.memory_space<vmem>>, %arg6: memref<2x32x128xbf16, #tpu.memory_space<vmem>>, %arg7: memref<2x128x32xbf16, #tpu.memory_space<vmem>>, %arg8: memref<2x8x128xf32, #tpu.memory_space<vmem>>, %arg9: memref<3x2x32xf32, #tpu.memory_space<vmem>>, %arg10: memref<3x32x16xbf16, #tpu.memory_space<vmem>>, %arg11: memref<3x1x16xf32, #tpu.memory_space<vmem>>, %arg12: memref<3x16x16xbf16, #tpu.memory_space<vmem>>, %arg13: memref<3x1x16xf32, #tpu.memory_space<vmem>>, %arg14: memref<3x16x1xbf16, #tpu.memory_space<vmem>>, %arg15: memref<3x1x1xf32, #tpu.memory_space<vmem>>, %arg16: memref<32x1xbf16, #tpu.memory_space<vmem>>, %arg17: memref<1x1xf32, #tpu.memory_space<vmem>>, %arg18: memref<50x32xf32, #tpu.memory_space<vmem>>, %arg19: memref<2x4xf32, #tpu.memory_space<vmem>>) attributes {dimension_semantics = [#tpu.dimension_semantics<arbitrary>], iteration_bounds = array<i64: 1>, scalar_prefetch = 0 : i64, scratch_operands = 0 : i64, tpu.core_type = #tpu.core_type<tc>, window_params = [{pipeline_mode = #tpu.pipeline_mode<synchronous>, transform_indices = @transform_0, window_bounds = array<i64: 50, 32>}, {pipeline_mode = #tpu.pipeline_mode<synchronous>, transform_indices = @transform_1, window_bounds = array<i64: 50, 50>}, {pipeline_mode = #tpu.pipeline_mode<synchronous>, transform_indices = @transform_2, window_bounds = array<i64: 25, 32>}, {pipeline_mode = #tpu.pipeline_mode<synchronous>, transform_indices = @transform_3, window_bounds = array<i64: 2, 32, 96>}, {pipeline_mode = #tpu.pipeline_mode<synchronous>, transform_indices = @transform_4, window_bounds = array<i64: 2, 32, 32>}, {pipeline_mode = #tpu.pipeline_mode<synchronous>, transform_indices = @transform_5, window_bounds = array<i64: 2, 32, 128>}, {pipeline_mode = #tpu.pipeline_mode<synchronous>, transform_indices = @transform_6, window_bounds = array<i64: 2, 128, 32>}, {pipeline_mode = #tpu.pipeline_mode<synchronous>, transform_indices = @transform_7, window_bounds = array<i64: 2, 8, 128>}, {pipeline_mode = #tpu.pipeline_mode<synchronous>, transform_indices = @transform_8, window_bounds = array<i64: 3, 2, 32>}, {pipeline_mode = #tpu.pipeline_mode<synchronous>, transform_indices = @transform_9, window_bounds = array<i64: 3, 32, 16>}, {pipeline_mode = #tpu.pipeline_mode<synchronous>, transform_indices = @transform_10, window_bounds = array<i64: 3, 1, 16>}, {pipeline_mode = #tpu.pipeline_mode<synchronous>, transform_indices = @transform_11, window_bounds = array<i64: 3, 16, 16>}, {pipeline_mode = #tpu.pipeline_mode<synchronous>, transform_indices = @transform_12, window_bounds = array<i64: 3, 1, 16>}, {pipeline_mode = #tpu.pipeline_mode<synchronous>, transform_indices = @transform_13, window_bounds = array<i64: 3, 16, 1>}, {pipeline_mode = #tpu.pipeline_mode<synchronous>, transform_indices = @transform_14, window_bounds = array<i64: 3, 1, 1>}, {pipeline_mode = #tpu.pipeline_mode<synchronous>, transform_indices = @transform_15, window_bounds = array<i64: 32, 1>}, {pipeline_mode = #tpu.pipeline_mode<synchronous>, transform_indices = @transform_16, window_bounds = array<i64: 1, 1>}, {pipeline_mode = #tpu.pipeline_mode<synchronous>, transform_indices = @transform_17, window_bounds = array<i64: 50, 32>}, {pipeline_mode = #tpu.pipeline_mode<synchronous>, transform_indices = @transform_18, window_bounds = array<i64: 2, 4>}]} {
    %c0 = arith.constant 0 : index
    %c0_0 = arith.constant 0 : index
    %0 = vector.load %arg1[%c0, %c0_0] : memref<50x32xf32, #tpu.memory_space<vmem>>, vector<50x32xf32>
    %c0_1 = arith.constant 0 : index
    %c0_2 = arith.constant 0 : index
    %1 = vector.load %arg3[%c0_1, %c0_2] : memref<25x32xf32, #tpu.memory_space<vmem>>, vector<25x32xf32>
    %2 = tpu.concatenate %1, %1 in 0 : vector<25x32xf32>, vector<25x32xf32> -> vector<50x32xf32>
    %3 = arith.addf %0, %2 : vector<50x32xf32>
    %c0_3 = arith.constant 0 : index
    %c0_4 = arith.constant 0 : index
    %c0_5 = arith.constant 0 : index
    %4 = vector.load %arg4[%c0_3, %c0_4, %c0_5] : memref<2x32x96xbf16, #tpu.memory_space<vmem>>, vector<2x32x96xbf16>
    %c0_6 = arith.constant 0 : index
    %c0_7 = arith.constant 0 : index
    %c0_8 = arith.constant 0 : index
    %5 = vector.load %arg5[%c0_6, %c0_7, %c0_8] : memref<2x32x32xbf16, #tpu.memory_space<vmem>>, vector<2x32x32xbf16>
    %c0_9 = arith.constant 0 : index
    %c0_10 = arith.constant 0 : index
    %c0_11 = arith.constant 0 : index
    %6 = vector.load %arg6[%c0_9, %c0_10, %c0_11] : memref<2x32x128xbf16, #tpu.memory_space<vmem>>, vector<2x32x128xbf16>
    %c0_12 = arith.constant 0 : index
    %c0_13 = arith.constant 0 : index
    %c0_14 = arith.constant 0 : index
    %7 = vector.load %arg7[%c0_12, %c0_13, %c0_14] : memref<2x128x32xbf16, #tpu.memory_space<vmem>>, vector<2x128x32xbf16>
    %c0_15 = arith.constant 0 : index
    %c0_16 = arith.constant 0 : index
    %c0_17 = arith.constant 0 : index
    %8 = vector.load %arg8[%c0_15, %c0_16, %c0_17] : memref<2x8x128xf32, #tpu.memory_space<vmem>>, vector<2x8x128xf32>
    %c0_18 = arith.constant 0 : index
    %c0_19 = arith.constant 0 : index
    %9 = vector.load %arg2[%c0_18, %c0_19] : memref<50x50xf32, #tpu.memory_space<vmem>>, vector<50x50xf32>
    %10 = vector.extract_strided_slice %8 {offsets = [0, 0, 0], sizes = [1, 8, 128], strides = [1, 1, 1]} : vector<2x8x128xf32> to vector<1x8x128xf32>
    %11 = vector.shape_cast %10 : vector<1x8x128xf32> to vector<8x128xf32>
    %12 = vector.extract_strided_slice %11 {offsets = [0, 0], sizes = [1, 96], strides = [1, 1]} : vector<8x128xf32> to vector<1x96xf32>
    %13 = vector.extract_strided_slice %11 {offsets = [1, 0], sizes = [1, 32], strides = [1, 1]} : vector<8x128xf32> to vector<1x32xf32>
    %14 = vector.extract_strided_slice %11 {offsets = [2, 0], sizes = [1, 128], strides = [1, 1]} : vector<8x128xf32> to vector<1x128xf32>
    %15 = vector.extract_strided_slice %11 {offsets = [3, 0], sizes = [1, 32], strides = [1, 1]} : vector<8x128xf32> to vector<1x32xf32>
    %16 = vector.extract_strided_slice %11 {offsets = [4, 0], sizes = [1, 32], strides = [1, 1]} : vector<8x128xf32> to vector<1x32xf32>
    %17 = vector.extract_strided_slice %11 {offsets = [5, 0], sizes = [1, 32], strides = [1, 1]} : vector<8x128xf32> to vector<1x32xf32>
    %18 = vector.extract_strided_slice %11 {offsets = [6, 0], sizes = [1, 32], strides = [1, 1]} : vector<8x128xf32> to vector<1x32xf32>
    %19 = vector.extract_strided_slice %11 {offsets = [7, 0], sizes = [1, 32], strides = [1, 1]} : vector<8x128xf32> to vector<1x32xf32>
    %20 = arith.truncf %3 : vector<50x32xf32> to vector<50x32xbf16>
    %21 = vector.extract_strided_slice %4 {offsets = [0, 0, 0], sizes = [1, 32, 96], strides = [1, 1, 1]} : vector<2x32x96xbf16> to vector<1x32x96xbf16>
    %22 = vector.shape_cast %21 : vector<1x32x96xbf16> to vector<32x96xbf16>
    %cst = arith.constant dense<0.000000e+00> : vector<50x96xf32>
    %23 = tpu.matmul %20, %22, %cst {dimension_numbers = #tpu.dot_dimension_numbers<[1], [0], [0], [1], [0, 0, 1, 1], [], []>} : vector<50x32xbf16>, vector<32x96xbf16>, vector<50x96xf32> -> vector<50x96xf32>
    %24 = vector.broadcast %12 : vector<1x96xf32> to vector<50x96xf32>
    %25 = arith.addf %23, %24 : vector<50x96xf32>
    %26 = arith.truncf %25 : vector<50x96xf32> to vector<50x96xbf16>
    %27 = vector.extract_strided_slice %26 {offsets = [0, 0], sizes = [50, 8], strides = [1, 1]} : vector<50x96xbf16> to vector<50x8xbf16>
    %28 = vector.extract_strided_slice %26 {offsets = [0, 8], sizes = [50, 8], strides = [1, 1]} : vector<50x96xbf16> to vector<50x8xbf16>
    %29 = vector.extract_strided_slice %26 {offsets = [0, 16], sizes = [50, 8], strides = [1, 1]} : vector<50x96xbf16> to vector<50x8xbf16>
    %30 = vector.extract_strided_slice %26 {offsets = [0, 24], sizes = [50, 8], strides = [1, 1]} : vector<50x96xbf16> to vector<50x8xbf16>
    %31 = vector.shape_cast %27 : vector<50x8xbf16> to vector<1x50x8xbf16>
    %32 = vector.shape_cast %28 : vector<50x8xbf16> to vector<1x50x8xbf16>
    %33 = vector.shape_cast %29 : vector<50x8xbf16> to vector<1x50x8xbf16>
    %34 = vector.shape_cast %30 : vector<50x8xbf16> to vector<1x50x8xbf16>
    %35 = tpu.concatenate %31, %32, %33, %34 in 0 : vector<1x50x8xbf16>, vector<1x50x8xbf16>, vector<1x50x8xbf16>, vector<1x50x8xbf16> -> vector<4x50x8xbf16>
    %36 = vector.extract_strided_slice %26 {offsets = [0, 32], sizes = [50, 8], strides = [1, 1]} : vector<50x96xbf16> to vector<50x8xbf16>
    %37 = vector.extract_strided_slice %26 {offsets = [0, 40], sizes = [50, 8], strides = [1, 1]} : vector<50x96xbf16> to vector<50x8xbf16>
    %38 = vector.extract_strided_slice %26 {offsets = [0, 48], sizes = [50, 8], strides = [1, 1]} : vector<50x96xbf16> to vector<50x8xbf16>
    %39 = vector.extract_strided_slice %26 {offsets = [0, 56], sizes = [50, 8], strides = [1, 1]} : vector<50x96xbf16> to vector<50x8xbf16>
    %40 = vector.shape_cast %36 : vector<50x8xbf16> to vector<1x50x8xbf16>
    %41 = vector.shape_cast %37 : vector<50x8xbf16> to vector<1x50x8xbf16>
    %42 = vector.shape_cast %38 : vector<50x8xbf16> to vector<1x50x8xbf16>
    %43 = vector.shape_cast %39 : vector<50x8xbf16> to vector<1x50x8xbf16>
    %44 = tpu.concatenate %40, %41, %42, %43 in 0 : vector<1x50x8xbf16>, vector<1x50x8xbf16>, vector<1x50x8xbf16>, vector<1x50x8xbf16> -> vector<4x50x8xbf16>
    %45 = vector.extract_strided_slice %26 {offsets = [0, 64], sizes = [50, 8], strides = [1, 1]} : vector<50x96xbf16> to vector<50x8xbf16>
    %46 = vector.extract_strided_slice %26 {offsets = [0, 72], sizes = [50, 8], strides = [1, 1]} : vector<50x96xbf16> to vector<50x8xbf16>
    %47 = vector.extract_strided_slice %26 {offsets = [0, 80], sizes = [50, 8], strides = [1, 1]} : vector<50x96xbf16> to vector<50x8xbf16>
    %48 = vector.extract_strided_slice %26 {offsets = [0, 88], sizes = [50, 8], strides = [1, 1]} : vector<50x96xbf16> to vector<50x8xbf16>
    %49 = vector.shape_cast %45 : vector<50x8xbf16> to vector<1x50x8xbf16>
    %50 = vector.shape_cast %46 : vector<50x8xbf16> to vector<1x50x8xbf16>
    %51 = vector.shape_cast %47 : vector<50x8xbf16> to vector<1x50x8xbf16>
    %52 = vector.shape_cast %48 : vector<50x8xbf16> to vector<1x50x8xbf16>
    %53 = tpu.concatenate %49, %50, %51, %52 in 0 : vector<1x50x8xbf16>, vector<1x50x8xbf16>, vector<1x50x8xbf16>, vector<1x50x8xbf16> -> vector<4x50x8xbf16>
    "tpu.trace_start"() <{level = 10 : i32, message = "hmd,hnd->hmn"}> : () -> ()
    %cst_20 = arith.constant dense<0.000000e+00> : vector<4x50x50xf32>
    %54 = tpu.matmul %35, %44, %cst_20 {dimension_numbers = #tpu.dot_dimension_numbers<[2], [2], [1], [1], [0, 0, 0, 1, 1, 1], [0], [0]>} : vector<4x50x8xbf16>, vector<4x50x8xbf16>, vector<4x50x50xf32> -> vector<4x50x50xf32>
    "tpu.trace_stop"() : () -> ()
    %55 = vector.shape_cast %9 : vector<50x50xf32> to vector<1x50x50xf32>
    %56 = vector.broadcast %55 : vector<1x50x50xf32> to vector<4x50x50xf32>
    %57 = arith.addf %54, %56 : vector<4x50x50xf32>
    %cst_21 = arith.constant dense<0xFF800000> : vector<4x50xf32>
    %58 = vector.multi_reduction <maximumf>, %57, %cst_21 [2] : vector<4x50x50xf32> to vector<4x50xf32>
    %59 = vector.shape_cast %58 : vector<4x50xf32> to vector<4x50x1xf32>
    %60 = vector.broadcast %59 : vector<4x50x1xf32> to vector<4x50x50xf32>
    %61 = arith.subf %57, %60 : vector<4x50x50xf32>
    %62 = math.exp %61 : vector<4x50x50xf32>
    %cst_22 = arith.constant dense<0.000000e+00> : vector<4x50xf32>
    %63 = vector.multi_reduction <add>, %62, %cst_22 [2] : vector<4x50x50xf32> to vector<4x50xf32>
    %64 = vector.shape_cast %63 : vector<4x50xf32> to vector<4x50x1xf32>
    %65 = tpu.reciprocal %64 {approx = true} : vector<4x50x1xf32> -> vector<4x50x1xf32>
    %66 = vector.broadcast %65 : vector<4x50x1xf32> to vector<4x50x50xf32>
    %67 = arith.mulf %62, %66 : vector<4x50x50xf32>
    %68 = arith.truncf %67 : vector<4x50x50xf32> to vector<4x50x50xbf16>
    "tpu.trace_start"() <{level = 10 : i32, message = "hmn,hnd->hmd"}> : () -> ()
    %cst_23 = arith.constant dense<0.000000e+00> : vector<4x50x8xf32>
    %69 = tpu.matmul %68, %53, %cst_23 {dimension_numbers = #tpu.dot_dimension_numbers<[2], [1], [1], [2], [0, 0, 0, 1, 1, 2], [0], [0]>} : vector<4x50x50xbf16>, vector<4x50x8xbf16>, vector<4x50x8xf32> -> vector<4x50x8xf32>
    "tpu.trace_stop"() : () -> ()
    %70 = vector.extract_strided_slice %69 {offsets = [0, 0, 0], sizes = [1, 50, 8], strides = [1, 1, 1]} : vector<4x50x8xf32> to vector<1x50x8xf32>
    %71 = vector.shape_cast %70 : vector<1x50x8xf32> to vector<50x8xf32>
    %72 = vector.extract_strided_slice %69 {offsets = [1, 0, 0], sizes = [1, 50, 8], strides = [1, 1, 1]} : vector<4x50x8xf32> to vector<1x50x8xf32>
    %73 = vector.shape_cast %72 : vector<1x50x8xf32> to vector<50x8xf32>
    %74 = vector.extract_strided_slice %69 {offsets = [2, 0, 0], sizes = [1, 50, 8], strides = [1, 1, 1]} : vector<4x50x8xf32> to vector<1x50x8xf32>
    %75 = vector.shape_cast %74 : vector<1x50x8xf32> to vector<50x8xf32>
    %76 = vector.extract_strided_slice %69 {offsets = [3, 0, 0], sizes = [1, 50, 8], strides = [1, 1, 1]} : vector<4x50x8xf32> to vector<1x50x8xf32>
    %77 = vector.shape_cast %76 : vector<1x50x8xf32> to vector<50x8xf32>
    %78 = tpu.concatenate %71, %73, %75, %77 in 1 : vector<50x8xf32>, vector<50x8xf32>, vector<50x8xf32>, vector<50x8xf32> -> vector<50x32xf32>
    %79 = arith.truncf %78 : vector<50x32xf32> to vector<50x32xbf16>
    %80 = vector.extract_strided_slice %5 {offsets = [0, 0, 0], sizes = [1, 32, 32], strides = [1, 1, 1]} : vector<2x32x32xbf16> to vector<1x32x32xbf16>
    %81 = vector.shape_cast %80 : vector<1x32x32xbf16> to vector<32x32xbf16>
    %cst_24 = arith.constant dense<0.000000e+00> : vector<50x32xf32>
    %82 = tpu.matmul %79, %81, %cst_24 {dimension_numbers = #tpu.dot_dimension_numbers<[1], [0], [0], [1], [0, 0, 1, 1], [], []>} : vector<50x32xbf16>, vector<32x32xbf16>, vector<50x32xf32> -> vector<50x32xf32>
    %83 = vector.broadcast %13 : vector<1x32xf32> to vector<50x32xf32>
    %84 = arith.addf %82, %83 : vector<50x32xf32>
    %85 = arith.addf %3, %84 : vector<50x32xf32>
    %cst_25 = arith.constant dense<0.000000e+00> : vector<50xf32>
    %86 = vector.multi_reduction <add>, %85, %cst_25 [1] : vector<50x32xf32> to vector<50xf32>
    %87 = vector.shape_cast %86 : vector<50xf32> to vector<50x1xf32>
    %cst_26 = arith.constant 3.125000e-02 : f32
    %88 = vector.broadcast %cst_26 : f32 to vector<50x1xf32>
    %89 = arith.mulf %87, %88 : vector<50x1xf32>
    %90 = arith.mulf %85, %85 : vector<50x32xf32>
    %cst_27 = arith.constant dense<0.000000e+00> : vector<50xf32>
    %91 = vector.multi_reduction <add>, %90, %cst_27 [1] : vector<50x32xf32> to vector<50xf32>
    %92 = vector.shape_cast %91 : vector<50xf32> to vector<50x1xf32>
    %cst_28 = arith.constant 3.125000e-02 : f32
    %93 = vector.broadcast %cst_28 : f32 to vector<50x1xf32>
    %94 = arith.mulf %92, %93 : vector<50x1xf32>
    %95 = arith.mulf %89, %89 : vector<50x1xf32>
    %96 = arith.subf %94, %95 : vector<50x1xf32>
    %97 = vector.broadcast %89 : vector<50x1xf32> to vector<50x32xf32>
    %98 = arith.subf %85, %97 : vector<50x32xf32>
    %cst_29 = arith.constant 9.99999974E-6 : f32
    %99 = vector.broadcast %cst_29 : f32 to vector<50x1xf32>
    %100 = arith.addf %96, %99 : vector<50x1xf32>
    %101 = math.rsqrt %100 : vector<50x1xf32>
    %102 = vector.broadcast %101 : vector<50x1xf32> to vector<50x32xf32>
    %103 = arith.mulf %98, %102 : vector<50x32xf32>
    %104 = vector.broadcast %16 : vector<1x32xf32> to vector<50x32xf32>
    %105 = arith.mulf %103, %104 : vector<50x32xf32>
    %106 = vector.broadcast %17 : vector<1x32xf32> to vector<50x32xf32>
    %107 = arith.addf %105, %106 : vector<50x32xf32>
    %108 = arith.truncf %107 : vector<50x32xf32> to vector<50x32xbf16>
    %109 = vector.extract_strided_slice %6 {offsets = [0, 0, 0], sizes = [1, 32, 128], strides = [1, 1, 1]} : vector<2x32x128xbf16> to vector<1x32x128xbf16>
    %110 = vector.shape_cast %109 : vector<1x32x128xbf16> to vector<32x128xbf16>
    %cst_30 = arith.constant dense<0.000000e+00> : vector<50x128xf32>
    %111 = tpu.matmul %108, %110, %cst_30 {dimension_numbers = #tpu.dot_dimension_numbers<[1], [0], [0], [1], [0, 0, 1, 1], [], []>} : vector<50x32xbf16>, vector<32x128xbf16>, vector<50x128xf32> -> vector<50x128xf32>
    %112 = vector.broadcast %14 : vector<1x128xf32> to vector<50x128xf32>
    %113 = arith.addf %111, %112 : vector<50x128xf32>
    %cst_31 = arith.constant 0.000000e+00 : f32
    %114 = vector.broadcast %cst_31 : f32 to vector<50x128xf32>
    %115 = arith.maximumf %113, %114 : vector<50x128xf32>
    %116 = arith.truncf %115 : vector<50x128xf32> to vector<50x128xbf16>
    %117 = vector.extract_strided_slice %7 {offsets = [0, 0, 0], sizes = [1, 128, 32], strides = [1, 1, 1]} : vector<2x128x32xbf16> to vector<1x128x32xbf16>
    %118 = vector.shape_cast %117 : vector<1x128x32xbf16> to vector<128x32xbf16>
    %cst_32 = arith.constant dense<0.000000e+00> : vector<50x32xf32>
    %119 = tpu.matmul %116, %118, %cst_32 {dimension_numbers = #tpu.dot_dimension_numbers<[1], [0], [0], [1], [0, 0, 1, 1], [], []>} : vector<50x128xbf16>, vector<128x32xbf16>, vector<50x32xf32> -> vector<50x32xf32>
    %120 = vector.broadcast %15 : vector<1x32xf32> to vector<50x32xf32>
    %121 = arith.addf %119, %120 : vector<50x32xf32>
    %122 = arith.addf %107, %121 : vector<50x32xf32>
    %cst_33 = arith.constant dense<0.000000e+00> : vector<50xf32>
    %123 = vector.multi_reduction <add>, %122, %cst_33 [1] : vector<50x32xf32> to vector<50xf32>
    %124 = vector.shape_cast %123 : vector<50xf32> to vector<50x1xf32>
    %cst_34 = arith.constant 3.125000e-02 : f32
    %125 = vector.broadcast %cst_34 : f32 to vector<50x1xf32>
    %126 = arith.mulf %124, %125 : vector<50x1xf32>
    %127 = arith.mulf %122, %122 : vector<50x32xf32>
    %cst_35 = arith.constant dense<0.000000e+00> : vector<50xf32>
    %128 = vector.multi_reduction <add>, %127, %cst_35 [1] : vector<50x32xf32> to vector<50xf32>
    %129 = vector.shape_cast %128 : vector<50xf32> to vector<50x1xf32>
    %cst_36 = arith.constant 3.125000e-02 : f32
    %130 = vector.broadcast %cst_36 : f32 to vector<50x1xf32>
    %131 = arith.mulf %129, %130 : vector<50x1xf32>
    %132 = arith.mulf %126, %126 : vector<50x1xf32>
    %133 = arith.subf %131, %132 : vector<50x1xf32>
    %134 = vector.broadcast %126 : vector<50x1xf32> to vector<50x32xf32>
    %135 = arith.subf %122, %134 : vector<50x32xf32>
    %cst_37 = arith.constant 9.99999974E-6 : f32
    %136 = vector.broadcast %cst_37 : f32 to vector<50x1xf32>
    %137 = arith.addf %133, %136 : vector<50x1xf32>
    %138 = math.rsqrt %137 : vector<50x1xf32>
    %139 = vector.broadcast %138 : vector<50x1xf32> to vector<50x32xf32>
    %140 = arith.mulf %135, %139 : vector<50x32xf32>
    %141 = vector.broadcast %18 : vector<1x32xf32> to vector<50x32xf32>
    %142 = arith.mulf %140, %141 : vector<50x32xf32>
    %143 = vector.broadcast %19 : vector<1x32xf32> to vector<50x32xf32>
    %144 = arith.addf %142, %143 : vector<50x32xf32>
    %145 = vector.extract_strided_slice %8 {offsets = [1, 0, 0], sizes = [1, 8, 128], strides = [1, 1, 1]} : vector<2x8x128xf32> to vector<1x8x128xf32>
    %146 = vector.shape_cast %145 : vector<1x8x128xf32> to vector<8x128xf32>
    %147 = vector.extract_strided_slice %146 {offsets = [0, 0], sizes = [1, 96], strides = [1, 1]} : vector<8x128xf32> to vector<1x96xf32>
    %148 = vector.extract_strided_slice %146 {offsets = [1, 0], sizes = [1, 32], strides = [1, 1]} : vector<8x128xf32> to vector<1x32xf32>
    %149 = vector.extract_strided_slice %146 {offsets = [2, 0], sizes = [1, 128], strides = [1, 1]} : vector<8x128xf32> to vector<1x128xf32>
    %150 = vector.extract_strided_slice %146 {offsets = [3, 0], sizes = [1, 32], strides = [1, 1]} : vector<8x128xf32> to vector<1x32xf32>
    %151 = vector.extract_strided_slice %146 {offsets = [4, 0], sizes = [1, 32], strides = [1, 1]} : vector<8x128xf32> to vector<1x32xf32>
    %152 = vector.extract_strided_slice %146 {offsets = [5, 0], sizes = [1, 32], strides = [1, 1]} : vector<8x128xf32> to vector<1x32xf32>
    %153 = vector.extract_strided_slice %146 {offsets = [6, 0], sizes = [1, 32], strides = [1, 1]} : vector<8x128xf32> to vector<1x32xf32>
    %154 = vector.extract_strided_slice %146 {offsets = [7, 0], sizes = [1, 32], strides = [1, 1]} : vector<8x128xf32> to vector<1x32xf32>
    %155 = arith.truncf %144 : vector<50x32xf32> to vector<50x32xbf16>
    %156 = vector.extract_strided_slice %4 {offsets = [1, 0, 0], sizes = [1, 32, 96], strides = [1, 1, 1]} : vector<2x32x96xbf16> to vector<1x32x96xbf16>
    %157 = vector.shape_cast %156 : vector<1x32x96xbf16> to vector<32x96xbf16>
    %cst_38 = arith.constant dense<0.000000e+00> : vector<50x96xf32>
    %158 = tpu.matmul %155, %157, %cst_38 {dimension_numbers = #tpu.dot_dimension_numbers<[1], [0], [0], [1], [0, 0, 1, 1], [], []>} : vector<50x32xbf16>, vector<32x96xbf16>, vector<50x96xf32> -> vector<50x96xf32>
    %159 = vector.broadcast %147 : vector<1x96xf32> to vector<50x96xf32>
    %160 = arith.addf %158, %159 : vector<50x96xf32>
    %161 = arith.truncf %160 : vector<50x96xf32> to vector<50x96xbf16>
    %162 = vector.extract_strided_slice %161 {offsets = [0, 0], sizes = [50, 8], strides = [1, 1]} : vector<50x96xbf16> to vector<50x8xbf16>
    %163 = vector.extract_strided_slice %161 {offsets = [0, 8], sizes = [50, 8], strides = [1, 1]} : vector<50x96xbf16> to vector<50x8xbf16>
    %164 = vector.extract_strided_slice %161 {offsets = [0, 16], sizes = [50, 8], strides = [1, 1]} : vector<50x96xbf16> to vector<50x8xbf16>
    %165 = vector.extract_strided_slice %161 {offsets = [0, 24], sizes = [50, 8], strides = [1, 1]} : vector<50x96xbf16> to vector<50x8xbf16>
    %166 = vector.shape_cast %162 : vector<50x8xbf16> to vector<1x50x8xbf16>
    %167 = vector.shape_cast %163 : vector<50x8xbf16> to vector<1x50x8xbf16>
    %168 = vector.shape_cast %164 : vector<50x8xbf16> to vector<1x50x8xbf16>
    %169 = vector.shape_cast %165 : vector<50x8xbf16> to vector<1x50x8xbf16>
    %170 = tpu.concatenate %166, %167, %168, %169 in 0 : vector<1x50x8xbf16>, vector<1x50x8xbf16>, vector<1x50x8xbf16>, vector<1x50x8xbf16> -> vector<4x50x8xbf16>
    %171 = vector.extract_strided_slice %161 {offsets = [0, 32], sizes = [50, 8], strides = [1, 1]} : vector<50x96xbf16> to vector<50x8xbf16>
    %172 = vector.extract_strided_slice %161 {offsets = [0, 40], sizes = [50, 8], strides = [1, 1]} : vector<50x96xbf16> to vector<50x8xbf16>
    %173 = vector.extract_strided_slice %161 {offsets = [0, 48], sizes = [50, 8], strides = [1, 1]} : vector<50x96xbf16> to vector<50x8xbf16>
    %174 = vector.extract_strided_slice %161 {offsets = [0, 56], sizes = [50, 8], strides = [1, 1]} : vector<50x96xbf16> to vector<50x8xbf16>
    %175 = vector.shape_cast %171 : vector<50x8xbf16> to vector<1x50x8xbf16>
    %176 = vector.shape_cast %172 : vector<50x8xbf16> to vector<1x50x8xbf16>
    %177 = vector.shape_cast %173 : vector<50x8xbf16> to vector<1x50x8xbf16>
    %178 = vector.shape_cast %174 : vector<50x8xbf16> to vector<1x50x8xbf16>
    %179 = tpu.concatenate %175, %176, %177, %178 in 0 : vector<1x50x8xbf16>, vector<1x50x8xbf16>, vector<1x50x8xbf16>, vector<1x50x8xbf16> -> vector<4x50x8xbf16>
    %180 = vector.extract_strided_slice %161 {offsets = [0, 64], sizes = [50, 8], strides = [1, 1]} : vector<50x96xbf16> to vector<50x8xbf16>
    %181 = vector.extract_strided_slice %161 {offsets = [0, 72], sizes = [50, 8], strides = [1, 1]} : vector<50x96xbf16> to vector<50x8xbf16>
    %182 = vector.extract_strided_slice %161 {offsets = [0, 80], sizes = [50, 8], strides = [1, 1]} : vector<50x96xbf16> to vector<50x8xbf16>
    %183 = vector.extract_strided_slice %161 {offsets = [0, 88], sizes = [50, 8], strides = [1, 1]} : vector<50x96xbf16> to vector<50x8xbf16>
    %184 = vector.shape_cast %180 : vector<50x8xbf16> to vector<1x50x8xbf16>
    %185 = vector.shape_cast %181 : vector<50x8xbf16> to vector<1x50x8xbf16>
    %186 = vector.shape_cast %182 : vector<50x8xbf16> to vector<1x50x8xbf16>
    %187 = vector.shape_cast %183 : vector<50x8xbf16> to vector<1x50x8xbf16>
    %188 = tpu.concatenate %184, %185, %186, %187 in 0 : vector<1x50x8xbf16>, vector<1x50x8xbf16>, vector<1x50x8xbf16>, vector<1x50x8xbf16> -> vector<4x50x8xbf16>
    "tpu.trace_start"() <{level = 10 : i32, message = "hmd,hnd->hmn"}> : () -> ()
    %cst_39 = arith.constant dense<0.000000e+00> : vector<4x50x50xf32>
    %189 = tpu.matmul %170, %179, %cst_39 {dimension_numbers = #tpu.dot_dimension_numbers<[2], [2], [1], [1], [0, 0, 0, 1, 1, 1], [0], [0]>} : vector<4x50x8xbf16>, vector<4x50x8xbf16>, vector<4x50x50xf32> -> vector<4x50x50xf32>
    "tpu.trace_stop"() : () -> ()
    %190 = vector.shape_cast %9 : vector<50x50xf32> to vector<1x50x50xf32>
    %191 = vector.broadcast %190 : vector<1x50x50xf32> to vector<4x50x50xf32>
    %192 = arith.addf %189, %191 : vector<4x50x50xf32>
    %cst_40 = arith.constant dense<0xFF800000> : vector<4x50xf32>
    %193 = vector.multi_reduction <maximumf>, %192, %cst_40 [2] : vector<4x50x50xf32> to vector<4x50xf32>
    %194 = vector.shape_cast %193 : vector<4x50xf32> to vector<4x50x1xf32>
    %195 = vector.broadcast %194 : vector<4x50x1xf32> to vector<4x50x50xf32>
    %196 = arith.subf %192, %195 : vector<4x50x50xf32>
    %197 = math.exp %196 : vector<4x50x50xf32>
    %cst_41 = arith.constant dense<0.000000e+00> : vector<4x50xf32>
    %198 = vector.multi_reduction <add>, %197, %cst_41 [2] : vector<4x50x50xf32> to vector<4x50xf32>
    %199 = vector.shape_cast %198 : vector<4x50xf32> to vector<4x50x1xf32>
    %200 = tpu.reciprocal %199 {approx = true} : vector<4x50x1xf32> -> vector<4x50x1xf32>
    %201 = vector.broadcast %200 : vector<4x50x1xf32> to vector<4x50x50xf32>
    %202 = arith.mulf %197, %201 : vector<4x50x50xf32>
    %203 = arith.truncf %202 : vector<4x50x50xf32> to vector<4x50x50xbf16>
    "tpu.trace_start"() <{level = 10 : i32, message = "hmn,hnd->hmd"}> : () -> ()
    %cst_42 = arith.constant dense<0.000000e+00> : vector<4x50x8xf32>
    %204 = tpu.matmul %203, %188, %cst_42 {dimension_numbers = #tpu.dot_dimension_numbers<[2], [1], [1], [2], [0, 0, 0, 1, 1, 2], [0], [0]>} : vector<4x50x50xbf16>, vector<4x50x8xbf16>, vector<4x50x8xf32> -> vector<4x50x8xf32>
    "tpu.trace_stop"() : () -> ()
    %205 = vector.extract_strided_slice %204 {offsets = [0, 0, 0], sizes = [1, 50, 8], strides = [1, 1, 1]} : vector<4x50x8xf32> to vector<1x50x8xf32>
    %206 = vector.shape_cast %205 : vector<1x50x8xf32> to vector<50x8xf32>
    %207 = vector.extract_strided_slice %204 {offsets = [1, 0, 0], sizes = [1, 50, 8], strides = [1, 1, 1]} : vector<4x50x8xf32> to vector<1x50x8xf32>
    %208 = vector.shape_cast %207 : vector<1x50x8xf32> to vector<50x8xf32>
    %209 = vector.extract_strided_slice %204 {offsets = [2, 0, 0], sizes = [1, 50, 8], strides = [1, 1, 1]} : vector<4x50x8xf32> to vector<1x50x8xf32>
    %210 = vector.shape_cast %209 : vector<1x50x8xf32> to vector<50x8xf32>
    %211 = vector.extract_strided_slice %204 {offsets = [3, 0, 0], sizes = [1, 50, 8], strides = [1, 1, 1]} : vector<4x50x8xf32> to vector<1x50x8xf32>
    %212 = vector.shape_cast %211 : vector<1x50x8xf32> to vector<50x8xf32>
    %213 = tpu.concatenate %206, %208, %210, %212 in 1 : vector<50x8xf32>, vector<50x8xf32>, vector<50x8xf32>, vector<50x8xf32> -> vector<50x32xf32>
    %214 = arith.truncf %213 : vector<50x32xf32> to vector<50x32xbf16>
    %215 = vector.extract_strided_slice %5 {offsets = [1, 0, 0], sizes = [1, 32, 32], strides = [1, 1, 1]} : vector<2x32x32xbf16> to vector<1x32x32xbf16>
    %216 = vector.shape_cast %215 : vector<1x32x32xbf16> to vector<32x32xbf16>
    %cst_43 = arith.constant dense<0.000000e+00> : vector<50x32xf32>
    %217 = tpu.matmul %214, %216, %cst_43 {dimension_numbers = #tpu.dot_dimension_numbers<[1], [0], [0], [1], [0, 0, 1, 1], [], []>} : vector<50x32xbf16>, vector<32x32xbf16>, vector<50x32xf32> -> vector<50x32xf32>
    %218 = vector.broadcast %148 : vector<1x32xf32> to vector<50x32xf32>
    %219 = arith.addf %217, %218 : vector<50x32xf32>
    %220 = arith.addf %144, %219 : vector<50x32xf32>
    %cst_44 = arith.constant dense<0.000000e+00> : vector<50xf32>
    %221 = vector.multi_reduction <add>, %220, %cst_44 [1] : vector<50x32xf32> to vector<50xf32>
    %222 = vector.shape_cast %221 : vector<50xf32> to vector<50x1xf32>
    %cst_45 = arith.constant 3.125000e-02 : f32
    %223 = vector.broadcast %cst_45 : f32 to vector<50x1xf32>
    %224 = arith.mulf %222, %223 : vector<50x1xf32>
    %225 = arith.mulf %220, %220 : vector<50x32xf32>
    %cst_46 = arith.constant dense<0.000000e+00> : vector<50xf32>
    %226 = vector.multi_reduction <add>, %225, %cst_46 [1] : vector<50x32xf32> to vector<50xf32>
    %227 = vector.shape_cast %226 : vector<50xf32> to vector<50x1xf32>
    %cst_47 = arith.constant 3.125000e-02 : f32
    %228 = vector.broadcast %cst_47 : f32 to vector<50x1xf32>
    %229 = arith.mulf %227, %228 : vector<50x1xf32>
    %230 = arith.mulf %224, %224 : vector<50x1xf32>
    %231 = arith.subf %229, %230 : vector<50x1xf32>
    %232 = vector.broadcast %224 : vector<50x1xf32> to vector<50x32xf32>
    %233 = arith.subf %220, %232 : vector<50x32xf32>
    %cst_48 = arith.constant 9.99999974E-6 : f32
    %234 = vector.broadcast %cst_48 : f32 to vector<50x1xf32>
    %235 = arith.addf %231, %234 : vector<50x1xf32>
    %236 = math.rsqrt %235 : vector<50x1xf32>
    %237 = vector.broadcast %236 : vector<50x1xf32> to vector<50x32xf32>
    %238 = arith.mulf %233, %237 : vector<50x32xf32>
    %239 = vector.broadcast %151 : vector<1x32xf32> to vector<50x32xf32>
    %240 = arith.mulf %238, %239 : vector<50x32xf32>
    %241 = vector.broadcast %152 : vector<1x32xf32> to vector<50x32xf32>
    %242 = arith.addf %240, %241 : vector<50x32xf32>
    %243 = arith.truncf %242 : vector<50x32xf32> to vector<50x32xbf16>
    %244 = vector.extract_strided_slice %6 {offsets = [1, 0, 0], sizes = [1, 32, 128], strides = [1, 1, 1]} : vector<2x32x128xbf16> to vector<1x32x128xbf16>
    %245 = vector.shape_cast %244 : vector<1x32x128xbf16> to vector<32x128xbf16>
    %cst_49 = arith.constant dense<0.000000e+00> : vector<50x128xf32>
    %246 = tpu.matmul %243, %245, %cst_49 {dimension_numbers = #tpu.dot_dimension_numbers<[1], [0], [0], [1], [0, 0, 1, 1], [], []>} : vector<50x32xbf16>, vector<32x128xbf16>, vector<50x128xf32> -> vector<50x128xf32>
    %247 = vector.broadcast %149 : vector<1x128xf32> to vector<50x128xf32>
    %248 = arith.addf %246, %247 : vector<50x128xf32>
    %cst_50 = arith.constant 0.000000e+00 : f32
    %249 = vector.broadcast %cst_50 : f32 to vector<50x128xf32>
    %250 = arith.maximumf %248, %249 : vector<50x128xf32>
    %251 = arith.truncf %250 : vector<50x128xf32> to vector<50x128xbf16>
    %252 = vector.extract_strided_slice %7 {offsets = [1, 0, 0], sizes = [1, 128, 32], strides = [1, 1, 1]} : vector<2x128x32xbf16> to vector<1x128x32xbf16>
    %253 = vector.shape_cast %252 : vector<1x128x32xbf16> to vector<128x32xbf16>
    %cst_51 = arith.constant dense<0.000000e+00> : vector<50x32xf32>
    %254 = tpu.matmul %251, %253, %cst_51 {dimension_numbers = #tpu.dot_dimension_numbers<[1], [0], [0], [1], [0, 0, 1, 1], [], []>} : vector<50x128xbf16>, vector<128x32xbf16>, vector<50x32xf32> -> vector<50x32xf32>
    %255 = vector.broadcast %150 : vector<1x32xf32> to vector<50x32xf32>
    %256 = arith.addf %254, %255 : vector<50x32xf32>
    %257 = arith.addf %242, %256 : vector<50x32xf32>
    %cst_52 = arith.constant dense<0.000000e+00> : vector<50xf32>
    %258 = vector.multi_reduction <add>, %257, %cst_52 [1] : vector<50x32xf32> to vector<50xf32>
    %259 = vector.shape_cast %258 : vector<50xf32> to vector<50x1xf32>
    %cst_53 = arith.constant 3.125000e-02 : f32
    %260 = vector.broadcast %cst_53 : f32 to vector<50x1xf32>
    %261 = arith.mulf %259, %260 : vector<50x1xf32>
    %262 = arith.mulf %257, %257 : vector<50x32xf32>
    %cst_54 = arith.constant dense<0.000000e+00> : vector<50xf32>
    %263 = vector.multi_reduction <add>, %262, %cst_54 [1] : vector<50x32xf32> to vector<50xf32>
    %264 = vector.shape_cast %263 : vector<50xf32> to vector<50x1xf32>
    %cst_55 = arith.constant 3.125000e-02 : f32
    %265 = vector.broadcast %cst_55 : f32 to vector<50x1xf32>
    %266 = arith.mulf %264, %265 : vector<50x1xf32>
    %267 = arith.mulf %261, %261 : vector<50x1xf32>
    %268 = arith.subf %266, %267 : vector<50x1xf32>
    %269 = vector.broadcast %261 : vector<50x1xf32> to vector<50x32xf32>
    %270 = arith.subf %257, %269 : vector<50x32xf32>
    %cst_56 = arith.constant 9.99999974E-6 : f32
    %271 = vector.broadcast %cst_56 : f32 to vector<50x1xf32>
    %272 = arith.addf %268, %271 : vector<50x1xf32>
    %273 = math.rsqrt %272 : vector<50x1xf32>
    %274 = vector.broadcast %273 : vector<50x1xf32> to vector<50x32xf32>
    %275 = arith.mulf %270, %274 : vector<50x32xf32>
    %276 = vector.broadcast %153 : vector<1x32xf32> to vector<50x32xf32>
    %277 = arith.mulf %275, %276 : vector<50x32xf32>
    %278 = vector.broadcast %154 : vector<1x32xf32> to vector<50x32xf32>
    %279 = arith.addf %277, %278 : vector<50x32xf32>
    %c0_57 = arith.constant 0 : index
    %c0_58 = arith.constant 0 : index
    %280 = vector.load %arg18[%c0_57, %c0_58] : memref<50x32xf32, #tpu.memory_space<vmem>>, vector<50x32xf32>
    tpu.vector_store %arg18[%c0_57, %c0_58], %279 {strides = array<i32>} : memref<50x32xf32, #tpu.memory_space<vmem>>, vector<50x32xf32>,
    %281 = vector.extract_strided_slice %279 {offsets = [0, 0], sizes = [1, 32], strides = [1, 1]} : vector<50x32xf32> to vector<1x32xf32>
    %282 = vector.extract_strided_slice %279 {offsets = [25, 0], sizes = [1, 32], strides = [1, 1]} : vector<50x32xf32> to vector<1x32xf32>
    %283 = tpu.concatenate %281, %282 in 0 : vector<1x32xf32>, vector<1x32xf32> -> vector<2x32xf32>
    %c0_59 = arith.constant 0 : index
    %c0_60 = arith.constant 0 : index
    %c0_61 = arith.constant 0 : index
    %284 = vector.load %arg9[%c0_59, %c0_60, %c0_61] : memref<3x2x32xf32, #tpu.memory_space<vmem>>, vector<3x2x32xf32>
    %285 = arith.truncf %284 : vector<3x2x32xf32> to vector<3x2x32xbf16>
    %c0_62 = arith.constant 0 : index
    %c0_63 = arith.constant 0 : index
    %c0_64 = arith.constant 0 : index
    %286 = vector.load %arg10[%c0_62, %c0_63, %c0_64] : memref<3x32x16xbf16, #tpu.memory_space<vmem>>, vector<3x32x16xbf16>
    "tpu.trace_start"() <{level = 10 : i32, message = "ibk,iko->ibo"}> : () -> ()
    %cst_65 = arith.constant dense<0.000000e+00> : vector<3x2x16xf32>
    %287 = tpu.matmul %285, %286, %cst_65 {dimension_numbers = #tpu.dot_dimension_numbers<[2], [1], [1], [2], [0, 0, 0, 1, 1, 2], [0], [0]>} : vector<3x2x32xbf16>, vector<3x32x16xbf16>, vector<3x2x16xf32> -> vector<3x2x16xf32>
    "tpu.trace_stop"() : () -> ()
    %c0_66 = arith.constant 0 : index
    %c0_67 = arith.constant 0 : index
    %c0_68 = arith.constant 0 : index
    %288 = vector.load %arg11[%c0_66, %c0_67, %c0_68] : memref<3x1x16xf32, #tpu.memory_space<vmem>>, vector<3x1x16xf32>
    %289 = vector.broadcast %288 : vector<3x1x16xf32> to vector<3x2x16xf32>
    %290 = arith.addf %287, %289 : vector<3x2x16xf32>
    %cst_69 = arith.constant 0.000000e+00 : f32
    %291 = vector.broadcast %cst_69 : f32 to vector<3x2x16xf32>
    %292 = arith.maximumf %290, %291 : vector<3x2x16xf32>
    %293 = arith.truncf %292 : vector<3x2x16xf32> to vector<3x2x16xbf16>
    %c0_70 = arith.constant 0 : index
    %c0_71 = arith.constant 0 : index
    %c0_72 = arith.constant 0 : index
    %294 = vector.load %arg12[%c0_70, %c0_71, %c0_72] : memref<3x16x16xbf16, #tpu.memory_space<vmem>>, vector<3x16x16xbf16>
    "tpu.trace_start"() <{level = 10 : i32, message = "ibk,iko->ibo"}> : () -> ()
    %cst_73 = arith.constant dense<0.000000e+00> : vector<3x2x16xf32>
    %295 = tpu.matmul %293, %294, %cst_73 {dimension_numbers = #tpu.dot_dimension_numbers<[2], [1], [1], [2], [0, 0, 0, 1, 1, 2], [0], [0]>} : vector<3x2x16xbf16>, vector<3x16x16xbf16>, vector<3x2x16xf32> -> vector<3x2x16xf32>
    "tpu.trace_stop"() : () -> ()
    %c0_74 = arith.constant 0 : index
    %c0_75 = arith.constant 0 : index
    %c0_76 = arith.constant 0 : index
    %296 = vector.load %arg13[%c0_74, %c0_75, %c0_76] : memref<3x1x16xf32, #tpu.memory_space<vmem>>, vector<3x1x16xf32>
    %297 = vector.broadcast %296 : vector<3x1x16xf32> to vector<3x2x16xf32>
    %298 = arith.addf %295, %297 : vector<3x2x16xf32>
    %cst_77 = arith.constant 0.000000e+00 : f32
    %299 = vector.broadcast %cst_77 : f32 to vector<3x2x16xf32>
    %300 = arith.maximumf %298, %299 : vector<3x2x16xf32>
    %301 = arith.truncf %300 : vector<3x2x16xf32> to vector<3x2x16xbf16>
    %c0_78 = arith.constant 0 : index
    %c0_79 = arith.constant 0 : index
    %c0_80 = arith.constant 0 : index
    %302 = vector.load %arg14[%c0_78, %c0_79, %c0_80] : memref<3x16x1xbf16, #tpu.memory_space<vmem>>, vector<3x16x1xbf16>
    "tpu.trace_start"() <{level = 10 : i32, message = "ibk,iko->ibo"}> : () -> ()
    %cst_81 = arith.constant dense<0.000000e+00> : vector<3x2x1xf32>
    %303 = tpu.matmul %301, %302, %cst_81 {dimension_numbers = #tpu.dot_dimension_numbers<[2], [1], [1], [2], [0, 0, 0, 1, 1, 2], [0], [0]>} : vector<3x2x16xbf16>, vector<3x16x1xbf16>, vector<3x2x1xf32> -> vector<3x2x1xf32>
    "tpu.trace_stop"() : () -> ()
    %c0_82 = arith.constant 0 : index
    %c0_83 = arith.constant 0 : index
    %c0_84 = arith.constant 0 : index
    %304 = vector.load %arg15[%c0_82, %c0_83, %c0_84] : memref<3x1x1xf32, #tpu.memory_space<vmem>>, vector<3x1x1xf32>
    %305 = vector.broadcast %304 : vector<3x1x1xf32> to vector<3x2x1xf32>
    %306 = arith.addf %303, %305 : vector<3x2x1xf32>
    %307 = arith.truncf %283 : vector<2x32xf32> to vector<2x32xbf16>
    %c0_85 = arith.constant 0 : index
    %c0_86 = arith.constant 0 : index
    %308 = vector.load %arg16[%c0_85, %c0_86] : memref<32x1xbf16, #tpu.memory_space<vmem>>, vector<32x1xbf16>
    %cst_87 = arith.constant dense<0.000000e+00> : vector<2x1xf32>
    %309 = tpu.matmul %307, %308, %cst_87 {dimension_numbers = #tpu.dot_dimension_numbers<[1], [0], [0], [1], [0, 0, 1, 1], [], []>} : vector<2x32xbf16>, vector<32x1xbf16>, vector<2x1xf32> -> vector<2x1xf32>
    %c0_88 = arith.constant 0 : index
    %c0_89 = arith.constant 0 : index
    %310 = vector.load %arg17[%c0_88, %c0_89] : memref<1x1xf32, #tpu.memory_space<vmem>>, vector<1x1xf32>
    %311 = vector.broadcast %310 : vector<1x1xf32> to vector<2x1xf32>
    %312 = arith.addf %309, %311 : vector<2x1xf32>
    %313 = vector.extract_strided_slice %306 {offsets = [0, 0, 0], sizes = [1, 2, 1], strides = [1, 1, 1]} : vector<3x2x1xf32> to vector<1x2x1xf32>
    %314 = vector.shape_cast %313 : vector<1x2x1xf32> to vector<2x1xf32>
    %315 = vector.extract_strided_slice %306 {offsets = [1, 0, 0], sizes = [1, 2, 1], strides = [1, 1, 1]} : vector<3x2x1xf32> to vector<1x2x1xf32>
    %316 = vector.shape_cast %315 : vector<1x2x1xf32> to vector<2x1xf32>
    %317 = arith.negf %316 : vector<2x1xf32>
    %318 = math.exp %317 : vector<2x1xf32>
    %cst_90 = arith.constant 1.000000e+00 : f32
    %319 = vector.broadcast %cst_90 : f32 to vector<2x1xf32>
    %320 = arith.addf %319, %318 : vector<2x1xf32>
    %321 = arith.divf %319, %320 : vector<2x1xf32>
    %cst_91 = arith.constant 2.000000e+00 : f32
    %322 = vector.broadcast %cst_91 : f32 to vector<2x1xf32>
    %323 = arith.mulf %321, %322 : vector<2x1xf32>
    %cst_92 = arith.constant 1.000000e+00 : f32
    %324 = vector.broadcast %cst_92 : f32 to vector<2x1xf32>
    %325 = arith.subf %323, %324 : vector<2x1xf32>
    %326 = vector.extract_strided_slice %306 {offsets = [2, 0, 0], sizes = [1, 2, 1], strides = [1, 1, 1]} : vector<3x2x1xf32> to vector<1x2x1xf32>
    %327 = vector.shape_cast %326 : vector<1x2x1xf32> to vector<2x1xf32>
    %328 = arith.negf %327 : vector<2x1xf32>
    %329 = math.exp %328 : vector<2x1xf32>
    %cst_93 = arith.constant 1.000000e+00 : f32
    %330 = vector.broadcast %cst_93 : f32 to vector<2x1xf32>
    %331 = arith.addf %330, %329 : vector<2x1xf32>
    %332 = arith.divf %330, %331 : vector<2x1xf32>
    %cst_94 = arith.constant 2.000000e+00 : f32
    %333 = vector.broadcast %cst_94 : f32 to vector<2x1xf32>
    %334 = arith.mulf %332, %333 : vector<2x1xf32>
    %cst_95 = arith.constant 1.000000e+00 : f32
    %335 = vector.broadcast %cst_95 : f32 to vector<2x1xf32>
    %336 = arith.subf %334, %335 : vector<2x1xf32>
    %337 = arith.negf %312 : vector<2x1xf32>
    %338 = math.exp %337 : vector<2x1xf32>
    %cst_96 = arith.constant 1.000000e+00 : f32
    %339 = vector.broadcast %cst_96 : f32 to vector<2x1xf32>
    %340 = arith.addf %339, %338 : vector<2x1xf32>
    %341 = arith.divf %339, %340 : vector<2x1xf32>
    %cst_97 = arith.constant 2.000000e+00 : f32
    %342 = vector.broadcast %cst_97 : f32 to vector<2x1xf32>
    %343 = arith.mulf %341, %342 : vector<2x1xf32>
    %cst_98 = arith.constant 1.000000e+00 : f32
    %344 = vector.broadcast %cst_98 : f32 to vector<2x1xf32>
    %345 = arith.subf %343, %344 : vector<2x1xf32>
    %346 = tpu.concatenate %314, %325, %336, %345 in 1 : vector<2x1xf32>, vector<2x1xf32>, vector<2x1xf32>, vector<2x1xf32> -> vector<2x4xf32>
    %c0_99 = arith.constant 0 : index
    %c0_100 = arith.constant 0 : index
    %347 = vector.load %arg19[%c0_99, %c0_100] : memref<2x4xf32, #tpu.memory_space<vmem>>, vector<2x4xf32>
    tpu.vector_store %arg19[%c0_99, %c0_100], %346 {strides = array<i32>} : memref<2x4xf32, #tpu.memory_space<vmem>>, vector<2x4xf32>,
    return
  }
  func.func @transform_0(%arg0: i32) -> (i32, i32) {
    %c0_i32 = arith.constant 0 : i32
    %c0_i32_0 = arith.constant 0 : i32
    %c0_i32_1 = arith.constant 0 : i32
    return %c0_i32, %c0_i32_0 : i32, i32
  }
  func.func @transform_1(%arg0: i32) -> (i32, i32) {
    %c0_i32 = arith.constant 0 : i32
    %c0_i32_0 = arith.constant 0 : i32
    %c0_i32_1 = arith.constant 0 : i32
    return %c0_i32, %c0_i32_0 : i32, i32
  }
  func.func @transform_2(%arg0: i32) -> (i32, i32) {
    %c0_i32 = arith.constant 0 : i32
    %c0_i32_0 = arith.constant 0 : i32
    %c0_i32_1 = arith.constant 0 : i32
    return %c0_i32, %c0_i32_0 : i32, i32
  }
  func.func @transform_3(%arg0: i32) -> (i32, i32, i32) {
    %c0_i32 = arith.constant 0 : i32
    %c0_i32_0 = arith.constant 0 : i32
    %c0_i32_1 = arith.constant 0 : i32
    %c0_i32_2 = arith.constant 0 : i32
    return %c0_i32, %c0_i32_0, %c0_i32_1 : i32, i32, i32
  }
  func.func @transform_4(%arg0: i32) -> (i32, i32, i32) {
    %c0_i32 = arith.constant 0 : i32
    %c0_i32_0 = arith.constant 0 : i32
    %c0_i32_1 = arith.constant 0 : i32
    %c0_i32_2 = arith.constant 0 : i32
    return %c0_i32, %c0_i32_0, %c0_i32_1 : i32, i32, i32
  }
  func.func @transform_5(%arg0: i32) -> (i32, i32, i32) {
    %c0_i32 = arith.constant 0 : i32
    %c0_i32_0 = arith.constant 0 : i32
    %c0_i32_1 = arith.constant 0 : i32
    %c0_i32_2 = arith.constant 0 : i32
    return %c0_i32, %c0_i32_0, %c0_i32_1 : i32, i32, i32
  }
  func.func @transform_6(%arg0: i32) -> (i32, i32, i32) {
    %c0_i32 = arith.constant 0 : i32
    %c0_i32_0 = arith.constant 0 : i32
    %c0_i32_1 = arith.constant 0 : i32
    %c0_i32_2 = arith.constant 0 : i32
    return %c0_i32, %c0_i32_0, %c0_i32_1 : i32, i32, i32
  }
  func.func @transform_7(%arg0: i32) -> (i32, i32, i32) {
    %c0_i32 = arith.constant 0 : i32
    %c0_i32_0 = arith.constant 0 : i32
    %c0_i32_1 = arith.constant 0 : i32
    %c0_i32_2 = arith.constant 0 : i32
    return %c0_i32, %c0_i32_0, %c0_i32_1 : i32, i32, i32
  }
  func.func @transform_8(%arg0: i32) -> (i32, i32, i32) {
    %c0_i32 = arith.constant 0 : i32
    %c0_i32_0 = arith.constant 0 : i32
    %c0_i32_1 = arith.constant 0 : i32
    %c0_i32_2 = arith.constant 0 : i32
    return %c0_i32, %c0_i32_0, %c0_i32_1 : i32, i32, i32
  }
  func.func @transform_9(%arg0: i32) -> (i32, i32, i32) {
    %c0_i32 = arith.constant 0 : i32
    %c0_i32_0 = arith.constant 0 : i32
    %c0_i32_1 = arith.constant 0 : i32
    %c0_i32_2 = arith.constant 0 : i32
    return %c0_i32, %c0_i32_0, %c0_i32_1 : i32, i32, i32
  }
  func.func @transform_10(%arg0: i32) -> (i32, i32, i32) {
    %c0_i32 = arith.constant 0 : i32
    %c0_i32_0 = arith.constant 0 : i32
    %c0_i32_1 = arith.constant 0 : i32
    %c0_i32_2 = arith.constant 0 : i32
    return %c0_i32, %c0_i32_0, %c0_i32_1 : i32, i32, i32
  }
  func.func @transform_11(%arg0: i32) -> (i32, i32, i32) {
    %c0_i32 = arith.constant 0 : i32
    %c0_i32_0 = arith.constant 0 : i32
    %c0_i32_1 = arith.constant 0 : i32
    %c0_i32_2 = arith.constant 0 : i32
    return %c0_i32, %c0_i32_0, %c0_i32_1 : i32, i32, i32
  }
  func.func @transform_12(%arg0: i32) -> (i32, i32, i32) {
    %c0_i32 = arith.constant 0 : i32
    %c0_i32_0 = arith.constant 0 : i32
    %c0_i32_1 = arith.constant 0 : i32
    %c0_i32_2 = arith.constant 0 : i32
    return %c0_i32, %c0_i32_0, %c0_i32_1 : i32, i32, i32
  }
  func.func @transform_13(%arg0: i32) -> (i32, i32, i32) {
    %c0_i32 = arith.constant 0 : i32
    %c0_i32_0 = arith.constant 0 : i32
    %c0_i32_1 = arith.constant 0 : i32
    %c0_i32_2 = arith.constant 0 : i32
    return %c0_i32, %c0_i32_0, %c0_i32_1 : i32, i32, i32
  }
  func.func @transform_14(%arg0: i32) -> (i32, i32, i32) {
    %c0_i32 = arith.constant 0 : i32
    %c0_i32_0 = arith.constant 0 : i32
    %c0_i32_1 = arith.constant 0 : i32
    %c0_i32_2 = arith.constant 0 : i32
    return %c0_i32, %c0_i32_0, %c0_i32_1 : i32, i32, i32
  }
  func.func @transform_15(%arg0: i32) -> (i32, i32) {
    %c0_i32 = arith.constant 0 : i32
    %c0_i32_0 = arith.constant 0 : i32
    %c0_i32_1 = arith.constant 0 : i32
    return %c0_i32, %c0_i32_0 : i32, i32
  }
  func.func @transform_16(%arg0: i32) -> (i32, i32) {
    %c0_i32 = arith.constant 0 : i32
    %c0_i32_0 = arith.constant 0 : i32
    %c0_i32_1 = arith.constant 0 : i32
    return %c0_i32, %c0_i32_0 : i32, i32
  }
  func.func @transform_17(%arg0: i32) -> (i32, i32) {
    %c0_i32 = arith.constant 0 : i32
    %c0_i32_0 = arith.constant 0 : i32
    %c0_i32_1 = arith.constant 0 : i32
    return %c0_i32, %c0_i32_0 : i32, i32
  }
  func.func @transform_18(%arg0: i32) -> (i32, i32) {
    %c0_i32 = arith.constant 0 : i32
    %c0_i32_0 = arith.constant 0 : i32
    %c0_i32_1 = arith.constant 0 : i32
    return %c0_i32, %c0_i32_0 : i32, i32
  }
}

</mosaic_0001>

<llo_original>
// kernel: _lambda_.2
$region0: #{_lambda_.2}
  #allocation0 [shape = 'u32[]', space=smem, size = 0x4, offset = 0x4, fixed_abs, tag = 'smem constant byte address 0x4 - core index']
  #allocation1 [shape = 'u32[72,128]{1,0:T(1,128)}', space=vmem, size = 0x9000, scoped, tag = 'internal scratch']
  %s0 = inlined_call_operand.vmem [shape: f32[3,18,48], index: 0, kind: input, shape index: {}]
  %s1 = inlined_call_operand.vmem [shape: f32[18,18], index: 1, kind: input, shape index: {}]
  %s2 = inlined_call_operand.vmem [shape: f32[3,1,1], index: 2, kind: input, shape index: {}]
  %s3 = inlined_call_operand.vmem [shape: bf16[3,48,48], index: 3, kind: input, shape index: {}]
  %s4 = inlined_call_operand.vmem [shape: f32[3,9,48], index: 4, kind: input, shape index: {}]
  %s5 = inlined_call_operand.vmem [shape: bf16[3,2,48,144], index: 5, kind: input, shape index: {}]
  %s6 = inlined_call_operand.vmem [shape: bf16[3,2,48,48], index: 6, kind: input, shape index: {}]
  %s7 = inlined_call_operand.vmem [shape: bf16[3,2,48,192], index: 7, kind: input, shape index: {}]
  %s8 = inlined_call_operand.vmem [shape: bf16[3,2,192,48], index: 8, kind: input, shape index: {}]
  %s9 = inlined_call_operand.vmem [shape: f32[3,2,8,192], index: 9, kind: input, shape index: {}]
  %s10 = inlined_call_operand.vmem [shape: bf16[3,48,32], index: 10, kind: input, shape index: {}]
  %s11 = inlined_call_operand.vmem [shape: f32[3,1,32], index: 11, kind: input, shape index: {}]
  %s12 = inlined_call_operand.vmem [shape: f32[3,18,32], index: 12, kind: output, shape index: {}]
  %s13 = sld [smem:[#allocation0]]
  $region81: #{_lambda_.2} parent=0
    _
  %s15 = ssub.s32 1, %s13
  %s16 = scalar_select 0, %s15, %s13
  loop: start=0, step=1, limit=5
  $region2: #{_lambda_.2} parent=0 // loop_pre_header
    _
  $region3: #{_lambda_.2} parent=0 // loop_header
    %s18 = sphi 0, %s22
    %p19 = scmp.ge.s32.totalorder %s18, 5
    %s28 = sphi 0, %s30
    %s31 = sphi 0, %s28
    %s32 = sphi 0, %s31
    %s48 = sphi 0, %s32
    %s52 = sphi 0, %s52
    %s54 = sphi 0, %s52
    %s55 = sphi 0, %s54
    %s69 = sphi 0, %s55
    %s75 = sphi 0, %s77
    %s78 = sphi 0, %s75
    %s79 = sphi 0, %s78
    %s95 = sphi 0, %s79
    %s101 = sphi 0, %s103
    %s104 = sphi 0, %s101
    %s105 = sphi 0, %s104
    %s121 = sphi 0, %s105
    %s127 = sphi 0, %s129
    %s130 = sphi 0, %s127
    %s131 = sphi 0, %s130
    %s147 = sphi 0, %s131
    %s153 = sphi 0, %s155
    %s156 = sphi 0, %s153
    %s157 = sphi 0, %s156
    %s173 = sphi 0, %s157
    %s179 = sphi 0, %s181
    %s182 = sphi 0, %s179
    %s183 = sphi 0, %s182
    %s199 = sphi 0, %s183
    %s205 = sphi 0, %s207
    %s208 = sphi 0, %s205
    %s209 = sphi 0, %s208
    %s225 = sphi 0, %s209
    %s231 = sphi 0, %s233
    %s234 = sphi 0, %s231
    %s235 = sphi 0, %s234
    %s251 = sphi 0, %s235
    %s257 = sphi 0, %s259
    %s260 = sphi 0, %s257
    %s261 = sphi 0, %s260
    %s277 = sphi 0, %s261
    %s283 = sphi 0, %s285
    %s286 = sphi 0, %s283
    %s287 = sphi 0, %s286
    %s303 = sphi 0, %s287
    %s309 = sphi 0, %s311
    %s312 = sphi 0, %s309
    %s313 = sphi 0, %s312
    %s329 = sphi 0, %s313
    %s335 = sphi 0, %s337
    %s338 = sphi 0, %s335
    %s339 = sphi 0, %s338
    %s355 = sphi 0, %s339
  $region4: #{_lambda_.2} parent=0 // loop_header_branch
    %21 = sbr.rel (%p19) target = $region8
  $region5: #{_lambda_.2} parent=0 // loop_body
    %s23 = ssub.s32 %s18, 1
    %s24 = ssub.s32 %s18, 2
    %s25 = sadd.s32 %s18, 1
    %s26 = ssub.s32 %s18, %s25
    %p27 = scmp.eq.s32.totalorder %s26, 0
    %s29 = sadd.s32 %s28, 1
    %s30 = scalar_select %p27, %s28, %s29
    %p33 = pneg %p27
    %p34 = scmp.eq.s32.totalorder %s18, 2
    %p35 = por %p33, %p34
    %p36 = scmp.ne.s32.totalorder %s28, %s31
    %p37 = scmp.eq.s32.totalorder %s18, 0
    %p38 = por %p36, %p37
    %p39 = scmp.ne.s32.totalorder %s28, %s31
    %p40 = scmp.eq.s32.totalorder %s23, 2
    %p41 = por %p39, %p40
    %p42 = scmp.ne.s32.totalorder %s31, %s32
    %p43 = scmp.eq.s32.totalorder %s23, 0
    %p44 = por %p42, %p43
    %p45 = scmp.ne.s32.totalorder %s31, %s32
    %p46 = scmp.eq.s32.totalorder %s24, 2
    %p47 = por %p45, %p46
    %p49 = scmp.ne.s32.totalorder %s32, %s48
    %p50 = scmp.eq.s32.totalorder %s24, 0
    %p51 = por %p49, %p50
    %s53 = sadd.s32 %s52, 1
    %p56 = scmp.eq.s32.totalorder %s18, 2
    %p57 = scmp.ne.s32.totalorder %s52, %s54
    %p58 = scmp.eq.s32.totalorder %s18, 0
    %p59 = por %p57, %p58
    %p60 = scmp.ne.s32.totalorder %s52, %s54
    %p61 = scmp.eq.s32.totalorder %s23, 2
    %p62 = por %p60, %p61
    %p63 = scmp.ne.s32.totalorder %s54, %s55
    %p64 = scmp.eq.s32.totalorder %s23, 0
    %p65 = por %p63, %p64
    %p66 = scmp.ne.s32.totalorder %s54, %s55
    %p67 = scmp.eq.s32.totalorder %s24, 2
    %p68 = por %p66, %p67
    %p70 = scmp.ne.s32.totalorder %s55, %s69
    %p71 = scmp.eq.s32.totalorder %s24, 0
    %p72 = por %p70, %p71
    %s73 = ssub.s32 %s18, %s25
    %p74 = scmp.eq.s32.totalorder %s73, 0
    %s76 = sadd.s32 %s75, 1
    %s77 = scalar_select %p74, %s75, %s76
    %p80 = pneg %p74
    %p81 = scmp.eq.s32.totalorder %s18, 2
    %p82 = por %p80, %p81
    %p83 = scmp.ne.s32.totalorder %s75, %s78
    %p84 = scmp.eq.s32.totalorder %s18, 0
    %p85 = por %p83, %p84
    %p86 = scmp.ne.s32.totalorder %s75, %s78
    %p87 = scmp.eq.s32.totalorder %s23, 2
    %p88 = por %p86, %p87
    %p89 = scmp.ne.s32.totalorder %s78, %s79
    %p90 = scmp.eq.s32.totalorder %s23, 0
    %p91 = por %p89, %p90
    %p92 = scmp.ne.s32.totalorder %s78, %s79
    %p93 = scmp.eq.s32.totalorder %s24, 2
    %p94 = por %p92, %p93
    %p96 = scmp.ne.s32.totalorder %s79, %s95
    %p97 = scmp.eq.s32.totalorder %s24, 0
    %p98 = por %p96, %p97
    %s99 = ssub.s32 %s18, %s25
    %p100 = scmp.eq.s32.totalorder %s99, 0
    %s102 = sadd.s32 %s101, 1
    %s103 = scalar_select %p100, %s101, %s102
    %p106 = pneg %p100
    %p107 = scmp.eq.s32.totalorder %s18, 2
    %p108 = por %p106, %p107
    %p109 = scmp.ne.s32.totalorder %s101, %s104
    %p110 = scmp.eq.s32.totalorder %s18, 0
    %p111 = por %p109, %p110
    %p112 = scmp.ne.s32.totalorder %s101, %s104
    %p113 = scmp.eq.s32.totalorder %s23, 2
    %p114 = por %p112, %p113
    %p115 = scmp.ne.s32.totalorder %s104, %s105
    %p116 = scmp.eq.s32.totalorder %s23, 0
    %p117 = por %p115, %p116
    %p118 = scmp.ne.s32.totalorder %s104, %s105
    %p119 = scmp.eq.s32.totalorder %s24, 2
    %p120 = por %p118, %p119
    %p122 = scmp.ne.s32.totalorder %s105, %s121
    %p123 = scmp.eq.s32.totalorder %s24, 0
    %p124 = por %p122, %p123
    %s125 = ssub.s32 %s18, %s25
    %p126 = scmp.eq.s32.totalorder %s125, 0
    %s128 = sadd.s32 %s127, 1
    %s129 = scalar_select %p126, %s127, %s128
    %p132 = pneg %p126
    %p133 = scmp.eq.s32.totalorder %s18, 2
    %p134 = por %p132, %p133
    %p135 = scmp.ne.s32.totalorder %s127, %s130
    %p136 = scmp.eq.s32.totalorder %s18, 0
    %p137 = por %p135, %p136
    %p138 = scmp.ne.s32.totalorder %s127, %s130
    %p139 = scmp.eq.s32.totalorder %s23, 2
    %p140 = por %p138, %p139
    %p141 = scmp.ne.s32.totalorder %s130, %s131
    %p142 = scmp.eq.s32.totalorder %s23, 0
    %p143 = por %p141, %p142
    %p144 = scmp.ne.s32.totalorder %s130, %s131
    %p145 = scmp.eq.s32.totalorder %s24, 2
    %p146 = por %p144, %p145
    %p148 = scmp.ne.s32.totalorder %s131, %s147
    %p149 = scmp.eq.s32.totalorder %s24, 0
    %p150 = por %p148, %p149
    %s151 = ssub.s32 %s18, %s25
    %p152 = scmp.eq.s32.totalorder %s151, 0
    %s154 = sadd.s32 %s153, 1
    %s155 = scalar_select %p152, %s153, %s154
    %p158 = pneg %p152
    %p159 = scmp.eq.s32.totalorder %s18, 2
    %p160 = por %p158, %p159
    %p161 = scmp.ne.s32.totalorder %s153, %s156
    %p162 = scmp.eq.s32.totalorder %s18, 0
    %p163 = por %p161, %p162
    %p164 = scmp.ne.s32.totalorder %s153, %s156
    %p165 = scmp.eq.s32.totalorder %s23, 2
    %p166 = por %p164, %p165
    %p167 = scmp.ne.s32.totalorder %s156, %s157
    %p168 = scmp.eq.s32.totalorder %s23, 0
    %p169 = por %p167, %p168
    %p170 = scmp.ne.s32.totalorder %s156, %s157
    %p171 = scmp.eq.s32.totalorder %s24, 2
    %p172 = por %p170, %p171
    %p174 = scmp.ne.s32.totalorder %s157, %s173
    %p175 = scmp.eq.s32.totalorder %s24, 0
    %p176 = por %p174, %p175
    %s177 = ssub.s32 %s18, %s25
    %p178 = scmp.eq.s32.totalorder %s177, 0
    %s180 = sadd.s32 %s179, 1
    %s181 = scalar_select %p178, %s179, %s180
    %p184 = pneg %p178
    %p185 = scmp.eq.s32.totalorder %s18, 2
    %p186 = por %p184, %p185
    %p187 = scmp.ne.s32.totalorder %s179, %s182
    %p188 = scmp.eq.s32.totalorder %s18, 0
    %p189 = por %p187, %p188
    %p190 = scmp.ne.s32.totalorder %s179, %s182
    %p191 = scmp.eq.s32.totalorder %s23, 2
    %p192 = por %p190, %p191
    %p193 = scmp.ne.s32.totalorder %s182, %s183
    %p194 = scmp.eq.s32.totalorder %s23, 0
    %p195 = por %p193, %p194
    %p196 = scmp.ne.s32.totalorder %s182, %s183
    %p197 = scmp.eq.s32.totalorder %s24, 2
    %p198 = por %p196, %p197
    %p200 = scmp.ne.s32.totalorder %s183, %s199
    %p201 = scmp.eq.s32.totalorder %s24, 0
    %p202 = por %p200, %p201
    %s203 = ssub.s32 %s18, %s25
    %p204 = scmp.eq.s32.totalorder %s203, 0
    %s206 = sadd.s32 %s205, 1
    %s207 = scalar_select %p204, %s205, %s206
    %p210 = pneg %p204
    %p211 = scmp.eq.s32.totalorder %s18, 2
    %p212 = por %p210, %p211
    %p213 = scmp.ne.s32.totalorder %s205, %s208
    %p214 = scmp.eq.s32.totalorder %s18, 0
    %p215 = por %p213, %p214
    %p216 = scmp.ne.s32.totalorder %s205, %s208
    %p217 = scmp.eq.s32.totalorder %s23, 2
    %p218 = por %p216, %p217
    %p219 = scmp.ne.s32.totalorder %s208, %s209
    %p220 = scmp.eq.s32.totalorder %s23, 0
    %p221 = por %p219, %p220
    %p222 = scmp.ne.s32.totalorder %s208, %s209
    %p223 = scmp.eq.s32.totalorder %s24, 2
    %p224 = por %p222, %p223
    %p226 = scmp.ne.s32.totalorder %s209, %s225
    %p227 = scmp.eq.s32.totalorder %s24, 0
    %p228 = por %p226, %p227
    %s229 = ssub.s32 %s18, %s25
    %p230 = scmp.eq.s32.totalorder %s229, 0
    %s232 = sadd.s32 %s231, 1
    %s233 = scalar_select %p230, %s231, %s232
    %p236 = pneg %p230
    %p237 = scmp.eq.s32.totalorder %s18, 2
    %p238 = por %p236, %p237
    %p239 = scmp.ne.s32.totalorder %s231, %s234
    %p240 = scmp.eq.s32.totalorder %s18, 0
    %p241 = por %p239, %p240
    %p242 = scmp.ne.s32.totalorder %s231, %s234
    %p243 = scmp.eq.s32.totalorder %s23, 2
    %p244 = por %p242, %p243
    %p245 = scmp.ne.s32.totalorder %s234, %s235
    %p246 = scmp.eq.s32.totalorder %s23, 0
    %p247 = por %p245, %p246
    %p248 = scmp.ne.s32.totalorder %s234, %s235
    %p249 = scmp.eq.s32.totalorder %s24, 2
    %p250 = por %p248, %p249
    %p252 = scmp.ne.s32.totalorder %s235, %s251
    %p253 = scmp.eq.s32.totalorder %s24, 0
    %p254 = por %p252, %p253
    %s255 = ssub.s32 %s18, %s25
    %p256 = scmp.eq.s32.totalorder %s255, 0
    %s258 = sadd.s32 %s257, 1
    %s259 = scalar_select %p256, %s257, %s258
    %p262 = pneg %p256
    %p263 = scmp.eq.s32.totalorder %s18, 2
    %p264 = por %p262, %p263
    %p265 = scmp.ne.s32.totalorder %s257, %s260
    %p266 = scmp.eq.s32.totalorder %s18, 0
    %p267 = por %p265, %p266
    %p268 = scmp.ne.s32.totalorder %s257, %s260
    %p269 = scmp.eq.s32.totalorder %s23, 2
    %p270 = por %p268, %p269
    %p271 = scmp.ne.s32.totalorder %s260, %s261
    %p272 = scmp.eq.s32.totalorder %s23, 0
    %p273 = por %p271, %p272
    %p274 = scmp.ne.s32.totalorder %s260, %s261
    %p275 = scmp.eq.s32.totalorder %s24, 2
    %p276 = por %p274, %p275
    %p278 = scmp.ne.s32.totalorder %s261, %s277
    %p279 = scmp.eq.s32.totalorder %s24, 0
    %p280 = por %p278, %p279
    %s281 = ssub.s32 %s18, %s25
    %p282 = scmp.eq.s32.totalorder %s281, 0
    %s284 = sadd.s32 %s283, 1
    %s285 = scalar_select %p282, %s283, %s284
    %p288 = pneg %p282
    %p289 = scmp.eq.s32.totalorder %s18, 2
    %p290 = por %p288, %p289
    %p291 = scmp.ne.s32.totalorder %s283, %s286
    %p292 = scmp.eq.s32.totalorder %s18, 0
    %p293 = por %p291, %p292
    %p294 = scmp.ne.s32.totalorder %s283, %s286
    %p295 = scmp.eq.s32.totalorder %s23, 2
    %p296 = por %p294, %p295
    %p297 = scmp.ne.s32.totalorder %s286, %s287
    %p298 = scmp.eq.s32.totalorder %s23, 0
    %p299 = por %p297, %p298
    %p300 = scmp.ne.s32.totalorder %s286, %s287
    %p301 = scmp.eq.s32.totalorder %s24, 2
    %p302 = por %p300, %p301
    %p304 = scmp.ne.s32.totalorder %s287, %s303
    %p305 = scmp.eq.s32.totalorder %s24, 0
    %p306 = por %p304, %p305
    %s307 = ssub.s32 %s18, %s25
    %p308 = scmp.eq.s32.totalorder %s307, 0
    %s310 = sadd.s32 %s309, 1
    %s311 = scalar_select %p308, %s309, %s310
    %p314 = pneg %p308
    %p315 = scmp.eq.s32.totalorder %s18, 2
    %p316 = por %p314, %p315
    %p317 = scmp.ne.s32.totalorder %s309, %s312
    %p318 = scmp.eq.s32.totalorder %s18, 0
    %p319 = por %p317, %p318
    %p320 = scmp.ne.s32.totalorder %s309, %s312
    %p321 = scmp.eq.s32.totalorder %s23, 2
    %p322 = por %p320, %p321
    %p323 = scmp.ne.s32.totalorder %s312, %s313
    %p324 = scmp.eq.s32.totalorder %s23, 0
    %p325 = por %p323, %p324
    %p326 = scmp.ne.s32.totalorder %s312, %s313
    %p327 = scmp.eq.s32.totalorder %s24, 2
    %p328 = por %p326, %p327
    %p330 = scmp.ne.s32.totalorder %s313, %s329
    %p331 = scmp.eq.s32.totalorder %s24, 0
    %p332 = por %p330, %p331
    %s333 = ssub.s32 %s18, %s25
    %p334 = scmp.eq.s32.totalorder %s333, 0
    %s336 = sadd.s32 %s335, 1
    %s337 = scalar_select %p334, %s335, %s336
    %p340 = pneg %p334
    %p341 = scmp.eq.s32.totalorder %s18, 2
    %p342 = por %p340, %p341
    %p343 = scmp.ne.s32.totalorder %s335, %s338
    %p344 = scmp.eq.s32.totalorder %s18, 0
    %p345 = por %p343, %p344
    %p346 = scmp.ne.s32.totalorder %s335, %s338
    %p347 = scmp.eq.s32.totalorder %s23, 2
    %p348 = por %p346, %p347
    %p349 = scmp.ne.s32.totalorder %s338, %s339
    %p350 = scmp.eq.s32.totalorder %s23, 0
    %p351 = por %p349, %p350
    %p352 = scmp.ne.s32.totalorder %s338, %s339
    %p353 = scmp.eq.s32.totalorder %s24, 2
    %p354 = por %p352, %p353
    %p356 = scmp.ne.s32.totalorder %s339, %s355
    %p357 = scmp.eq.s32.totalorder %s24, 0
    %p358 = por %p356, %p357
    %p359 = scmp.le.s32.totalorder 1, %s18
    %p360 = scmp.lt.s32.totalorder %s18, 4
    %p361 = pnand %p359, %p360
    %p362 = pneg %p361
    // Predicated region
    $region9: #{_lambda_.2} parent=5 // pred_check
      _
    $region10: #{_lambda_.2} parent=5 // pred_check_branch
      %364 = sbr.rel (%p361) target = $region12
    $region11: #{_lambda_.2} parent=5 // pred_region
      %s365 = ssub.s32 %s18, 1
      // Predicated region
      $region13: #{_lambda_.2} parent=11 // pred_check
        %p366 = pneg %p65
      $region14: #{_lambda_.2} parent=11 // pred_check_branch
        %368 = sbr.rel (%p366) target = $region16
      $region15: #{_lambda_.2} parent=11 // pred_region
        _
      $region16: #{_lambda_.2} parent=11 // pred_fallthru
        _
    $region12: #{_lambda_.2} parent=5 // pred_fallthru
      _
    %p369 = scmp.lt.s32.totalorder %s18, 3
    // Predicated region
    $region17: #{_lambda_.2} parent=5 // pred_check
      %p370 = pneg %p369
    $region18: #{_lambda_.2} parent=5 // pred_check_branch
      %372 = sbr.rel (%p370) target = $region20
    $region19: #{_lambda_.2} parent=5 // pred_region
      // Predicated region
      $region21: #{_lambda_.2} parent=19 // pred_check
        %p373 = pneg %p38
      $region22: #{_lambda_.2} parent=19 // pred_check_branch
        %375 = sbr.rel (%p373) target = $region24
      $region23: #{_lambda_.2} parent=19 // pred_region
        %p376 = scmp.lt.s32.totalorder %s18, 2
        %s377 = scalar_select %p376, %s18, 2
        %s378 = smul.addr %s377, 3
        %s379 = smul.addr %s378, 8
        %s380 = scalar_lea.vmem %s0, %s379
      $region24: #{_lambda_.2} parent=19 // pred_fallthru
        _
      // Predicated region
      $region25: #{_lambda_.2} parent=19 // pred_check
        %p381 = pneg %p85
      $region26: #{_lambda_.2} parent=19 // pred_check_branch
        %383 = sbr.rel (%p381) target = $region28
      $region27: #{_lambda_.2} parent=19 // pred_region
        %p384 = scmp.lt.s32.totalorder %s18, 2
        %s385 = scalar_select %p384, %s18, 2
        %s386 = scalar_lea.vmem %s2, %s385
      $region28: #{_lambda_.2} parent=19 // pred_fallthru
        _
      // Predicated region
      $region29: #{_lambda_.2} parent=19 // pred_check
        %p387 = pneg %p111
      $region30: #{_lambda_.2} parent=19 // pred_check_branch
        %389 = sbr.rel (%p387) target = $region32
      $region31: #{_lambda_.2} parent=19 // pred_region
        %p390 = scmp.lt.s32.totalorder %s18, 2
        %s391 = scalar_select %p390, %s18, 2
        %s392 = smul.addr %s391, 6
        %s393 = smul.addr %s392, 4
        %s394 = scalar_lea.vmem %s3, %s393
      $region32: #{_lambda_.2} parent=19 // pred_fallthru
        _
      // Predicated region
      $region33: #{_lambda_.2} parent=19 // pred_check
        %p395 = pneg %p137
      $region34: #{_lambda_.2} parent=19 // pred_check_branch
        %397 = sbr.rel (%p395) target = $region36
      $region35: #{_lambda_.2} parent=19 // pred_region
        %p398 = scmp.lt.s32.totalorder %s18, 2
        %s399 = scalar_select %p398, %s18, 2
        %s400 = smul.addr %s399, 2
        %s401 = smul.addr %s400, 8
        %s402 = scalar_lea.vmem %s4, %s401
      $region36: #{_lambda_.2} parent=19 // pred_fallthru
        _
      // Predicated region
      $region37: #{_lambda_.2} parent=19 // pred_check
        %p403 = pneg %p163
      $region38: #{_lambda_.2} parent=19 // pred_check_branch
        %405 = sbr.rel (%p403) target = $region40
      $region39: #{_lambda_.2} parent=19 // pred_region
        %p406 = scmp.lt.s32.totalorder %s18, 2
        %s407 = scalar_select %p406, %s18, 2
        %s408 = smul.addr %s407, 24
        %s409 = smul.addr %s408, 4
        %s410 = scalar_lea.vmem %s5, %s409
      $region40: #{_lambda_.2} parent=19 // pred_fallthru
        _
      // Predicated region
      $region41: #{_lambda_.2} parent=19 // pred_check
        %p411 = pneg %p189
      $region42: #{_lambda_.2} parent=19 // pred_check_branch
        %413 = sbr.rel (%p411) target = $region44
      $region43: #{_lambda_.2} parent=19 // pred_region
        %p414 = scmp.lt.s32.totalorder %s18, 2
        %s415 = scalar_select %p414, %s18, 2
        %s416 = smul.addr %s415, 12
        %s417 = smul.addr %s416, 4
        %s418 = scalar_lea.vmem %s6, %s417
      $region44: #{_lambda_.2} parent=19 // pred_fallthru
        _
      // Predicated region
      $region45: #{_lambda_.2} parent=19 // pred_check
        %p419 = pneg %p215
      $region46: #{_lambda_.2} parent=19 // pred_check_branch
        %421 = sbr.rel (%p419) target = $region48
      $region47: #{_lambda_.2} parent=19 // pred_region
        %p422 = scmp.lt.s32.totalorder %s18, 2
        %s423 = scalar_select %p422, %s18, 2
        %s424 = smul.addr %s423, 24
        %s425 = smul.addr %s424, 4
        %s426 = scalar_lea.vmem %s7, %s425
      $region48: #{_lambda_.2} parent=19 // pred_fallthru
        _
      // Predicated region
      $region49: #{_lambda_.2} parent=19 // pred_check
        %p427 = pneg %p241
      $region50: #{_lambda_.2} parent=19 // pred_check_branch
        %429 = sbr.rel (%p427) target = $region52
      $region51: #{_lambda_.2} parent=19 // pred_region
        %p430 = scmp.lt.s32.totalorder %s18, 2
        %s431 = scalar_select %p430, %s18, 2
        %s432 = smul.addr %s431, 48
        %s433 = smul.addr %s432, 4
        %s434 = scalar_lea.vmem %s8, %s433
      $region52: #{_lambda_.2} parent=19 // pred_fallthru
        _
      // Predicated region
      $region53: #{_lambda_.2} parent=19 // pred_check
        %p435 = pneg %p267
      $region54: #{_lambda_.2} parent=19 // pred_check_branch
        %437 = sbr.rel (%p435) target = $region56
      $region55: #{_lambda_.2} parent=19 // pred_region
        %p438 = scmp.lt.s32.totalorder %s18, 2
        %s439 = scalar_select %p438, %s18, 2
        %s440 = smul.addr %s439, 4
        %s441 = smul.addr %s440, 8
        %s442 = scalar_lea.vmem %s9, %s441
      $region56: #{_lambda_.2} parent=19 // pred_fallthru
        _
      // Predicated region
      $region57: #{_lambda_.2} parent=19 // pred_check
        %p443 = pneg %p293
      $region58: #{_lambda_.2} parent=19 // pred_check_branch
        %445 = sbr.rel (%p443) target = $region60
      $region59: #{_lambda_.2} parent=19 // pred_region
        %p446 = scmp.lt.s32.totalorder %s18, 2
        %s447 = scalar_select %p446, %s18, 2
        %s448 = smul.addr %s447, 6
        %s449 = smul.addr %s448, 4
        %s450 = scalar_lea.vmem %s10, %s449
      $region60: #{_lambda_.2} parent=19 // pred_fallthru
        _
      // Predicated region
      $region61: #{_lambda_.2} parent=19 // pred_check
        %p451 = pneg %p319
      $region62: #{_lambda_.2} parent=19 // pred_check_branch
        %453 = sbr.rel (%p451) target = $region64
      $region63: #{_lambda_.2} parent=19 // pred_region
        %p454 = scmp.lt.s32.totalorder %s18, 2
        %s455 = scalar_select %p454, %s18, 2
        %s456 = scalar_lea.vmem %s11, %s455
      $region64: #{_lambda_.2} parent=19 // pred_fallthru
        _
    $region20: #{_lambda_.2} parent=5 // pred_fallthru
      _
    %p457 = scmp.le.s32.totalorder 1, %s18
    %p458 = scmp.lt.s32.totalorder %s18, 4
    %p459 = pnand %p457, %p458
    %p460 = pneg %p459
    // Predicated region
    $region65: #{_lambda_.2} parent=5 // pred_check
      _
    $region66: #{_lambda_.2} parent=5 // pred_check_branch
      %462 = sbr.rel (%p459) target = $region68
    $region67: #{_lambda_.2} parent=5 // pred_region
      %s463 = ssub.s32 %s18, 1
      %p464 = scmp.lt.s32.totalorder %s23, 2
      %s465 = scalar_select %p464, %s23, 2
      %s466 = smul.addr %s465, 3
      %s467 = smul.addr %s466, 8
      %s468 = scalar_lea.vmem %s0, %s467
      %p469 = pneg %p44
      %p470 = pneg %p41
      %p471 = pneg %p65
      %p472 = pneg %p62
      %p473 = scmp.lt.s32.totalorder %s23, 2
      %s474 = scalar_select %p473, %s23, 2
      %s475 = scalar_lea.vmem %s2, %s474
      %p476 = pneg %p91
      %p477 = pneg %p88
      %p478 = scmp.lt.s32.totalorder %s23, 2
      %s479 = scalar_select %p478, %s23, 2
      %s480 = smul.addr %s479, 6
      %s481 = smul.addr %s480, 4
      %s482 = scalar_lea.vmem %s3, %s481
      %p483 = pneg %p117
      %p484 = pneg %p114
      %p485 = scmp.lt.s32.totalorder %s23, 2
      %s486 = scalar_select %p485, %s23, 2
      %s487 = smul.addr %s486, 2
      %s488 = smul.addr %s487, 8
      %s489 = scalar_lea.vmem %s4, %s488
      %p490 = pneg %p143
      %p491 = pneg %p140
      %p492 = scmp.lt.s32.totalorder %s23, 2
      %s493 = scalar_select %p492, %s23, 2
      %s494 = smul.addr %s493, 24
      %s495 = smul.addr %s494, 4
      %s496 = scalar_lea.vmem %s5, %s495
      %p497 = pneg %p169
      %p498 = pneg %p166
      %p499 = scmp.lt.s32.totalorder %s23, 2
      %s500 = scalar_select %p499, %s23, 2
      %s501 = smul.addr %s500, 12
      %s502 = smul.addr %s501, 4
      %s503 = scalar_lea.vmem %s6, %s502
      %p504 = pneg %p195
      %p505 = pneg %p192
      %p506 = scmp.lt.s32.totalorder %s23, 2
      %s507 = scalar_select %p506, %s23, 2
      %s508 = smul.addr %s507, 24
      %s509 = smul.addr %s508, 4
      %s510 = scalar_lea.vmem %s7, %s509
      %p511 = pneg %p221
      %p512 = pneg %p218
      %p513 = scmp.lt.s32.totalorder %s23, 2
      %s514 = scalar_select %p513, %s23, 2
      %s515 = smul.addr %s514, 48
      %s516 = smul.addr %s515, 4
      %s517 = scalar_lea.vmem %s8, %s516
      %p518 = pneg %p247
      %p519 = pneg %p244
      %p520 = scmp.lt.s32.totalorder %s23, 2
      %s521 = scalar_select %p520, %s23, 2
      %s522 = smul.addr %s521, 4
      %s523 = smul.addr %s522, 8
      %s524 = scalar_lea.vmem %s9, %s523
      %p525 = pneg %p273
      %p526 = pneg %p270
      %p527 = scmp.lt.s32.totalorder %s23, 2
      %s528 = scalar_select %p527, %s23, 2
      %s529 = smul.addr %s528, 6
      %s530 = smul.addr %s529, 4
      %s531 = scalar_lea.vmem %s10, %s530
      %p532 = pneg %p299
      %p533 = pneg %p296
      %p534 = scmp.lt.s32.totalorder %s23, 2
      %s535 = scalar_select %p534, %s23, 2
      %s536 = scalar_lea.vmem %s11, %s535
      %p537 = pneg %p325
      %p538 = pneg %p322
      %p539 = pneg %p351
      %p540 = pneg %p348
      %p541 = scmp.lt.s32.totalorder %s23, 2
      %s542 = scalar_select %p541, %s23, 2
      %s543 = smul.addr %s542, 3
      %s544 = smul.addr %s543, 8
      %s545 = scalar_lea.vmem %s12, %s544
      %p546 = scmp.lt.s32.totalorder %s23, 2
      %s547 = scalar_select %p546, %s23, 2
      %s548 = smul.addr %s547, 3
      %s549 = smul.addr %s548, 8
      %s550 = scalar_lea.vmem %s0, %s549
      %p551 = scmp.lt.s32.totalorder %s23, 2
      %s552 = scalar_select %p551, %s23, 2
      %s553 = scalar_lea.vmem %s2, %s552
      %p554 = scmp.lt.s32.totalorder %s23, 2
      %s555 = scalar_select %p554, %s23, 2
      %s556 = smul.addr %s555, 6
      %s557 = smul.addr %s556, 4
      %s558 = scalar_lea.vmem %s3, %s557
      %p559 = scmp.lt.s32.totalorder %s23, 2
      %s560 = scalar_select %p559, %s23, 2
      %s561 = smul.addr %s560, 2
      %s562 = smul.addr %s561, 8
      %s563 = scalar_lea.vmem %s4, %s562
      %p564 = scmp.lt.s32.totalorder %s23, 2
      %s565 = scalar_select %p564, %s23, 2
      %s566 = smul.addr %s565, 24
      %s567 = smul.addr %s566, 4
      %s568 = scalar_lea.vmem %s5, %s567
      %p569 = scmp.lt.s32.totalorder %s23, 2
      %s570 = scalar_select %p569, %s23, 2
      %s571 = smul.addr %s570, 12
      %s572 = smul.addr %s571, 4
      %s573 = scalar_lea.vmem %s6, %s572
      %p574 = scmp.lt.s32.totalorder %s23, 2
      %s575 = scalar_select %p574, %s23, 2
      %s576 = smul.addr %s575, 24
      %s577 = smul.addr %s576, 4
      %s578 = scalar_lea.vmem %s7, %s577
      %p579 = scmp.lt.s32.totalorder %s23, 2
      %s580 = scalar_select %p579, %s23, 2
      %s581 = smul.addr %s580, 48
      %s582 = smul.addr %s581, 4
      %s583 = scalar_lea.vmem %s8, %s582
      %p584 = scmp.lt.s32.totalorder %s23, 2
      %s585 = scalar_select %p584, %s23, 2
      %s586 = smul.addr %s585, 4
      %s587 = smul.addr %s586, 8
      %s588 = scalar_lea.vmem %s9, %s587
      %p589 = scmp.lt.s32.totalorder %s23, 2
      %s590 = scalar_select %p589, %s23, 2
      %s591 = smul.addr %s590, 6
      %s592 = smul.addr %s591, 4
      %s593 = scalar_lea.vmem %s10, %s592
      %p594 = scmp.lt.s32.totalorder %s23, 2
      %s595 = scalar_select %p594, %s23, 2
      %s596 = scalar_lea.vmem %s11, %s595
      %p597 = scmp.lt.s32.totalorder %s23, 2
      %s598 = scalar_select %p597, %s23, 2
      %s599 = smul.addr %s598, 3
      %s600 = smul.addr %s599, 8
      %s601 = scalar_lea.vmem %s12, %s600
      %v603 = vld [vmem:[%s553] sm:$0x1]
      %v604 = vld [vmem:[%s550] sm:$0xff]
      %v605 = vld [vmem:[%s550 + $0x8] sm:$0xff]
      %v606 = vld [vmem:[%s550 + $0x10] sm:$0x3]
      %v607 = vpack.c.bf16 %v605, %v604
      %v608 = vpack.c.bf16 %v606, %v606
      %v609 = vld [vmem:[%s558] sm:$0xf]
      %v610 = vld [vmem:[%s558 + $0x4] sm:$0xf]
      %v611 = vld [vmem:[%s558 + $0x8] sm:$0xf]
      %v612 = vld [vmem:[%s558 + $0xc] sm:$0xf]
      %v613 = vld [vmem:[%s558 + $0x10] sm:$0xf]
      %v614 = vld [vmem:[%s558 + $0x14] sm:$0xf]
      %v615 = vld [vmem:[%s563] sm:$0xff]
      %v616 = vld [vmem:[%s563 + $0x8] sm:$0x1]
      %vm619 = vcmask 1040384
      %v620 = vrot.slane %v615, 7
      %v621 = vrot.slane %v616, 7
      %v622 = vsel %vm619, %v620, %v621
      %v625 = vsel %vm619, %v616, %v620
      %v632 = vunpack.c.l.b16 %v609
      %v633 = vunpack.c.l.b16 %v610
      %v634 = vunpack.c.l.b16 %v611
      %v635 = vunpack.c.l.b16 %v612
      %v636 = vunpack.c.l.b16 %v613
      %v637 = vunpack.c.l.b16 %v614
      %v638 = vpack.c.b16 %v633, %v632
      %v639 = vpack.c.b16 %v635, %v634
      %v640 = vpack.c.b16 %v637, %v636
      %vm644 = vcmask 392192
      %v646 = vsel %vm644, %v607, 0
      %v649 = vsel %vm644, %v608, 0
      %651 = vmatpush.bf16.msra.mxu0 0
      %652 = vmatpush.bf16.msra.mxu0 0
      %653 = vmatpush.bf16.msra.mxu0 0
      %654 = vmatpush.bf16.msra.mxu0 0
      %655 = vmatpush.bf16.msra.mxu0 0
      %656 = vmatpush.bf16.msra.mxu0 %v640
      %657 = vmatpush.bf16.msra.mxu0 %v639
      %658 = vmatpush.bf16.msra.mxu0 %v638
      %659 = vmatmul.bf16.gmra.mxu0 %v646
      %v660 = vpop.f32.mrf.mxu0
      %v661 = vadd.f32 %v615, %v660
      %v662 = vpop.f32.mrf.mxu0
      %v663 = vadd.f32 %v625, %v662
      %664 = vmatmul.bf16.gmra.mxu0 %v649
      %v665 = vpop.f32.mrf.mxu0
      %v666 = vadd.f32 %v622, %v665
      %v667 = vpop.f32.mrf.mxu0
      %668 = vdwg.mxu0
      %v669 = vld [vmem:[%s568] sm:$0xff]
      %v670 = vld [vmem:[%s568 + $0x8] sm:$0xff]
      %v671 = vld [vmem:[%s568 + $0x10] sm:$0xff]
      %v672 = vld [vmem:[%s568 + $0x18] sm:$0xff]
      %v673 = vld [vmem:[%s568 + $0x20] sm:$0xff]
      %v674 = vld [vmem:[%s568 + $0x28] sm:$0xff]
      %v675 = vld [vmem:[%s568 + $0x30] sm:$0xff]
      %v676 = vld [vmem:[%s568 + $0x38] sm:$0xff]
      %v677 = vld [vmem:[%s568 + $0x40] sm:$0xff]
      %v678 = vld [vmem:[%s568 + $0x48] sm:$0xff]
      %v679 = vld [vmem:[%s568 + $0x50] sm:$0xff]
      %v680 = vld [vmem:[%s568 + $0x58] sm:$0xff]
      %v681 = vld [vmem:[%s573] sm:$0xf]
      %v682 = vld [vmem:[%s573 + $0x4] sm:$0xf]
      %v683 = vld [vmem:[%s573 + $0x8] sm:$0xf]
      %v684 = vld [vmem:[%s573 + $0xc] sm:$0xf]
      %v685 = vld [vmem:[%s573 + $0x10] sm:$0xf]
      %v686 = vld [vmem:[%s573 + $0x14] sm:$0xf]
      %v687 = vld [vmem:[%s573 + $0x18] sm:$0xf]
      %v688 = vld [vmem:[%s573 + $0x1c] sm:$0xf]
      %v689 = vld [vmem:[%s573 + $0x20] sm:$0xf]
      %v690 = vld [vmem:[%s573 + $0x24] sm:$0xf]
      %v691 = vld [vmem:[%s573 + $0x28] sm:$0xf]
      %v692 = vld [vmem:[%s573 + $0x2c] sm:$0xf]
      %v693 = vld [vmem:[%s578] sm:$0xff]
      %v694 = vld [vmem:[%s578 + $0x8] sm:$0xff]
      %v695 = vld [vmem:[%s578 + $0x10] sm:$0xff]
      %v696 = vld [vmem:[%s578 + $0x18] sm:$0xff]
      %v697 = vld [vmem:[%s578 + $0x20] sm:$0xff]
      %v698 = vld [vmem:[%s578 + $0x28] sm:$0xff]
      %v699 = vld [vmem:[%s578 + $0x30] sm:$0xff]
      %v700 = vld [vmem:[%s578 + $0x38] sm:$0xff]
      %v701 = vld [vmem:[%s578 + $0x40] sm:$0xff]
      %v702 = vld [vmem:[%s578 + $0x48] sm:$0xff]
      %v703 = vld [vmem:[%s578 + $0x50] sm:$0xff]
      %v704 = vld [vmem:[%s578 + $0x58] sm:$0xff]
      %v705 = vld [vmem:[%s583] sm:$0xf]
      %v706 = vld [vmem:[%s583 + $0x4] sm:$0xf]
      %v707 = vld [vmem:[%s583 + $0x8] sm:$0xf]
      %v708 = vld [vmem:[%s583 + $0xc] sm:$0xf]
      %v709 = vld [vmem:[%s583 + $0x10] sm:$0xf]
      %v710 = vld [vmem:[%s583 + $0x14] sm:$0xf]
      %v711 = vld [vmem:[%s583 + $0x18] sm:$0xf]
      %v712 = vld [vmem:[%s583 + $0x1c] sm:$0xf]
      %v713 = vld [vmem:[%s583 + $0x20] sm:$0xf]
      %v714 = vld [vmem:[%s583 + $0x24] sm:$0xf]
      %v715 = vld [vmem:[%s583 + $0x28] sm:$0xf]
      %v716 = vld [vmem:[%s583 + $0x2c] sm:$0xf]
      %v717 = vld [vmem:[%s583 + $0x30] sm:$0xf]
      %v718 = vld [vmem:[%s583 + $0x34] sm:$0xf]
      %v719 = vld [vmem:[%s583 + $0x38] sm:$0xf]
      %v720 = vld [vmem:[%s583 + $0x3c] sm:$0xf]
      %v721 = vld [vmem:[%s583 + $0x40] sm:$0xf]
      %v722 = vld [vmem:[%s583 + $0x44] sm:$0xf]
      %v723 = vld [vmem:[%s583 + $0x48] sm:$0xf]
      %v724 = vld [vmem:[%s583 + $0x4c] sm:$0xf]
      %v725 = vld [vmem:[%s583 + $0x50] sm:$0xf]
      %v726 = vld [vmem:[%s583 + $0x54] sm:$0xf]
      %v727 = vld [vmem:[%s583 + $0x58] sm:$0xf]
      %v728 = vld [vmem:[%s583 + $0x5c] sm:$0xf]
      %v729 = vld [vmem:[%s583 + $0x60] sm:$0xf]
      %v730 = vld [vmem:[%s583 + $0x64] sm:$0xf]
      %v731 = vld [vmem:[%s583 + $0x68] sm:$0xf]
      %v732 = vld [vmem:[%s583 + $0x6c] sm:$0xf]
      %v733 = vld [vmem:[%s583 + $0x70] sm:$0xf]
      %v734 = vld [vmem:[%s583 + $0x74] sm:$0xf]
      %v735 = vld [vmem:[%s583 + $0x78] sm:$0xf]
      %v736 = vld [vmem:[%s583 + $0x7c] sm:$0xf]
      %v737 = vld [vmem:[%s583 + $0x80] sm:$0xf]
      %v738 = vld [vmem:[%s583 + $0x84] sm:$0xf]
      %v739 = vld [vmem:[%s583 + $0x88] sm:$0xf]
      %v740 = vld [vmem:[%s583 + $0x8c] sm:$0xf]
      %v741 = vld [vmem:[%s583 + $0x90] sm:$0xf]
      %v742 = vld [vmem:[%s583 + $0x94] sm:$0xf]
      %v743 = vld [vmem:[%s583 + $0x98] sm:$0xf]
      %v744 = vld [vmem:[%s583 + $0x9c] sm:$0xf]
      %v745 = vld [vmem:[%s583 + $0xa0] sm:$0xf]
      %v746 = vld [vmem:[%s583 + $0xa4] sm:$0xf]
      %v747 = vld [vmem:[%s583 + $0xa8] sm:$0xf]
      %v748 = vld [vmem:[%s583 + $0xac] sm:$0xf]
      %v749 = vld [vmem:[%s583 + $0xb0] sm:$0xf]
      %v750 = vld [vmem:[%s583 + $0xb4] sm:$0xf]
      %v751 = vld [vmem:[%s583 + $0xb8] sm:$0xf]
      %v752 = vld [vmem:[%s583 + $0xbc] sm:$0xf]
      %v753 = vld [vmem:[%s588] sm:$0xff]
      %v754 = vld [vmem:[%s588 + $0x8] sm:$0xff]
      %v755 = vld [vmem:[%s588 + $0x10] sm:$0xff]
      %v756 = vld [vmem:[%s588 + $0x18] sm:$0xff]
      %v757 = vld [vmem:[%s1] sm:$0xff]
      %v758 = vld [vmem:[%s1 + $0x8] sm:$0xff]
      %v759 = vld [vmem:[%s1 + $0x10] sm:$0x3]
      %v760 = vpack.c.bf16 %v663, %v661
      %v761 = vpack.c.bf16 %v666, %v666
      %v762 = vperm.slane %v753, 0
      %v763 = vperm.slane %v754, 0
      %v770 = vunpack.c.l.b16 %v669
      %v771 = vunpack.c.h.b16 %v669
      %v772 = vunpack.c.l.b16 %v670
      %v773 = vunpack.c.h.b16 %v670
      %v774 = vunpack.c.l.b16 %v671
      %v775 = vunpack.c.h.b16 %v671
      %v776 = vunpack.c.l.b16 %v672
      %v777 = vunpack.c.h.b16 %v672
      %v778 = vunpack.c.l.b16 %v673
      %v779 = vunpack.c.h.b16 %v673
      %v780 = vunpack.c.l.b16 %v674
      %v781 = vunpack.c.h.b16 %v674
      %v782 = vpack.c.b16 %v772, %v770
      %v783 = vpack.c.b16 %v773, %v771
      %v784 = vpack.c.b16 %v776, %v774
      %v785 = vpack.c.b16 %v777, %v775
      %v786 = vpack.c.b16 %v780, %v778
      %v787 = vpack.c.b16 %v781, %v779
      %v795 = vsel %vm644, %v760, 0
      %v798 = vsel %vm644, %v761, 0
      %800 = vmatpush.bf16.msra.mxu0 0
      %801 = vmatpush.bf16.msra.mxu0 0
      %802 = vmatpush.bf16.msra.mxu0 0
      %803 = vmatpush.bf16.msra.mxu0 0
      %804 = vmatpush.bf16.msra.mxu0 0
      %805 = vmatpush.bf16.msra.mxu0 %v786
      %806 = vmatpush.bf16.msra.mxu0 %v784
      %807 = vmatpush.bf16.msra.mxu0 %v782
      %808 = vmatmul.bf16.gmra.mxu0 %v795
      %v809 = vpop.f32.mrf.mxu0
      %v810 = vadd.f32 %v762, %v809
      %v811 = vpop.f32.mrf.mxu0
      %v812 = vadd.f32 %v762, %v811
      %813 = vmatmul.bf16.gmra.mxu0 %v798
      %v814 = vpop.f32.mrf.mxu0
      %v815 = vadd.f32 %v762, %v814
      %v816 = vpop.f32.mrf.mxu0
      %817 = vdwg.mxu0
      %818 = vmatpush.bf16.msra.mxu0 0
      %819 = vmatpush.bf16.msra.mxu0 0
      %820 = vmatpush.bf16.msra.mxu0 0
      %821 = vmatpush.bf16.msra.mxu0 0
      %822 = vmatpush.bf16.msra.mxu0 0
      %823 = vmatpush.bf16.msra.mxu0 %v787
      %824 = vmatpush.bf16.msra.mxu0 %v785
      %825 = vmatpush.bf16.msra.mxu0 %v783
      %826 = vmatmul.bf16.gmra.mxu0 %v795
      %v827 = vpop.f32.mrf.mxu0
      %v828 = vadd.f32 %v763, %v827
      %v829 = vpop.f32.mrf.mxu0
      %v830 = vadd.f32 %v763, %v829
      %831 = vmatmul.bf16.gmra.mxu0 %v798
      %v832 = vpop.f32.mrf.mxu0
      %v833 = vadd.f32 %v763, %v832
      %v834 = vpop.f32.mrf.mxu0
      %835 = vdwg.mxu0
      %v836 = vpack.c.bf16 %v828, %v810
      %v837 = vpack.c.bf16 %v830, %v812
      %v838 = vpack.c.bf16 %v833, %v815
      %842 = vrot.lane.b32.xlu0 %v836, 116
      %v843 = vpop.permute.xlu0 %842
      %844 = vrot.lane.b32.xlu0 %v837, 116
      %v845 = vpop.permute.xlu0 %844
      %846 = vrot.lane.b32.xlu0 %v838, 116
      %v847 = vpop.permute.xlu0 %846
      %848 = vrot.lane.b32.xlu0 %v836, 104
      %v849 = vpop.permute.xlu0 %848
      %850 = vrot.lane.b32.xlu0 %v837, 104
      %v851 = vpop.permute.xlu0 %850
      %852 = vrot.lane.b32.xlu0 %v838, 104
      %v853 = vpop.permute.xlu0 %852
      %854 = vrot.lane.b32.xlu0 %v836, 92
      %v855 = vpop.permute.xlu0 %854
      %856 = vrot.lane.b32.xlu0 %v837, 92
      %v857 = vpop.permute.xlu0 %856
      %858 = vrot.lane.b32.xlu0 %v838, 92
      %v859 = vpop.permute.xlu0 %858
      %860 = vrot.lane.b32.xlu0 %v836, 124
      %v861 = vpop.permute.xlu0 %860
      %862 = vrot.lane.b32.xlu0 %v837, 124
      %v863 = vpop.permute.xlu0 %862
      %864 = vrot.lane.b32.xlu0 %v838, 124
      %v865 = vpop.permute.xlu0 %864
      %v866 = vrot.slane %v861, 4
      %v867 = vrot.slane %v863, 4
      %v868 = vrot.slane %v865, 4
      %v869 = vrot.slane %v849, 4
      %v870 = vrot.slane %v851, 4
      %v871 = vrot.slane %v853, 4
      %vm872 = vcmask 850944
      %v873 = vsel %vm872, %v849, %v869
      %v874 = vsel %vm872, %v851, %v870
      %v875 = vsel %vm872, %v853, %v871
      %876 = vrot.lane.b32.xlu0 %v866, 96
      %v877 = vpop.permute.xlu0 %876
      %878 = vrot.lane.b32.xlu0 %v867, 96
      %v879 = vpop.permute.xlu0 %878
      %880 = vrot.lane.b32.xlu0 %v868, 96
      %v881 = vpop.permute.xlu0 %880
      %v882 = vunpack.c.l.b16 %v836
      %v883 = vunpack.c.l.b16 %v837
      %v884 = vunpack.c.l.b16 %v838
      %v885 = vpack.c.b16 %v883, %v882
      %v886 = vpack.c.b16 %v884, %v884
      %887 = vrot.lane.b32.xlu0 %v885, 80
      %v888 = vpop.permute.xlu0 %887
      %889 = vrot.lane.b32.xlu0 %v886, 80
      %v890 = vpop.permute.xlu0 %889
      %vm891 = vcmask 97280
      %v893 = vsel %vm891, %v885, 0
      %v896 = vsel %vm891, %v886, 0
      %v899 = vsel %vm891, %v888, 0
      %v902 = vsel %vm891, %v890, 0
      %904 = vmatpush.bf16.xpose.msra.mxu0 0
      %905 = vmatpush.bf16.xpose.msra.mxu0 0
      %906 = vmatpush.bf16.xpose.msra.mxu0 0
      %907 = vmatpush.bf16.xpose.msra.mxu0 0
      %908 = vmatpush.bf16.xpose.msra.mxu0 0
      %909 = vmatpush.bf16.xpose.msra.mxu0 0
      %910 = vmatpush.bf16.xpose.msra.mxu0 %v902
      %911 = vmatpush.bf16.xpose.msra.mxu0 %v899
      %912 = vmatmul.bf16.gmra.mxu0 %v893
      %v913 = vpop.f32.mrf.mxu0
      %v914 = vadd.f32 %v757, %v913
      %v915 = vpop.f32.mrf.mxu0
      %v916 = vadd.f32 %v758, %v915
      %917 = vmatmul.bf16.gmra.mxu0 %v896
      %v918 = vpop.f32.mrf.mxu0
      %v919 = vadd.f32 %v759, %v918
      %v920 = vpop.f32.mrf.mxu0
      %921 = vdwg.mxu0
      %v922 = vunpack.c.l.b16 %v843
      %v923 = vunpack.c.l.b16 %v845
      %v924 = vunpack.c.l.b16 %v847
      %v925 = vpack.c.b16 %v923, %v922
      %v926 = vpack.c.b16 %v924, %v924
      %927 = vrot.lane.b32.xlu0 %v925, 80
      %v928 = vpop.permute.xlu0 %927
      %929 = vrot.lane.b32.xlu0 %v926, 80
      %v930 = vpop.permute.xlu0 %929
      %v932 = vsel %vm891, %v925, 0
      %v935 = vsel %vm891, %v926, 0
      %v938 = vsel %vm891, %v928, 0
      %v941 = vsel %vm891, %v930, 0
      %943 = vmatpush.bf16.xpose.msra.mxu0 0
      %944 = vmatpush.bf16.xpose.msra.mxu0 0
      %945 = vmatpush.bf16.xpose.msra.mxu0 0
      %946 = vmatpush.bf16.xpose.msra.mxu0 0
      %947 = vmatpush.bf16.xpose.msra.mxu0 0
      %948 = vmatpush.bf16.xpose.msra.mxu0 0
      %949 = vmatpush.bf16.xpose.msra.mxu0 %v941
      %950 = vmatpush.bf16.xpose.msra.mxu0 %v938
      %951 = vmatmul.bf16.gmra.mxu0 %v932
      %v952 = vpop.f32.mrf.mxu0
      %v953 = vadd.f32 %v757, %v952
      %v954 = vpop.f32.mrf.mxu0
      %v955 = vadd.f32 %v758, %v954
      %956 = vmatmul.bf16.gmra.mxu0 %v935
      %v957 = vpop.f32.mrf.mxu0
      %v958 = vadd.f32 %v759, %v957
      %v959 = vpop.f32.mrf.mxu0
      %960 = vdwg.mxu0
      %v961 = vunpack.c.l.b16 %v849
      %v962 = vunpack.c.l.b16 %v851
      %v963 = vunpack.c.l.b16 %v853
      %v964 = vpack.c.b16 %v962, %v961
      %v965 = vpack.c.b16 %v963, %v963
      %966 = vrot.lane.b32.xlu0 %v964, 80
      %v967 = vpop.permute.xlu0 %966
      %968 = vrot.lane.b32.xlu0 %v965, 80
      %v969 = vpop.permute.xlu0 %968
      %v971 = vsel %vm891, %v964, 0
      %v974 = vsel %vm891, %v965, 0
      %v977 = vsel %vm891, %v967, 0
      %v980 = vsel %vm891, %v969, 0
      %982 = vmatpush.bf16.xpose.msra.mxu0 0
      %983 = vmatpush.bf16.xpose.msra.mxu0 0
      %984 = vmatpush.bf16.xpose.msra.mxu0 0
      %985 = vmatpush.bf16.xpose.msra.mxu0 0
      %986 = vmatpush.bf16.xpose.msra.mxu0 0
      %987 = vmatpush.bf16.xpose.msra.mxu0 0
      %988 = vmatpush.bf16.xpose.msra.mxu0 %v980
      %989 = vmatpush.bf16.xpose.msra.mxu0 %v977
      %990 = vmatmul.bf16.gmra.mxu0 %v971
      %v991 = vpop.f32.mrf.mxu0
      %v992 = vadd.f32 %v757, %v991
      %v993 = vpop.f32.mrf.mxu0
      %v994 = vadd.f32 %v758, %v993
      %995 = vmatmul.bf16.gmra.mxu0 %v974
      %v996 = vpop.f32.mrf.mxu0
      %v997 = vadd.f32 %v759, %v996
      %v998 = vpop.f32.mrf.mxu0
      %999 = vdwg.mxu0
      %v1000 = vunpack.c.l.b16 %v855
      %v1001 = vunpack.c.l.b16 %v857
      %v1002 = vunpack.c.l.b16 %v859
      %v1003 = vpack.c.b16 %v1001, %v1000
      %v1004 = vpack.c.b16 %v1002, %v1002
      %1005 = vrot.lane.b32.xlu0 %v1003, 80
      %v1006 = vpop.permute.xlu0 %1005
      %1007 = vrot.lane.b32.xlu0 %v1004, 80
      %v1008 = vpop.permute.xlu0 %1007
      %v1010 = vsel %vm891, %v1003, 0
      %v1013 = vsel %vm891, %v1004, 0
      %v1016 = vsel %vm891, %v1006, 0
      %v1019 = vsel %vm891, %v1008, 0
      %1021 = vmatpush.bf16.xpose.msra.mxu0 0
      %1022 = vmatpush.bf16.xpose.msra.mxu0 0
      %1023 = vmatpush.bf16.xpose.msra.mxu0 0
      %1024 = vmatpush.bf16.xpose.msra.mxu0 0
      %1025 = vmatpush.bf16.xpose.msra.mxu0 0
      %1026 = vmatpush.bf16.xpose.msra.mxu0 0
      %1027 = vmatpush.bf16.xpose.msra.mxu0 %v1019
      %1028 = vmatpush.bf16.xpose.msra.mxu0 %v1016
      %1029 = vmatmul.bf16.gmra.mxu0 %v1010
      %v1030 = vpop.f32.mrf.mxu0
      %v1031 = vadd.f32 %v757, %v1030
      %v1032 = vpop.f32.mrf.mxu0
      %v1033 = vadd.f32 %v758, %v1032
      %1034 = vmatmul.bf16.gmra.mxu0 %v1013
      %v1035 = vpop.f32.mrf.mxu0
      %v1036 = vadd.f32 %v759, %v1035
      %v1037 = vpop.f32.mrf.mxu0
      %1038 = vdwg.mxu0
      %vm1039 = vcmask 146432
      %v1040 = vsel %vm1039, %v914, -inf
      %1041 = vmax.xlane.f32.xlu0 %v1040
      %v1042 = vpop.xlane.xlu0 %1041
      %v1043 = vsel %vm1039, %v916, -inf
      %1044 = vmax.xlane.f32.xlu0 %v1043
      %v1045 = vpop.xlane.xlu0 %1044
      %vm1046 = vcmask 140288
      %v1047 = vsel %vm1046, %v919, -inf
      %1048 = vmax.xlane.f32.xlu0 %v1047
      %v1049 = vpop.xlane.xlu0 %1048
      %v1050 = vsel %vm1039, %v953, -inf
      %1051 = vmax.xlane.f32.xlu0 %v1050
      %v1052 = vpop.xlane.xlu0 %1051
      %v1053 = vsel %vm1039, %v955, -inf
      %1054 = vmax.xlane.f32.xlu0 %v1053
      %v1055 = vpop.xlane.xlu0 %1054
      %v1056 = vsel %vm1046, %v958, -inf
      %1057 = vmax.xlane.f32.xlu0 %v1056
      %v1058 = vpop.xlane.xlu0 %1057
      %v1059 = vsel %vm1039, %v992, -inf
      %1060 = vmax.xlane.f32.xlu0 %v1059
      %v1061 = vpop.xlane.xlu0 %1060
      %v1062 = vsel %vm1039, %v994, -inf
      %1063 = vmax.xlane.f32.xlu0 %v1062
      %v1064 = vpop.xlane.xlu0 %1063
      %v1065 = vsel %vm1046, %v997, -inf
      %1066 = vmax.xlane.f32.xlu0 %v1065
      %v1067 = vpop.xlane.xlu0 %1066
      %v1068 = vsel %vm1039, %v1031, -inf
      %1069 = vmax.xlane.f32.xlu0 %v1068
      %v1070 = vpop.xlane.xlu0 %1069
      %v1071 = vsel %vm1039, %v1033, -inf
      %1072 = vmax.xlane.f32.xlu0 %v1071
      %v1073 = vpop.xlane.xlu0 %1072
      %v1074 = vsel %vm1046, %v1036, -inf
      %1075 = vmax.xlane.f32.xlu0 %v1074
      %v1076 = vpop.xlane.xlu0 %1075
      %v1077 = vsub.f32 %v914, %v1042
      %v1078 = vsub.f32 %v916, %v1045
      %v1079 = vsub.f32 %v919, %v1049
      %v1080 = vsub.f32 %v953, %v1052
      %v1081 = vsub.f32 %v955, %v1055
      %v1082 = vsub.f32 %v958, %v1058
      %v1083 = vsub.f32 %v992, %v1061
      %v1084 = vsub.f32 %v994, %v1064
      %v1085 = vsub.f32 %v997, %v1067
      %v1086 = vsub.f32 %v1031, %v1070
      %v1087 = vsub.f32 %v1033, %v1073
      %v1088 = vsub.f32 %v1036, %v1076
      %v1089 = vmul.f32 %v1077, 1.442695
      %v1090 = vpow.pop %v1089
      %v1091 = vmul.f32 %v1078, 1.442695
      %v1092 = vpow.pop %v1091
      %v1093 = vmul.f32 %v1079, 1.442695
      %v1094 = vpow.pop %v1093
      %v1095 = vmul.f32 %v1080, 1.442695
      %v1096 = vpow.pop %v1095
      %v1097 = vmul.f32 %v1081, 1.442695
      %v1098 = vpow.pop %v1097
      %v1099 = vmul.f32 %v1082, 1.442695
      %v1100 = vpow.pop %v1099
      %v1101 = vmul.f32 %v1083, 1.442695
      %v1102 = vpow.pop %v1101
      %v1103 = vmul.f32 %v1084, 1.442695
      %v1104 = vpow.pop %v1103
      %v1105 = vmul.f32 %v1085, 1.442695
      %v1106 = vpow.pop %v1105
      %v1107 = vmul.f32 %v1086, 1.442695
      %v1108 = vpow.pop %v1107
      %v1109 = vmul.f32 %v1087, 1.442695
      %v1110 = vpow.pop %v1109
      %v1111 = vmul.f32 %v1088, 1.442695
      %v1112 = vpow.pop %v1111
      %v1113 = vsel %vm1039, %v1090, 0.0
      %1114 = vadd.xlane.f32.xlu0 %v1113
      %v1115 = vpop.xlane.xlu0 %1114
      %v1116 = vsel %vm1039, %v1092, 0.0
      %1117 = vadd.xlane.f32.xlu0 %v1116
      %v1118 = vpop.xlane.xlu0 %1117
      %v1119 = vsel %vm1046, %v1094, 0.0
      %1120 = vadd.xlane.f32.xlu0 %v1119
      %v1121 = vpop.xlane.xlu0 %1120
      %v1122 = vsel %vm1039, %v1096, 0.0
      %1123 = vadd.xlane.f32.xlu0 %v1122
      %v1124 = vpop.xlane.xlu0 %1123
      %v1125 = vsel %vm1039, %v1098, 0.0
      %1126 = vadd.xlane.f32.xlu0 %v1125
      %v1127 = vpop.xlane.xlu0 %1126
      %v1128 = vsel %vm1046, %v1100, 0.0
      %1129 = vadd.xlane.f32.xlu0 %v1128
      %v1130 = vpop.xlane.xlu0 %1129
      %v1131 = vsel %vm1039, %v1102, 0.0
      %1132 = vadd.xlane.f32.xlu0 %v1131
      %v1133 = vpop.xlane.xlu0 %1132
      %v1134 = vsel %vm1039, %v1104, 0.0
      %1135 = vadd.xlane.f32.xlu0 %v1134
      %v1136 = vpop.xlane.xlu0 %1135
      %v1137 = vsel %vm1046, %v1106, 0.0
      %1138 = vadd.xlane.f32.xlu0 %v1137
      %v1139 = vpop.xlane.xlu0 %1138
      %v1140 = vsel %vm1039, %v1108, 0.0
      %1141 = vadd.xlane.f32.xlu0 %v1140
      %v1142 = vpop.xlane.xlu0 %1141
      %v1143 = vsel %vm1039, %v1110, 0.0
      %1144 = vadd.xlane.f32.xlu0 %v1143
      %v1145 = vpop.xlane.xlu0 %1144
      %v1146 = vsel %vm1046, %v1112, 0.0
      %1147 = vadd.xlane.f32.xlu0 %v1146
      %v1148 = vpop.xlane.xlu0 %1147
      %v1149 = vrcp.pop %v1115
      %v1150 = vrcp.pop %v1118
      %v1151 = vrcp.pop %v1121
      %v1152 = vrcp.pop %v1124
      %v1153 = vrcp.pop %v1127
      %v1154 = vrcp.pop %v1130
      %v1155 = vrcp.pop %v1133
      %v1156 = vrcp.pop %v1136
      %v1157 = vrcp.pop %v1139
      %v1158 = vrcp.pop %v1142
      %v1159 = vrcp.pop %v1145
      %v1160 = vrcp.pop %v1148
      %v1161 = vmul.f32 %v1090, %v1149
      %v1162 = vmul.f32 %v1092, %v1150
      %v1163 = vmul.f32 %v1094, %v1151
      %v1164 = vmul.f32 %v1096, %v1152
      %v1165 = vmul.f32 %v1098, %v1153
      %v1166 = vmul.f32 %v1100, %v1154
      %v1167 = vmul.f32 %v1102, %v1155
      %v1168 = vmul.f32 %v1104, %v1156
      %v1169 = vmul.f32 %v1106, %v1157
      %v1170 = vmul.f32 %v1108, %v1158
      %v1171 = vmul.f32 %v1110, %v1159
      %v1172 = vmul.f32 %v1112, %v1160
      %v1173 = vpack.c.bf16 %v1161, %v1161
      %v1174 = vpack.c.bf16 %v1162, %v1162
      %v1175 = vpack.c.bf16 %v1163, %v1163
      %v1176 = vpack.c.bf16 %v1164, %v1164
      %v1177 = vpack.c.bf16 %v1165, %v1165
      %v1178 = vpack.c.bf16 %v1166, %v1166
      %v1179 = vpack.c.bf16 %v1167, %v1167
      %v1180 = vpack.c.bf16 %v1168, %v1168
      %v1181 = vpack.c.bf16 %v1169, %v1169
      %v1182 = vpack.c.bf16 %v1170, %v1170
      %v1183 = vpack.c.bf16 %v1171, %v1171
      %v1184 = vpack.c.bf16 %v1172, %v1172
      %v1188 = vunpack.c.l.b16 %v1173
      %v1189 = vunpack.c.l.b16 %v1174
      %v1190 = vunpack.c.l.b16 %v1175
      %v1191 = vpack.c.b16 %v1189, %v1188
      %v1192 = vpack.c.b16 %v1190, %v1190
      %1193 = vrot.lane.b32.xlu0 %v885, 32
      %v1194 = vpop.permute.xlu0 %1193
      %1195 = vrot.lane.b32.xlu0 %v886, 32
      %v1196 = vpop.permute.xlu0 %1195
      %v1199 = vsel %vm1039, %v1191, 0
      %v1202 = vsel %vm1039, %v1192, 0
      %v1205 = vsel %vm619, %v1196, 0
      %1207 = vmatpush.bf16.msra.mxu0 0
      %1208 = vmatpush.bf16.msra.mxu0 0
      %1209 = vmatpush.bf16.msra.mxu0 0
      %1210 = vmatpush.bf16.msra.mxu0 0
      %1211 = vmatpush.bf16.msra.mxu0 0
      %1212 = vmatpush.bf16.msra.mxu0 0
      %1213 = vmatpush.bf16.msra.mxu0 %v1205
      %1214 = vmatpush.bf16.msra.mxu0 %v1194
      %1215 = vmatmul.bf16.gmra.mxu0 %v1199
      %v1216 = vpop.f32.mrf.mxu0
      %v1217 = vadd.f32 0.0, %v1216
      %v1218 = vpop.f32.mrf.mxu0
      %v1219 = vadd.f32 0.0, %v1218
      %1220 = vmatmul.bf16.gmra.mxu0 %v1202
      %v1221 = vpop.f32.mrf.mxu0
      %v1222 = vadd.f32 0.0, %v1221
      %v1223 = vpop.f32.mrf.mxu0
      %1224 = vdwg.mxu0
      %v1228 = vunpack.c.l.b16 %v1176
      %v1229 = vunpack.c.l.b16 %v1177
      %v1230 = vunpack.c.l.b16 %v1178
      %v1231 = vpack.c.b16 %v1229, %v1228
      %v1232 = vpack.c.b16 %v1230, %v1230
      %1233 = vrot.lane.b32.xlu0 %v925, 32
      %v1234 = vpop.permute.xlu0 %1233
      %1235 = vrot.lane.b32.xlu0 %v926, 32
      %v1236 = vpop.permute.xlu0 %1235
      %v1239 = vsel %vm1039, %v1231, 0
      %v1242 = vsel %vm1039, %v1232, 0
      %v1245 = vsel %vm619, %v1236, 0
      %1247 = vmatpush.bf16.msra.mxu0 0
      %1248 = vmatpush.bf16.msra.mxu0 0
      %1249 = vmatpush.bf16.msra.mxu0 0
      %1250 = vmatpush.bf16.msra.mxu0 0
      %1251 = vmatpush.bf16.msra.mxu0 0
      %1252 = vmatpush.bf16.msra.mxu0 0
      %1253 = vmatpush.bf16.msra.mxu0 %v1245
      %1254 = vmatpush.bf16.msra.mxu0 %v1234
      %1255 = vmatmul.bf16.gmra.mxu0 %v1239
      %v1256 = vpop.f32.mrf.mxu0
      %v1257 = vadd.f32 0.0, %v1256
      %v1258 = vpop.f32.mrf.mxu0
      %v1259 = vadd.f32 0.0, %v1258
      %1260 = vmatmul.bf16.gmra.mxu0 %v1242
      %v1261 = vpop.f32.mrf.mxu0
      %v1262 = vadd.f32 0.0, %v1261
      %v1263 = vpop.f32.mrf.mxu0
      %1264 = vdwg.mxu0
      %v1268 = vunpack.c.l.b16 %v1179
      %v1269 = vunpack.c.l.b16 %v1180
      %v1270 = vunpack.c.l.b16 %v1181
      %v1271 = vpack.c.b16 %v1269, %v1268
      %v1272 = vpack.c.b16 %v1270, %v1270
      %v1273 = vunpack.c.l.b16 %v873
      %v1274 = vunpack.c.l.b16 %v874
      %v1275 = vunpack.c.l.b16 %v875
      %v1276 = vpack.c.b16 %v1274, %v1273
      %v1277 = vpack.c.b16 %v1275, %v1275
      %1278 = vrot.lane.b32.xlu0 %v1276, 32
      %v1279 = vpop.permute.xlu0 %1278
      %1280 = vrot.lane.b32.xlu0 %v1277, 32
      %v1281 = vpop.permute.xlu0 %1280
      %v1284 = vsel %vm1039, %v1271, 0
      %v1287 = vsel %vm1039, %v1272, 0
      %v1290 = vsel %vm619, %v1281, 0
      %1292 = vmatpush.bf16.msra.mxu0 0
      %1293 = vmatpush.bf16.msra.mxu0 0
      %1294 = vmatpush.bf16.msra.mxu0 0
      %1295 = vmatpush.bf16.msra.mxu0 0
      %1296 = vmatpush.bf16.msra.mxu0 0
      %1297 = vmatpush.bf16.msra.mxu0 0
      %1298 = vmatpush.bf16.msra.mxu0 %v1290
      %1299 = vmatpush.bf16.msra.mxu0 %v1279
      %1300 = vmatmul.bf16.gmra.mxu0 %v1284
      %v1301 = vpop.f32.mrf.mxu0
      %v1302 = vadd.f32 0.0, %v1301
      %v1303 = vpop.f32.mrf.mxu0
      %v1304 = vadd.f32 0.0, %v1303
      %1305 = vmatmul.bf16.gmra.mxu0 %v1287
      %v1306 = vpop.f32.mrf.mxu0
      %v1307 = vadd.f32 0.0, %v1306
      %v1308 = vpop.f32.mrf.mxu0
      %1309 = vdwg.mxu0
      %v1313 = vunpack.c.l.b16 %v1182
      %v1314 = vunpack.c.l.b16 %v1183
      %v1315 = vunpack.c.l.b16 %v1184
      %v1316 = vpack.c.b16 %v1314, %v1313
      %v1317 = vpack.c.b16 %v1315, %v1315
      %v1318 = vunpack.c.l.b16 %v877
      %v1319 = vunpack.c.l.b16 %v879
      %v1320 = vunpack.c.l.b16 %v881
      %v1321 = vpack.c.b16 %v1319, %v1318
      %v1322 = vpack.c.b16 %v1320, %v1320
      %1323 = vrot.lane.b32.xlu0 %v1321, 32
      %v1324 = vpop.permute.xlu0 %1323
      %1325 = vrot.lane.b32.xlu0 %v1322, 32
      %v1326 = vpop.permute.xlu0 %1325
      %v1329 = vsel %vm1039, %v1316, 0
      %v1332 = vsel %vm1039, %v1317, 0
      %v1335 = vsel %vm619, %v1326, 0
      %1337 = vmatpush.bf16.msra.mxu0 0
      %1338 = vmatpush.bf16.msra.mxu0 0
      %1339 = vmatpush.bf16.msra.mxu0 0
      %1340 = vmatpush.bf16.msra.mxu0 0
      %1341 = vmatpush.bf16.msra.mxu0 0
      %1342 = vmatpush.bf16.msra.mxu0 0
      %1343 = vmatpush.bf16.msra.mxu0 %v1335
      %1344 = vmatpush.bf16.msra.mxu0 %v1324
      %1345 = vmatmul.bf16.gmra.mxu0 %v1329
      %v1346 = vpop.f32.mrf.mxu0
      %v1347 = vadd.f32 0.0, %v1346
      %v1348 = vpop.f32.mrf.mxu0
      %v1349 = vadd.f32 0.0, %v1348
      %1350 = vmatmul.bf16.gmra.mxu0 %v1332
      %v1351 = vpop.f32.mrf.mxu0
      %v1352 = vadd.f32 0.0, %v1351
      %v1353 = vpop.f32.mrf.mxu0
      %1354 = vdwg.mxu0
      %1358 = vrot.lane.b32.xlu0 %v1257, 12
      %v1359 = vpop.permute.xlu0 %1358
      %1360 = vrot.lane.b32.xlu0 %v1259, 12
      %v1361 = vpop.permute.xlu0 %1360
      %1362 = vrot.lane.b32.xlu0 %v1262, 12
      %v1363 = vpop.permute.xlu0 %1362
      %1370 = vrot.lane.b32.xlu0 %v1302, 24
      %v1371 = vpop.permute.xlu0 %1370
      %1372 = vrot.lane.b32.xlu0 %v1304, 24
      %v1373 = vpop.permute.xlu0 %1372
      %1374 = vrot.lane.b32.xlu0 %v1307, 24
      %v1375 = vpop.permute.xlu0 %1374
      %1382 = vrot.lane.b32.xlu0 %v1347, 36
      %v1383 = vpop.permute.xlu0 %1382
      %1384 = vrot.lane.b32.xlu0 %v1349, 36
      %v1385 = vpop.permute.xlu0 %1384
      %1386 = vrot.lane.b32.xlu0 %v1352, 36
      %v1387 = vpop.permute.xlu0 %1386
      %v1391 = vsel %vm891, %v1217, %v1359
      %v1392 = vsel %vm891, %v1219, %v1361
      %v1393 = vsel %vm891, %v1222, %v1363
      %vm1394 = vcmask 195584
      %v1395 = vsel %vm1394, %v1391, %v1371
      %v1396 = vsel %vm1394, %v1392, %v1373
      %v1397 = vsel %vm1394, %v1393, %v1375
      %vm1398 = vcmask 293888
      %v1399 = vsel %vm1398, %v1395, %v1383
      %v1400 = vsel %vm1398, %v1396, %v1385
      %v1401 = vsel %vm1398, %v1397, %v1387
      %v1402 = vpack.c.bf16 %v1400, %v1399
      %v1403 = vpack.c.bf16 %v1401, %v1401
      %v1404 = vperm.slane %v753, 1
      %v1411 = vunpack.c.l.b16 %v681
      %v1412 = vunpack.c.l.b16 %v682
      %v1413 = vunpack.c.l.b16 %v683
      %v1414 = vunpack.c.l.b16 %v684
      %v1415 = vunpack.c.l.b16 %v685
      %v1416 = vunpack.c.l.b16 %v686
      %v1417 = vpack.c.b16 %v1412, %v1411
      %v1418 = vpack.c.b16 %v1414, %v1413
      %v1419 = vpack.c.b16 %v1416, %v1415
      %v1424 = vsel %vm644, %v1402, 0
      %v1427 = vsel %vm644, %v1403, 0
      %1429 = vmatpush.bf16.msra.mxu0 0
      %1430 = vmatpush.bf16.msra.mxu0 0
      %1431 = vmatpush.bf16.msra.mxu0 0
      %1432 = vmatpush.bf16.msra.mxu0 0
      %1433 = vmatpush.bf16.msra.mxu0 0
      %1434 = vmatpush.bf16.msra.mxu0 %v1419
      %1435 = vmatpush.bf16.msra.mxu0 %v1418
      %1436 = vmatpush.bf16.msra.mxu0 %v1417
      %1437 = vmatmul.bf16.gmra.mxu0 %v1424
      %v1438 = vpop.f32.mrf.mxu0
      %v1439 = vadd.f32 %v1404, %v1438
      %v1440 = vpop.f32.mrf.mxu0
      %v1441 = vadd.f32 %v1404, %v1440
      %1442 = vmatmul.bf16.gmra.mxu0 %v1427
      %v1443 = vpop.f32.mrf.mxu0
      %v1444 = vadd.f32 %v1404, %v1443
      %v1445 = vpop.f32.mrf.mxu0
      %1446 = vdwg.mxu0
      %v1447 = vadd.f32 %v661, %v1439
      %v1448 = vadd.f32 %v663, %v1441
      %v1449 = vadd.f32 %v666, %v1444
      %v1450 = vsel %vm644, %v1447, 0.0
      %1451 = vadd.xlane.f32.xlu0 %v1450
      %v1452 = vpop.xlane.xlu0 %1451
      %v1453 = vsel %vm644, %v1448, 0.0
      %1454 = vadd.xlane.f32.xlu0 %v1453
      %v1455 = vpop.xlane.xlu0 %1454
      %vm1456 = vcmask 386048
      %v1457 = vsel %vm1456, %v1449, 0.0
      %1458 = vadd.xlane.f32.xlu0 %v1457
      %v1459 = vpop.xlane.xlu0 %1458
      %v1461 = vperm.slane %v603, 0
      %v1463 = vmul.f32 %v1452, %v1461
      %v1464 = vmul.f32 %v1455, %v1461
      %v1465 = vmul.f32 %v1459, %v1461
      %v1466 = vmul.f32 %v1447, %v1447
      %v1467 = vmul.f32 %v1448, %v1448
      %v1468 = vmul.f32 %v1449, %v1449
      %v1469 = vsel %vm644, %v1466, 0.0
      %1470 = vadd.xlane.f32.xlu0 %v1469
      %v1471 = vpop.xlane.xlu0 %1470
      %v1472 = vsel %vm644, %v1467, 0.0
      %1473 = vadd.xlane.f32.xlu0 %v1472
      %v1474 = vpop.xlane.xlu0 %1473
      %v1475 = vsel %vm1456, %v1468, 0.0
      %1476 = vadd.xlane.f32.xlu0 %v1475
      %v1477 = vpop.xlane.xlu0 %1476
      %v1478 = vmul.f32 %v1471, %v1461
      %v1479 = vmul.f32 %v1474, %v1461
      %v1480 = vmul.f32 %v1477, %v1461
      %v1481 = vmul.f32 %v1463, %v1463
      %v1482 = vmul.f32 %v1464, %v1464
      %v1483 = vmul.f32 %v1465, %v1465
      %v1484 = vsub.f32 %v1478, %v1481
      %v1485 = vsub.f32 %v1479, %v1482
      %v1486 = vsub.f32 %v1480, %v1483
      %1488 = vset.pattern.permute.xlu0 0
      %1489 = vperm.xlu0 %1488, %v1463
      %v1490 = vpop.permute.xlu0 %1489
      %1493 = vset.pattern.permute.xlu0 0
      %1494 = vperm.xlu0 %1493, %v1464
      %v1495 = vpop.permute.xlu0 %1494
      %1498 = vset.pattern.permute.xlu0 0
      %1499 = vperm.xlu0 %1498, %v1465
      %v1500 = vpop.permute.xlu0 %1499
      %v1502 = vsub.f32 %v1447, %v1490
      %v1503 = vsub.f32 %v1448, %v1495
      %v1504 = vsub.f32 %v1449, %v1500
      %v1505 = vadd.f32 %v1484, 1e-05
      %v1506 = vadd.f32 %v1485, 1e-05
      %v1507 = vadd.f32 %v1486, 1e-05
      %v1508 = vrsqrt.pop %v1505
      %v1509 = vmul.f32 %v1508, %v1505
      %v1510 = vmul.f32 %v1509, %v1508
      %v1511 = vmul.f32 0.5, %v1510
      %v1512 = vsub.f32 1.5, %v1511
      %v1513 = vmul.f32 %v1508, %v1512
      %vm1514 = vweird.f32 %v1505
      %vm1515 = vweird.f32 %v1508
      %vm1516 = vmor %vm1514, %vm1515
      %v1517 = vsel %vm1516, %v1508, %v1513
      %v1518 = vrsqrt.pop %v1506
      %v1519 = vmul.f32 %v1518, %v1506
      %v1520 = vmul.f32 %v1519, %v1518
      %v1521 = vmul.f32 0.5, %v1520
      %v1522 = vsub.f32 1.5, %v1521
      %v1523 = vmul.f32 %v1518, %v1522
      %vm1524 = vweird.f32 %v1506
      %vm1525 = vweird.f32 %v1518
      %vm1526 = vmor %vm1524, %vm1525
      %v1527 = vsel %vm1526, %v1518, %v1523
      %v1528 = vrsqrt.pop %v1507
      %v1529 = vmul.f32 %v1528, %v1507
      %v1530 = vmul.f32 %v1529, %v1528
      %v1531 = vmul.f32 0.5, %v1530
      %v1532 = vsub.f32 1.5, %v1531
      %v1533 = vmul.f32 %v1528, %v1532
      %vm1534 = vweird.f32 %v1507
      %vm1535 = vweird.f32 %v1528
      %vm1536 = vmor %vm1534, %vm1535
      %v1537 = vsel %vm1536, %v1528, %v1533
      %1539 = vset.pattern.permute.xlu0 0
      %1540 = vperm.xlu0 %1539, %v1517
      %v1541 = vpop.permute.xlu0 %1540
      %1544 = vset.pattern.permute.xlu0 0
      %1545 = vperm.xlu0 %1544, %v1527
      %v1546 = vpop.permute.xlu0 %1545
      %1549 = vset.pattern.permute.xlu0 0
      %1550 = vperm.xlu0 %1549, %v1537
      %v1551 = vpop.permute.xlu0 %1550
      %v1553 = vmul.f32 %v1502, %v1541
      %v1554 = vmul.f32 %v1503, %v1546
      %v1555 = vmul.f32 %v1504, %v1551
      %v1556 = vperm.slane %v753, 4
      %v1557 = vmul.f32 %v1553, %v1556
      %v1558 = vmul.f32 %v1554, %v1556
      %v1559 = vmul.f32 %v1555, %v1556
      %v1560 = vperm.slane %v753, 5
      %v1561 = vadd.f32 %v1557, %v1560
      %v1562 = vadd.f32 %v1558, %v1560
      %v1563 = vadd.f32 %v1559, %v1560
      %v1564 = vpack.c.bf16 %v1562, %v1561
      %v1565 = vpack.c.bf16 %v1563, %v1563
      %v1566 = vperm.slane %v753, 2
      %v1567 = vperm.slane %v754, 2
      %v1574 = vunpack.c.l.b16 %v693
      %v1575 = vunpack.c.h.b16 %v693
      %v1576 = vunpack.c.l.b16 %v694
      %v1577 = vunpack.c.h.b16 %v694
      %v1578 = vunpack.c.l.b16 %v695
      %v1579 = vunpack.c.h.b16 %v695
      %v1580 = vunpack.c.l.b16 %v696
      %v1581 = vunpack.c.h.b16 %v696
      %v1582 = vunpack.c.l.b16 %v697
      %v1583 = vunpack.c.h.b16 %v697
      %v1584 = vunpack.c.l.b16 %v698
      %v1585 = vunpack.c.h.b16 %v698
      %v1586 = vpack.c.b16 %v1576, %v1574
      %v1587 = vpack.c.b16 %v1577, %v1575
      %v1588 = vpack.c.b16 %v1580, %v1578
      %v1589 = vpack.c.b16 %v1581, %v1579
      %v1590 = vpack.c.b16 %v1584, %v1582
      %v1591 = vpack.c.b16 %v1585, %v1583
      %v1599 = vsel %vm644, %v1564, 0
      %v1602 = vsel %vm644, %v1565, 0
      %1604 = vmatpush.bf16.msra.mxu0 0
      %1605 = vmatpush.bf16.msra.mxu0 0
      %1606 = vmatpush.bf16.msra.mxu0 0
      %1607 = vmatpush.bf16.msra.mxu0 0
      %1608 = vmatpush.bf16.msra.mxu0 0
      %1609 = vmatpush.bf16.msra.mxu0 %v1590
      %1610 = vmatpush.bf16.msra.mxu0 %v1588
      %1611 = vmatpush.bf16.msra.mxu0 %v1586
      %1612 = vmatmul.bf16.gmra.mxu0 %v1599
      %v1613 = vpop.f32.mrf.mxu0
      %v1614 = vadd.f32 %v1566, %v1613
      %v1615 = vpop.f32.mrf.mxu0
      %v1616 = vadd.f32 %v1566, %v1615
      %1617 = vmatmul.bf16.gmra.mxu0 %v1602
      %v1618 = vpop.f32.mrf.mxu0
      %v1619 = vadd.f32 %v1566, %v1618
      %v1620 = vpop.f32.mrf.mxu0
      %1621 = vdwg.mxu0
      %1622 = vmatpush.bf16.msra.mxu0 0
      %1623 = vmatpush.bf16.msra.mxu0 0
      %1624 = vmatpush.bf16.msra.mxu0 0
      %1625 = vmatpush.bf16.msra.mxu0 0
      %1626 = vmatpush.bf16.msra.mxu0 0
      %1627 = vmatpush.bf16.msra.mxu0 %v1591
      %1628 = vmatpush.bf16.msra.mxu0 %v1589
      %1629 = vmatpush.bf16.msra.mxu0 %v1587
      %1630 = vmatmul.bf16.gmra.mxu0 %v1599
      %v1631 = vpop.f32.mrf.mxu0
      %v1632 = vadd.f32 %v1567, %v1631
      %v1633 = vpop.f32.mrf.mxu0
      %v1634 = vadd.f32 %v1567, %v1633
      %1635 = vmatmul.bf16.gmra.mxu0 %v1602
      %v1636 = vpop.f32.mrf.mxu0
      %v1637 = vadd.f32 %v1567, %v1636
      %v1638 = vpop.f32.mrf.mxu0
      %1639 = vdwg.mxu0
      %v1640 = vmax.f32 %v1614, 0.0
      %v1641 = vmax.f32 %v1632, 0.0
      %v1642 = vmax.f32 %v1616, 0.0
      %v1643 = vmax.f32 %v1634, 0.0
      %v1644 = vmax.f32 %v1619, 0.0
      %v1645 = vmax.f32 %v1637, 0.0
      %v1646 = vpack.c.bf16 %v1642, %v1640
      %v1647 = vpack.c.bf16 %v1643, %v1641
      %v1648 = vpack.c.bf16 %v1644, %v1644
      %v1649 = vpack.c.bf16 %v1645, %v1645
      %v1650 = vperm.slane %v753, 3
      %v1675 = vunpack.c.l.b16 %v705
      %v1676 = vunpack.c.l.b16 %v706
      %v1677 = vunpack.c.l.b16 %v707
      %v1678 = vunpack.c.l.b16 %v708
      %v1679 = vunpack.c.l.b16 %v709
      %v1680 = vunpack.c.l.b16 %v710
      %v1681 = vunpack.c.l.b16 %v711
      %v1682 = vunpack.c.l.b16 %v712
      %v1683 = vunpack.c.l.b16 %v713
      %v1684 = vunpack.c.l.b16 %v714
      %v1685 = vunpack.c.l.b16 %v715
      %v1686 = vunpack.c.l.b16 %v716
      %v1687 = vunpack.c.l.b16 %v717
      %v1688 = vunpack.c.l.b16 %v718
      %v1689 = vunpack.c.l.b16 %v719
      %v1690 = vunpack.c.l.b16 %v720
      %v1691 = vunpack.c.l.b16 %v721
      %v1692 = vunpack.c.l.b16 %v722
      %v1693 = vunpack.c.l.b16 %v723
      %v1694 = vunpack.c.l.b16 %v724
      %v1695 = vunpack.c.l.b16 %v725
      %v1696 = vunpack.c.l.b16 %v726
      %v1697 = vunpack.c.l.b16 %v727
      %v1698 = vunpack.c.l.b16 %v728
      %v1699 = vpack.c.b16 %v1676, %v1675
      %v1700 = vpack.c.b16 %v1678, %v1677
      %v1701 = vpack.c.b16 %v1680, %v1679
      %v1702 = vpack.c.b16 %v1682, %v1681
      %v1703 = vpack.c.b16 %v1684, %v1683
      %v1704 = vpack.c.b16 %v1686, %v1685
      %v1705 = vpack.c.b16 %v1688, %v1687
      %v1706 = vpack.c.b16 %v1690, %v1689
      %v1707 = vpack.c.b16 %v1692, %v1691
      %v1708 = vpack.c.b16 %v1694, %v1693
      %v1709 = vpack.c.b16 %v1696, %v1695
      %v1710 = vpack.c.b16 %v1698, %v1697
      %vm1723 = vcmask 523264
      %v1725 = vsel %vm1723, %v1647, 0
      %v1728 = vsel %vm1723, %v1649, 0
      %1730 = vmatpush.bf16.msra.mxu0 %v1706
      %1731 = vmatpush.bf16.msra.mxu0 %v1705
      %1732 = vmatpush.bf16.msra.mxu0 %v1704
      %1733 = vmatpush.bf16.msra.mxu0 %v1703
      %1734 = vmatpush.bf16.msra.mxu0 %v1702
      %1735 = vmatpush.bf16.msra.mxu0 %v1701
      %1736 = vmatpush.bf16.msra.mxu0 %v1700
      %1737 = vmatpush.bf16.msra.mxu0 %v1699
      %1738 = vmatmul.bf16.gmra.mxu0 %v1646
      %v1739 = vpop.f32.mrf.mxu0
      %v1740 = vadd.f32 %v1650, %v1739
      %v1741 = vpop.f32.mrf.mxu0
      %v1742 = vadd.f32 %v1650, %v1741
      %1743 = vmatmul.bf16.gmra.mxu0 %v1648
      %v1744 = vpop.f32.mrf.mxu0
      %v1745 = vadd.f32 %v1650, %v1744
      %v1746 = vpop.f32.mrf.mxu0
      %1747 = vdwg.mxu0
      %1748 = vmatpush.bf16.msra.mxu0 0
      %1749 = vmatpush.bf16.msra.mxu0 0
      %1750 = vmatpush.bf16.msra.mxu0 0
      %1751 = vmatpush.bf16.msra.mxu0 0
      %1752 = vmatpush.bf16.msra.mxu0 %v1710
      %1753 = vmatpush.bf16.msra.mxu0 %v1709
      %1754 = vmatpush.bf16.msra.mxu0 %v1708
      %1755 = vmatpush.bf16.msra.mxu0 %v1707
      %1756 = vmatmul.bf16.gmra.mxu0 %v1725
      %v1757 = vpop.f32.mrf.mxu0
      %v1758 = vadd.f32 %v1740, %v1757
      %v1759 = vpop.f32.mrf.mxu0
      %v1760 = vadd.f32 %v1742, %v1759
      %1761 = vmatmul.bf16.gmra.mxu0 %v1728
      %v1762 = vpop.f32.mrf.mxu0
      %v1763 = vadd.f32 %v1745, %v1762
      %v1764 = vpop.f32.mrf.mxu0
      %1765 = vdwg.mxu0
      %v1766 = vadd.f32 %v1561, %v1758
      %v1767 = vadd.f32 %v1562, %v1760
      %v1768 = vadd.f32 %v1563, %v1763
      %v1769 = vsel %vm644, %v1766, 0.0
      %1770 = vadd.xlane.f32.xlu0 %v1769
      %v1771 = vpop.xlane.xlu0 %1770
      %v1772 = vsel %vm644, %v1767, 0.0
      %1773 = vadd.xlane.f32.xlu0 %v1772
      %v1774 = vpop.xlane.xlu0 %1773
      %v1775 = vsel %vm1456, %v1768, 0.0
      %1776 = vadd.xlane.f32.xlu0 %v1775
      %v1777 = vpop.xlane.xlu0 %1776
      %v1778 = vmul.f32 %v1771, %v1461
      %v1779 = vmul.f32 %v1774, %v1461
      %v1780 = vmul.f32 %v1777, %v1461
      %v1781 = vmul.f32 %v1766, %v1766
      %v1782 = vmul.f32 %v1767, %v1767
      %v1783 = vmul.f32 %v1768, %v1768
      %v1784 = vsel %vm644, %v1781, 0.0
      %1785 = vadd.xlane.f32.xlu0 %v1784
      %v1786 = vpop.xlane.xlu0 %1785
      %v1787 = vsel %vm644, %v1782, 0.0
      %1788 = vadd.xlane.f32.xlu0 %v1787
      %v1789 = vpop.xlane.xlu0 %1788
      %v1790 = vsel %vm1456, %v1783, 0.0
      %1791 = vadd.xlane.f32.xlu0 %v1790
      %v1792 = vpop.xlane.xlu0 %1791
      %v1793 = vmul.f32 %v1786, %v1461
      %v1794 = vmul.f32 %v1789, %v1461
      %v1795 = vmul.f32 %v1792, %v1461
      %v1796 = vmul.f32 %v1778, %v1778
      %v1797 = vmul.f32 %v1779, %v1779
      %v1798 = vmul.f32 %v1780, %v1780
      %v1799 = vsub.f32 %v1793, %v1796
      %v1800 = vsub.f32 %v1794, %v1797
      %v1801 = vsub.f32 %v1795, %v1798
      %1803 = vset.pattern.permute.xlu0 0
      %1804 = vperm.xlu0 %1803, %v1778
      %v1805 = vpop.permute.xlu0 %1804
      %1808 = vset.pattern.permute.xlu0 0
      %1809 = vperm.xlu0 %1808, %v1779
      %v1810 = vpop.permute.xlu0 %1809
      %1813 = vset.pattern.permute.xlu0 0
      %1814 = vperm.xlu0 %1813, %v1780
      %v1815 = vpop.permute.xlu0 %1814
      %v1817 = vsub.f32 %v1766, %v1805
      %v1818 = vsub.f32 %v1767, %v1810
      %v1819 = vsub.f32 %v1768, %v1815
      %v1820 = vadd.f32 %v1799, 1e-05
      %v1821 = vadd.f32 %v1800, 1e-05
      %v1822 = vadd.f32 %v1801, 1e-05
      %v1823 = vrsqrt.pop %v1820
      %v1824 = vmul.f32 %v1823, %v1820
      %v1825 = vmul.f32 %v1824, %v1823
      %v1826 = vmul.f32 0.5, %v1825
      %v1827 = vsub.f32 1.5, %v1826
      %v1828 = vmul.f32 %v1823, %v1827
      %vm1829 = vweird.f32 %v1820
      %vm1830 = vweird.f32 %v1823
      %vm1831 = vmor %vm1829, %vm1830
      %v1832 = vsel %vm1831, %v1823, %v1828
      %v1833 = vrsqrt.pop %v1821
      %v1834 = vmul.f32 %v1833, %v1821
      %v1835 = vmul.f32 %v1834, %v1833
      %v1836 = vmul.f32 0.5, %v1835
      %v1837 = vsub.f32 1.5, %v1836
      %v1838 = vmul.f32 %v1833, %v1837
      %vm1839 = vweird.f32 %v1821
      %vm1840 = vweird.f32 %v1833
      %vm1841 = vmor %vm1839, %vm1840
      %v1842 = vsel %vm1841, %v1833, %v1838
      %v1843 = vrsqrt.pop %v1822
      %v1844 = vmul.f32 %v1843, %v1822
      %v1845 = vmul.f32 %v1844, %v1843
      %v1846 = vmul.f32 0.5, %v1845
      %v1847 = vsub.f32 1.5, %v1846
      %v1848 = vmul.f32 %v1843, %v1847
      %vm1849 = vweird.f32 %v1822
      %vm1850 = vweird.f32 %v1843
      %vm1851 = vmor %vm1849, %vm1850
      %v1852 = vsel %vm1851, %v1843, %v1848
      %1854 = vset.pattern.permute.xlu0 0
      %1855 = vperm.xlu0 %1854, %v1832
      %v1856 = vpop.permute.xlu0 %1855
      %1859 = vset.pattern.permute.xlu0 0
      %1860 = vperm.xlu0 %1859, %v1842
      %v1861 = vpop.permute.xlu0 %1860
      %1864 = vset.pattern.permute.xlu0 0
      %1865 = vperm.xlu0 %1864, %v1852
      %v1866 = vpop.permute.xlu0 %1865
      %v1868 = vmul.f32 %v1817, %v1856
      %v1869 = vmul.f32 %v1818, %v1861
      %v1870 = vmul.f32 %v1819, %v1866
      %v1871 = vperm.slane %v753, 6
      %v1872 = vmul.f32 %v1868, %v1871
      %v1873 = vmul.f32 %v1869, %v1871
      %v1874 = vmul.f32 %v1870, %v1871
      %v1875 = vperm.slane %v753, 7
      %v1876 = vadd.f32 %v1872, %v1875
      %v1877 = vadd.f32 %v1873, %v1875
      %v1878 = vadd.f32 %v1874, %v1875
      %v1879 = vpack.c.bf16 %v1877, %v1876
      %v1880 = vpack.c.bf16 %v1878, %v1878
      %v1881 = vperm.slane %v755, 0
      %v1882 = vperm.slane %v756, 0
      %v1889 = vunpack.c.l.b16 %v675
      %v1890 = vunpack.c.h.b16 %v675
      %v1891 = vunpack.c.l.b16 %v676
      %v1892 = vunpack.c.h.b16 %v676
      %v1893 = vunpack.c.l.b16 %v677
      %v1894 = vunpack.c.h.b16 %v677
      %v1895 = vunpack.c.l.b16 %v678
      %v1896 = vunpack.c.h.b16 %v678
      %v1897 = vunpack.c.l.b16 %v679
      %v1898 = vunpack.c.h.b16 %v679
      %v1899 = vunpack.c.l.b16 %v680
      %v1900 = vunpack.c.h.b16 %v680
      %v1901 = vpack.c.b16 %v1891, %v1889
      %v1902 = vpack.c.b16 %v1892, %v1890
      %v1903 = vpack.c.b16 %v1895, %v1893
      %v1904 = vpack.c.b16 %v1896, %v1894
      %v1905 = vpack.c.b16 %v1899, %v1897
      %v1906 = vpack.c.b16 %v1900, %v1898
      %v1914 = vsel %vm644, %v1879, 0
      %v1917 = vsel %vm644, %v1880, 0
      %1919 = vmatpush.bf16.msra.mxu0 0
      %1920 = vmatpush.bf16.msra.mxu0 0
      %1921 = vmatpush.bf16.msra.mxu0 0
      %1922 = vmatpush.bf16.msra.mxu0 0
      %1923 = vmatpush.bf16.msra.mxu0 0
      %1924 = vmatpush.bf16.msra.mxu0 %v1905
      %1925 = vmatpush.bf16.msra.mxu0 %v1903
      %1926 = vmatpush.bf16.msra.mxu0 %v1901
      %1927 = vmatmul.bf16.gmra.mxu0 %v1914
      %v1928 = vpop.f32.mrf.mxu0
      %v1929 = vadd.f32 %v1881, %v1928
      %v1930 = vpop.f32.mrf.mxu0
      %v1931 = vadd.f32 %v1881, %v1930
      %1932 = vmatmul.bf16.gmra.mxu0 %v1917
      %v1933 = vpop.f32.mrf.mxu0
      %v1934 = vadd.f32 %v1881, %v1933
      %v1935 = vpop.f32.mrf.mxu0
      %1936 = vdwg.mxu0
      %1937 = vmatpush.bf16.msra.mxu0 0
      %1938 = vmatpush.bf16.msra.mxu0 0
      %1939 = vmatpush.bf16.msra.mxu0 0
      %1940 = vmatpush.bf16.msra.mxu0 0
      %1941 = vmatpush.bf16.msra.mxu0 0
      %1942 = vmatpush.bf16.msra.mxu0 %v1906
      %1943 = vmatpush.bf16.msra.mxu0 %v1904
      %1944 = vmatpush.bf16.msra.mxu0 %v1902
      %1945 = vmatmul.bf16.gmra.mxu0 %v1914
      %v1946 = vpop.f32.mrf.mxu0
      %v1947 = vadd.f32 %v1882, %v1946
      %v1948 = vpop.f32.mrf.mxu0
      %v1949 = vadd.f32 %v1882, %v1948
      %1950 = vmatmul.bf16.gmra.mxu0 %v1917
      %v1951 = vpop.f32.mrf.mxu0
      %v1952 = vadd.f32 %v1882, %v1951
      %v1953 = vpop.f32.mrf.mxu0
      %1954 = vdwg.mxu0
      %v1955 = vpack.c.bf16 %v1947, %v1929
      %v1956 = vpack.c.bf16 %v1949, %v1931
      %v1957 = vpack.c.bf16 %v1952, %v1934
      %1961 = vrot.lane.b32.xlu0 %v1955, 116
      %v1962 = vpop.permute.xlu0 %1961
      %1963 = vrot.lane.b32.xlu0 %v1956, 116
      %v1964 = vpop.permute.xlu0 %1963
      %1965 = vrot.lane.b32.xlu0 %v1957, 116
      %v1966 = vpop.permute.xlu0 %1965
      %1967 = vrot.lane.b32.xlu0 %v1955, 104
      %v1968 = vpop.permute.xlu0 %1967
      %1969 = vrot.lane.b32.xlu0 %v1956, 104
      %v1970 = vpop.permute.xlu0 %1969
      %1971 = vrot.lane.b32.xlu0 %v1957, 104
      %v1972 = vpop.permute.xlu0 %1971
      %1973 = vrot.lane.b32.xlu0 %v1955, 92
      %v1974 = vpop.permute.xlu0 %1973
      %1975 = vrot.lane.b32.xlu0 %v1956, 92
      %v1976 = vpop.permute.xlu0 %1975
      %1977 = vrot.lane.b32.xlu0 %v1957, 92
      %v1978 = vpop.permute.xlu0 %1977
      %1979 = vrot.lane.b32.xlu0 %v1955, 124
      %v1980 = vpop.permute.xlu0 %1979
      %1981 = vrot.lane.b32.xlu0 %v1956, 124
      %v1982 = vpop.permute.xlu0 %1981
      %1983 = vrot.lane.b32.xlu0 %v1957, 124
      %v1984 = vpop.permute.xlu0 %1983
      %v1985 = vrot.slane %v1980, 4
      %v1986 = vrot.slane %v1982, 4
      %v1987 = vrot.slane %v1984, 4
      %v1988 = vrot.slane %v1968, 4
      %v1989 = vrot.slane %v1970, 4
      %v1990 = vrot.slane %v1972, 4
      %v1991 = vsel %vm872, %v1968, %v1988
      %v1992 = vsel %vm872, %v1970, %v1989
      %v1993 = vsel %vm872, %v1972, %v1990
      %1994 = vrot.lane.b32.xlu0 %v1985, 96
      %v1995 = vpop.permute.xlu0 %1994
      %1996 = vrot.lane.b32.xlu0 %v1986, 96
      %v1997 = vpop.permute.xlu0 %1996
      %1998 = vrot.lane.b32.xlu0 %v1987, 96
      %v1999 = vpop.permute.xlu0 %1998
      %v2000 = vunpack.c.l.b16 %v1955
      %v2001 = vunpack.c.l.b16 %v1956
      %v2002 = vunpack.c.l.b16 %v1957
      %v2003 = vpack.c.b16 %v2001, %v2000
      %v2004 = vpack.c.b16 %v2002, %v2002
      %2005 = vrot.lane.b32.xlu0 %v2003, 80
      %v2006 = vpop.permute.xlu0 %2005
      %2007 = vrot.lane.b32.xlu0 %v2004, 80
      %v2008 = vpop.permute.xlu0 %2007
      %v2010 = vsel %vm891, %v2003, 0
      %v2013 = vsel %vm891, %v2004, 0
      %v2016 = vsel %vm891, %v2006, 0
      %v2019 = vsel %vm891, %v2008, 0
      %2021 = vmatpush.bf16.xpose.msra.mxu0 0
      %2022 = vmatpush.bf16.xpose.msra.mxu0 0
      %2023 = vmatpush.bf16.xpose.msra.mxu0 0
      %2024 = vmatpush.bf16.xpose.msra.mxu0 0
      %2025 = vmatpush.bf16.xpose.msra.mxu0 0
      %2026 = vmatpush.bf16.xpose.msra.mxu0 0
      %2027 = vmatpush.bf16.xpose.msra.mxu0 %v2019
      %2028 = vmatpush.bf16.xpose.msra.mxu0 %v2016
      %2029 = vmatmul.bf16.gmra.mxu0 %v2010
      %v2030 = vpop.f32.mrf.mxu0
      %v2031 = vadd.f32 %v757, %v2030
      %v2032 = vpop.f32.mrf.mxu0
      %v2033 = vadd.f32 %v758, %v2032
      %2034 = vmatmul.bf16.gmra.mxu0 %v2013
      %v2035 = vpop.f32.mrf.mxu0
      %v2036 = vadd.f32 %v759, %v2035
      %v2037 = vpop.f32.mrf.mxu0
      %2038 = vdwg.mxu0
      %v2039 = vunpack.c.l.b16 %v1962
      %v2040 = vunpack.c.l.b16 %v1964
      %v2041 = vunpack.c.l.b16 %v1966
      %v2042 = vpack.c.b16 %v2040, %v2039
      %v2043 = vpack.c.b16 %v2041, %v2041
      %2044 = vrot.lane.b32.xlu0 %v2042, 80
      %v2045 = vpop.permute.xlu0 %2044
      %2046 = vrot.lane.b32.xlu0 %v2043, 80
      %v2047 = vpop.permute.xlu0 %2046
      %v2049 = vsel %vm891, %v2042, 0
      %v2052 = vsel %vm891, %v2043, 0
      %v2055 = vsel %vm891, %v2045, 0
      %v2058 = vsel %vm891, %v2047, 0
      %2060 = vmatpush.bf16.xpose.msra.mxu0 0
      %2061 = vmatpush.bf16.xpose.msra.mxu0 0
      %2062 = vmatpush.bf16.xpose.msra.mxu0 0
      %2063 = vmatpush.bf16.xpose.msra.mxu0 0
      %2064 = vmatpush.bf16.xpose.msra.mxu0 0
      %2065 = vmatpush.bf16.xpose.msra.mxu0 0
      %2066 = vmatpush.bf16.xpose.msra.mxu0 %v2058
      %2067 = vmatpush.bf16.xpose.msra.mxu0 %v2055
      %2068 = vmatmul.bf16.gmra.mxu0 %v2049
      %v2069 = vpop.f32.mrf.mxu0
      %v2070 = vadd.f32 %v757, %v2069
      %v2071 = vpop.f32.mrf.mxu0
      %v2072 = vadd.f32 %v758, %v2071
      %2073 = vmatmul.bf16.gmra.mxu0 %v2052
      %v2074 = vpop.f32.mrf.mxu0
      %v2075 = vadd.f32 %v759, %v2074
      %v2076 = vpop.f32.mrf.mxu0
      %2077 = vdwg.mxu0
      %v2078 = vunpack.c.l.b16 %v1968
      %v2079 = vunpack.c.l.b16 %v1970
      %v2080 = vunpack.c.l.b16 %v1972
      %v2081 = vpack.c.b16 %v2079, %v2078
      %v2082 = vpack.c.b16 %v2080, %v2080
      %2083 = vrot.lane.b32.xlu0 %v2081, 80
      %v2084 = vpop.permute.xlu0 %2083
      %2085 = vrot.lane.b32.xlu0 %v2082, 80
      %v2086 = vpop.permute.xlu0 %2085
      %v2088 = vsel %vm891, %v2081, 0
      %v2091 = vsel %vm891, %v2082, 0
      %v2094 = vsel %vm891, %v2084, 0
      %v2097 = vsel %vm891, %v2086, 0
      %2099 = vmatpush.bf16.xpose.msra.mxu0 0
      %2100 = vmatpush.bf16.xpose.msra.mxu0 0
      %2101 = vmatpush.bf16.xpose.msra.mxu0 0
      %2102 = vmatpush.bf16.xpose.msra.mxu0 0
      %2103 = vmatpush.bf16.xpose.msra.mxu0 0
      %2104 = vmatpush.bf16.xpose.msra.mxu0 0
      %2105 = vmatpush.bf16.xpose.msra.mxu0 %v2097
      %2106 = vmatpush.bf16.xpose.msra.mxu0 %v2094
      %2107 = vmatmul.bf16.gmra.mxu0 %v2088
      %v2108 = vpop.f32.mrf.mxu0
      %v2109 = vadd.f32 %v757, %v2108
      %v2110 = vpop.f32.mrf.mxu0
      %v2111 = vadd.f32 %v758, %v2110
      %2112 = vmatmul.bf16.gmra.mxu0 %v2091
      %v2113 = vpop.f32.mrf.mxu0
      %v2114 = vadd.f32 %v759, %v2113
      %v2115 = vpop.f32.mrf.mxu0
      %2116 = vdwg.mxu0
      %v2117 = vunpack.c.l.b16 %v1974
      %v2118 = vunpack.c.l.b16 %v1976
      %v2119 = vunpack.c.l.b16 %v1978
      %v2120 = vpack.c.b16 %v2118, %v2117
      %v2121 = vpack.c.b16 %v2119, %v2119
      %2122 = vrot.lane.b32.xlu0 %v2120, 80
      %v2123 = vpop.permute.xlu0 %2122
      %2124 = vrot.lane.b32.xlu0 %v2121, 80
      %v2125 = vpop.permute.xlu0 %2124
      %v2127 = vsel %vm891, %v2120, 0
      %v2130 = vsel %vm891, %v2121, 0
      %v2133 = vsel %vm891, %v2123, 0
      %v2136 = vsel %vm891, %v2125, 0
      %2138 = vmatpush.bf16.xpose.msra.mxu0 0
      %2139 = vmatpush.bf16.xpose.msra.mxu0 0
      %2140 = vmatpush.bf16.xpose.msra.mxu0 0
      %2141 = vmatpush.bf16.xpose.msra.mxu0 0
      %2142 = vmatpush.bf16.xpose.msra.mxu0 0
      %2143 = vmatpush.bf16.xpose.msra.mxu0 0
      %2144 = vmatpush.bf16.xpose.msra.mxu0 %v2136
      %2145 = vmatpush.bf16.xpose.msra.mxu0 %v2133
      %2146 = vmatmul.bf16.gmra.mxu0 %v2127
      %v2147 = vpop.f32.mrf.mxu0
      %v2148 = vadd.f32 %v757, %v2147
      %v2149 = vpop.f32.mrf.mxu0
      %v2150 = vadd.f32 %v758, %v2149
      %2151 = vmatmul.bf16.gmra.mxu0 %v2130
      %v2152 = vpop.f32.mrf.mxu0
      %v2153 = vadd.f32 %v759, %v2152
      %v2154 = vpop.f32.mrf.mxu0
      %2155 = vdwg.mxu0
      %v2156 = vsel %vm1039, %v2031, -inf
      %2157 = vmax.xlane.f32.xlu0 %v2156
      %v2158 = vpop.xlane.xlu0 %2157
      %v2159 = vsel %vm1039, %v2033, -inf
      %2160 = vmax.xlane.f32.xlu0 %v2159
      %v2161 = vpop.xlane.xlu0 %2160
      %v2162 = vsel %vm1046, %v2036, -inf
      %2163 = vmax.xlane.f32.xlu0 %v2162
      %v2164 = vpop.xlane.xlu0 %2163
      %v2165 = vsel %vm1039, %v2070, -inf
      %2166 = vmax.xlane.f32.xlu0 %v2165
      %v2167 = vpop.xlane.xlu0 %2166
      %v2168 = vsel %vm1039, %v2072, -inf
      %2169 = vmax.xlane.f32.xlu0 %v2168
      %v2170 = vpop.xlane.xlu0 %2169
      %v2171 = vsel %vm1046, %v2075, -inf
      %2172 = vmax.xlane.f32.xlu0 %v2171
      %v2173 = vpop.xlane.xlu0 %2172
      %v2174 = vsel %vm1039, %v2109, -inf
      %2175 = vmax.xlane.f32.xlu0 %v2174
      %v2176 = vpop.xlane.xlu0 %2175
      %v2177 = vsel %vm1039, %v2111, -inf
      %2178 = vmax.xlane.f32.xlu0 %v2177
      %v2179 = vpop.xlane.xlu0 %2178
      %v2180 = vsel %vm1046, %v2114, -inf
      %2181 = vmax.xlane.f32.xlu0 %v2180
      %v2182 = vpop.xlane.xlu0 %2181
      %v2183 = vsel %vm1039, %v2148, -inf
      %2184 = vmax.xlane.f32.xlu0 %v2183
      %v2185 = vpop.xlane.xlu0 %2184
      %v2186 = vsel %vm1039, %v2150, -inf
      %2187 = vmax.xlane.f32.xlu0 %v2186
      %v2188 = vpop.xlane.xlu0 %2187
      %v2189 = vsel %vm1046, %v2153, -inf
      %2190 = vmax.xlane.f32.xlu0 %v2189
      %v2191 = vpop.xlane.xlu0 %2190
      %v2192 = vsub.f32 %v2031, %v2158
      %v2193 = vsub.f32 %v2033, %v2161
      %v2194 = vsub.f32 %v2036, %v2164
      %v2195 = vsub.f32 %v2070, %v2167
      %v2196 = vsub.f32 %v2072, %v2170
      %v2197 = vsub.f32 %v2075, %v2173
      %v2198 = vsub.f32 %v2109, %v2176
      %v2199 = vsub.f32 %v2111, %v2179
      %v2200 = vsub.f32 %v2114, %v2182
      %v2201 = vsub.f32 %v2148, %v2185
      %v2202 = vsub.f32 %v2150, %v2188
      %v2203 = vsub.f32 %v2153, %v2191
      %v2204 = vmul.f32 %v2192, 1.442695
      %v2205 = vpow.pop %v2204
      %v2206 = vmul.f32 %v2193, 1.442695
      %v2207 = vpow.pop %v2206
      %v2208 = vmul.f32 %v2194, 1.442695
      %v2209 = vpow.pop %v2208
      %v2210 = vmul.f32 %v2195, 1.442695
      %v2211 = vpow.pop %v2210
      %v2212 = vmul.f32 %v2196, 1.442695
      %v2213 = vpow.pop %v2212
      %v2214 = vmul.f32 %v2197, 1.442695
      %v2215 = vpow.pop %v2214
      %v2216 = vmul.f32 %v2198, 1.442695
      %v2217 = vpow.pop %v2216
      %v2218 = vmul.f32 %v2199, 1.442695
      %v2219 = vpow.pop %v2218
      %v2220 = vmul.f32 %v2200, 1.442695
      %v2221 = vpow.pop %v2220
      %v2222 = vmul.f32 %v2201, 1.442695
      %v2223 = vpow.pop %v2222
      %v2224 = vmul.f32 %v2202, 1.442695
      %v2225 = vpow.pop %v2224
      %v2226 = vmul.f32 %v2203, 1.442695
      %v2227 = vpow.pop %v2226
      %v2228 = vsel %vm1039, %v2205, 0.0
      %2229 = vadd.xlane.f32.xlu0 %v2228
      %v2230 = vpop.xlane.xlu0 %2229
      %v2231 = vsel %vm1039, %v2207, 0.0
      %2232 = vadd.xlane.f32.xlu0 %v2231
      %v2233 = vpop.xlane.xlu0 %2232
      %v2234 = vsel %vm1046, %v2209, 0.0
      %2235 = vadd.xlane.f32.xlu0 %v2234
      %v2236 = vpop.xlane.xlu0 %2235
      %v2237 = vsel %vm1039, %v2211, 0.0
      %2238 = vadd.xlane.f32.xlu0 %v2237
      %v2239 = vpop.xlane.xlu0 %2238
      %v2240 = vsel %vm1039, %v2213, 0.0
      %2241 = vadd.xlane.f32.xlu0 %v2240
      %v2242 = vpop.xlane.xlu0 %2241
      %v2243 = vsel %vm1046, %v2215, 0.0
      %2244 = vadd.xlane.f32.xlu0 %v2243
      %v2245 = vpop.xlane.xlu0 %2244
      %v2246 = vsel %vm1039, %v2217, 0.0
      %2247 = vadd.xlane.f32.xlu0 %v2246
      %v2248 = vpop.xlane.xlu0 %2247
      %v2249 = vsel %vm1039, %v2219, 0.0
      %2250 = vadd.xlane.f32.xlu0 %v2249
      %v2251 = vpop.xlane.xlu0 %2250
      %v2252 = vsel %vm1046, %v2221, 0.0
      %2253 = vadd.xlane.f32.xlu0 %v2252
      %v2254 = vpop.xlane.xlu0 %2253
      %v2255 = vsel %vm1039, %v2223, 0.0
      %2256 = vadd.xlane.f32.xlu0 %v2255
      %v2257 = vpop.xlane.xlu0 %2256
      %v2258 = vsel %vm1039, %v2225, 0.0
      %2259 = vadd.xlane.f32.xlu0 %v2258
      %v2260 = vpop.xlane.xlu0 %2259
      %v2261 = vsel %vm1046, %v2227, 0.0
      %2262 = vadd.xlane.f32.xlu0 %v2261
      %v2263 = vpop.xlane.xlu0 %2262
      %v2264 = vrcp.pop %v2230
      %v2265 = vrcp.pop %v2233
      %v2266 = vrcp.pop %v2236
      %v2267 = vrcp.pop %v2239
      %v2268 = vrcp.pop %v2242
      %v2269 = vrcp.pop %v2245
      %v2270 = vrcp.pop %v2248
      %v2271 = vrcp.pop %v2251
      %v2272 = vrcp.pop %v2254
      %v2273 = vrcp.pop %v2257
      %v2274 = vrcp.pop %v2260
      %v2275 = vrcp.pop %v2263
      %v2276 = vmul.f32 %v2205, %v2264
      %v2277 = vmul.f32 %v2207, %v2265
      %v2278 = vmul.f32 %v2209, %v2266
      %v2279 = vmul.f32 %v2211, %v2267
      %v2280 = vmul.f32 %v2213, %v2268
      %v2281 = vmul.f32 %v2215, %v2269
      %v2282 = vmul.f32 %v2217, %v2270
      %v2283 = vmul.f32 %v2219, %v2271
      %v2284 = vmul.f32 %v2221, %v2272
      %v2285 = vmul.f32 %v2223, %v2273
      %v2286 = vmul.f32 %v2225, %v2274
      %v2287 = vmul.f32 %v2227, %v2275
      %v2288 = vpack.c.bf16 %v2276, %v2276
      %v2289 = vpack.c.bf16 %v2277, %v2277
      %v2290 = vpack.c.bf16 %v2278, %v2278
      %v2291 = vpack.c.bf16 %v2279, %v2279
      %v2292 = vpack.c.bf16 %v2280, %v2280
      %v2293 = vpack.c.bf16 %v2281, %v2281
      %v2294 = vpack.c.bf16 %v2282, %v2282
      %v2295 = vpack.c.bf16 %v2283, %v2283
      %v2296 = vpack.c.bf16 %v2284, %v2284
      %v2297 = vpack.c.bf16 %v2285, %v2285
      %v2298 = vpack.c.bf16 %v2286, %v2286
      %v2299 = vpack.c.bf16 %v2287, %v2287
      %v2303 = vunpack.c.l.b16 %v2288
      %v2304 = vunpack.c.l.b16 %v2289
      %v2305 = vunpack.c.l.b16 %v2290
      %v2306 = vpack.c.b16 %v2304, %v2303
      %v2307 = vpack.c.b16 %v2305, %v2305
      %2308 = vrot.lane.b32.xlu0 %v2003, 32
      %v2309 = vpop.permute.xlu0 %2308
      %2310 = vrot.lane.b32.xlu0 %v2004, 32
      %v2311 = vpop.permute.xlu0 %2310
      %v2314 = vsel %vm1039, %v2306, 0
      %v2317 = vsel %vm1039, %v2307, 0
      %v2320 = vsel %vm619, %v2311, 0
      %2322 = vmatpush.bf16.msra.mxu0 0
      %2323 = vmatpush.bf16.msra.mxu0 0
      %2324 = vmatpush.bf16.msra.mxu0 0
      %2325 = vmatpush.bf16.msra.mxu0 0
      %2326 = vmatpush.bf16.msra.mxu0 0
      %2327 = vmatpush.bf16.msra.mxu0 0
      %2328 = vmatpush.bf16.msra.mxu0 %v2320
      %2329 = vmatpush.bf16.msra.mxu0 %v2309
      %2330 = vmatmul.bf16.gmra.mxu0 %v2314
      %v2331 = vpop.f32.mrf.mxu0
      %v2332 = vadd.f32 0.0, %v2331
      %v2333 = vpop.f32.mrf.mxu0
      %v2334 = vadd.f32 0.0, %v2333
      %2335 = vmatmul.bf16.gmra.mxu0 %v2317
      %v2336 = vpop.f32.mrf.mxu0
      %v2337 = vadd.f32 0.0, %v2336
      %v2338 = vpop.f32.mrf.mxu0
      %2339 = vdwg.mxu0
      %v2343 = vunpack.c.l.b16 %v2291
      %v2344 = vunpack.c.l.b16 %v2292
      %v2345 = vunpack.c.l.b16 %v2293
      %v2346 = vpack.c.b16 %v2344, %v2343
      %v2347 = vpack.c.b16 %v2345, %v2345
      %2348 = vrot.lane.b32.xlu0 %v2042, 32
      %v2349 = vpop.permute.xlu0 %2348
      %2350 = vrot.lane.b32.xlu0 %v2043, 32
      %v2351 = vpop.permute.xlu0 %2350
      %v2354 = vsel %vm1039, %v2346, 0
      %v2357 = vsel %vm1039, %v2347, 0
      %v2360 = vsel %vm619, %v2351, 0
      %2362 = vmatpush.bf16.msra.mxu0 0
      %2363 = vmatpush.bf16.msra.mxu0 0
      %2364 = vmatpush.bf16.msra.mxu0 0
      %2365 = vmatpush.bf16.msra.mxu0 0
      %2366 = vmatpush.bf16.msra.mxu0 0
      %2367 = vmatpush.bf16.msra.mxu0 0
      %2368 = vmatpush.bf16.msra.mxu0 %v2360
      %2369 = vmatpush.bf16.msra.mxu0 %v2349
      %2370 = vmatmul.bf16.gmra.mxu0 %v2354
      %v2371 = vpop.f32.mrf.mxu0
      %v2372 = vadd.f32 0.0, %v2371
      %v2373 = vpop.f32.mrf.mxu0
      %v2374 = vadd.f32 0.0, %v2373
      %2375 = vmatmul.bf16.gmra.mxu0 %v2357
      %v2376 = vpop.f32.mrf.mxu0
      %v2377 = vadd.f32 0.0, %v2376
      %v2378 = vpop.f32.mrf.mxu0
      %2379 = vdwg.mxu0
      %v2383 = vunpack.c.l.b16 %v2294
      %v2384 = vunpack.c.l.b16 %v2295
      %v2385 = vunpack.c.l.b16 %v2296
      %v2386 = vpack.c.b16 %v2384, %v2383
      %v2387 = vpack.c.b16 %v2385, %v2385
      %v2388 = vunpack.c.l.b16 %v1991
      %v2389 = vunpack.c.l.b16 %v1992
      %v2390 = vunpack.c.l.b16 %v1993
      %v2391 = vpack.c.b16 %v2389, %v2388
      %v2392 = vpack.c.b16 %v2390, %v2390
      %2393 = vrot.lane.b32.xlu0 %v2391, 32
      %v2394 = vpop.permute.xlu0 %2393
      %2395 = vrot.lane.b32.xlu0 %v2392, 32
      %v2396 = vpop.permute.xlu0 %2395
      %v2399 = vsel %vm1039, %v2386, 0
      %v2402 = vsel %vm1039, %v2387, 0
      %v2405 = vsel %vm619, %v2396, 0
      %2407 = vmatpush.bf16.msra.mxu0 0
      %2408 = vmatpush.bf16.msra.mxu0 0
      %2409 = vmatpush.bf16.msra.mxu0 0
      %2410 = vmatpush.bf16.msra.mxu0 0
      %2411 = vmatpush.bf16.msra.mxu0 0
      %2412 = vmatpush.bf16.msra.mxu0 0
      %2413 = vmatpush.bf16.msra.mxu0 %v2405
      %2414 = vmatpush.bf16.msra.mxu0 %v2394
      %2415 = vmatmul.bf16.gmra.mxu0 %v2399
      %v2416 = vpop.f32.mrf.mxu0
      %v2417 = vadd.f32 0.0, %v2416
      %v2418 = vpop.f32.mrf.mxu0
      %v2419 = vadd.f32 0.0, %v2418
      %2420 = vmatmul.bf16.gmra.mxu0 %v2402
      %v2421 = vpop.f32.mrf.mxu0
      %v2422 = vadd.f32 0.0, %v2421
      %v2423 = vpop.f32.mrf.mxu0
      %2424 = vdwg.mxu0
      %v2428 = vunpack.c.l.b16 %v2297
      %v2429 = vunpack.c.l.b16 %v2298
      %v2430 = vunpack.c.l.b16 %v2299
      %v2431 = vpack.c.b16 %v2429, %v2428
      %v2432 = vpack.c.b16 %v2430, %v2430
      %v2433 = vunpack.c.l.b16 %v1995
      %v2434 = vunpack.c.l.b16 %v1997
      %v2435 = vunpack.c.l.b16 %v1999
      %v2436 = vpack.c.b16 %v2434, %v2433
      %v2437 = vpack.c.b16 %v2435, %v2435
      %2438 = vrot.lane.b32.xlu0 %v2436, 32
      %v2439 = vpop.permute.xlu0 %2438
      %2440 = vrot.lane.b32.xlu0 %v2437, 32
      %v2441 = vpop.permute.xlu0 %2440
      %v2444 = vsel %vm1039, %v2431, 0
      %v2447 = vsel %vm1039, %v2432, 0
      %v2450 = vsel %vm619, %v2441, 0
      %2452 = vmatpush.bf16.msra.mxu0 0
      %2453 = vmatpush.bf16.msra.mxu0 0
      %2454 = vmatpush.bf16.msra.mxu0 0
      %2455 = vmatpush.bf16.msra.mxu0 0
      %2456 = vmatpush.bf16.msra.mxu0 0
      %2457 = vmatpush.bf16.msra.mxu0 0
      %2458 = vmatpush.bf16.msra.mxu0 %v2450
      %2459 = vmatpush.bf16.msra.mxu0 %v2439
      %2460 = vmatmul.bf16.gmra.mxu0 %v2444
      %v2461 = vpop.f32.mrf.mxu0
      %v2462 = vadd.f32 0.0, %v2461
      %v2463 = vpop.f32.mrf.mxu0
      %v2464 = vadd.f32 0.0, %v2463
      %2465 = vmatmul.bf16.gmra.mxu0 %v2447
      %v2466 = vpop.f32.mrf.mxu0
      %v2467 = vadd.f32 0.0, %v2466
      %v2468 = vpop.f32.mrf.mxu0
      %2469 = vdwg.mxu0
      %2473 = vrot.lane.b32.xlu0 %v2372, 12
      %v2474 = vpop.permute.xlu0 %2473
      %2475 = vrot.lane.b32.xlu0 %v2374, 12
      %v2476 = vpop.permute.xlu0 %2475
      %2477 = vrot.lane.b32.xlu0 %v2377, 12
      %v2478 = vpop.permute.xlu0 %2477
      %2485 = vrot.lane.b32.xlu0 %v2417, 24
      %v2486 = vpop.permute.xlu0 %2485
      %2487 = vrot.lane.b32.xlu0 %v2419, 24
      %v2488 = vpop.permute.xlu0 %2487
      %2489 = vrot.lane.b32.xlu0 %v2422, 24
      %v2490 = vpop.permute.xlu0 %2489
      %2497 = vrot.lane.b32.xlu0 %v2462, 36
      %v2498 = vpop.permute.xlu0 %2497
      %2499 = vrot.lane.b32.xlu0 %v2464, 36
      %v2500 = vpop.permute.xlu0 %2499
      %2501 = vrot.lane.b32.xlu0 %v2467, 36
      %v2502 = vpop.permute.xlu0 %2501
      %v2506 = vsel %vm891, %v2332, %v2474
      %v2507 = vsel %vm891, %v2334, %v2476
      %v2508 = vsel %vm891, %v2337, %v2478
      %v2509 = vsel %vm1394, %v2506, %v2486
      %v2510 = vsel %vm1394, %v2507, %v2488
      %v2511 = vsel %vm1394, %v2508, %v2490
      %v2512 = vsel %vm1398, %v2509, %v2498
      %v2513 = vsel %vm1398, %v2510, %v2500
      %v2514 = vsel %vm1398, %v2511, %v2502
      %v2515 = vpack.c.bf16 %v2513, %v2512
      %v2516 = vpack.c.bf16 %v2514, %v2514
      %v2517 = vperm.slane %v755, 1
      %v2524 = vunpack.c.l.b16 %v687
      %v2525 = vunpack.c.l.b16 %v688
      %v2526 = vunpack.c.l.b16 %v689
      %v2527 = vunpack.c.l.b16 %v690
      %v2528 = vunpack.c.l.b16 %v691
      %v2529 = vunpack.c.l.b16 %v692
      %v2530 = vpack.c.b16 %v2525, %v2524
      %v2531 = vpack.c.b16 %v2527, %v2526
      %v2532 = vpack.c.b16 %v2529, %v2528
      %v2537 = vsel %vm644, %v2515, 0
      %v2540 = vsel %vm644, %v2516, 0
      %2542 = vmatpush.bf16.msra.mxu0 0
      %2543 = vmatpush.bf16.msra.mxu0 0
      %2544 = vmatpush.bf16.msra.mxu0 0
      %2545 = vmatpush.bf16.msra.mxu0 0
      %2546 = vmatpush.bf16.msra.mxu0 0
      %2547 = vmatpush.bf16.msra.mxu0 %v2532
      %2548 = vmatpush.bf16.msra.mxu0 %v2531
      %2549 = vmatpush.bf16.msra.mxu0 %v2530
      %2550 = vmatmul.bf16.gmra.mxu0 %v2537
      %v2551 = vpop.f32.mrf.mxu0
      %v2552 = vadd.f32 %v2517, %v2551
      %v2553 = vpop.f32.mrf.mxu0
      %v2554 = vadd.f32 %v2517, %v2553
      %2555 = vmatmul.bf16.gmra.mxu0 %v2540
      %v2556 = vpop.f32.mrf.mxu0
      %v2557 = vadd.f32 %v2517, %v2556
      %v2558 = vpop.f32.mrf.mxu0
      %2559 = vdwg.mxu0
      %v2560 = vadd.f32 %v1876, %v2552
      %v2561 = vadd.f32 %v1877, %v2554
      %v2562 = vadd.f32 %v1878, %v2557
      %v2563 = vsel %vm644, %v2560, 0.0
      %2564 = vadd.xlane.f32.xlu0 %v2563
      %v2565 = vpop.xlane.xlu0 %2564
      %v2566 = vsel %vm644, %v2561, 0.0
      %2567 = vadd.xlane.f32.xlu0 %v2566
      %v2568 = vpop.xlane.xlu0 %2567
      %v2569 = vsel %vm1456, %v2562, 0.0
      %2570 = vadd.xlane.f32.xlu0 %v2569
      %v2571 = vpop.xlane.xlu0 %2570
      %v2572 = vmul.f32 %v2565, %v1461
      %v2573 = vmul.f32 %v2568, %v1461
      %v2574 = vmul.f32 %v2571, %v1461
      %v2575 = vmul.f32 %v2560, %v2560
      %v2576 = vmul.f32 %v2561, %v2561
      %v2577 = vmul.f32 %v2562, %v2562
      %v2578 = vsel %vm644, %v2575, 0.0
      %2579 = vadd.xlane.f32.xlu0 %v2578
      %v2580 = vpop.xlane.xlu0 %2579
      %v2581 = vsel %vm644, %v2576, 0.0
      %2582 = vadd.xlane.f32.xlu0 %v2581
      %v2583 = vpop.xlane.xlu0 %2582
      %v2584 = vsel %vm1456, %v2577, 0.0
      %2585 = vadd.xlane.f32.xlu0 %v2584
      %v2586 = vpop.xlane.xlu0 %2585
      %v2587 = vmul.f32 %v2580, %v1461
      %v2588 = vmul.f32 %v2583, %v1461
      %v2589 = vmul.f32 %v2586, %v1461
      %v2590 = vmul.f32 %v2572, %v2572
      %v2591 = vmul.f32 %v2573, %v2573
      %v2592 = vmul.f32 %v2574, %v2574
      %v2593 = vsub.f32 %v2587, %v2590
      %v2594 = vsub.f32 %v2588, %v2591
      %v2595 = vsub.f32 %v2589, %v2592
      %2597 = vset.pattern.permute.xlu0 0
      %2598 = vperm.xlu0 %2597, %v2572
      %v2599 = vpop.permute.xlu0 %2598
      %2602 = vset.pattern.permute.xlu0 0
      %2603 = vperm.xlu0 %2602, %v2573
      %v2604 = vpop.permute.xlu0 %2603
      %2607 = vset.pattern.permute.xlu0 0
      %2608 = vperm.xlu0 %2607, %v2574
      %v2609 = vpop.permute.xlu0 %2608
      %v2611 = vsub.f32 %v2560, %v2599
      %v2612 = vsub.f32 %v2561, %v2604
      %v2613 = vsub.f32 %v2562, %v2609
      %v2614 = vadd.f32 %v2593, 1e-05
      %v2615 = vadd.f32 %v2594, 1e-05
      %v2616 = vadd.f32 %v2595, 1e-05
      %v2617 = vrsqrt.pop %v2614
      %v2618 = vmul.f32 %v2617, %v2614
      %v2619 = vmul.f32 %v2618, %v2617
      %v2620 = vmul.f32 0.5, %v2619
      %v2621 = vsub.f32 1.5, %v2620
      %v2622 = vmul.f32 %v2617, %v2621
      %vm2623 = vweird.f32 %v2614
      %vm2624 = vweird.f32 %v2617
      %vm2625 = vmor %vm2623, %vm2624
      %v2626 = vsel %vm2625, %v2617, %v2622
      %v2627 = vrsqrt.pop %v2615
      %v2628 = vmul.f32 %v2627, %v2615
      %v2629 = vmul.f32 %v2628, %v2627
      %v2630 = vmul.f32 0.5, %v2629
      %v2631 = vsub.f32 1.5, %v2630
      %v2632 = vmul.f32 %v2627, %v2631
      %vm2633 = vweird.f32 %v2615
      %vm2634 = vweird.f32 %v2627
      %vm2635 = vmor %vm2633, %vm2634
      %v2636 = vsel %vm2635, %v2627, %v2632
      %v2637 = vrsqrt.pop %v2616
      %v2638 = vmul.f32 %v2637, %v2616
      %v2639 = vmul.f32 %v2638, %v2637
      %v2640 = vmul.f32 0.5, %v2639
      %v2641 = vsub.f32 1.5, %v2640
      %v2642 = vmul.f32 %v2637, %v2641
      %vm2643 = vweird.f32 %v2616
      %vm2644 = vweird.f32 %v2637
      %vm2645 = vmor %vm2643, %vm2644
      %v2646 = vsel %vm2645, %v2637, %v2642
      %2648 = vset.pattern.permute.xlu0 0
      %2649 = vperm.xlu0 %2648, %v2626
      %v2650 = vpop.permute.xlu0 %2649
      %2653 = vset.pattern.permute.xlu0 0
      %2654 = vperm.xlu0 %2653, %v2636
      %v2655 = vpop.permute.xlu0 %2654
      %2658 = vset.pattern.permute.xlu0 0
      %2659 = vperm.xlu0 %2658, %v2646
      %v2660 = vpop.permute.xlu0 %2659
      %v2662 = vmul.f32 %v2611, %v2650
      %v2663 = vmul.f32 %v2612, %v2655
      %v2664 = vmul.f32 %v2613, %v2660
      %v2665 = vperm.slane %v755, 4
      %v2666 = vmul.f32 %v2662, %v2665
      %v2667 = vmul.f32 %v2663, %v2665
      %v2668 = vmul.f32 %v2664, %v2665
      %v2669 = vperm.slane %v755, 5
      %v2670 = vadd.f32 %v2666, %v2669
      %v2671 = vadd.f32 %v2667, %v2669
      %v2672 = vadd.f32 %v2668, %v2669
      %v2673 = vpack.c.bf16 %v2671, %v2670
      %v2674 = vpack.c.bf16 %v2672, %v2672
      %v2675 = vperm.slane %v755, 2
      %v2676 = vperm.slane %v756, 2
      %v2683 = vunpack.c.l.b16 %v699
      %v2684 = vunpack.c.h.b16 %v699
      %v2685 = vunpack.c.l.b16 %v700
      %v2686 = vunpack.c.h.b16 %v700
      %v2687 = vunpack.c.l.b16 %v701
      %v2688 = vunpack.c.h.b16 %v701
      %v2689 = vunpack.c.l.b16 %v702
      %v2690 = vunpack.c.h.b16 %v702
      %v2691 = vunpack.c.l.b16 %v703
      %v2692 = vunpack.c.h.b16 %v703
      %v2693 = vunpack.c.l.b16 %v704
      %v2694 = vunpack.c.h.b16 %v704
      %v2695 = vpack.c.b16 %v2685, %v2683
      %v2696 = vpack.c.b16 %v2686, %v2684
      %v2697 = vpack.c.b16 %v2689, %v2687
      %v2698 = vpack.c.b16 %v2690, %v2688
      %v2699 = vpack.c.b16 %v2693, %v2691
      %v2700 = vpack.c.b16 %v2694, %v2692
      %v2708 = vsel %vm644, %v2673, 0
      %v2711 = vsel %vm644, %v2674, 0
      %2713 = vmatpush.bf16.msra.mxu0 0
      %2714 = vmatpush.bf16.msra.mxu0 0
      %2715 = vmatpush.bf16.msra.mxu0 0
      %2716 = vmatpush.bf16.msra.mxu0 0
      %2717 = vmatpush.bf16.msra.mxu0 0
      %2718 = vmatpush.bf16.msra.mxu0 %v2699
      %2719 = vmatpush.bf16.msra.mxu0 %v2697
      %2720 = vmatpush.bf16.msra.mxu0 %v2695
      %2721 = vmatmul.bf16.gmra.mxu0 %v2708
      %v2722 = vpop.f32.mrf.mxu0
      %v2723 = vadd.f32 %v2675, %v2722
      %v2724 = vpop.f32.mrf.mxu0
      %v2725 = vadd.f32 %v2675, %v2724
      %2726 = vmatmul.bf16.gmra.mxu0 %v2711
      %v2727 = vpop.f32.mrf.mxu0
      %v2728 = vadd.f32 %v2675, %v2727
      %v2729 = vpop.f32.mrf.mxu0
      %2730 = vdwg.mxu0
      %2731 = vmatpush.bf16.msra.mxu0 0
      %2732 = vmatpush.bf16.msra.mxu0 0
      %2733 = vmatpush.bf16.msra.mxu0 0
      %2734 = vmatpush.bf16.msra.mxu0 0
      %2735 = vmatpush.bf16.msra.mxu0 0
      %2736 = vmatpush.bf16.msra.mxu0 %v2700
      %2737 = vmatpush.bf16.msra.mxu0 %v2698
      %2738 = vmatpush.bf16.msra.mxu0 %v2696
      %2739 = vmatmul.bf16.gmra.mxu0 %v2708
      %v2740 = vpop.f32.mrf.mxu0
      %v2741 = vadd.f32 %v2676, %v2740
      %v2742 = vpop.f32.mrf.mxu0
      %v2743 = vadd.f32 %v2676, %v2742
      %2744 = vmatmul.bf16.gmra.mxu0 %v2711
      %v2745 = vpop.f32.mrf.mxu0
      %v2746 = vadd.f32 %v2676, %v2745
      %v2747 = vpop.f32.mrf.mxu0
      %2748 = vdwg.mxu0
      %v2749 = vmax.f32 %v2723, 0.0
      %v2750 = vmax.f32 %v2741, 0.0
      %v2751 = vmax.f32 %v2725, 0.0
      %v2752 = vmax.f32 %v2743, 0.0
      %v2753 = vmax.f32 %v2728, 0.0
      %v2754 = vmax.f32 %v2746, 0.0
      %v2755 = vpack.c.bf16 %v2751, %v2749
      %v2756 = vpack.c.bf16 %v2752, %v2750
      %v2757 = vpack.c.bf16 %v2753, %v2753
      %v2758 = vpack.c.bf16 %v2754, %v2754
      %v2759 = vperm.slane %v755, 3
      %v2784 = vunpack.c.l.b16 %v729
      %v2785 = vunpack.c.l.b16 %v730
      %v2786 = vunpack.c.l.b16 %v731
      %v2787 = vunpack.c.l.b16 %v732
      %v2788 = vunpack.c.l.b16 %v733
      %v2789 = vunpack.c.l.b16 %v734
      %v2790 = vunpack.c.l.b16 %v735
      %v2791 = vunpack.c.l.b16 %v736
      %v2792 = vunpack.c.l.b16 %v737
      %v2793 = vunpack.c.l.b16 %v738
      %v2794 = vunpack.c.l.b16 %v739
      %v2795 = vunpack.c.l.b16 %v740
      %v2796 = vunpack.c.l.b16 %v741
      %v2797 = vunpack.c.l.b16 %v742
      %v2798 = vunpack.c.l.b16 %v743
      %v2799 = vunpack.c.l.b16 %v744
      %v2800 = vunpack.c.l.b16 %v745
      %v2801 = vunpack.c.l.b16 %v746
      %v2802 = vunpack.c.l.b16 %v747
      %v2803 = vunpack.c.l.b16 %v748
      %v2804 = vunpack.c.l.b16 %v749
      %v2805 = vunpack.c.l.b16 %v750
      %v2806 = vunpack.c.l.b16 %v751
      %v2807 = vunpack.c.l.b16 %v752
      %v2808 = vpack.c.b16 %v2785, %v2784
      %v2809 = vpack.c.b16 %v2787, %v2786
      %v2810 = vpack.c.b16 %v2789, %v2788
      %v2811 = vpack.c.b16 %v2791, %v2790
      %v2812 = vpack.c.b16 %v2793, %v2792
      %v2813 = vpack.c.b16 %v2795, %v2794
      %v2814 = vpack.c.b16 %v2797, %v2796
      %v2815 = vpack.c.b16 %v2799, %v2798
      %v2816 = vpack.c.b16 %v2801, %v2800
      %v2817 = vpack.c.b16 %v2803, %v2802
      %v2818 = vpack.c.b16 %v2805, %v2804
      %v2819 = vpack.c.b16 %v2807, %v2806
      %v2833 = vsel %vm1723, %v2756, 0
      %v2836 = vsel %vm1723, %v2758, 0
      %2838 = vmatpush.bf16.msra.mxu0 %v2815
      %2839 = vmatpush.bf16.msra.mxu0 %v2814
      %2840 = vmatpush.bf16.msra.mxu0 %v2813
      %2841 = vmatpush.bf16.msra.mxu0 %v2812
      %2842 = vmatpush.bf16.msra.mxu0 %v2811
      %2843 = vmatpush.bf16.msra.mxu0 %v2810
      %2844 = vmatpush.bf16.msra.mxu0 %v2809
      %2845 = vmatpush.bf16.msra.mxu0 %v2808
      %2846 = vmatmul.bf16.gmra.mxu0 %v2755
      %v2847 = vpop.f32.mrf.mxu0
      %v2848 = vadd.f32 %v2759, %v2847
      %v2849 = vpop.f32.mrf.mxu0
      %v2850 = vadd.f32 %v2759, %v2849
      %2851 = vmatmul.bf16.gmra.mxu0 %v2757
      %v2852 = vpop.f32.mrf.mxu0
      %v2853 = vadd.f32 %v2759, %v2852
      %v2854 = vpop.f32.mrf.mxu0
      %2855 = vdwg.mxu0
      %2856 = vmatpush.bf16.msra.mxu0 0
      %2857 = vmatpush.bf16.msra.mxu0 0
      %2858 = vmatpush.bf16.msra.mxu0 0
      %2859 = vmatpush.bf16.msra.mxu0 0
      %2860 = vmatpush.bf16.msra.mxu0 %v2819
      %2861 = vmatpush.bf16.msra.mxu0 %v2818
      %2862 = vmatpush.bf16.msra.mxu0 %v2817
      %2863 = vmatpush.bf16.msra.mxu0 %v2816
      %2864 = vmatmul.bf16.gmra.mxu0 %v2833
      %v2865 = vpop.f32.mrf.mxu0
      %v2866 = vadd.f32 %v2848, %v2865
      %v2867 = vpop.f32.mrf.mxu0
      %v2868 = vadd.f32 %v2850, %v2867
      %2869 = vmatmul.bf16.gmra.mxu0 %v2836
      %v2870 = vpop.f32.mrf.mxu0
      %v2871 = vadd.f32 %v2853, %v2870
      %v2872 = vpop.f32.mrf.mxu0
      %2873 = vdwg.mxu0
      %v2874 = vadd.f32 %v2670, %v2866
      %v2875 = vadd.f32 %v2671, %v2868
      %v2876 = vadd.f32 %v2672, %v2871
      %v2877 = vsel %vm644, %v2874, 0.0
      %2878 = vadd.xlane.f32.xlu0 %v2877
      %v2879 = vpop.xlane.xlu0 %2878
      %v2880 = vsel %vm644, %v2875, 0.0
      %2881 = vadd.xlane.f32.xlu0 %v2880
      %v2882 = vpop.xlane.xlu0 %2881
      %v2883 = vsel %vm1456, %v2876, 0.0
      %2884 = vadd.xlane.f32.xlu0 %v2883
      %v2885 = vpop.xlane.xlu0 %2884
      %v2886 = vmul.f32 %v2879, %v1461
      %v2887 = vmul.f32 %v2882, %v1461
      %v2888 = vmul.f32 %v2885, %v1461
      %v2889 = vmul.f32 %v2874, %v2874
      %v2890 = vmul.f32 %v2875, %v2875
      %v2891 = vmul.f32 %v2876, %v2876
      %v2892 = vsel %vm644, %v2889, 0.0
      %2893 = vadd.xlane.f32.xlu0 %v2892
      %v2894 = vpop.xlane.xlu0 %2893
      %v2895 = vsel %vm644, %v2890, 0.0
      %2896 = vadd.xlane.f32.xlu0 %v2895
      %v2897 = vpop.xlane.xlu0 %2896
      %v2898 = vsel %vm1456, %v2891, 0.0
      %2899 = vadd.xlane.f32.xlu0 %v2898
      %v2900 = vpop.xlane.xlu0 %2899
      %v2901 = vmul.f32 %v2894, %v1461
      %v2902 = vmul.f32 %v2897, %v1461
      %v2903 = vmul.f32 %v2900, %v1461
      %v2904 = vmul.f32 %v2886, %v2886
      %v2905 = vmul.f32 %v2887, %v2887
      %v2906 = vmul.f32 %v2888, %v2888
      %v2907 = vsub.f32 %v2901, %v2904
      %v2908 = vsub.f32 %v2902, %v2905
      %v2909 = vsub.f32 %v2903, %v2906
      %2911 = vset.pattern.permute.xlu0 0
      %2912 = vperm.xlu0 %2911, %v2886
      %v2913 = vpop.permute.xlu0 %2912
      %2916 = vset.pattern.permute.xlu0 0
      %2917 = vperm.xlu0 %2916, %v2887
      %v2918 = vpop.permute.xlu0 %2917
      %2921 = vset.pattern.permute.xlu0 0
      %2922 = vperm.xlu0 %2921, %v2888
      %v2923 = vpop.permute.xlu0 %2922
      %v2925 = vsub.f32 %v2874, %v2913
      %v2926 = vsub.f32 %v2875, %v2918
      %v2927 = vsub.f32 %v2876, %v2923
      %v2928 = vadd.f32 %v2907, 1e-05
      %v2929 = vadd.f32 %v2908, 1e-05
      %v2930 = vadd.f32 %v2909, 1e-05
      %v2931 = vrsqrt.pop %v2928
      %v2932 = vmul.f32 %v2931, %v2928
      %v2933 = vmul.f32 %v2932, %v2931
      %v2934 = vmul.f32 0.5, %v2933
      %v2935 = vsub.f32 1.5, %v2934
      %v2936 = vmul.f32 %v2931, %v2935
      %vm2937 = vweird.f32 %v2928
      %vm2938 = vweird.f32 %v2931
      %vm2939 = vmor %vm2937, %vm2938
      %v2940 = vsel %vm2939, %v2931, %v2936
      %v2941 = vrsqrt.pop %v2929
      %v2942 = vmul.f32 %v2941, %v2929
      %v2943 = vmul.f32 %v2942, %v2941
      %v2944 = vmul.f32 0.5, %v2943
      %v2945 = vsub.f32 1.5, %v2944
      %v2946 = vmul.f32 %v2941, %v2945
      %vm2947 = vweird.f32 %v2929
      %vm2948 = vweird.f32 %v2941
      %vm2949 = vmor %vm2947, %vm2948
      %v2950 = vsel %vm2949, %v2941, %v2946
      %v2951 = vrsqrt.pop %v2930
      %v2952 = vmul.f32 %v2951, %v2930
      %v2953 = vmul.f32 %v2952, %v2951
      %v2954 = vmul.f32 0.5, %v2953
      %v2955 = vsub.f32 1.5, %v2954
      %v2956 = vmul.f32 %v2951, %v2955
      %vm2957 = vweird.f32 %v2930
      %vm2958 = vweird.f32 %v2951
      %vm2959 = vmor %vm2957, %vm2958
      %v2960 = vsel %vm2959, %v2951, %v2956
      %2962 = vset.pattern.permute.xlu0 0
      %2963 = vperm.xlu0 %2962, %v2940
      %v2964 = vpop.permute.xlu0 %2963
      %2967 = vset.pattern.permute.xlu0 0
      %2968 = vperm.xlu0 %2967, %v2950
      %v2969 = vpop.permute.xlu0 %2968
      %2972 = vset.pattern.permute.xlu0 0
      %2973 = vperm.xlu0 %2972, %v2960
      %v2974 = vpop.permute.xlu0 %2973
      %v2976 = vmul.f32 %v2925, %v2964
      %v2977 = vmul.f32 %v2926, %v2969
      %v2978 = vmul.f32 %v2927, %v2974
      %v2979 = vperm.slane %v755, 6
      %v2980 = vmul.f32 %v2976, %v2979
      %v2981 = vmul.f32 %v2977, %v2979
      %v2982 = vmul.f32 %v2978, %v2979
      %v2983 = vperm.slane %v755, 7
      %v2984 = vadd.f32 %v2980, %v2983
      %v2985 = vadd.f32 %v2981, %v2983
      %v2986 = vadd.f32 %v2982, %v2983
      %v2987 = vpack.c.bf16 %v2985, %v2984
      %v2988 = vpack.c.bf16 %v2986, %v2986
      %v2989 = vld [vmem:[%s593] sm:$0xf]
      %v2990 = vld [vmem:[%s593 + $0x4] sm:$0xf]
      %v2991 = vld [vmem:[%s593 + $0x8] sm:$0xf]
      %v2992 = vld [vmem:[%s593 + $0xc] sm:$0xf]
      %v2993 = vld [vmem:[%s593 + $0x10] sm:$0xf]
      %v2994 = vld [vmem:[%s593 + $0x14] sm:$0xf]
      %v2995 = vld [vmem:[%s596] sm:$0x1]
      %v2997 = vperm.slane %v2995, 0
      %v3005 = vunpack.c.l.b16 %v2989
      %v3006 = vunpack.c.l.b16 %v2990
      %v3007 = vunpack.c.l.b16 %v2991
      %v3008 = vunpack.c.l.b16 %v2992
      %v3009 = vunpack.c.l.b16 %v2993
      %v3010 = vunpack.c.l.b16 %v2994
      %v3011 = vpack.c.b16 %v3006, %v3005
      %v3012 = vpack.c.b16 %v3008, %v3007
      %v3013 = vpack.c.b16 %v3010, %v3009
      %v3018 = vsel %vm644, %v2987, 0
      %v3021 = vsel %vm644, %v2988, 0
      %3023 = vmatpush.bf16.msra.mxu0 0
      %3024 = vmatpush.bf16.msra.mxu0 0
      %3025 = vmatpush.bf16.msra.mxu0 0
      %3026 = vmatpush.bf16.msra.mxu0 0
      %3027 = vmatpush.bf16.msra.mxu0 0
      %3028 = vmatpush.bf16.msra.mxu0 %v3013
      %3029 = vmatpush.bf16.msra.mxu0 %v3012
      %3030 = vmatpush.bf16.msra.mxu0 %v3011
      %3031 = vmatmul.bf16.gmra.mxu0 %v3018
      %v3032 = vpop.f32.mrf.mxu0
      %v3033 = vadd.f32 %v2997, %v3032
      %v3034 = vpop.f32.mrf.mxu0
      %v3035 = vadd.f32 %v2997, %v3034
      %3036 = vmatmul.bf16.gmra.mxu0 %v3021
      %v3037 = vpop.f32.mrf.mxu0
      %v3038 = vadd.f32 %v2997, %v3037
      %v3039 = vpop.f32.mrf.mxu0
      %3040 = vdwg.mxu0
      %vm3041 = vcmask 261120
      %3042 = vst.msk [vmem:[%s601] sm:$0xff] %vm3041, %v3033
      %3043 = vst.msk [vmem:[%s601 + $0x8] sm:$0xff] %vm3041, %v3035
      %vm3044 = vcmask 254976
      %3045 = vst.msk [vmem:[%s601 + $0x10] sm:$0x3] %vm3044, %v3038
      %p3046 = scmp.lt.s32.totalorder %s23, 2
      %s3047 = scalar_select %p3046, %s23, 2
      %s3048 = smul.addr %s3047, 3
      %s3049 = smul.addr %s3048, 8
      %s3050 = scalar_lea.vmem %s12, %s3049
      // Predicated region
      $region69: #{_lambda_.2} parent=67 // pred_check
        %p3051 = pneg %p348
      $region70: #{_lambda_.2} parent=67 // pred_check_branch
        %3053 = sbr.rel (%p3051) target = $region72
      $region71: #{_lambda_.2} parent=67 // pred_region
        _
      $region72: #{_lambda_.2} parent=67 // pred_fallthru
        _
    $region68: #{_lambda_.2} parent=5 // pred_fallthru
      _
    %p3054 = scmp.le.s32.totalorder 2, %s18
    // Predicated region
    $region73: #{_lambda_.2} parent=5 // pred_check
      %p3055 = pneg %p3054
    $region74: #{_lambda_.2} parent=5 // pred_check_branch
      %3057 = sbr.rel (%p3055) target = $region76
    $region75: #{_lambda_.2} parent=5 // pred_region
      %s3058 = ssub.s32 %s18, 2
      // Predicated region
      $region77: #{_lambda_.2} parent=75 // pred_check
        %p3059 = pneg %p354
      $region78: #{_lambda_.2} parent=75 // pred_check_branch
        %3061 = sbr.rel (%p3059) target = $region80
      $region79: #{_lambda_.2} parent=75 // pred_region
        %p3062 = scmp.lt.s32.totalorder %s24, 2
        %s3063 = scalar_select %p3062, %s24, 2
        %s3064 = smul.addr %s3063, 3
        %s3065 = smul.addr %s3064, 8
        %s3066 = scalar_lea.vmem %s12, %s3065
      $region80: #{_lambda_.2} parent=75 // pred_fallthru
        _
    $region76: #{_lambda_.2} parent=5 // pred_fallthru
      _
  $region6: #{_lambda_.2} parent=0 // loop_footer
    %s22 = sadd.s32 1, %s18
  $region7: #{_lambda_.2} parent=0 // loop_footer_branch
    %17 = sbr.rel target = $region3
  $region8: #{_lambda_.2} parent=0 // loop_exit
    _

// kernel: _lambda_.3
$region0: #{_lambda_.3}
  #allocation0 [shape = 'u32[]', space=smem, size = 0x4, offset = 0x4, fixed_abs, tag = 'smem constant byte address 0x4 - core index']
  #allocation1 [shape = 'u32[72,128]{1,0:T(1,128)}', space=vmem, size = 0x9000, scoped, tag = 'internal scratch']
  #allocation2 [shape = 'f32[1,1]{1,0:T(1,128)S(1)}', space=vmem, size = 0x200, scoped, tag = 'scoped memory for _lambda_.3']
  %s0 = inlined_call_operand.vmem [shape: f32[50,32], index: 0, kind: input, shape index: {}]
  %s1 = inlined_call_operand.vmem [shape: f32[50,50], index: 1, kind: input, shape index: {}]
  %s2 = inlined_call_operand.vmem [shape: f32[25,32], index: 2, kind: input, shape index: {}]
  %s3 = inlined_call_operand.vmem [shape: bf16[2,32,96], index: 3, kind: input, shape index: {}]
  %s4 = inlined_call_operand.vmem [shape: bf16[2,32,32], index: 4, kind: input, shape index: {}]
  %s5 = inlined_call_operand.vmem [shape: bf16[2,32,128], index: 5, kind: input, shape index: {}]
  %s6 = inlined_call_operand.vmem [shape: bf16[2,128,32], index: 6, kind: input, shape index: {}]
  %s7 = inlined_call_operand.vmem [shape: f32[2,8,128], index: 7, kind: input, shape index: {}]
  %s8 = inlined_call_operand.vmem [shape: f32[3,2,32], index: 8, kind: input, shape index: {}]
  %s9 = inlined_call_operand.vmem [shape: bf16[3,32,16], index: 9, kind: input, shape index: {}]
  %s10 = inlined_call_operand.vmem [shape: f32[3,1,16], index: 10, kind: input, shape index: {}]
  %s11 = inlined_call_operand.vmem [shape: bf16[3,16,16], index: 11, kind: input, shape index: {}]
  %s12 = inlined_call_operand.vmem [shape: f32[3,1,16], index: 12, kind: input, shape index: {}]
  %s13 = inlined_call_operand.vmem [shape: bf16[3,16,1], index: 13, kind: input, shape index: {}]
  %s14 = inlined_call_operand.vmem [shape: f32[3,1,1], index: 14, kind: input, shape index: {}]
  %s15 = inlined_call_operand.vmem [shape: bf16[32,1], index: 15, kind: input, shape index: {}]
  %s16 = inlined_call_operand.<no memory space> [shape: f32[1,1], index: 16, kind: input, shape index: {}]
  %s17 = inlined_call_operand.vmem [shape: f32[50,32], index: 17, kind: output, shape index: {0}]
  %s18 = inlined_call_operand.vmem [shape: f32[2,4], index: 18, kind: output, shape index: {1}]
  %19 = xla_tuple %s17, %s18
  %s20 = sld [smem:[#allocation0]]
  $region86: #{_lambda_.3} parent=0
    _
  %s22 = ssub.s32 1, %s20
  %s23 = scalar_select 0, %s22, %s20
  %v24 = vstv %s16
  %25 = vst [vmem:[#allocation2] sm:$0x1] %v24
  // Predicated region
  $region2: #{_lambda_.3} parent=0 // pred_check
    _
  $region3: #{_lambda_.3} parent=0 // pred_check_branch
    %27 = sbr.rel (0) target = $region5
  $region4: #{_lambda_.3} parent=0 // pred_region
    _
  $region5: #{_lambda_.3} parent=0 // pred_fallthru
    _
  // Predicated region
  $region6: #{_lambda_.3} parent=0 // pred_check
    _
  $region7: #{_lambda_.3} parent=0 // pred_check_branch
    %29 = sbr.rel (0) target = $region9
  $region8: #{_lambda_.3} parent=0 // pred_region
    _
  $region9: #{_lambda_.3} parent=0 // pred_fallthru
    _
  // Predicated region
  $region10: #{_lambda_.3} parent=0 // pred_check
    _
  $region11: #{_lambda_.3} parent=0 // pred_check_branch
    %31 = sbr.rel (0) target = $region13
  $region12: #{_lambda_.3} parent=0 // pred_region
    _
  $region13: #{_lambda_.3} parent=0 // pred_fallthru
    _
  // Predicated region
  $region14: #{_lambda_.3} parent=0 // pred_check
    _
  $region15: #{_lambda_.3} parent=0 // pred_check_branch
    %33 = sbr.rel (0) target = $region17
  $region16: #{_lambda_.3} parent=0 // pred_region
    _
  $region17: #{_lambda_.3} parent=0 // pred_fallthru
    _
  // Predicated region
  $region18: #{_lambda_.3} parent=0 // pred_check
    _
  $region19: #{_lambda_.3} parent=0 // pred_check_branch
    %35 = sbr.rel (0) target = $region21
  $region20: #{_lambda_.3} parent=0 // pred_region
    _
  $region21: #{_lambda_.3} parent=0 // pred_fallthru
    _
  // Predicated region
  $region22: #{_lambda_.3} parent=0 // pred_check
    _
  $region23: #{_lambda_.3} parent=0 // pred_check_branch
    %37 = sbr.rel (0) target = $region25
  $region24: #{_lambda_.3} parent=0 // pred_region
    _
  $region25: #{_lambda_.3} parent=0 // pred_fallthru
    _
  // Predicated region
  $region26: #{_lambda_.3} parent=0 // pred_check
    _
  $region27: #{_lambda_.3} parent=0 // pred_check_branch
    %39 = sbr.rel (0) target = $region29
  $region28: #{_lambda_.3} parent=0 // pred_region
    _
  $region29: #{_lambda_.3} parent=0 // pred_fallthru
    _
  // Predicated region
  $region30: #{_lambda_.3} parent=0 // pred_check
    _
  $region31: #{_lambda_.3} parent=0 // pred_check_branch
    %41 = sbr.rel (0) target = $region33
  $region32: #{_lambda_.3} parent=0 // pred_region
    _
  $region33: #{_lambda_.3} parent=0 // pred_fallthru
    _
  // Predicated region
  $region34: #{_lambda_.3} parent=0 // pred_check
    _
  $region35: #{_lambda_.3} parent=0 // pred_check_branch
    %43 = sbr.rel (0) target = $region37
  $region36: #{_lambda_.3} parent=0 // pred_region
    _
  $region37: #{_lambda_.3} parent=0 // pred_fallthru
    _
  // Predicated region
  $region38: #{_lambda_.3} parent=0 // pred_check
    _
  $region39: #{_lambda_.3} parent=0 // pred_check_branch
    %45 = sbr.rel (0) target = $region41
  $region40: #{_lambda_.3} parent=0 // pred_region
    _
  $region41: #{_lambda_.3} parent=0 // pred_fallthru
    _
  // Predicated region
  $region42: #{_lambda_.3} parent=0 // pred_check
    _
  $region43: #{_lambda_.3} parent=0 // pred_check_branch
    %47 = sbr.rel (0) target = $region45
  $region44: #{_lambda_.3} parent=0 // pred_region
    _
  $region45: #{_lambda_.3} parent=0 // pred_fallthru
    _
  // Predicated region
  $region46: #{_lambda_.3} parent=0 // pred_check
    _
  $region47: #{_lambda_.3} parent=0 // pred_check_branch
    %49 = sbr.rel (0) target = $region49
  $region48: #{_lambda_.3} parent=0 // pred_region
    _
  $region49: #{_lambda_.3} parent=0 // pred_fallthru
    _
  // Predicated region
  $region50: #{_lambda_.3} parent=0 // pred_check
    _
  $region51: #{_lambda_.3} parent=0 // pred_check_branch
    %51 = sbr.rel (0) target = $region53
  $region52: #{_lambda_.3} parent=0 // pred_region
    _
  $region53: #{_lambda_.3} parent=0 // pred_fallthru
    _
  // Predicated region
  $region54: #{_lambda_.3} parent=0 // pred_check
    _
  $region55: #{_lambda_.3} parent=0 // pred_check_branch
    %53 = sbr.rel (0) target = $region57
  $region56: #{_lambda_.3} parent=0 // pred_region
    _
  $region57: #{_lambda_.3} parent=0 // pred_fallthru
    _
  // Predicated region
  $region58: #{_lambda_.3} parent=0 // pred_check
    _
  $region59: #{_lambda_.3} parent=0 // pred_check_branch
    %55 = sbr.rel (0) target = $region61
  $region60: #{_lambda_.3} parent=0 // pred_region
    _
  $region61: #{_lambda_.3} parent=0 // pred_fallthru
    _
  // Predicated region
  $region62: #{_lambda_.3} parent=0 // pred_check
    _
  $region63: #{_lambda_.3} parent=0 // pred_check_branch
    %57 = sbr.rel (0) target = $region65
  $region64: #{_lambda_.3} parent=0 // pred_region
    _
  $region65: #{_lambda_.3} parent=0 // pred_fallthru
    _
  // Predicated region
  $region66: #{_lambda_.3} parent=0 // pred_check
    _
  $region67: #{_lambda_.3} parent=0 // pred_check_branch
    %59 = sbr.rel (0) target = $region69
  $region68: #{_lambda_.3} parent=0 // pred_region
    _
  $region69: #{_lambda_.3} parent=0 // pred_fallthru
    _
  %v61 = vld [vmem:[%s0] sm:$0xff]
  %v62 = vld [vmem:[%s0 + $0x8] sm:$0xff]
  %v63 = vld [vmem:[%s0 + $0x10] sm:$0xff]
  %v64 = vld [vmem:[%s0 + $0x18] sm:$0xff]
  %v65 = vld [vmem:[%s0 + $0x20] sm:$0xff]
  %v66 = vld [vmem:[%s0 + $0x28] sm:$0xff]
  %v67 = vld [vmem:[%s0 + $0x30] sm:$0x3]
  %v68 = vld [vmem:[%s2] sm:$0xff]
  %v69 = vld [vmem:[%s2 + $0x8] sm:$0xff]
  %v70 = vld [vmem:[%s2 + $0x10] sm:$0xff]
  %v71 = vld [vmem:[%s2 + $0x18] sm:$0x1]
  %vm76 = vcmask 1040384
  %v77 = vrot.slane %v68, 7
  %v78 = vrot.slane %v69, 7
  %v79 = vsel %vm76, %v77, %v78
  %v80 = vrot.slane %v70, 7
  %v81 = vsel %vm76, %v78, %v80
  %v82 = vrot.slane %v71, 7
  %v83 = vsel %vm76, %v80, %v82
  %v88 = vsel %vm76, %v71, %v77
  %v89 = vadd.f32 %v61, %v68
  %v90 = vadd.f32 %v62, %v69
  %v91 = vadd.f32 %v63, %v70
  %v92 = vadd.f32 %v64, %v88
  %v93 = vadd.f32 %v65, %v79
  %v94 = vadd.f32 %v66, %v81
  %v95 = vadd.f32 %v67, %v83
  %v96 = vld [vmem:[%s3] sm:$0xf]
  %v97 = vld [vmem:[%s3 + $0x4] sm:$0xf]
  %v98 = vld [vmem:[%s3 + $0x8] sm:$0xf]
  %v99 = vld [vmem:[%s3 + $0xc] sm:$0xf]
  %v100 = vld [vmem:[%s3 + $0x10] sm:$0xf]
  %v101 = vld [vmem:[%s3 + $0x14] sm:$0xf]
  %v102 = vld [vmem:[%s3 + $0x18] sm:$0xf]
  %v103 = vld [vmem:[%s3 + $0x1c] sm:$0xf]
  %v104 = vld [vmem:[%s4] sm:$0xf]
  %v105 = vld [vmem:[%s4 + $0x4] sm:$0xf]
  %v106 = vld [vmem:[%s4 + $0x8] sm:$0xf]
  %v107 = vld [vmem:[%s4 + $0xc] sm:$0xf]
  %v108 = vld [vmem:[%s4 + $0x10] sm:$0xf]
  %v109 = vld [vmem:[%s4 + $0x14] sm:$0xf]
  %v110 = vld [vmem:[%s4 + $0x18] sm:$0xf]
  %v111 = vld [vmem:[%s4 + $0x1c] sm:$0xf]
  %v112 = vld [vmem:[%s5] sm:$0xf]
  %v113 = vld [vmem:[%s5 + $0x4] sm:$0xf]
  %v114 = vld [vmem:[%s5 + $0x8] sm:$0xf]
  %v115 = vld [vmem:[%s5 + $0xc] sm:$0xf]
  %v116 = vld [vmem:[%s5 + $0x10] sm:$0xf]
  %v117 = vld [vmem:[%s5 + $0x14] sm:$0xf]
  %v118 = vld [vmem:[%s5 + $0x18] sm:$0xf]
  %v119 = vld [vmem:[%s5 + $0x1c] sm:$0xf]
  %v120 = vld [vmem:[%s6] sm:$0xf]
  %v121 = vld [vmem:[%s6 + $0x4] sm:$0xf]
  %v122 = vld [vmem:[%s6 + $0x8] sm:$0xf]
  %v123 = vld [vmem:[%s6 + $0xc] sm:$0xf]
  %v124 = vld [vmem:[%s6 + $0x10] sm:$0xf]
  %v125 = vld [vmem:[%s6 + $0x14] sm:$0xf]
  %v126 = vld [vmem:[%s6 + $0x18] sm:$0xf]
  %v127 = vld [vmem:[%s6 + $0x1c] sm:$0xf]
  %v128 = vld [vmem:[%s6 + $0x20] sm:$0xf]
  %v129 = vld [vmem:[%s6 + $0x24] sm:$0xf]
  %v130 = vld [vmem:[%s6 + $0x28] sm:$0xf]
  %v131 = vld [vmem:[%s6 + $0x2c] sm:$0xf]
  %v132 = vld [vmem:[%s6 + $0x30] sm:$0xf]
  %v133 = vld [vmem:[%s6 + $0x34] sm:$0xf]
  %v134 = vld [vmem:[%s6 + $0x38] sm:$0xf]
  %v135 = vld [vmem:[%s6 + $0x3c] sm:$0xf]
  %v136 = vld [vmem:[%s6 + $0x40] sm:$0xf]
  %v137 = vld [vmem:[%s6 + $0x44] sm:$0xf]
  %v138 = vld [vmem:[%s6 + $0x48] sm:$0xf]
  %v139 = vld [vmem:[%s6 + $0x4c] sm:$0xf]
  %v140 = vld [vmem:[%s6 + $0x50] sm:$0xf]
  %v141 = vld [vmem:[%s6 + $0x54] sm:$0xf]
  %v142 = vld [vmem:[%s6 + $0x58] sm:$0xf]
  %v143 = vld [vmem:[%s6 + $0x5c] sm:$0xf]
  %v144 = vld [vmem:[%s6 + $0x60] sm:$0xf]
  %v145 = vld [vmem:[%s6 + $0x64] sm:$0xf]
  %v146 = vld [vmem:[%s6 + $0x68] sm:$0xf]
  %v147 = vld [vmem:[%s6 + $0x6c] sm:$0xf]
  %v148 = vld [vmem:[%s6 + $0x70] sm:$0xf]
  %v149 = vld [vmem:[%s6 + $0x74] sm:$0xf]
  %v150 = vld [vmem:[%s6 + $0x78] sm:$0xf]
  %v151 = vld [vmem:[%s6 + $0x7c] sm:$0xf]
  %v152 = vld [vmem:[%s7] sm:$0xff]
  %v153 = vld [vmem:[%s7 + $0x8] sm:$0xff]
  %v154 = vld [vmem:[%s1] sm:$0xff]
  %v155 = vld [vmem:[%s1 + $0x8] sm:$0xff]
  %v156 = vld [vmem:[%s1 + $0x10] sm:$0xff]
  %v157 = vld [vmem:[%s1 + $0x18] sm:$0xff]
  %v158 = vld [vmem:[%s1 + $0x20] sm:$0xff]
  %v159 = vld [vmem:[%s1 + $0x28] sm:$0xff]
  %v160 = vld [vmem:[%s1 + $0x30] sm:$0x3]
  %v161 = vpack.c.bf16 %v90, %v89
  %v162 = vpack.c.bf16 %v92, %v91
  %v163 = vpack.c.bf16 %v94, %v93
  %v164 = vpack.c.bf16 %v95, %v95
  %v165 = vperm.slane %v152, 0
  %v170 = vunpack.c.l.b16 %v96
  %v171 = vunpack.c.l.b16 %v97
  %v172 = vunpack.c.l.b16 %v98
  %v173 = vunpack.c.l.b16 %v99
  %v174 = vpack.c.b16 %v171, %v170
  %v175 = vpack.c.b16 %v173, %v172
  %vm178 = vcmask 261120
  %v180 = vsel %vm178, %v161, 0
  %v183 = vsel %vm178, %v162, 0
  %v186 = vsel %vm178, %v163, 0
  %v189 = vsel %vm178, %v164, 0
  %191 = vmatpush.bf16.msra.mxu0 0
  %192 = vmatpush.bf16.msra.mxu0 0
  %193 = vmatpush.bf16.msra.mxu0 0
  %194 = vmatpush.bf16.msra.mxu0 0
  %195 = vmatpush.bf16.msra.mxu0 0
  %196 = vmatpush.bf16.msra.mxu0 0
  %197 = vmatpush.bf16.msra.mxu0 %v175
  %198 = vmatpush.bf16.msra.mxu0 %v174
  %199 = vmatmul.bf16.gmra.mxu0 %v180
  %v200 = vpop.f32.mrf.mxu0
  %v201 = vadd.f32 %v165, %v200
  %v202 = vpop.f32.mrf.mxu0
  %v203 = vadd.f32 %v165, %v202
  %204 = vmatmul.bf16.gmra.mxu0 %v183
  %v205 = vpop.f32.mrf.mxu0
  %v206 = vadd.f32 %v165, %v205
  %v207 = vpop.f32.mrf.mxu0
  %v208 = vadd.f32 %v165, %v207
  %209 = vmatmul.bf16.gmra.mxu0 %v186
  %v210 = vpop.f32.mrf.mxu0
  %v211 = vadd.f32 %v165, %v210
  %v212 = vpop.f32.mrf.mxu0
  %v213 = vadd.f32 %v165, %v212
  %214 = vmatmul.bf16.gmra.mxu0 %v189
  %v215 = vpop.f32.mrf.mxu0
  %v216 = vadd.f32 %v165, %v215
  %v217 = vpop.f32.mrf.mxu0
  %218 = vdwg.mxu0
  %v219 = vpack.c.bf16 %v201, %v201
  %v220 = vpack.c.bf16 %v203, %v203
  %v221 = vpack.c.bf16 %v206, %v206
  %v222 = vpack.c.bf16 %v208, %v208
  %v223 = vpack.c.bf16 %v211, %v211
  %v224 = vpack.c.bf16 %v213, %v213
  %v225 = vpack.c.bf16 %v216, %v216
  %233 = vrot.lane.b32.xlu0 %v219, 120
  %v234 = vpop.permute.xlu0 %233
  %235 = vrot.lane.b32.xlu0 %v220, 120
  %v236 = vpop.permute.xlu0 %235
  %237 = vrot.lane.b32.xlu0 %v221, 120
  %v238 = vpop.permute.xlu0 %237
  %239 = vrot.lane.b32.xlu0 %v222, 120
  %v240 = vpop.permute.xlu0 %239
  %241 = vrot.lane.b32.xlu0 %v223, 120
  %v242 = vpop.permute.xlu0 %241
  %243 = vrot.lane.b32.xlu0 %v224, 120
  %v244 = vpop.permute.xlu0 %243
  %245 = vrot.lane.b32.xlu0 %v225, 120
  %v246 = vpop.permute.xlu0 %245
  %247 = vrot.lane.b32.xlu0 %v219, 112
  %v248 = vpop.permute.xlu0 %247
  %249 = vrot.lane.b32.xlu0 %v220, 112
  %v250 = vpop.permute.xlu0 %249
  %251 = vrot.lane.b32.xlu0 %v221, 112
  %v252 = vpop.permute.xlu0 %251
  %253 = vrot.lane.b32.xlu0 %v222, 112
  %v254 = vpop.permute.xlu0 %253
  %255 = vrot.lane.b32.xlu0 %v223, 112
  %v256 = vpop.permute.xlu0 %255
  %257 = vrot.lane.b32.xlu0 %v224, 112
  %v258 = vpop.permute.xlu0 %257
  %259 = vrot.lane.b32.xlu0 %v225, 112
  %v260 = vpop.permute.xlu0 %259
  %261 = vrot.lane.b32.xlu0 %v219, 104
  %v262 = vpop.permute.xlu0 %261
  %263 = vrot.lane.b32.xlu0 %v220, 104
  %v264 = vpop.permute.xlu0 %263
  %265 = vrot.lane.b32.xlu0 %v221, 104
  %v266 = vpop.permute.xlu0 %265
  %267 = vrot.lane.b32.xlu0 %v222, 104
  %v268 = vpop.permute.xlu0 %267
  %269 = vrot.lane.b32.xlu0 %v223, 104
  %v270 = vpop.permute.xlu0 %269
  %271 = vrot.lane.b32.xlu0 %v224, 104
  %v272 = vpop.permute.xlu0 %271
  %273 = vrot.lane.b32.xlu0 %v225, 104
  %v274 = vpop.permute.xlu0 %273
  %v275 = vunpack.c.l.b16 %v219
  %v276 = vunpack.c.l.b16 %v220
  %v277 = vunpack.c.l.b16 %v221
  %v278 = vunpack.c.l.b16 %v222
  %v279 = vunpack.c.l.b16 %v223
  %v280 = vunpack.c.l.b16 %v224
  %v281 = vunpack.c.l.b16 %v225
  %v282 = vpack.c.b16 %v276, %v275
  %v283 = vpack.c.b16 %v278, %v277
  %v284 = vpack.c.b16 %v280, %v279
  %v285 = vpack.c.b16 %v281, %v281
  %286 = vrot.lane.b32.xlu0 %v282, 96
  %v287 = vpop.permute.xlu0 %286
  %288 = vrot.lane.b32.xlu0 %v283, 96
  %v289 = vpop.permute.xlu0 %288
  %290 = vrot.lane.b32.xlu0 %v284, 96
  %v291 = vpop.permute.xlu0 %290
  %292 = vrot.lane.b32.xlu0 %v285, 96
  %v293 = vpop.permute.xlu0 %292
  %vm294 = vcmask 64512
  %v296 = vsel %vm294, %v282, 0
  %v299 = vsel %vm294, %v283, 0
  %v302 = vsel %vm294, %v284, 0
  %v305 = vsel %vm294, %v285, 0
  %v308 = vsel %vm294, %v287, 0
  %v311 = vsel %vm294, %v289, 0
  %v314 = vsel %vm294, %v291, 0
  %v317 = vsel %vm294, %v293, 0
  %319 = vmatpush.bf16.xpose.msra.mxu0 0
  %320 = vmatpush.bf16.xpose.msra.mxu0 0
  %321 = vmatpush.bf16.xpose.msra.mxu0 0
  %322 = vmatpush.bf16.xpose.msra.mxu0 0
  %323 = vmatpush.bf16.xpose.msra.mxu0 %v317
  %324 = vmatpush.bf16.xpose.msra.mxu0 %v314
  %325 = vmatpush.bf16.xpose.msra.mxu0 %v311
  %326 = vmatpush.bf16.xpose.msra.mxu0 %v308
  %327 = vmatmul.bf16.gmra.mxu0 %v296
  %v328 = vpop.f32.mrf.mxu0
  %v329 = vadd.f32 %v154, %v328
  %v330 = vpop.f32.mrf.mxu0
  %v331 = vadd.f32 %v155, %v330
  %332 = vmatmul.bf16.gmra.mxu0 %v299
  %v333 = vpop.f32.mrf.mxu0
  %v334 = vadd.f32 %v156, %v333
  %v335 = vpop.f32.mrf.mxu0
  %v336 = vadd.f32 %v157, %v335
  %337 = vmatmul.bf16.gmra.mxu0 %v302
  %v338 = vpop.f32.mrf.mxu0
  %v339 = vadd.f32 %v158, %v338
  %v340 = vpop.f32.mrf.mxu0
  %v341 = vadd.f32 %v159, %v340
  %342 = vmatmul.bf16.gmra.mxu0 %v305
  %v343 = vpop.f32.mrf.mxu0
  %v344 = vadd.f32 %v160, %v343
  %v345 = vpop.f32.mrf.mxu0
  %346 = vdwg.mxu0
  %v347 = vunpack.c.l.b16 %v234
  %v348 = vunpack.c.l.b16 %v236
  %v349 = vunpack.c.l.b16 %v238
  %v350 = vunpack.c.l.b16 %v240
  %v351 = vunpack.c.l.b16 %v242
  %v352 = vunpack.c.l.b16 %v244
  %v353 = vunpack.c.l.b16 %v246
  %v354 = vpack.c.b16 %v348, %v347
  %v355 = vpack.c.b16 %v350, %v349
  %v356 = vpack.c.b16 %v352, %v351
  %v357 = vpack.c.b16 %v353, %v353
  %358 = vrot.lane.b32.xlu0 %v354, 96
  %v359 = vpop.permute.xlu0 %358
  %360 = vrot.lane.b32.xlu0 %v355, 96
  %v361 = vpop.permute.xlu0 %360
  %362 = vrot.lane.b32.xlu0 %v356, 96
  %v363 = vpop.permute.xlu0 %362
  %364 = vrot.lane.b32.xlu0 %v357, 96
  %v365 = vpop.permute.xlu0 %364
  %v367 = vsel %vm294, %v354, 0
  %v370 = vsel %vm294, %v355, 0
  %v373 = vsel %vm294, %v356, 0
  %v376 = vsel %vm294, %v357, 0
  %v379 = vsel %vm294, %v359, 0
  %v382 = vsel %vm294, %v361, 0
  %v385 = vsel %vm294, %v363, 0
  %v388 = vsel %vm294, %v365, 0
  %390 = vmatpush.bf16.xpose.msra.mxu0 0
  %391 = vmatpush.bf16.xpose.msra.mxu0 0
  %392 = vmatpush.bf16.xpose.msra.mxu0 0
  %393 = vmatpush.bf16.xpose.msra.mxu0 0
  %394 = vmatpush.bf16.xpose.msra.mxu0 %v388
  %395 = vmatpush.bf16.xpose.msra.mxu0 %v385
  %396 = vmatpush.bf16.xpose.msra.mxu0 %v382
  %397 = vmatpush.bf16.xpose.msra.mxu0 %v379
  %398 = vmatmul.bf16.gmra.mxu0 %v367
  %v399 = vpop.f32.mrf.mxu0
  %v400 = vadd.f32 %v154, %v399
  %v401 = vpop.f32.mrf.mxu0
  %v402 = vadd.f32 %v155, %v401
  %403 = vmatmul.bf16.gmra.mxu0 %v370
  %v404 = vpop.f32.mrf.mxu0
  %v405 = vadd.f32 %v156, %v404
  %v406 = vpop.f32.mrf.mxu0
  %v407 = vadd.f32 %v157, %v406
  %408 = vmatmul.bf16.gmra.mxu0 %v373
  %v409 = vpop.f32.mrf.mxu0
  %v410 = vadd.f32 %v158, %v409
  %v411 = vpop.f32.mrf.mxu0
  %v412 = vadd.f32 %v159, %v411
  %413 = vmatmul.bf16.gmra.mxu0 %v376
  %v414 = vpop.f32.mrf.mxu0
  %v415 = vadd.f32 %v160, %v414
  %v416 = vpop.f32.mrf.mxu0
  %417 = vdwg.mxu0
  %v418 = vunpack.c.l.b16 %v248
  %v419 = vunpack.c.l.b16 %v250
  %v420 = vunpack.c.l.b16 %v252
  %v421 = vunpack.c.l.b16 %v254
  %v422 = vunpack.c.l.b16 %v256
  %v423 = vunpack.c.l.b16 %v258
  %v424 = vunpack.c.l.b16 %v260
  %v425 = vpack.c.b16 %v419, %v418
  %v426 = vpack.c.b16 %v421, %v420
  %v427 = vpack.c.b16 %v423, %v422
  %v428 = vpack.c.b16 %v424, %v424
  %429 = vrot.lane.b32.xlu0 %v425, 96
  %v430 = vpop.permute.xlu0 %429
  %431 = vrot.lane.b32.xlu0 %v426, 96
  %v432 = vpop.permute.xlu0 %431
  %433 = vrot.lane.b32.xlu0 %v427, 96
  %v434 = vpop.permute.xlu0 %433
  %435 = vrot.lane.b32.xlu0 %v428, 96
  %v436 = vpop.permute.xlu0 %435
  %v438 = vsel %vm294, %v425, 0
  %v441 = vsel %vm294, %v426, 0
  %v444 = vsel %vm294, %v427, 0
  %v447 = vsel %vm294, %v428, 0
  %v450 = vsel %vm294, %v430, 0
  %v453 = vsel %vm294, %v432, 0
  %v456 = vsel %vm294, %v434, 0
  %v459 = vsel %vm294, %v436, 0
  %461 = vmatpush.bf16.xpose.msra.mxu0 0
  %462 = vmatpush.bf16.xpose.msra.mxu0 0
  %463 = vmatpush.bf16.xpose.msra.mxu0 0
  %464 = vmatpush.bf16.xpose.msra.mxu0 0
  %465 = vmatpush.bf16.xpose.msra.mxu0 %v459
  %466 = vmatpush.bf16.xpose.msra.mxu0 %v456
  %467 = vmatpush.bf16.xpose.msra.mxu0 %v453
  %468 = vmatpush.bf16.xpose.msra.mxu0 %v450
  %469 = vmatmul.bf16.gmra.mxu0 %v438
  %v470 = vpop.f32.mrf.mxu0
  %v471 = vadd.f32 %v154, %v470
  %v472 = vpop.f32.mrf.mxu0
  %v473 = vadd.f32 %v155, %v472
  %474 = vmatmul.bf16.gmra.mxu0 %v441
  %v475 = vpop.f32.mrf.mxu0
  %v476 = vadd.f32 %v156, %v475
  %v477 = vpop.f32.mrf.mxu0
  %v478 = vadd.f32 %v157, %v477
  %479 = vmatmul.bf16.gmra.mxu0 %v444
  %v480 = vpop.f32.mrf.mxu0
  %v481 = vadd.f32 %v158, %v480
  %v482 = vpop.f32.mrf.mxu0
  %v483 = vadd.f32 %v159, %v482
  %484 = vmatmul.bf16.gmra.mxu0 %v447
  %v485 = vpop.f32.mrf.mxu0
  %v486 = vadd.f32 %v160, %v485
  %v487 = vpop.f32.mrf.mxu0
  %488 = vdwg.mxu0
  %v489 = vunpack.c.l.b16 %v262
  %v490 = vunpack.c.l.b16 %v264
  %v491 = vunpack.c.l.b16 %v266
  %v492 = vunpack.c.l.b16 %v268
  %v493 = vunpack.c.l.b16 %v270
  %v494 = vunpack.c.l.b16 %v272
  %v495 = vunpack.c.l.b16 %v274
  %v496 = vpack.c.b16 %v490, %v489
  %v497 = vpack.c.b16 %v492, %v491
  %v498 = vpack.c.b16 %v494, %v493
  %v499 = vpack.c.b16 %v495, %v495
  %500 = vrot.lane.b32.xlu0 %v496, 96
  %v501 = vpop.permute.xlu0 %500
  %502 = vrot.lane.b32.xlu0 %v497, 96
  %v503 = vpop.permute.xlu0 %502
  %504 = vrot.lane.b32.xlu0 %v498, 96
  %v505 = vpop.permute.xlu0 %504
  %506 = vrot.lane.b32.xlu0 %v499, 96
  %v507 = vpop.permute.xlu0 %506
  %v509 = vsel %vm294, %v496, 0
  %v512 = vsel %vm294, %v497, 0
  %v515 = vsel %vm294, %v498, 0
  %v518 = vsel %vm294, %v499, 0
  %v521 = vsel %vm294, %v501, 0
  %v524 = vsel %vm294, %v503, 0
  %v527 = vsel %vm294, %v505, 0
  %v530 = vsel %vm294, %v507, 0
  %532 = vmatpush.bf16.xpose.msra.mxu0 0
  %533 = vmatpush.bf16.xpose.msra.mxu0 0
  %534 = vmatpush.bf16.xpose.msra.mxu0 0
  %535 = vmatpush.bf16.xpose.msra.mxu0 0
  %536 = vmatpush.bf16.xpose.msra.mxu0 %v530
  %537 = vmatpush.bf16.xpose.msra.mxu0 %v527
  %538 = vmatpush.bf16.xpose.msra.mxu0 %v524
  %539 = vmatpush.bf16.xpose.msra.mxu0 %v521
  %540 = vmatmul.bf16.gmra.mxu0 %v509
  %v541 = vpop.f32.mrf.mxu0
  %v542 = vadd.f32 %v154, %v541
  %v543 = vpop.f32.mrf.mxu0
  %v544 = vadd.f32 %v155, %v543
  %545 = vmatmul.bf16.gmra.mxu0 %v512
  %v546 = vpop.f32.mrf.mxu0
  %v547 = vadd.f32 %v156, %v546
  %v548 = vpop.f32.mrf.mxu0
  %v549 = vadd.f32 %v157, %v548
  %550 = vmatmul.bf16.gmra.mxu0 %v515
  %v551 = vpop.f32.mrf.mxu0
  %v552 = vadd.f32 %v158, %v551
  %v553 = vpop.f32.mrf.mxu0
  %v554 = vadd.f32 %v159, %v553
  %555 = vmatmul.bf16.gmra.mxu0 %v518
  %v556 = vpop.f32.mrf.mxu0
  %v557 = vadd.f32 %v160, %v556
  %v558 = vpop.f32.mrf.mxu0
  %559 = vdwg.mxu0
  %vm560 = vcmask 408576
  %v561 = vsel %vm560, %v329, -inf
  %562 = vmax.xlane.f32.xlu0 %v561
  %v563 = vpop.xlane.xlu0 %562
  %v564 = vsel %vm560, %v331, -inf
  %565 = vmax.xlane.f32.xlu0 %v564
  %v566 = vpop.xlane.xlu0 %565
  %v567 = vsel %vm560, %v334, -inf
  %568 = vmax.xlane.f32.xlu0 %v567
  %v569 = vpop.xlane.xlu0 %568
  %v570 = vsel %vm560, %v336, -inf
  %571 = vmax.xlane.f32.xlu0 %v570
  %v572 = vpop.xlane.xlu0 %571
  %v573 = vsel %vm560, %v339, -inf
  %574 = vmax.xlane.f32.xlu0 %v573
  %v575 = vpop.xlane.xlu0 %574
  %v576 = vsel %vm560, %v341, -inf
  %577 = vmax.xlane.f32.xlu0 %v576
  %v578 = vpop.xlane.xlu0 %577
  %vm579 = vcmask 402432
  %v580 = vsel %vm579, %v344, -inf
  %581 = vmax.xlane.f32.xlu0 %v580
  %v582 = vpop.xlane.xlu0 %581
  %v583 = vsel %vm560, %v400, -inf
  %584 = vmax.xlane.f32.xlu0 %v583
  %v585 = vpop.xlane.xlu0 %584
  %v586 = vsel %vm560, %v402, -inf
  %587 = vmax.xlane.f32.xlu0 %v586
  %v588 = vpop.xlane.xlu0 %587
  %v589 = vsel %vm560, %v405, -inf
  %590 = vmax.xlane.f32.xlu0 %v589
  %v591 = vpop.xlane.xlu0 %590
  %v592 = vsel %vm560, %v407, -inf
  %593 = vmax.xlane.f32.xlu0 %v592
  %v594 = vpop.xlane.xlu0 %593
  %v595 = vsel %vm560, %v410, -inf
  %596 = vmax.xlane.f32.xlu0 %v595
  %v597 = vpop.xlane.xlu0 %596
  %v598 = vsel %vm560, %v412, -inf
  %599 = vmax.xlane.f32.xlu0 %v598
  %v600 = vpop.xlane.xlu0 %599
  %v601 = vsel %vm579, %v415, -inf
  %602 = vmax.xlane.f32.xlu0 %v601
  %v603 = vpop.xlane.xlu0 %602
  %v604 = vsel %vm560, %v471, -inf
  %605 = vmax.xlane.f32.xlu0 %v604
  %v606 = vpop.xlane.xlu0 %605
  %v607 = vsel %vm560, %v473, -inf
  %608 = vmax.xlane.f32.xlu0 %v607
  %v609 = vpop.xlane.xlu0 %608
  %v610 = vsel %vm560, %v476, -inf
  %611 = vmax.xlane.f32.xlu0 %v610
  %v612 = vpop.xlane.xlu0 %611
  %v613 = vsel %vm560, %v478, -inf
  %614 = vmax.xlane.f32.xlu0 %v613
  %v615 = vpop.xlane.xlu0 %614
  %v616 = vsel %vm560, %v481, -inf
  %617 = vmax.xlane.f32.xlu0 %v616
  %v618 = vpop.xlane.xlu0 %617
  %v619 = vsel %vm560, %v483, -inf
  %620 = vmax.xlane.f32.xlu0 %v619
  %v621 = vpop.xlane.xlu0 %620
  %v622 = vsel %vm579, %v486, -inf
  %623 = vmax.xlane.f32.xlu0 %v622
  %v624 = vpop.xlane.xlu0 %623
  %v625 = vsel %vm560, %v542, -inf
  %626 = vmax.xlane.f32.xlu0 %v625
  %v627 = vpop.xlane.xlu0 %626
  %v628 = vsel %vm560, %v544, -inf
  %629 = vmax.xlane.f32.xlu0 %v628
  %v630 = vpop.xlane.xlu0 %629
  %v631 = vsel %vm560, %v547, -inf
  %632 = vmax.xlane.f32.xlu0 %v631
  %v633 = vpop.xlane.xlu0 %632
  %v634 = vsel %vm560, %v549, -inf
  %635 = vmax.xlane.f32.xlu0 %v634
  %v636 = vpop.xlane.xlu0 %635
  %v637 = vsel %vm560, %v552, -inf
  %638 = vmax.xlane.f32.xlu0 %v637
  %v639 = vpop.xlane.xlu0 %638
  %v640 = vsel %vm560, %v554, -inf
  %641 = vmax.xlane.f32.xlu0 %v640
  %v642 = vpop.xlane.xlu0 %641
  %v643 = vsel %vm579, %v557, -inf
  %644 = vmax.xlane.f32.xlu0 %v643
  %v645 = vpop.xlane.xlu0 %644
  %v646 = vsub.f32 %v329, %v563
  %v647 = vsub.f32 %v331, %v566
  %v648 = vsub.f32 %v334, %v569
  %v649 = vsub.f32 %v336, %v572
  %v650 = vsub.f32 %v339, %v575
  %v651 = vsub.f32 %v341, %v578
  %v652 = vsub.f32 %v344, %v582
  %v653 = vsub.f32 %v400, %v585
  %v654 = vsub.f32 %v402, %v588
  %v655 = vsub.f32 %v405, %v591
  %v656 = vsub.f32 %v407, %v594
  %v657 = vsub.f32 %v410, %v597
  %v658 = vsub.f32 %v412, %v600
  %v659 = vsub.f32 %v415, %v603
  %v660 = vsub.f32 %v471, %v606
  %v661 = vsub.f32 %v473, %v609
  %v662 = vsub.f32 %v476, %v612
  %v663 = vsub.f32 %v478, %v615
  %v664 = vsub.f32 %v481, %v618
  %v665 = vsub.f32 %v483, %v621
  %v666 = vsub.f32 %v486, %v624
  %v667 = vsub.f32 %v542, %v627
  %v668 = vsub.f32 %v544, %v630
  %v669 = vsub.f32 %v547, %v633
  %v670 = vsub.f32 %v549, %v636
  %v671 = vsub.f32 %v552, %v639
  %v672 = vsub.f32 %v554, %v642
  %v673 = vsub.f32 %v557, %v645
  %v674 = vmul.f32 %v646, 1.442695
  %v675 = vpow.pop %v674
  %v676 = vmul.f32 %v647, 1.442695
  %v677 = vpow.pop %v676
  %v678 = vmul.f32 %v648, 1.442695
  %v679 = vpow.pop %v678
  %v680 = vmul.f32 %v649, 1.442695
  %v681 = vpow.pop %v680
  %v682 = vmul.f32 %v650, 1.442695
  %v683 = vpow.pop %v682
  %v684 = vmul.f32 %v651, 1.442695
  %v685 = vpow.pop %v684
  %v686 = vmul.f32 %v652, 1.442695
  %v687 = vpow.pop %v686
  %v688 = vmul.f32 %v653, 1.442695
  %v689 = vpow.pop %v688
  %v690 = vmul.f32 %v654, 1.442695
  %v691 = vpow.pop %v690
  %v692 = vmul.f32 %v655, 1.442695
  %v693 = vpow.pop %v692
  %v694 = vmul.f32 %v656, 1.442695
  %v695 = vpow.pop %v694
  %v696 = vmul.f32 %v657, 1.442695
  %v697 = vpow.pop %v696
  %v698 = vmul.f32 %v658, 1.442695
  %v699 = vpow.pop %v698
  %v700 = vmul.f32 %v659, 1.442695
  %v701 = vpow.pop %v700
  %v702 = vmul.f32 %v660, 1.442695
  %v703 = vpow.pop %v702
  %v704 = vmul.f32 %v661, 1.442695
  %v705 = vpow.pop %v704
  %v706 = vmul.f32 %v662, 1.442695
  %v707 = vpow.pop %v706
  %v708 = vmul.f32 %v663, 1.442695
  %v709 = vpow.pop %v708
  %v710 = vmul.f32 %v664, 1.442695
  %v711 = vpow.pop %v710
  %v712 = vmul.f32 %v665, 1.442695
  %v713 = vpow.pop %v712
  %v714 = vmul.f32 %v666, 1.442695
  %v715 = vpow.pop %v714
  %v716 = vmul.f32 %v667, 1.442695
  %v717 = vpow.pop %v716
  %v718 = vmul.f32 %v668, 1.442695
  %v719 = vpow.pop %v718
  %v720 = vmul.f32 %v669, 1.442695
  %v721 = vpow.pop %v720
  %v722 = vmul.f32 %v670, 1.442695
  %v723 = vpow.pop %v722
  %v724 = vmul.f32 %v671, 1.442695
  %v725 = vpow.pop %v724
  %v726 = vmul.f32 %v672, 1.442695
  %v727 = vpow.pop %v726
  %v728 = vmul.f32 %v673, 1.442695
  %v729 = vpow.pop %v728
  %v730 = vsel %vm560, %v675, 0.0
  %731 = vadd.xlane.f32.xlu0 %v730
  %v732 = vpop.xlane.xlu0 %731
  %v733 = vsel %vm560, %v677, 0.0
  %734 = vadd.xlane.f32.xlu0 %v733
  %v735 = vpop.xlane.xlu0 %734
  %v736 = vsel %vm560, %v679, 0.0
  %737 = vadd.xlane.f32.xlu0 %v736
  %v738 = vpop.xlane.xlu0 %737
  %v739 = vsel %vm560, %v681, 0.0
  %740 = vadd.xlane.f32.xlu0 %v739
  %v741 = vpop.xlane.xlu0 %740
  %v742 = vsel %vm560, %v683, 0.0
  %743 = vadd.xlane.f32.xlu0 %v742
  %v744 = vpop.xlane.xlu0 %743
  %v745 = vsel %vm560, %v685, 0.0
  %746 = vadd.xlane.f32.xlu0 %v745
  %v747 = vpop.xlane.xlu0 %746
  %v748 = vsel %vm579, %v687, 0.0
  %749 = vadd.xlane.f32.xlu0 %v748
  %v750 = vpop.xlane.xlu0 %749
  %v751 = vsel %vm560, %v689, 0.0
  %752 = vadd.xlane.f32.xlu0 %v751
  %v753 = vpop.xlane.xlu0 %752
  %v754 = vsel %vm560, %v691, 0.0
  %755 = vadd.xlane.f32.xlu0 %v754
  %v756 = vpop.xlane.xlu0 %755
  %v757 = vsel %vm560, %v693, 0.0
  %758 = vadd.xlane.f32.xlu0 %v757
  %v759 = vpop.xlane.xlu0 %758
  %v760 = vsel %vm560, %v695, 0.0
  %761 = vadd.xlane.f32.xlu0 %v760
  %v762 = vpop.xlane.xlu0 %761
  %v763 = vsel %vm560, %v697, 0.0
  %764 = vadd.xlane.f32.xlu0 %v763
  %v765 = vpop.xlane.xlu0 %764
  %v766 = vsel %vm560, %v699, 0.0
  %767 = vadd.xlane.f32.xlu0 %v766
  %v768 = vpop.xlane.xlu0 %767
  %v769 = vsel %vm579, %v701, 0.0
  %770 = vadd.xlane.f32.xlu0 %v769
  %v771 = vpop.xlane.xlu0 %770
  %v772 = vsel %vm560, %v703, 0.0
  %773 = vadd.xlane.f32.xlu0 %v772
  %v774 = vpop.xlane.xlu0 %773
  %v775 = vsel %vm560, %v705, 0.0
  %776 = vadd.xlane.f32.xlu0 %v775
  %v777 = vpop.xlane.xlu0 %776
  %v778 = vsel %vm560, %v707, 0.0
  %779 = vadd.xlane.f32.xlu0 %v778
  %v780 = vpop.xlane.xlu0 %779
  %v781 = vsel %vm560, %v709, 0.0
  %782 = vadd.xlane.f32.xlu0 %v781
  %v783 = vpop.xlane.xlu0 %782
  %v784 = vsel %vm560, %v711, 0.0
  %785 = vadd.xlane.f32.xlu0 %v784
  %v786 = vpop.xlane.xlu0 %785
  %v787 = vsel %vm560, %v713, 0.0
  %788 = vadd.xlane.f32.xlu0 %v787
  %v789 = vpop.xlane.xlu0 %788
  %v790 = vsel %vm579, %v715, 0.0
  %791 = vadd.xlane.f32.xlu0 %v790
  %v792 = vpop.xlane.xlu0 %791
  %v793 = vsel %vm560, %v717, 0.0
  %794 = vadd.xlane.f32.xlu0 %v793
  %v795 = vpop.xlane.xlu0 %794
  %v796 = vsel %vm560, %v719, 0.0
  %797 = vadd.xlane.f32.xlu0 %v796
  %v798 = vpop.xlane.xlu0 %797
  %v799 = vsel %vm560, %v721, 0.0
  %800 = vadd.xlane.f32.xlu0 %v799
  %v801 = vpop.xlane.xlu0 %800
  %v802 = vsel %vm560, %v723, 0.0
  %803 = vadd.xlane.f32.xlu0 %v802
  %v804 = vpop.xlane.xlu0 %803
  %v805 = vsel %vm560, %v725, 0.0
  %806 = vadd.xlane.f32.xlu0 %v805
  %v807 = vpop.xlane.xlu0 %806
  %v808 = vsel %vm560, %v727, 0.0
  %809 = vadd.xlane.f32.xlu0 %v808
  %v810 = vpop.xlane.xlu0 %809
  %v811 = vsel %vm579, %v729, 0.0
  %812 = vadd.xlane.f32.xlu0 %v811
  %v813 = vpop.xlane.xlu0 %812
  %v814 = vrcp.pop %v732
  %v815 = vrcp.pop %v735
  %v816 = vrcp.pop %v738
  %v817 = vrcp.pop %v741
  %v818 = vrcp.pop %v744
  %v819 = vrcp.pop %v747
  %v820 = vrcp.pop %v750
  %v821 = vrcp.pop %v753
  %v822 = vrcp.pop %v756
  %v823 = vrcp.pop %v759
  %v824 = vrcp.pop %v762
  %v825 = vrcp.pop %v765
  %v826 = vrcp.pop %v768
  %v827 = vrcp.pop %v771
  %v828 = vrcp.pop %v774
  %v829 = vrcp.pop %v777
  %v830 = vrcp.pop %v780
  %v831 = vrcp.pop %v783
  %v832 = vrcp.pop %v786
  %v833 = vrcp.pop %v789
  %v834 = vrcp.pop %v792
  %v835 = vrcp.pop %v795
  %v836 = vrcp.pop %v798
  %v837 = vrcp.pop %v801
  %v838 = vrcp.pop %v804
  %v839 = vrcp.pop %v807
  %v840 = vrcp.pop %v810
  %v841 = vrcp.pop %v813
  %v842 = vmul.f32 %v675, %v814
  %v843 = vmul.f32 %v677, %v815
  %v844 = vmul.f32 %v679, %v816
  %v845 = vmul.f32 %v681, %v817
  %v846 = vmul.f32 %v683, %v818
  %v847 = vmul.f32 %v685, %v819
  %v848 = vmul.f32 %v687, %v820
  %v849 = vmul.f32 %v689, %v821
  %v850 = vmul.f32 %v691, %v822
  %v851 = vmul.f32 %v693, %v823
  %v852 = vmul.f32 %v695, %v824
  %v853 = vmul.f32 %v697, %v825
  %v854 = vmul.f32 %v699, %v826
  %v855 = vmul.f32 %v701, %v827
  %v856 = vmul.f32 %v703, %v828
  %v857 = vmul.f32 %v705, %v829
  %v858 = vmul.f32 %v707, %v830
  %v859 = vmul.f32 %v709, %v831
  %v860 = vmul.f32 %v711, %v832
  %v861 = vmul.f32 %v713, %v833
  %v862 = vmul.f32 %v715, %v834
  %v863 = vmul.f32 %v717, %v835
  %v864 = vmul.f32 %v719, %v836
  %v865 = vmul.f32 %v721, %v837
  %v866 = vmul.f32 %v723, %v838
  %v867 = vmul.f32 %v725, %v839
  %v868 = vmul.f32 %v727, %v840
  %v869 = vmul.f32 %v729, %v841
  %v870 = vpack.c.bf16 %v842, %v842
  %v871 = vpack.c.bf16 %v843, %v843
  %v872 = vpack.c.bf16 %v844, %v844
  %v873 = vpack.c.bf16 %v845, %v845
  %v874 = vpack.c.bf16 %v846, %v846
  %v875 = vpack.c.bf16 %v847, %v847
  %v876 = vpack.c.bf16 %v848, %v848
  %v877 = vpack.c.bf16 %v849, %v849
  %v878 = vpack.c.bf16 %v850, %v850
  %v879 = vpack.c.bf16 %v851, %v851
  %v880 = vpack.c.bf16 %v852, %v852
  %v881 = vpack.c.bf16 %v853, %v853
  %v882 = vpack.c.bf16 %v854, %v854
  %v883 = vpack.c.bf16 %v855, %v855
  %v884 = vpack.c.bf16 %v856, %v856
  %v885 = vpack.c.bf16 %v857, %v857
  %v886 = vpack.c.bf16 %v858, %v858
  %v887 = vpack.c.bf16 %v859, %v859
  %v888 = vpack.c.bf16 %v860, %v860
  %v889 = vpack.c.bf16 %v861, %v861
  %v890 = vpack.c.bf16 %v862, %v862
  %v891 = vpack.c.bf16 %v863, %v863
  %v892 = vpack.c.bf16 %v864, %v864
  %v893 = vpack.c.bf16 %v865, %v865
  %v894 = vpack.c.bf16 %v866, %v866
  %v895 = vpack.c.bf16 %v867, %v867
  %v896 = vpack.c.bf16 %v868, %v868
  %v897 = vpack.c.bf16 %v869, %v869
  %v905 = vunpack.c.l.b16 %v870
  %v906 = vunpack.c.l.b16 %v871
  %v907 = vunpack.c.l.b16 %v872
  %v908 = vunpack.c.l.b16 %v873
  %v909 = vunpack.c.l.b16 %v874
  %v910 = vunpack.c.l.b16 %v875
  %v911 = vunpack.c.l.b16 %v876
  %v912 = vpack.c.b16 %v906, %v905
  %v913 = vpack.c.b16 %v908, %v907
  %v914 = vpack.c.b16 %v910, %v909
  %v915 = vpack.c.b16 %v911, %v911
  %916 = vrot.lane.b32.xlu0 %v282, 64
  %v917 = vpop.permute.xlu0 %916
  %918 = vrot.lane.b32.xlu0 %v283, 64
  %v919 = vpop.permute.xlu0 %918
  %920 = vrot.lane.b32.xlu0 %v284, 64
  %v921 = vpop.permute.xlu0 %920
  %922 = vrot.lane.b32.xlu0 %v285, 64
  %v923 = vpop.permute.xlu0 %922
  %v928 = vsel %vm560, %v912, 0
  %v931 = vsel %vm560, %v913, 0
  %v934 = vsel %vm560, %v914, 0
  %v937 = vsel %vm560, %v915, 0
  %v940 = vsel %vm76, %v923, 0
  %942 = vmatpush.bf16.msra.mxu0 0
  %943 = vmatpush.bf16.msra.mxu0 0
  %944 = vmatpush.bf16.msra.mxu0 0
  %945 = vmatpush.bf16.msra.mxu0 0
  %946 = vmatpush.bf16.msra.mxu0 %v940
  %947 = vmatpush.bf16.msra.mxu0 %v921
  %948 = vmatpush.bf16.msra.mxu0 %v919
  %949 = vmatpush.bf16.msra.mxu0 %v917
  %950 = vmatmul.bf16.gmra.mxu0 %v928
  %v951 = vpop.f32.mrf.mxu0
  %v952 = vadd.f32 0.0, %v951
  %v953 = vpop.f32.mrf.mxu0
  %v954 = vadd.f32 0.0, %v953
  %955 = vmatmul.bf16.gmra.mxu0 %v931
  %v956 = vpop.f32.mrf.mxu0
  %v957 = vadd.f32 0.0, %v956
  %v958 = vpop.f32.mrf.mxu0
  %v959 = vadd.f32 0.0, %v958
  %960 = vmatmul.bf16.gmra.mxu0 %v934
  %v961 = vpop.f32.mrf.mxu0
  %v962 = vadd.f32 0.0, %v961
  %v963 = vpop.f32.mrf.mxu0
  %v964 = vadd.f32 0.0, %v963
  %965 = vmatmul.bf16.gmra.mxu0 %v937
  %v966 = vpop.f32.mrf.mxu0
  %v967 = vadd.f32 0.0, %v966
  %v968 = vpop.f32.mrf.mxu0
  %969 = vdwg.mxu0
  %v977 = vunpack.c.l.b16 %v877
  %v978 = vunpack.c.l.b16 %v878
  %v979 = vunpack.c.l.b16 %v879
  %v980 = vunpack.c.l.b16 %v880
  %v981 = vunpack.c.l.b16 %v881
  %v982 = vunpack.c.l.b16 %v882
  %v983 = vunpack.c.l.b16 %v883
  %v984 = vpack.c.b16 %v978, %v977
  %v985 = vpack.c.b16 %v980, %v979
  %v986 = vpack.c.b16 %v982, %v981
  %v987 = vpack.c.b16 %v983, %v983
  %988 = vrot.lane.b32.xlu0 %v354, 64
  %v989 = vpop.permute.xlu0 %988
  %990 = vrot.lane.b32.xlu0 %v355, 64
  %v991 = vpop.permute.xlu0 %990
  %992 = vrot.lane.b32.xlu0 %v356, 64
  %v993 = vpop.permute.xlu0 %992
  %994 = vrot.lane.b32.xlu0 %v357, 64
  %v995 = vpop.permute.xlu0 %994
  %v1000 = vsel %vm560, %v984, 0
  %v1003 = vsel %vm560, %v985, 0
  %v1006 = vsel %vm560, %v986, 0
  %v1009 = vsel %vm560, %v987, 0
  %v1012 = vsel %vm76, %v995, 0
  %1014 = vmatpush.bf16.msra.mxu0 0
  %1015 = vmatpush.bf16.msra.mxu0 0
  %1016 = vmatpush.bf16.msra.mxu0 0
  %1017 = vmatpush.bf16.msra.mxu0 0
  %1018 = vmatpush.bf16.msra.mxu0 %v1012
  %1019 = vmatpush.bf16.msra.mxu0 %v993
  %1020 = vmatpush.bf16.msra.mxu0 %v991
  %1021 = vmatpush.bf16.msra.mxu0 %v989
  %1022 = vmatmul.bf16.gmra.mxu0 %v1000
  %v1023 = vpop.f32.mrf.mxu0
  %v1024 = vadd.f32 0.0, %v1023
  %v1025 = vpop.f32.mrf.mxu0
  %v1026 = vadd.f32 0.0, %v1025
  %1027 = vmatmul.bf16.gmra.mxu0 %v1003
  %v1028 = vpop.f32.mrf.mxu0
  %v1029 = vadd.f32 0.0, %v1028
  %v1030 = vpop.f32.mrf.mxu0
  %v1031 = vadd.f32 0.0, %v1030
  %1032 = vmatmul.bf16.gmra.mxu0 %v1006
  %v1033 = vpop.f32.mrf.mxu0
  %v1034 = vadd.f32 0.0, %v1033
  %v1035 = vpop.f32.mrf.mxu0
  %v1036 = vadd.f32 0.0, %v1035
  %1037 = vmatmul.bf16.gmra.mxu0 %v1009
  %v1038 = vpop.f32.mrf.mxu0
  %v1039 = vadd.f32 0.0, %v1038
  %v1040 = vpop.f32.mrf.mxu0
  %1041 = vdwg.mxu0
  %v1049 = vunpack.c.l.b16 %v884
  %v1050 = vunpack.c.l.b16 %v885
  %v1051 = vunpack.c.l.b16 %v886
  %v1052 = vunpack.c.l.b16 %v887
  %v1053 = vunpack.c.l.b16 %v888
  %v1054 = vunpack.c.l.b16 %v889
  %v1055 = vunpack.c.l.b16 %v890
  %v1056 = vpack.c.b16 %v1050, %v1049
  %v1057 = vpack.c.b16 %v1052, %v1051
  %v1058 = vpack.c.b16 %v1054, %v1053
  %v1059 = vpack.c.b16 %v1055, %v1055
  %1060 = vrot.lane.b32.xlu0 %v425, 64
  %v1061 = vpop.permute.xlu0 %1060
  %1062 = vrot.lane.b32.xlu0 %v426, 64
  %v1063 = vpop.permute.xlu0 %1062
  %1064 = vrot.lane.b32.xlu0 %v427, 64
  %v1065 = vpop.permute.xlu0 %1064
  %1066 = vrot.lane.b32.xlu0 %v428, 64
  %v1067 = vpop.permute.xlu0 %1066
  %v1072 = vsel %vm560, %v1056, 0
  %v1075 = vsel %vm560, %v1057, 0
  %v1078 = vsel %vm560, %v1058, 0
  %v1081 = vsel %vm560, %v1059, 0
  %v1084 = vsel %vm76, %v1067, 0
  %1086 = vmatpush.bf16.msra.mxu0 0
  %1087 = vmatpush.bf16.msra.mxu0 0
  %1088 = vmatpush.bf16.msra.mxu0 0
  %1089 = vmatpush.bf16.msra.mxu0 0
  %1090 = vmatpush.bf16.msra.mxu0 %v1084
  %1091 = vmatpush.bf16.msra.mxu0 %v1065
  %1092 = vmatpush.bf16.msra.mxu0 %v1063
  %1093 = vmatpush.bf16.msra.mxu0 %v1061
  %1094 = vmatmul.bf16.gmra.mxu0 %v1072
  %v1095 = vpop.f32.mrf.mxu0
  %v1096 = vadd.f32 0.0, %v1095
  %v1097 = vpop.f32.mrf.mxu0
  %v1098 = vadd.f32 0.0, %v1097
  %1099 = vmatmul.bf16.gmra.mxu0 %v1075
  %v1100 = vpop.f32.mrf.mxu0
  %v1101 = vadd.f32 0.0, %v1100
  %v1102 = vpop.f32.mrf.mxu0
  %v1103 = vadd.f32 0.0, %v1102
  %1104 = vmatmul.bf16.gmra.mxu0 %v1078
  %v1105 = vpop.f32.mrf.mxu0
  %v1106 = vadd.f32 0.0, %v1105
  %v1107 = vpop.f32.mrf.mxu0
  %v1108 = vadd.f32 0.0, %v1107
  %1109 = vmatmul.bf16.gmra.mxu0 %v1081
  %v1110 = vpop.f32.mrf.mxu0
  %v1111 = vadd.f32 0.0, %v1110
  %v1112 = vpop.f32.mrf.mxu0
  %1113 = vdwg.mxu0
  %v1121 = vunpack.c.l.b16 %v891
  %v1122 = vunpack.c.l.b16 %v892
  %v1123 = vunpack.c.l.b16 %v893
  %v1124 = vunpack.c.l.b16 %v894
  %v1125 = vunpack.c.l.b16 %v895
  %v1126 = vunpack.c.l.b16 %v896
  %v1127 = vunpack.c.l.b16 %v897
  %v1128 = vpack.c.b16 %v1122, %v1121
  %v1129 = vpack.c.b16 %v1124, %v1123
  %v1130 = vpack.c.b16 %v1126, %v1125
  %v1131 = vpack.c.b16 %v1127, %v1127
  %1132 = vrot.lane.b32.xlu0 %v496, 64
  %v1133 = vpop.permute.xlu0 %1132
  %1134 = vrot.lane.b32.xlu0 %v497, 64
  %v1135 = vpop.permute.xlu0 %1134
  %1136 = vrot.lane.b32.xlu0 %v498, 64
  %v1137 = vpop.permute.xlu0 %1136
  %1138 = vrot.lane.b32.xlu0 %v499, 64
  %v1139 = vpop.permute.xlu0 %1138
  %v1144 = vsel %vm560, %v1128, 0
  %v1147 = vsel %vm560, %v1129, 0
  %v1150 = vsel %vm560, %v1130, 0
  %v1153 = vsel %vm560, %v1131, 0
  %v1156 = vsel %vm76, %v1139, 0
  %1158 = vmatpush.bf16.msra.mxu0 0
  %1159 = vmatpush.bf16.msra.mxu0 0
  %1160 = vmatpush.bf16.msra.mxu0 0
  %1161 = vmatpush.bf16.msra.mxu0 0
  %1162 = vmatpush.bf16.msra.mxu0 %v1156
  %1163 = vmatpush.bf16.msra.mxu0 %v1137
  %1164 = vmatpush.bf16.msra.mxu0 %v1135
  %1165 = vmatpush.bf16.msra.mxu0 %v1133
  %1166 = vmatmul.bf16.gmra.mxu0 %v1144
  %v1167 = vpop.f32.mrf.mxu0
  %v1168 = vadd.f32 0.0, %v1167
  %v1169 = vpop.f32.mrf.mxu0
  %v1170 = vadd.f32 0.0, %v1169
  %1171 = vmatmul.bf16.gmra.mxu0 %v1147
  %v1172 = vpop.f32.mrf.mxu0
  %v1173 = vadd.f32 0.0, %v1172
  %v1174 = vpop.f32.mrf.mxu0
  %v1175 = vadd.f32 0.0, %v1174
  %1176 = vmatmul.bf16.gmra.mxu0 %v1150
  %v1177 = vpop.f32.mrf.mxu0
  %v1178 = vadd.f32 0.0, %v1177
  %v1179 = vpop.f32.mrf.mxu0
  %v1180 = vadd.f32 0.0, %v1179
  %1181 = vmatmul.bf16.gmra.mxu0 %v1153
  %v1182 = vpop.f32.mrf.mxu0
  %v1183 = vadd.f32 0.0, %v1182
  %v1184 = vpop.f32.mrf.mxu0
  %1185 = vdwg.mxu0
  %1193 = vrot.lane.b32.xlu0 %v1024, 8
  %v1194 = vpop.permute.xlu0 %1193
  %1195 = vrot.lane.b32.xlu0 %v1026, 8
  %v1196 = vpop.permute.xlu0 %1195
  %1197 = vrot.lane.b32.xlu0 %v1029, 8
  %v1198 = vpop.permute.xlu0 %1197
  %1199 = vrot.lane.b32.xlu0 %v1031, 8
  %v1200 = vpop.permute.xlu0 %1199
  %1201 = vrot.lane.b32.xlu0 %v1034, 8
  %v1202 = vpop.permute.xlu0 %1201
  %1203 = vrot.lane.b32.xlu0 %v1036, 8
  %v1204 = vpop.permute.xlu0 %1203
  %1205 = vrot.lane.b32.xlu0 %v1039, 8
  %v1206 = vpop.permute.xlu0 %1205
  %1221 = vrot.lane.b32.xlu0 %v1096, 16
  %v1222 = vpop.permute.xlu0 %1221
  %1223 = vrot.lane.b32.xlu0 %v1098, 16
  %v1224 = vpop.permute.xlu0 %1223
  %1225 = vrot.lane.b32.xlu0 %v1101, 16
  %v1226 = vpop.permute.xlu0 %1225
  %1227 = vrot.lane.b32.xlu0 %v1103, 16
  %v1228 = vpop.permute.xlu0 %1227
  %1229 = vrot.lane.b32.xlu0 %v1106, 16
  %v1230 = vpop.permute.xlu0 %1229
  %1231 = vrot.lane.b32.xlu0 %v1108, 16
  %v1232 = vpop.permute.xlu0 %1231
  %1233 = vrot.lane.b32.xlu0 %v1111, 16
  %v1234 = vpop.permute.xlu0 %1233
  %1249 = vrot.lane.b32.xlu0 %v1168, 24
  %v1250 = vpop.permute.xlu0 %1249
  %1251 = vrot.lane.b32.xlu0 %v1170, 24
  %v1252 = vpop.permute.xlu0 %1251
  %1253 = vrot.lane.b32.xlu0 %v1173, 24
  %v1254 = vpop.permute.xlu0 %1253
  %1255 = vrot.lane.b32.xlu0 %v1175, 24
  %v1256 = vpop.permute.xlu0 %1255
  %1257 = vrot.lane.b32.xlu0 %v1178, 24
  %v1258 = vpop.permute.xlu0 %1257
  %1259 = vrot.lane.b32.xlu0 %v1180, 24
  %v1260 = vpop.permute.xlu0 %1259
  %1261 = vrot.lane.b32.xlu0 %v1183, 24
  %v1262 = vpop.permute.xlu0 %1261
  %v1270 = vsel %vm294, %v952, %v1194
  %v1271 = vsel %vm294, %v954, %v1196
  %v1272 = vsel %vm294, %v957, %v1198
  %v1273 = vsel %vm294, %v959, %v1200
  %v1274 = vsel %vm294, %v962, %v1202
  %v1275 = vsel %vm294, %v964, %v1204
  %v1276 = vsel %vm294, %v967, %v1206
  %vm1277 = vcmask 130048
  %v1278 = vsel %vm1277, %v1270, %v1222
  %v1279 = vsel %vm1277, %v1271, %v1224
  %v1280 = vsel %vm1277, %v1272, %v1226
  %v1281 = vsel %vm1277, %v1273, %v1228
  %v1282 = vsel %vm1277, %v1274, %v1230
  %v1283 = vsel %vm1277, %v1275, %v1232
  %v1284 = vsel %vm1277, %v1276, %v1234
  %vm1285 = vcmask 195584
  %v1286 = vsel %vm1285, %v1278, %v1250
  %v1287 = vsel %vm1285, %v1279, %v1252
  %v1288 = vsel %vm1285, %v1280, %v1254
  %v1289 = vsel %vm1285, %v1281, %v1256
  %v1290 = vsel %vm1285, %v1282, %v1258
  %v1291 = vsel %vm1285, %v1283, %v1260
  %v1292 = vsel %vm1285, %v1284, %v1262
  %v1293 = vpack.c.bf16 %v1287, %v1286
  %v1294 = vpack.c.bf16 %v1289, %v1288
  %v1295 = vpack.c.bf16 %v1291, %v1290
  %v1296 = vpack.c.bf16 %v1292, %v1292
  %v1297 = vperm.slane %v152, 1
  %v1302 = vunpack.c.l.b16 %v104
  %v1303 = vunpack.c.l.b16 %v105
  %v1304 = vunpack.c.l.b16 %v106
  %v1305 = vunpack.c.l.b16 %v107
  %v1306 = vpack.c.b16 %v1303, %v1302
  %v1307 = vpack.c.b16 %v1305, %v1304
  %v1311 = vsel %vm178, %v1293, 0
  %v1314 = vsel %vm178, %v1294, 0
  %v1317 = vsel %vm178, %v1295, 0
  %v1320 = vsel %vm178, %v1296, 0
  %1322 = vmatpush.bf16.msra.mxu0 0
  %1323 = vmatpush.bf16.msra.mxu0 0
  %1324 = vmatpush.bf16.msra.mxu0 0
  %1325 = vmatpush.bf16.msra.mxu0 0
  %1326 = vmatpush.bf16.msra.mxu0 0
  %1327 = vmatpush.bf16.msra.mxu0 0
  %1328 = vmatpush.bf16.msra.mxu0 %v1307
  %1329 = vmatpush.bf16.msra.mxu0 %v1306
  %1330 = vmatmul.bf16.gmra.mxu0 %v1311
  %v1331 = vpop.f32.mrf.mxu0
  %v1332 = vadd.f32 %v1297, %v1331
  %v1333 = vpop.f32.mrf.mxu0
  %v1334 = vadd.f32 %v1297, %v1333
  %1335 = vmatmul.bf16.gmra.mxu0 %v1314
  %v1336 = vpop.f32.mrf.mxu0
  %v1337 = vadd.f32 %v1297, %v1336
  %v1338 = vpop.f32.mrf.mxu0
  %v1339 = vadd.f32 %v1297, %v1338
  %1340 = vmatmul.bf16.gmra.mxu0 %v1317
  %v1341 = vpop.f32.mrf.mxu0
  %v1342 = vadd.f32 %v1297, %v1341
  %v1343 = vpop.f32.mrf.mxu0
  %v1344 = vadd.f32 %v1297, %v1343
  %1345 = vmatmul.bf16.gmra.mxu0 %v1320
  %v1346 = vpop.f32.mrf.mxu0
  %v1347 = vadd.f32 %v1297, %v1346
  %v1348 = vpop.f32.mrf.mxu0
  %1349 = vdwg.mxu0
  %v1350 = vadd.f32 %v89, %v1332
  %v1351 = vadd.f32 %v90, %v1334
  %v1352 = vadd.f32 %v91, %v1337
  %v1353 = vadd.f32 %v92, %v1339
  %v1354 = vadd.f32 %v93, %v1342
  %v1355 = vadd.f32 %v94, %v1344
  %v1356 = vadd.f32 %v95, %v1347
  %v1357 = vsel %vm178, %v1350, 0.0
  %1358 = vadd.xlane.f32.xlu0 %v1357
  %v1359 = vpop.xlane.xlu0 %1358
  %v1360 = vsel %vm178, %v1351, 0.0
  %1361 = vadd.xlane.f32.xlu0 %v1360
  %v1362 = vpop.xlane.xlu0 %1361
  %v1363 = vsel %vm178, %v1352, 0.0
  %1364 = vadd.xlane.f32.xlu0 %v1363
  %v1365 = vpop.xlane.xlu0 %1364
  %v1366 = vsel %vm178, %v1353, 0.0
  %1367 = vadd.xlane.f32.xlu0 %v1366
  %v1368 = vpop.xlane.xlu0 %1367
  %v1369 = vsel %vm178, %v1354, 0.0
  %1370 = vadd.xlane.f32.xlu0 %v1369
  %v1371 = vpop.xlane.xlu0 %1370
  %v1372 = vsel %vm178, %v1355, 0.0
  %1373 = vadd.xlane.f32.xlu0 %v1372
  %v1374 = vpop.xlane.xlu0 %1373
  %vm1375 = vcmask 254976
  %v1376 = vsel %vm1375, %v1356, 0.0
  %1377 = vadd.xlane.f32.xlu0 %v1376
  %v1378 = vpop.xlane.xlu0 %1377
  %v1379 = vmul.f32 %v1359, 0.03125
  %v1380 = vmul.f32 %v1362, 0.03125
  %v1381 = vmul.f32 %v1365, 0.03125
  %v1382 = vmul.f32 %v1368, 0.03125
  %v1383 = vmul.f32 %v1371, 0.03125
  %v1384 = vmul.f32 %v1374, 0.03125
  %v1385 = vmul.f32 %v1378, 0.03125
  %v1386 = vmul.f32 %v1350, %v1350
  %v1387 = vmul.f32 %v1351, %v1351
  %v1388 = vmul.f32 %v1352, %v1352
  %v1389 = vmul.f32 %v1353, %v1353
  %v1390 = vmul.f32 %v1354, %v1354
  %v1391 = vmul.f32 %v1355, %v1355
  %v1392 = vmul.f32 %v1356, %v1356
  %v1393 = vsel %vm178, %v1386, 0.0
  %1394 = vadd.xlane.f32.xlu0 %v1393
  %v1395 = vpop.xlane.xlu0 %1394
  %v1396 = vsel %vm178, %v1387, 0.0
  %1397 = vadd.xlane.f32.xlu0 %v1396
  %v1398 = vpop.xlane.xlu0 %1397
  %v1399 = vsel %vm178, %v1388, 0.0
  %1400 = vadd.xlane.f32.xlu0 %v1399
  %v1401 = vpop.xlane.xlu0 %1400
  %v1402 = vsel %vm178, %v1389, 0.0
  %1403 = vadd.xlane.f32.xlu0 %v1402
  %v1404 = vpop.xlane.xlu0 %1403
  %v1405 = vsel %vm178, %v1390, 0.0
  %1406 = vadd.xlane.f32.xlu0 %v1405
  %v1407 = vpop.xlane.xlu0 %1406
  %v1408 = vsel %vm178, %v1391, 0.0
  %1409 = vadd.xlane.f32.xlu0 %v1408
  %v1410 = vpop.xlane.xlu0 %1409
  %v1411 = vsel %vm1375, %v1392, 0.0
  %1412 = vadd.xlane.f32.xlu0 %v1411
  %v1413 = vpop.xlane.xlu0 %1412
  %v1414 = vmul.f32 %v1395, 0.03125
  %v1415 = vmul.f32 %v1398, 0.03125
  %v1416 = vmul.f32 %v1401, 0.03125
  %v1417 = vmul.f32 %v1404, 0.03125
  %v1418 = vmul.f32 %v1407, 0.03125
  %v1419 = vmul.f32 %v1410, 0.03125
  %v1420 = vmul.f32 %v1413, 0.03125
  %v1421 = vmul.f32 %v1379, %v1379
  %v1422 = vmul.f32 %v1380, %v1380
  %v1423 = vmul.f32 %v1381, %v1381
  %v1424 = vmul.f32 %v1382, %v1382
  %v1425 = vmul.f32 %v1383, %v1383
  %v1426 = vmul.f32 %v1384, %v1384
  %v1427 = vmul.f32 %v1385, %v1385
  %v1428 = vsub.f32 %v1414, %v1421
  %v1429 = vsub.f32 %v1415, %v1422
  %v1430 = vsub.f32 %v1416, %v1423
  %v1431 = vsub.f32 %v1417, %v1424
  %v1432 = vsub.f32 %v1418, %v1425
  %v1433 = vsub.f32 %v1419, %v1426
  %v1434 = vsub.f32 %v1420, %v1427
  %v1435 = vsub.f32 %v1350, %v1379
  %v1436 = vsub.f32 %v1351, %v1380
  %v1437 = vsub.f32 %v1352, %v1381
  %v1438 = vsub.f32 %v1353, %v1382
  %v1439 = vsub.f32 %v1354, %v1383
  %v1440 = vsub.f32 %v1355, %v1384
  %v1441 = vsub.f32 %v1356, %v1385
  %v1442 = vadd.f32 %v1428, 1e-05
  %v1443 = vadd.f32 %v1429, 1e-05
  %v1444 = vadd.f32 %v1430, 1e-05
  %v1445 = vadd.f32 %v1431, 1e-05
  %v1446 = vadd.f32 %v1432, 1e-05
  %v1447 = vadd.f32 %v1433, 1e-05
  %v1448 = vadd.f32 %v1434, 1e-05
  %v1449 = vrsqrt.pop %v1442
  %v1450 = vmul.f32 %v1449, %v1442
  %v1451 = vmul.f32 %v1450, %v1449
  %v1452 = vmul.f32 0.5, %v1451
  %v1453 = vsub.f32 1.5, %v1452
  %v1454 = vmul.f32 %v1449, %v1453
  %vm1455 = vweird.f32 %v1442
  %vm1456 = vweird.f32 %v1449
  %vm1457 = vmor %vm1455, %vm1456
  %v1458 = vsel %vm1457, %v1449, %v1454
  %v1459 = vrsqrt.pop %v1443
  %v1460 = vmul.f32 %v1459, %v1443
  %v1461 = vmul.f32 %v1460, %v1459
  %v1462 = vmul.f32 0.5, %v1461
  %v1463 = vsub.f32 1.5, %v1462
  %v1464 = vmul.f32 %v1459, %v1463
  %vm1465 = vweird.f32 %v1443
  %vm1466 = vweird.f32 %v1459
  %vm1467 = vmor %vm1465, %vm1466
  %v1468 = vsel %vm1467, %v1459, %v1464
  %v1469 = vrsqrt.pop %v1444
  %v1470 = vmul.f32 %v1469, %v1444
  %v1471 = vmul.f32 %v1470, %v1469
  %v1472 = vmul.f32 0.5, %v1471
  %v1473 = vsub.f32 1.5, %v1472
  %v1474 = vmul.f32 %v1469, %v1473
  %vm1475 = vweird.f32 %v1444
  %vm1476 = vweird.f32 %v1469
  %vm1477 = vmor %vm1475, %vm1476
  %v1478 = vsel %vm1477, %v1469, %v1474
  %v1479 = vrsqrt.pop %v1445
  %v1480 = vmul.f32 %v1479, %v1445
  %v1481 = vmul.f32 %v1480, %v1479
  %v1482 = vmul.f32 0.5, %v1481
  %v1483 = vsub.f32 1.5, %v1482
  %v1484 = vmul.f32 %v1479, %v1483
  %vm1485 = vweird.f32 %v1445
  %vm1486 = vweird.f32 %v1479
  %vm1487 = vmor %vm1485, %vm1486
  %v1488 = vsel %vm1487, %v1479, %v1484
  %v1489 = vrsqrt.pop %v1446
  %v1490 = vmul.f32 %v1489, %v1446
  %v1491 = vmul.f32 %v1490, %v1489
  %v1492 = vmul.f32 0.5, %v1491
  %v1493 = vsub.f32 1.5, %v1492
  %v1494 = vmul.f32 %v1489, %v1493
  %vm1495 = vweird.f32 %v1446
  %vm1496 = vweird.f32 %v1489
  %vm1497 = vmor %vm1495, %vm1496
  %v1498 = vsel %vm1497, %v1489, %v1494
  %v1499 = vrsqrt.pop %v1447
  %v1500 = vmul.f32 %v1499, %v1447
  %v1501 = vmul.f32 %v1500, %v1499
  %v1502 = vmul.f32 0.5, %v1501
  %v1503 = vsub.f32 1.5, %v1502
  %v1504 = vmul.f32 %v1499, %v1503
  %vm1505 = vweird.f32 %v1447
  %vm1506 = vweird.f32 %v1499
  %vm1507 = vmor %vm1505, %vm1506
  %v1508 = vsel %vm1507, %v1499, %v1504
  %v1509 = vrsqrt.pop %v1448
  %v1510 = vmul.f32 %v1509, %v1448
  %v1511 = vmul.f32 %v1510, %v1509
  %v1512 = vmul.f32 0.5, %v1511
  %v1513 = vsub.f32 1.5, %v1512
  %v1514 = vmul.f32 %v1509, %v1513
  %vm1515 = vweird.f32 %v1448
  %vm1516 = vweird.f32 %v1509
  %vm1517 = vmor %vm1515, %vm1516
  %v1518 = vsel %vm1517, %v1509, %v1514
  %v1519 = vmul.f32 %v1435, %v1458
  %v1520 = vmul.f32 %v1436, %v1468
  %v1521 = vmul.f32 %v1437, %v1478
  %v1522 = vmul.f32 %v1438, %v1488
  %v1523 = vmul.f32 %v1439, %v1498
  %v1524 = vmul.f32 %v1440, %v1508
  %v1525 = vmul.f32 %v1441, %v1518
  %v1526 = vperm.slane %v152, 4
  %v1527 = vmul.f32 %v1519, %v1526
  %v1528 = vmul.f32 %v1520, %v1526
  %v1529 = vmul.f32 %v1521, %v1526
  %v1530 = vmul.f32 %v1522, %v1526
  %v1531 = vmul.f32 %v1523, %v1526
  %v1532 = vmul.f32 %v1524, %v1526
  %v1533 = vmul.f32 %v1525, %v1526
  %v1534 = vperm.slane %v152, 5
  %v1535 = vadd.f32 %v1527, %v1534
  %v1536 = vadd.f32 %v1528, %v1534
  %v1537 = vadd.f32 %v1529, %v1534
  %v1538 = vadd.f32 %v1530, %v1534
  %v1539 = vadd.f32 %v1531, %v1534
  %v1540 = vadd.f32 %v1532, %v1534
  %v1541 = vadd.f32 %v1533, %v1534
  %v1542 = vpack.c.bf16 %v1536, %v1535
  %v1543 = vpack.c.bf16 %v1538, %v1537
  %v1544 = vpack.c.bf16 %v1540, %v1539
  %v1545 = vpack.c.bf16 %v1541, %v1541
  %v1546 = vperm.slane %v152, 2
  %v1551 = vunpack.c.l.b16 %v112
  %v1552 = vunpack.c.l.b16 %v113
  %v1553 = vunpack.c.l.b16 %v114
  %v1554 = vunpack.c.l.b16 %v115
  %v1555 = vpack.c.b16 %v1552, %v1551
  %v1556 = vpack.c.b16 %v1554, %v1553
  %v1560 = vsel %vm178, %v1542, 0
  %v1563 = vsel %vm178, %v1543, 0
  %v1566 = vsel %vm178, %v1544, 0
  %v1569 = vsel %vm178, %v1545, 0
  %1571 = vmatpush.bf16.msra.mxu0 0
  %1572 = vmatpush.bf16.msra.mxu0 0
  %1573 = vmatpush.bf16.msra.mxu0 0
  %1574 = vmatpush.bf16.msra.mxu0 0
  %1575 = vmatpush.bf16.msra.mxu0 0
  %1576 = vmatpush.bf16.msra.mxu0 0
  %1577 = vmatpush.bf16.msra.mxu0 %v1556
  %1578 = vmatpush.bf16.msra.mxu0 %v1555
  %1579 = vmatmul.bf16.gmra.mxu0 %v1560
  %v1580 = vpop.f32.mrf.mxu0
  %v1581 = vadd.f32 %v1546, %v1580
  %v1582 = vpop.f32.mrf.mxu0
  %v1583 = vadd.f32 %v1546, %v1582
  %1584 = vmatmul.bf16.gmra.mxu0 %v1563
  %v1585 = vpop.f32.mrf.mxu0
  %v1586 = vadd.f32 %v1546, %v1585
  %v1587 = vpop.f32.mrf.mxu0
  %v1588 = vadd.f32 %v1546, %v1587
  %1589 = vmatmul.bf16.gmra.mxu0 %v1566
  %v1590 = vpop.f32.mrf.mxu0
  %v1591 = vadd.f32 %v1546, %v1590
  %v1592 = vpop.f32.mrf.mxu0
  %v1593 = vadd.f32 %v1546, %v1592
  %1594 = vmatmul.bf16.gmra.mxu0 %v1569
  %v1595 = vpop.f32.mrf.mxu0
  %v1596 = vadd.f32 %v1546, %v1595
  %v1597 = vpop.f32.mrf.mxu0
  %1598 = vdwg.mxu0
  %v1599 = vmax.f32 %v1581, 0.0
  %v1600 = vmax.f32 %v1583, 0.0
  %v1601 = vmax.f32 %v1586, 0.0
  %v1602 = vmax.f32 %v1588, 0.0
  %v1603 = vmax.f32 %v1591, 0.0
  %v1604 = vmax.f32 %v1593, 0.0
  %v1605 = vmax.f32 %v1596, 0.0
  %v1606 = vpack.c.bf16 %v1600, %v1599
  %v1607 = vpack.c.bf16 %v1602, %v1601
  %v1608 = vpack.c.bf16 %v1604, %v1603
  %v1609 = vpack.c.bf16 %v1605, %v1605
  %v1610 = vperm.slane %v152, 3
  %v1627 = vunpack.c.l.b16 %v120
  %v1628 = vunpack.c.l.b16 %v121
  %v1629 = vunpack.c.l.b16 %v122
  %v1630 = vunpack.c.l.b16 %v123
  %v1631 = vunpack.c.l.b16 %v124
  %v1632 = vunpack.c.l.b16 %v125
  %v1633 = vunpack.c.l.b16 %v126
  %v1634 = vunpack.c.l.b16 %v127
  %v1635 = vunpack.c.l.b16 %v128
  %v1636 = vunpack.c.l.b16 %v129
  %v1637 = vunpack.c.l.b16 %v130
  %v1638 = vunpack.c.l.b16 %v131
  %v1639 = vunpack.c.l.b16 %v132
  %v1640 = vunpack.c.l.b16 %v133
  %v1641 = vunpack.c.l.b16 %v134
  %v1642 = vunpack.c.l.b16 %v135
  %v1643 = vpack.c.b16 %v1628, %v1627
  %v1644 = vpack.c.b16 %v1630, %v1629
  %v1645 = vpack.c.b16 %v1632, %v1631
  %v1646 = vpack.c.b16 %v1634, %v1633
  %v1647 = vpack.c.b16 %v1636, %v1635
  %v1648 = vpack.c.b16 %v1638, %v1637
  %v1649 = vpack.c.b16 %v1640, %v1639
  %v1650 = vpack.c.b16 %v1642, %v1641
  %1659 = vmatpush.bf16.msra.mxu0 %v1650
  %1660 = vmatpush.bf16.msra.mxu0 %v1649
  %1661 = vmatpush.bf16.msra.mxu0 %v1648
  %1662 = vmatpush.bf16.msra.mxu0 %v1647
  %1663 = vmatpush.bf16.msra.mxu0 %v1646
  %1664 = vmatpush.bf16.msra.mxu0 %v1645
  %1665 = vmatpush.bf16.msra.mxu0 %v1644
  %1666 = vmatpush.bf16.msra.mxu0 %v1643
  %1667 = vmatmul.bf16.gmra.mxu0 %v1606
  %v1668 = vpop.f32.mrf.mxu0
  %v1669 = vadd.f32 %v1610, %v1668
  %v1670 = vpop.f32.mrf.mxu0
  %v1671 = vadd.f32 %v1610, %v1670
  %1672 = vmatmul.bf16.gmra.mxu0 %v1607
  %v1673 = vpop.f32.mrf.mxu0
  %v1674 = vadd.f32 %v1610, %v1673
  %v1675 = vpop.f32.mrf.mxu0
  %v1676 = vadd.f32 %v1610, %v1675
  %1677 = vmatmul.bf16.gmra.mxu0 %v1608
  %v1678 = vpop.f32.mrf.mxu0
  %v1679 = vadd.f32 %v1610, %v1678
  %v1680 = vpop.f32.mrf.mxu0
  %v1681 = vadd.f32 %v1610, %v1680
  %1682 = vmatmul.bf16.gmra.mxu0 %v1609
  %v1683 = vpop.f32.mrf.mxu0
  %v1684 = vadd.f32 %v1610, %v1683
  %v1685 = vpop.f32.mrf.mxu0
  %1686 = vdwg.mxu0
  %v1687 = vadd.f32 %v1535, %v1669
  %v1688 = vadd.f32 %v1536, %v1671
  %v1689 = vadd.f32 %v1537, %v1674
  %v1690 = vadd.f32 %v1538, %v1676
  %v1691 = vadd.f32 %v1539, %v1679
  %v1692 = vadd.f32 %v1540, %v1681
  %v1693 = vadd.f32 %v1541, %v1684
  %v1694 = vsel %vm178, %v1687, 0.0
  %1695 = vadd.xlane.f32.xlu0 %v1694
  %v1696 = vpop.xlane.xlu0 %1695
  %v1697 = vsel %vm178, %v1688, 0.0
  %1698 = vadd.xlane.f32.xlu0 %v1697
  %v1699 = vpop.xlane.xlu0 %1698
  %v1700 = vsel %vm178, %v1689, 0.0
  %1701 = vadd.xlane.f32.xlu0 %v1700
  %v1702 = vpop.xlane.xlu0 %1701
  %v1703 = vsel %vm178, %v1690, 0.0
  %1704 = vadd.xlane.f32.xlu0 %v1703
  %v1705 = vpop.xlane.xlu0 %1704
  %v1706 = vsel %vm178, %v1691, 0.0
  %1707 = vadd.xlane.f32.xlu0 %v1706
  %v1708 = vpop.xlane.xlu0 %1707
  %v1709 = vsel %vm178, %v1692, 0.0
  %1710 = vadd.xlane.f32.xlu0 %v1709
  %v1711 = vpop.xlane.xlu0 %1710
  %v1712 = vsel %vm1375, %v1693, 0.0
  %1713 = vadd.xlane.f32.xlu0 %v1712
  %v1714 = vpop.xlane.xlu0 %1713
  %v1715 = vmul.f32 %v1696, 0.03125
  %v1716 = vmul.f32 %v1699, 0.03125
  %v1717 = vmul.f32 %v1702, 0.03125
  %v1718 = vmul.f32 %v1705, 0.03125
  %v1719 = vmul.f32 %v1708, 0.03125
  %v1720 = vmul.f32 %v1711, 0.03125
  %v1721 = vmul.f32 %v1714, 0.03125
  %v1722 = vmul.f32 %v1687, %v1687
  %v1723 = vmul.f32 %v1688, %v1688
  %v1724 = vmul.f32 %v1689, %v1689
  %v1725 = vmul.f32 %v1690, %v1690
  %v1726 = vmul.f32 %v1691, %v1691
  %v1727 = vmul.f32 %v1692, %v1692
  %v1728 = vmul.f32 %v1693, %v1693
  %v1729 = vsel %vm178, %v1722, 0.0
  %1730 = vadd.xlane.f32.xlu0 %v1729
  %v1731 = vpop.xlane.xlu0 %1730
  %v1732 = vsel %vm178, %v1723, 0.0
  %1733 = vadd.xlane.f32.xlu0 %v1732
  %v1734 = vpop.xlane.xlu0 %1733
  %v1735 = vsel %vm178, %v1724, 0.0
  %1736 = vadd.xlane.f32.xlu0 %v1735
  %v1737 = vpop.xlane.xlu0 %1736
  %v1738 = vsel %vm178, %v1725, 0.0
  %1739 = vadd.xlane.f32.xlu0 %v1738
  %v1740 = vpop.xlane.xlu0 %1739
  %v1741 = vsel %vm178, %v1726, 0.0
  %1742 = vadd.xlane.f32.xlu0 %v1741
  %v1743 = vpop.xlane.xlu0 %1742
  %v1744 = vsel %vm178, %v1727, 0.0
  %1745 = vadd.xlane.f32.xlu0 %v1744
  %v1746 = vpop.xlane.xlu0 %1745
  %v1747 = vsel %vm1375, %v1728, 0.0
  %1748 = vadd.xlane.f32.xlu0 %v1747
  %v1749 = vpop.xlane.xlu0 %1748
  %v1750 = vmul.f32 %v1731, 0.03125
  %v1751 = vmul.f32 %v1734, 0.03125
  %v1752 = vmul.f32 %v1737, 0.03125
  %v1753 = vmul.f32 %v1740, 0.03125
  %v1754 = vmul.f32 %v1743, 0.03125
  %v1755 = vmul.f32 %v1746, 0.03125
  %v1756 = vmul.f32 %v1749, 0.03125
  %v1757 = vmul.f32 %v1715, %v1715
  %v1758 = vmul.f32 %v1716, %v1716
  %v1759 = vmul.f32 %v1717, %v1717
  %v1760 = vmul.f32 %v1718, %v1718
  %v1761 = vmul.f32 %v1719, %v1719
  %v1762 = vmul.f32 %v1720, %v1720
  %v1763 = vmul.f32 %v1721, %v1721
  %v1764 = vsub.f32 %v1750, %v1757
  %v1765 = vsub.f32 %v1751, %v1758
  %v1766 = vsub.f32 %v1752, %v1759
  %v1767 = vsub.f32 %v1753, %v1760
  %v1768 = vsub.f32 %v1754, %v1761
  %v1769 = vsub.f32 %v1755, %v1762
  %v1770 = vsub.f32 %v1756, %v1763
  %v1771 = vsub.f32 %v1687, %v1715
  %v1772 = vsub.f32 %v1688, %v1716
  %v1773 = vsub.f32 %v1689, %v1717
  %v1774 = vsub.f32 %v1690, %v1718
  %v1775 = vsub.f32 %v1691, %v1719
  %v1776 = vsub.f32 %v1692, %v1720
  %v1777 = vsub.f32 %v1693, %v1721
  %v1778 = vadd.f32 %v1764, 1e-05
  %v1779 = vadd.f32 %v1765, 1e-05
  %v1780 = vadd.f32 %v1766, 1e-05
  %v1781 = vadd.f32 %v1767, 1e-05
  %v1782 = vadd.f32 %v1768, 1e-05
  %v1783 = vadd.f32 %v1769, 1e-05
  %v1784 = vadd.f32 %v1770, 1e-05
  %v1785 = vrsqrt.pop %v1778
  %v1786 = vmul.f32 %v1785, %v1778
  %v1787 = vmul.f32 %v1786, %v1785
  %v1788 = vmul.f32 0.5, %v1787
  %v1789 = vsub.f32 1.5, %v1788
  %v1790 = vmul.f32 %v1785, %v1789
  %vm1791 = vweird.f32 %v1778
  %vm1792 = vweird.f32 %v1785
  %vm1793 = vmor %vm1791, %vm1792
  %v1794 = vsel %vm1793, %v1785, %v1790
  %v1795 = vrsqrt.pop %v1779
  %v1796 = vmul.f32 %v1795, %v1779
  %v1797 = vmul.f32 %v1796, %v1795
  %v1798 = vmul.f32 0.5, %v1797
  %v1799 = vsub.f32 1.5, %v1798
  %v1800 = vmul.f32 %v1795, %v1799
  %vm1801 = vweird.f32 %v1779
  %vm1802 = vweird.f32 %v1795
  %vm1803 = vmor %vm1801, %vm1802
  %v1804 = vsel %vm1803, %v1795, %v1800
  %v1805 = vrsqrt.pop %v1780
  %v1806 = vmul.f32 %v1805, %v1780
  %v1807 = vmul.f32 %v1806, %v1805
  %v1808 = vmul.f32 0.5, %v1807
  %v1809 = vsub.f32 1.5, %v1808
  %v1810 = vmul.f32 %v1805, %v1809
  %vm1811 = vweird.f32 %v1780
  %vm1812 = vweird.f32 %v1805
  %vm1813 = vmor %vm1811, %vm1812
  %v1814 = vsel %vm1813, %v1805, %v1810
  %v1815 = vrsqrt.pop %v1781
  %v1816 = vmul.f32 %v1815, %v1781
  %v1817 = vmul.f32 %v1816, %v1815
  %v1818 = vmul.f32 0.5, %v1817
  %v1819 = vsub.f32 1.5, %v1818
  %v1820 = vmul.f32 %v1815, %v1819
  %vm1821 = vweird.f32 %v1781
  %vm1822 = vweird.f32 %v1815
  %vm1823 = vmor %vm1821, %vm1822
  %v1824 = vsel %vm1823, %v1815, %v1820
  %v1825 = vrsqrt.pop %v1782
  %v1826 = vmul.f32 %v1825, %v1782
  %v1827 = vmul.f32 %v1826, %v1825
  %v1828 = vmul.f32 0.5, %v1827
  %v1829 = vsub.f32 1.5, %v1828
  %v1830 = vmul.f32 %v1825, %v1829
  %vm1831 = vweird.f32 %v1782
  %vm1832 = vweird.f32 %v1825
  %vm1833 = vmor %vm1831, %vm1832
  %v1834 = vsel %vm1833, %v1825, %v1830
  %v1835 = vrsqrt.pop %v1783
  %v1836 = vmul.f32 %v1835, %v1783
  %v1837 = vmul.f32 %v1836, %v1835
  %v1838 = vmul.f32 0.5, %v1837
  %v1839 = vsub.f32 1.5, %v1838
  %v1840 = vmul.f32 %v1835, %v1839
  %vm1841 = vweird.f32 %v1783
  %vm1842 = vweird.f32 %v1835
  %vm1843 = vmor %vm1841, %vm1842
  %v1844 = vsel %vm1843, %v1835, %v1840
  %v1845 = vrsqrt.pop %v1784
  %v1846 = vmul.f32 %v1845, %v1784
  %v1847 = vmul.f32 %v1846, %v1845
  %v1848 = vmul.f32 0.5, %v1847
  %v1849 = vsub.f32 1.5, %v1848
  %v1850 = vmul.f32 %v1845, %v1849
  %vm1851 = vweird.f32 %v1784
  %vm1852 = vweird.f32 %v1845
  %vm1853 = vmor %vm1851, %vm1852
  %v1854 = vsel %vm1853, %v1845, %v1850
  %v1855 = vmul.f32 %v1771, %v1794
  %v1856 = vmul.f32 %v1772, %v1804
  %v1857 = vmul.f32 %v1773, %v1814
  %v1858 = vmul.f32 %v1774, %v1824
  %v1859 = vmul.f32 %v1775, %v1834
  %v1860 = vmul.f32 %v1776, %v1844
  %v1861 = vmul.f32 %v1777, %v1854
  %v1862 = vperm.slane %v152, 6
  %v1863 = vmul.f32 %v1855, %v1862
  %v1864 = vmul.f32 %v1856, %v1862
  %v1865 = vmul.f32 %v1857, %v1862
  %v1866 = vmul.f32 %v1858, %v1862
  %v1867 = vmul.f32 %v1859, %v1862
  %v1868 = vmul.f32 %v1860, %v1862
  %v1869 = vmul.f32 %v1861, %v1862
  %v1870 = vperm.slane %v152, 7
  %v1871 = vadd.f32 %v1863, %v1870
  %v1872 = vadd.f32 %v1864, %v1870
  %v1873 = vadd.f32 %v1865, %v1870
  %v1874 = vadd.f32 %v1866, %v1870
  %v1875 = vadd.f32 %v1867, %v1870
  %v1876 = vadd.f32 %v1868, %v1870
  %v1877 = vadd.f32 %v1869, %v1870
  %v1878 = vpack.c.bf16 %v1872, %v1871
  %v1879 = vpack.c.bf16 %v1874, %v1873
  %v1880 = vpack.c.bf16 %v1876, %v1875
  %v1881 = vpack.c.bf16 %v1877, %v1877
  %v1882 = vperm.slane %v153, 0
  %v1887 = vunpack.c.l.b16 %v100
  %v1888 = vunpack.c.l.b16 %v101
  %v1889 = vunpack.c.l.b16 %v102
  %v1890 = vunpack.c.l.b16 %v103
  %v1891 = vpack.c.b16 %v1888, %v1887
  %v1892 = vpack.c.b16 %v1890, %v1889
  %v1896 = vsel %vm178, %v1878, 0
  %v1899 = vsel %vm178, %v1879, 0
  %v1902 = vsel %vm178, %v1880, 0
  %v1905 = vsel %vm178, %v1881, 0
  %1907 = vmatpush.bf16.msra.mxu0 0
  %1908 = vmatpush.bf16.msra.mxu0 0
  %1909 = vmatpush.bf16.msra.mxu0 0
  %1910 = vmatpush.bf16.msra.mxu0 0
  %1911 = vmatpush.bf16.msra.mxu0 0
  %1912 = vmatpush.bf16.msra.mxu0 0
  %1913 = vmatpush.bf16.msra.mxu0 %v1892
  %1914 = vmatpush.bf16.msra.mxu0 %v1891
  %1915 = vmatmul.bf16.gmra.mxu0 %v1896
  %v1916 = vpop.f32.mrf.mxu0
  %v1917 = vadd.f32 %v1882, %v1916
  %v1918 = vpop.f32.mrf.mxu0
  %v1919 = vadd.f32 %v1882, %v1918
  %1920 = vmatmul.bf16.gmra.mxu0 %v1899
  %v1921 = vpop.f32.mrf.mxu0
  %v1922 = vadd.f32 %v1882, %v1921
  %v1923 = vpop.f32.mrf.mxu0
  %v1924 = vadd.f32 %v1882, %v1923
  %1925 = vmatmul.bf16.gmra.mxu0 %v1902
  %v1926 = vpop.f32.mrf.mxu0
  %v1927 = vadd.f32 %v1882, %v1926
  %v1928 = vpop.f32.mrf.mxu0
  %v1929 = vadd.f32 %v1882, %v1928
  %1930 = vmatmul.bf16.gmra.mxu0 %v1905
  %v1931 = vpop.f32.mrf.mxu0
  %v1932 = vadd.f32 %v1882, %v1931
  %v1933 = vpop.f32.mrf.mxu0
  %1934 = vdwg.mxu0
  %v1935 = vpack.c.bf16 %v1917, %v1917
  %v1936 = vpack.c.bf16 %v1919, %v1919
  %v1937 = vpack.c.bf16 %v1922, %v1922
  %v1938 = vpack.c.bf16 %v1924, %v1924
  %v1939 = vpack.c.bf16 %v1927, %v1927
  %v1940 = vpack.c.bf16 %v1929, %v1929
  %v1941 = vpack.c.bf16 %v1932, %v1932
  %1949 = vrot.lane.b32.xlu0 %v1935, 120
  %v1950 = vpop.permute.xlu0 %1949
  %1951 = vrot.lane.b32.xlu0 %v1936, 120
  %v1952 = vpop.permute.xlu0 %1951
  %1953 = vrot.lane.b32.xlu0 %v1937, 120
  %v1954 = vpop.permute.xlu0 %1953
  %1955 = vrot.lane.b32.xlu0 %v1938, 120
  %v1956 = vpop.permute.xlu0 %1955
  %1957 = vrot.lane.b32.xlu0 %v1939, 120
  %v1958 = vpop.permute.xlu0 %1957
  %1959 = vrot.lane.b32.xlu0 %v1940, 120
  %v1960 = vpop.permute.xlu0 %1959
  %1961 = vrot.lane.b32.xlu0 %v1941, 120
  %v1962 = vpop.permute.xlu0 %1961
  %1963 = vrot.lane.b32.xlu0 %v1935, 112
  %v1964 = vpop.permute.xlu0 %1963
  %1965 = vrot.lane.b32.xlu0 %v1936, 112
  %v1966 = vpop.permute.xlu0 %1965
  %1967 = vrot.lane.b32.xlu0 %v1937, 112
  %v1968 = vpop.permute.xlu0 %1967
  %1969 = vrot.lane.b32.xlu0 %v1938, 112
  %v1970 = vpop.permute.xlu0 %1969
  %1971 = vrot.lane.b32.xlu0 %v1939, 112
  %v1972 = vpop.permute.xlu0 %1971
  %1973 = vrot.lane.b32.xlu0 %v1940, 112
  %v1974 = vpop.permute.xlu0 %1973
  %1975 = vrot.lane.b32.xlu0 %v1941, 112
  %v1976 = vpop.permute.xlu0 %1975
  %1977 = vrot.lane.b32.xlu0 %v1935, 104
  %v1978 = vpop.permute.xlu0 %1977
  %1979 = vrot.lane.b32.xlu0 %v1936, 104
  %v1980 = vpop.permute.xlu0 %1979
  %1981 = vrot.lane.b32.xlu0 %v1937, 104
  %v1982 = vpop.permute.xlu0 %1981
  %1983 = vrot.lane.b32.xlu0 %v1938, 104
  %v1984 = vpop.permute.xlu0 %1983
  %1985 = vrot.lane.b32.xlu0 %v1939, 104
  %v1986 = vpop.permute.xlu0 %1985
  %1987 = vrot.lane.b32.xlu0 %v1940, 104
  %v1988 = vpop.permute.xlu0 %1987
  %1989 = vrot.lane.b32.xlu0 %v1941, 104
  %v1990 = vpop.permute.xlu0 %1989
  %v1991 = vunpack.c.l.b16 %v1935
  %v1992 = vunpack.c.l.b16 %v1936
  %v1993 = vunpack.c.l.b16 %v1937
  %v1994 = vunpack.c.l.b16 %v1938
  %v1995 = vunpack.c.l.b16 %v1939
  %v1996 = vunpack.c.l.b16 %v1940
  %v1997 = vunpack.c.l.b16 %v1941
  %v1998 = vpack.c.b16 %v1992, %v1991
  %v1999 = vpack.c.b16 %v1994, %v1993
  %v2000 = vpack.c.b16 %v1996, %v1995
  %v2001 = vpack.c.b16 %v1997, %v1997
  %2002 = vrot.lane.b32.xlu0 %v1998, 96
  %v2003 = vpop.permute.xlu0 %2002
  %2004 = vrot.lane.b32.xlu0 %v1999, 96
  %v2005 = vpop.permute.xlu0 %2004
  %2006 = vrot.lane.b32.xlu0 %v2000, 96
  %v2007 = vpop.permute.xlu0 %2006
  %2008 = vrot.lane.b32.xlu0 %v2001, 96
  %v2009 = vpop.permute.xlu0 %2008
  %v2011 = vsel %vm294, %v1998, 0
  %v2014 = vsel %vm294, %v1999, 0
  %v2017 = vsel %vm294, %v2000, 0
  %v2020 = vsel %vm294, %v2001, 0
  %v2023 = vsel %vm294, %v2003, 0
  %v2026 = vsel %vm294, %v2005, 0
  %v2029 = vsel %vm294, %v2007, 0
  %v2032 = vsel %vm294, %v2009, 0
  %2034 = vmatpush.bf16.xpose.msra.mxu0 0
  %2035 = vmatpush.bf16.xpose.msra.mxu0 0
  %2036 = vmatpush.bf16.xpose.msra.mxu0 0
  %2037 = vmatpush.bf16.xpose.msra.mxu0 0
  %2038 = vmatpush.bf16.xpose.msra.mxu0 %v2032
  %2039 = vmatpush.bf16.xpose.msra.mxu0 %v2029
  %2040 = vmatpush.bf16.xpose.msra.mxu0 %v2026
  %2041 = vmatpush.bf16.xpose.msra.mxu0 %v2023
  %2042 = vmatmul.bf16.gmra.mxu0 %v2011
  %v2043 = vpop.f32.mrf.mxu0
  %v2044 = vadd.f32 %v154, %v2043
  %v2045 = vpop.f32.mrf.mxu0
  %v2046 = vadd.f32 %v155, %v2045
  %2047 = vmatmul.bf16.gmra.mxu0 %v2014
  %v2048 = vpop.f32.mrf.mxu0
  %v2049 = vadd.f32 %v156, %v2048
  %v2050 = vpop.f32.mrf.mxu0
  %v2051 = vadd.f32 %v157, %v2050
  %2052 = vmatmul.bf16.gmra.mxu0 %v2017
  %v2053 = vpop.f32.mrf.mxu0
  %v2054 = vadd.f32 %v158, %v2053
  %v2055 = vpop.f32.mrf.mxu0
  %v2056 = vadd.f32 %v159, %v2055
  %2057 = vmatmul.bf16.gmra.mxu0 %v2020
  %v2058 = vpop.f32.mrf.mxu0
  %v2059 = vadd.f32 %v160, %v2058
  %v2060 = vpop.f32.mrf.mxu0
  %2061 = vdwg.mxu0
  %v2062 = vunpack.c.l.b16 %v1950
  %v2063 = vunpack.c.l.b16 %v1952
  %v2064 = vunpack.c.l.b16 %v1954
  %v2065 = vunpack.c.l.b16 %v1956
  %v2066 = vunpack.c.l.b16 %v1958
  %v2067 = vunpack.c.l.b16 %v1960
  %v2068 = vunpack.c.l.b16 %v1962
  %v2069 = vpack.c.b16 %v2063, %v2062
  %v2070 = vpack.c.b16 %v2065, %v2064
  %v2071 = vpack.c.b16 %v2067, %v2066
  %v2072 = vpack.c.b16 %v2068, %v2068
  %2073 = vrot.lane.b32.xlu0 %v2069, 96
  %v2074 = vpop.permute.xlu0 %2073
  %2075 = vrot.lane.b32.xlu0 %v2070, 96
  %v2076 = vpop.permute.xlu0 %2075
  %2077 = vrot.lane.b32.xlu0 %v2071, 96
  %v2078 = vpop.permute.xlu0 %2077
  %2079 = vrot.lane.b32.xlu0 %v2072, 96
  %v2080 = vpop.permute.xlu0 %2079
  %v2082 = vsel %vm294, %v2069, 0
  %v2085 = vsel %vm294, %v2070, 0
  %v2088 = vsel %vm294, %v2071, 0
  %v2091 = vsel %vm294, %v2072, 0
  %v2094 = vsel %vm294, %v2074, 0
  %v2097 = vsel %vm294, %v2076, 0
  %v2100 = vsel %vm294, %v2078, 0
  %v2103 = vsel %vm294, %v2080, 0
  %2105 = vmatpush.bf16.xpose.msra.mxu0 0
  %2106 = vmatpush.bf16.xpose.msra.mxu0 0
  %2107 = vmatpush.bf16.xpose.msra.mxu0 0
  %2108 = vmatpush.bf16.xpose.msra.mxu0 0
  %2109 = vmatpush.bf16.xpose.msra.mxu0 %v2103
  %2110 = vmatpush.bf16.xpose.msra.mxu0 %v2100
  %2111 = vmatpush.bf16.xpose.msra.mxu0 %v2097
  %2112 = vmatpush.bf16.xpose.msra.mxu0 %v2094
  %2113 = vmatmul.bf16.gmra.mxu0 %v2082
  %v2114 = vpop.f32.mrf.mxu0
  %v2115 = vadd.f32 %v154, %v2114
  %v2116 = vpop.f32.mrf.mxu0
  %v2117 = vadd.f32 %v155, %v2116
  %2118 = vmatmul.bf16.gmra.mxu0 %v2085
  %v2119 = vpop.f32.mrf.mxu0
  %v2120 = vadd.f32 %v156, %v2119
  %v2121 = vpop.f32.mrf.mxu0
  %v2122 = vadd.f32 %v157, %v2121
  %2123 = vmatmul.bf16.gmra.mxu0 %v2088
  %v2124 = vpop.f32.mrf.mxu0
  %v2125 = vadd.f32 %v158, %v2124
  %v2126 = vpop.f32.mrf.mxu0
  %v2127 = vadd.f32 %v159, %v2126
  %2128 = vmatmul.bf16.gmra.mxu0 %v2091
  %v2129 = vpop.f32.mrf.mxu0
  %v2130 = vadd.f32 %v160, %v2129
  %v2131 = vpop.f32.mrf.mxu0
  %2132 = vdwg.mxu0
  %v2133 = vunpack.c.l.b16 %v1964
  %v2134 = vunpack.c.l.b16 %v1966
  %v2135 = vunpack.c.l.b16 %v1968
  %v2136 = vunpack.c.l.b16 %v1970
  %v2137 = vunpack.c.l.b16 %v1972
  %v2138 = vunpack.c.l.b16 %v1974
  %v2139 = vunpack.c.l.b16 %v1976
  %v2140 = vpack.c.b16 %v2134, %v2133
  %v2141 = vpack.c.b16 %v2136, %v2135
  %v2142 = vpack.c.b16 %v2138, %v2137
  %v2143 = vpack.c.b16 %v2139, %v2139
  %2144 = vrot.lane.b32.xlu0 %v2140, 96
  %v2145 = vpop.permute.xlu0 %2144
  %2146 = vrot.lane.b32.xlu0 %v2141, 96
  %v2147 = vpop.permute.xlu0 %2146
  %2148 = vrot.lane.b32.xlu0 %v2142, 96
  %v2149 = vpop.permute.xlu0 %2148
  %2150 = vrot.lane.b32.xlu0 %v2143, 96
  %v2151 = vpop.permute.xlu0 %2150
  %v2153 = vsel %vm294, %v2140, 0
  %v2156 = vsel %vm294, %v2141, 0
  %v2159 = vsel %vm294, %v2142, 0
  %v2162 = vsel %vm294, %v2143, 0
  %v2165 = vsel %vm294, %v2145, 0
  %v2168 = vsel %vm294, %v2147, 0
  %v2171 = vsel %vm294, %v2149, 0
  %v2174 = vsel %vm294, %v2151, 0
  %2176 = vmatpush.bf16.xpose.msra.mxu0 0
  %2177 = vmatpush.bf16.xpose.msra.mxu0 0
  %2178 = vmatpush.bf16.xpose.msra.mxu0 0
  %2179 = vmatpush.bf16.xpose.msra.mxu0 0
  %2180 = vmatpush.bf16.xpose.msra.mxu0 %v2174
  %2181 = vmatpush.bf16.xpose.msra.mxu0 %v2171
  %2182 = vmatpush.bf16.xpose.msra.mxu0 %v2168
  %2183 = vmatpush.bf16.xpose.msra.mxu0 %v2165
  %2184 = vmatmul.bf16.gmra.mxu0 %v2153
  %v2185 = vpop.f32.mrf.mxu0
  %v2186 = vadd.f32 %v154, %v2185
  %v2187 = vpop.f32.mrf.mxu0
  %v2188 = vadd.f32 %v155, %v2187
  %2189 = vmatmul.bf16.gmra.mxu0 %v2156
  %v2190 = vpop.f32.mrf.mxu0
  %v2191 = vadd.f32 %v156, %v2190
  %v2192 = vpop.f32.mrf.mxu0
  %v2193 = vadd.f32 %v157, %v2192
  %2194 = vmatmul.bf16.gmra.mxu0 %v2159
  %v2195 = vpop.f32.mrf.mxu0
  %v2196 = vadd.f32 %v158, %v2195
  %v2197 = vpop.f32.mrf.mxu0
  %v2198 = vadd.f32 %v159, %v2197
  %2199 = vmatmul.bf16.gmra.mxu0 %v2162
  %v2200 = vpop.f32.mrf.mxu0
  %v2201 = vadd.f32 %v160, %v2200
  %v2202 = vpop.f32.mrf.mxu0
  %2203 = vdwg.mxu0
  %v2204 = vunpack.c.l.b16 %v1978
  %v2205 = vunpack.c.l.b16 %v1980
  %v2206 = vunpack.c.l.b16 %v1982
  %v2207 = vunpack.c.l.b16 %v1984
  %v2208 = vunpack.c.l.b16 %v1986
  %v2209 = vunpack.c.l.b16 %v1988
  %v2210 = vunpack.c.l.b16 %v1990
  %v2211 = vpack.c.b16 %v2205, %v2204
  %v2212 = vpack.c.b16 %v2207, %v2206
  %v2213 = vpack.c.b16 %v2209, %v2208
  %v2214 = vpack.c.b16 %v2210, %v2210
  %2215 = vrot.lane.b32.xlu0 %v2211, 96
  %v2216 = vpop.permute.xlu0 %2215
  %2217 = vrot.lane.b32.xlu0 %v2212, 96
  %v2218 = vpop.permute.xlu0 %2217
  %2219 = vrot.lane.b32.xlu0 %v2213, 96
  %v2220 = vpop.permute.xlu0 %2219
  %2221 = vrot.lane.b32.xlu0 %v2214, 96
  %v2222 = vpop.permute.xlu0 %2221
  %v2224 = vsel %vm294, %v2211, 0
  %v2227 = vsel %vm294, %v2212, 0
  %v2230 = vsel %vm294, %v2213, 0
  %v2233 = vsel %vm294, %v2214, 0
  %v2236 = vsel %vm294, %v2216, 0
  %v2239 = vsel %vm294, %v2218, 0
  %v2242 = vsel %vm294, %v2220, 0
  %v2245 = vsel %vm294, %v2222, 0
  %2247 = vmatpush.bf16.xpose.msra.mxu0 0
  %2248 = vmatpush.bf16.xpose.msra.mxu0 0
  %2249 = vmatpush.bf16.xpose.msra.mxu0 0
  %2250 = vmatpush.bf16.xpose.msra.mxu0 0
  %2251 = vmatpush.bf16.xpose.msra.mxu0 %v2245
  %2252 = vmatpush.bf16.xpose.msra.mxu0 %v2242
  %2253 = vmatpush.bf16.xpose.msra.mxu0 %v2239
  %2254 = vmatpush.bf16.xpose.msra.mxu0 %v2236
  %2255 = vmatmul.bf16.gmra.mxu0 %v2224
  %v2256 = vpop.f32.mrf.mxu0
  %v2257 = vadd.f32 %v154, %v2256
  %v2258 = vpop.f32.mrf.mxu0
  %v2259 = vadd.f32 %v155, %v2258
  %2260 = vmatmul.bf16.gmra.mxu0 %v2227
  %v2261 = vpop.f32.mrf.mxu0
  %v2262 = vadd.f32 %v156, %v2261
  %v2263 = vpop.f32.mrf.mxu0
  %v2264 = vadd.f32 %v157, %v2263
  %2265 = vmatmul.bf16.gmra.mxu0 %v2230
  %v2266 = vpop.f32.mrf.mxu0
  %v2267 = vadd.f32 %v158, %v2266
  %v2268 = vpop.f32.mrf.mxu0
  %v2269 = vadd.f32 %v159, %v2268
  %2270 = vmatmul.bf16.gmra.mxu0 %v2233
  %v2271 = vpop.f32.mrf.mxu0
  %v2272 = vadd.f32 %v160, %v2271
  %v2273 = vpop.f32.mrf.mxu0
  %2274 = vdwg.mxu0
  %v2275 = vsel %vm560, %v2044, -inf
  %2276 = vmax.xlane.f32.xlu0 %v2275
  %v2277 = vpop.xlane.xlu0 %2276
  %v2278 = vsel %vm560, %v2046, -inf
  %2279 = vmax.xlane.f32.xlu0 %v2278
  %v2280 = vpop.xlane.xlu0 %2279
  %v2281 = vsel %vm560, %v2049, -inf
  %2282 = vmax.xlane.f32.xlu0 %v2281
  %v2283 = vpop.xlane.xlu0 %2282
  %v2284 = vsel %vm560, %v2051, -inf
  %2285 = vmax.xlane.f32.xlu0 %v2284
  %v2286 = vpop.xlane.xlu0 %2285
  %v2287 = vsel %vm560, %v2054, -inf
  %2288 = vmax.xlane.f32.xlu0 %v2287
  %v2289 = vpop.xlane.xlu0 %2288
  %v2290 = vsel %vm560, %v2056, -inf
  %2291 = vmax.xlane.f32.xlu0 %v2290
  %v2292 = vpop.xlane.xlu0 %2291
  %v2293 = vsel %vm579, %v2059, -inf
  %2294 = vmax.xlane.f32.xlu0 %v2293
  %v2295 = vpop.xlane.xlu0 %2294
  %v2296 = vsel %vm560, %v2115, -inf
  %2297 = vmax.xlane.f32.xlu0 %v2296
  %v2298 = vpop.xlane.xlu0 %2297
  %v2299 = vsel %vm560, %v2117, -inf
  %2300 = vmax.xlane.f32.xlu0 %v2299
  %v2301 = vpop.xlane.xlu0 %2300
  %v2302 = vsel %vm560, %v2120, -inf
  %2303 = vmax.xlane.f32.xlu0 %v2302
  %v2304 = vpop.xlane.xlu0 %2303
  %v2305 = vsel %vm560, %v2122, -inf
  %2306 = vmax.xlane.f32.xlu0 %v2305
  %v2307 = vpop.xlane.xlu0 %2306
  %v2308 = vsel %vm560, %v2125, -inf
  %2309 = vmax.xlane.f32.xlu0 %v2308
  %v2310 = vpop.xlane.xlu0 %2309
  %v2311 = vsel %vm560, %v2127, -inf
  %2312 = vmax.xlane.f32.xlu0 %v2311
  %v2313 = vpop.xlane.xlu0 %2312
  %v2314 = vsel %vm579, %v2130, -inf
  %2315 = vmax.xlane.f32.xlu0 %v2314
  %v2316 = vpop.xlane.xlu0 %2315
  %v2317 = vsel %vm560, %v2186, -inf
  %2318 = vmax.xlane.f32.xlu0 %v2317
  %v2319 = vpop.xlane.xlu0 %2318
  %v2320 = vsel %vm560, %v2188, -inf
  %2321 = vmax.xlane.f32.xlu0 %v2320
  %v2322 = vpop.xlane.xlu0 %2321
  %v2323 = vsel %vm560, %v2191, -inf
  %2324 = vmax.xlane.f32.xlu0 %v2323
  %v2325 = vpop.xlane.xlu0 %2324
  %v2326 = vsel %vm560, %v2193, -inf
  %2327 = vmax.xlane.f32.xlu0 %v2326
  %v2328 = vpop.xlane.xlu0 %2327
  %v2329 = vsel %vm560, %v2196, -inf
  %2330 = vmax.xlane.f32.xlu0 %v2329
  %v2331 = vpop.xlane.xlu0 %2330
  %v2332 = vsel %vm560, %v2198, -inf
  %2333 = vmax.xlane.f32.xlu0 %v2332
  %v2334 = vpop.xlane.xlu0 %2333
  %v2335 = vsel %vm579, %v2201, -inf
  %2336 = vmax.xlane.f32.xlu0 %v2335
  %v2337 = vpop.xlane.xlu0 %2336
  %v2338 = vsel %vm560, %v2257, -inf
  %2339 = vmax.xlane.f32.xlu0 %v2338
  %v2340 = vpop.xlane.xlu0 %2339
  %v2341 = vsel %vm560, %v2259, -inf
  %2342 = vmax.xlane.f32.xlu0 %v2341
  %v2343 = vpop.xlane.xlu0 %2342
  %v2344 = vsel %vm560, %v2262, -inf
  %2345 = vmax.xlane.f32.xlu0 %v2344
  %v2346 = vpop.xlane.xlu0 %2345
  %v2347 = vsel %vm560, %v2264, -inf
  %2348 = vmax.xlane.f32.xlu0 %v2347
  %v2349 = vpop.xlane.xlu0 %2348
  %v2350 = vsel %vm560, %v2267, -inf
  %2351 = vmax.xlane.f32.xlu0 %v2350
  %v2352 = vpop.xlane.xlu0 %2351
  %v2353 = vsel %vm560, %v2269, -inf
  %2354 = vmax.xlane.f32.xlu0 %v2353
  %v2355 = vpop.xlane.xlu0 %2354
  %v2356 = vsel %vm579, %v2272, -inf
  %2357 = vmax.xlane.f32.xlu0 %v2356
  %v2358 = vpop.xlane.xlu0 %2357
  %v2359 = vsub.f32 %v2044, %v2277
  %v2360 = vsub.f32 %v2046, %v2280
  %v2361 = vsub.f32 %v2049, %v2283
  %v2362 = vsub.f32 %v2051, %v2286
  %v2363 = vsub.f32 %v2054, %v2289
  %v2364 = vsub.f32 %v2056, %v2292
  %v2365 = vsub.f32 %v2059, %v2295
  %v2366 = vsub.f32 %v2115, %v2298
  %v2367 = vsub.f32 %v2117, %v2301
  %v2368 = vsub.f32 %v2120, %v2304
  %v2369 = vsub.f32 %v2122, %v2307
  %v2370 = vsub.f32 %v2125, %v2310
  %v2371 = vsub.f32 %v2127, %v2313
  %v2372 = vsub.f32 %v2130, %v2316
  %v2373 = vsub.f32 %v2186, %v2319
  %v2374 = vsub.f32 %v2188, %v2322
  %v2375 = vsub.f32 %v2191, %v2325
  %v2376 = vsub.f32 %v2193, %v2328
  %v2377 = vsub.f32 %v2196, %v2331
  %v2378 = vsub.f32 %v2198, %v2334
  %v2379 = vsub.f32 %v2201, %v2337
  %v2380 = vsub.f32 %v2257, %v2340
  %v2381 = vsub.f32 %v2259, %v2343
  %v2382 = vsub.f32 %v2262, %v2346
  %v2383 = vsub.f32 %v2264, %v2349
  %v2384 = vsub.f32 %v2267, %v2352
  %v2385 = vsub.f32 %v2269, %v2355
  %v2386 = vsub.f32 %v2272, %v2358
  %v2387 = vmul.f32 %v2359, 1.442695
  %v2388 = vpow.pop %v2387
  %v2389 = vmul.f32 %v2360, 1.442695
  %v2390 = vpow.pop %v2389
  %v2391 = vmul.f32 %v2361, 1.442695
  %v2392 = vpow.pop %v2391
  %v2393 = vmul.f32 %v2362, 1.442695
  %v2394 = vpow.pop %v2393
  %v2395 = vmul.f32 %v2363, 1.442695
  %v2396 = vpow.pop %v2395
  %v2397 = vmul.f32 %v2364, 1.442695
  %v2398 = vpow.pop %v2397
  %v2399 = vmul.f32 %v2365, 1.442695
  %v2400 = vpow.pop %v2399
  %v2401 = vmul.f32 %v2366, 1.442695
  %v2402 = vpow.pop %v2401
  %v2403 = vmul.f32 %v2367, 1.442695
  %v2404 = vpow.pop %v2403
  %v2405 = vmul.f32 %v2368, 1.442695
  %v2406 = vpow.pop %v2405
  %v2407 = vmul.f32 %v2369, 1.442695
  %v2408 = vpow.pop %v2407
  %v2409 = vmul.f32 %v2370, 1.442695
  %v2410 = vpow.pop %v2409
  %v2411 = vmul.f32 %v2371, 1.442695
  %v2412 = vpow.pop %v2411
  %v2413 = vmul.f32 %v2372, 1.442695
  %v2414 = vpow.pop %v2413
  %v2415 = vmul.f32 %v2373, 1.442695
  %v2416 = vpow.pop %v2415
  %v2417 = vmul.f32 %v2374, 1.442695
  %v2418 = vpow.pop %v2417
  %v2419 = vmul.f32 %v2375, 1.442695
  %v2420 = vpow.pop %v2419
  %v2421 = vmul.f32 %v2376, 1.442695
  %v2422 = vpow.pop %v2421
  %v2423 = vmul.f32 %v2377, 1.442695
  %v2424 = vpow.pop %v2423
  %v2425 = vmul.f32 %v2378, 1.442695
  %v2426 = vpow.pop %v2425
  %v2427 = vmul.f32 %v2379, 1.442695
  %v2428 = vpow.pop %v2427
  %v2429 = vmul.f32 %v2380, 1.442695
  %v2430 = vpow.pop %v2429
  %v2431 = vmul.f32 %v2381, 1.442695
  %v2432 = vpow.pop %v2431
  %v2433 = vmul.f32 %v2382, 1.442695
  %v2434 = vpow.pop %v2433
  %v2435 = vmul.f32 %v2383, 1.442695
  %v2436 = vpow.pop %v2435
  %v2437 = vmul.f32 %v2384, 1.442695
  %v2438 = vpow.pop %v2437
  %v2439 = vmul.f32 %v2385, 1.442695
  %v2440 = vpow.pop %v2439
  %v2441 = vmul.f32 %v2386, 1.442695
  %v2442 = vpow.pop %v2441
  %v2443 = vsel %vm560, %v2388, 0.0
  %2444 = vadd.xlane.f32.xlu0 %v2443
  %v2445 = vpop.xlane.xlu0 %2444
  %v2446 = vsel %vm560, %v2390, 0.0
  %2447 = vadd.xlane.f32.xlu0 %v2446
  %v2448 = vpop.xlane.xlu0 %2447
  %v2449 = vsel %vm560, %v2392, 0.0
  %2450 = vadd.xlane.f32.xlu0 %v2449
  %v2451 = vpop.xlane.xlu0 %2450
  %v2452 = vsel %vm560, %v2394, 0.0
  %2453 = vadd.xlane.f32.xlu0 %v2452
  %v2454 = vpop.xlane.xlu0 %2453
  %v2455 = vsel %vm560, %v2396, 0.0
  %2456 = vadd.xlane.f32.xlu0 %v2455
  %v2457 = vpop.xlane.xlu0 %2456
  %v2458 = vsel %vm560, %v2398, 0.0
  %2459 = vadd.xlane.f32.xlu0 %v2458
  %v2460 = vpop.xlane.xlu0 %2459
  %v2461 = vsel %vm579, %v2400, 0.0
  %2462 = vadd.xlane.f32.xlu0 %v2461
  %v2463 = vpop.xlane.xlu0 %2462
  %v2464 = vsel %vm560, %v2402, 0.0
  %2465 = vadd.xlane.f32.xlu0 %v2464
  %v2466 = vpop.xlane.xlu0 %2465
  %v2467 = vsel %vm560, %v2404, 0.0
  %2468 = vadd.xlane.f32.xlu0 %v2467
  %v2469 = vpop.xlane.xlu0 %2468
  %v2470 = vsel %vm560, %v2406, 0.0
  %2471 = vadd.xlane.f32.xlu0 %v2470
  %v2472 = vpop.xlane.xlu0 %2471
  %v2473 = vsel %vm560, %v2408, 0.0
  %2474 = vadd.xlane.f32.xlu0 %v2473
  %v2475 = vpop.xlane.xlu0 %2474
  %v2476 = vsel %vm560, %v2410, 0.0
  %2477 = vadd.xlane.f32.xlu0 %v2476
  %v2478 = vpop.xlane.xlu0 %2477
  %v2479 = vsel %vm560, %v2412, 0.0
  %2480 = vadd.xlane.f32.xlu0 %v2479
  %v2481 = vpop.xlane.xlu0 %2480
  %v2482 = vsel %vm579, %v2414, 0.0
  %2483 = vadd.xlane.f32.xlu0 %v2482
  %v2484 = vpop.xlane.xlu0 %2483
  %v2485 = vsel %vm560, %v2416, 0.0
  %2486 = vadd.xlane.f32.xlu0 %v2485
  %v2487 = vpop.xlane.xlu0 %2486
  %v2488 = vsel %vm560, %v2418, 0.0
  %2489 = vadd.xlane.f32.xlu0 %v2488
  %v2490 = vpop.xlane.xlu0 %2489
  %v2491 = vsel %vm560, %v2420, 0.0
  %2492 = vadd.xlane.f32.xlu0 %v2491
  %v2493 = vpop.xlane.xlu0 %2492
  %v2494 = vsel %vm560, %v2422, 0.0
  %2495 = vadd.xlane.f32.xlu0 %v2494
  %v2496 = vpop.xlane.xlu0 %2495
  %v2497 = vsel %vm560, %v2424, 0.0
  %2498 = vadd.xlane.f32.xlu0 %v2497
  %v2499 = vpop.xlane.xlu0 %2498
  %v2500 = vsel %vm560, %v2426, 0.0
  %2501 = vadd.xlane.f32.xlu0 %v2500
  %v2502 = vpop.xlane.xlu0 %2501
  %v2503 = vsel %vm579, %v2428, 0.0
  %2504 = vadd.xlane.f32.xlu0 %v2503
  %v2505 = vpop.xlane.xlu0 %2504
  %v2506 = vsel %vm560, %v2430, 0.0
  %2507 = vadd.xlane.f32.xlu0 %v2506
  %v2508 = vpop.xlane.xlu0 %2507
  %v2509 = vsel %vm560, %v2432, 0.0
  %2510 = vadd.xlane.f32.xlu0 %v2509
  %v2511 = vpop.xlane.xlu0 %2510
  %v2512 = vsel %vm560, %v2434, 0.0
  %2513 = vadd.xlane.f32.xlu0 %v2512
  %v2514 = vpop.xlane.xlu0 %2513
  %v2515 = vsel %vm560, %v2436, 0.0
  %2516 = vadd.xlane.f32.xlu0 %v2515
  %v2517 = vpop.xlane.xlu0 %2516
  %v2518 = vsel %vm560, %v2438, 0.0
  %2519 = vadd.xlane.f32.xlu0 %v2518
  %v2520 = vpop.xlane.xlu0 %2519
  %v2521 = vsel %vm560, %v2440, 0.0
  %2522 = vadd.xlane.f32.xlu0 %v2521
  %v2523 = vpop.xlane.xlu0 %2522
  %v2524 = vsel %vm579, %v2442, 0.0
  %2525 = vadd.xlane.f32.xlu0 %v2524
  %v2526 = vpop.xlane.xlu0 %2525
  %v2527 = vrcp.pop %v2445
  %v2528 = vrcp.pop %v2448
  %v2529 = vrcp.pop %v2451
  %v2530 = vrcp.pop %v2454
  %v2531 = vrcp.pop %v2457
  %v2532 = vrcp.pop %v2460
  %v2533 = vrcp.pop %v2463
  %v2534 = vrcp.pop %v2466
  %v2535 = vrcp.pop %v2469
  %v2536 = vrcp.pop %v2472
  %v2537 = vrcp.pop %v2475
  %v2538 = vrcp.pop %v2478
  %v2539 = vrcp.pop %v2481
  %v2540 = vrcp.pop %v2484
  %v2541 = vrcp.pop %v2487
  %v2542 = vrcp.pop %v2490
  %v2543 = vrcp.pop %v2493
  %v2544 = vrcp.pop %v2496
  %v2545 = vrcp.pop %v2499
  %v2546 = vrcp.pop %v2502
  %v2547 = vrcp.pop %v2505
  %v2548 = vrcp.pop %v2508
  %v2549 = vrcp.pop %v2511
  %v2550 = vrcp.pop %v2514
  %v2551 = vrcp.pop %v2517
  %v2552 = vrcp.pop %v2520
  %v2553 = vrcp.pop %v2523
  %v2554 = vrcp.pop %v2526
  %v2555 = vmul.f32 %v2388, %v2527
  %v2556 = vmul.f32 %v2390, %v2528
  %v2557 = vmul.f32 %v2392, %v2529
  %v2558 = vmul.f32 %v2394, %v2530
  %v2559 = vmul.f32 %v2396, %v2531
  %v2560 = vmul.f32 %v2398, %v2532
  %v2561 = vmul.f32 %v2400, %v2533
  %v2562 = vmul.f32 %v2402, %v2534
  %v2563 = vmul.f32 %v2404, %v2535
  %v2564 = vmul.f32 %v2406, %v2536
  %v2565 = vmul.f32 %v2408, %v2537
  %v2566 = vmul.f32 %v2410, %v2538
  %v2567 = vmul.f32 %v2412, %v2539
  %v2568 = vmul.f32 %v2414, %v2540
  %v2569 = vmul.f32 %v2416, %v2541
  %v2570 = vmul.f32 %v2418, %v2542
  %v2571 = vmul.f32 %v2420, %v2543
  %v2572 = vmul.f32 %v2422, %v2544
  %v2573 = vmul.f32 %v2424, %v2545
  %v2574 = vmul.f32 %v2426, %v2546
  %v2575 = vmul.f32 %v2428, %v2547
  %v2576 = vmul.f32 %v2430, %v2548
  %v2577 = vmul.f32 %v2432, %v2549
  %v2578 = vmul.f32 %v2434, %v2550
  %v2579 = vmul.f32 %v2436, %v2551
  %v2580 = vmul.f32 %v2438, %v2552
  %v2581 = vmul.f32 %v2440, %v2553
  %v2582 = vmul.f32 %v2442, %v2554
  %v2583 = vpack.c.bf16 %v2555, %v2555
  %v2584 = vpack.c.bf16 %v2556, %v2556
  %v2585 = vpack.c.bf16 %v2557, %v2557
  %v2586 = vpack.c.bf16 %v2558, %v2558
  %v2587 = vpack.c.bf16 %v2559, %v2559
  %v2588 = vpack.c.bf16 %v2560, %v2560
  %v2589 = vpack.c.bf16 %v2561, %v2561
  %v2590 = vpack.c.bf16 %v2562, %v2562
  %v2591 = vpack.c.bf16 %v2563, %v2563
  %v2592 = vpack.c.bf16 %v2564, %v2564
  %v2593 = vpack.c.bf16 %v2565, %v2565
  %v2594 = vpack.c.bf16 %v2566, %v2566
  %v2595 = vpack.c.bf16 %v2567, %v2567
  %v2596 = vpack.c.bf16 %v2568, %v2568
  %v2597 = vpack.c.bf16 %v2569, %v2569
  %v2598 = vpack.c.bf16 %v2570, %v2570
  %v2599 = vpack.c.bf16 %v2571, %v2571
  %v2600 = vpack.c.bf16 %v2572, %v2572
  %v2601 = vpack.c.bf16 %v2573, %v2573
  %v2602 = vpack.c.bf16 %v2574, %v2574
  %v2603 = vpack.c.bf16 %v2575, %v2575
  %v2604 = vpack.c.bf16 %v2576, %v2576
  %v2605 = vpack.c.bf16 %v2577, %v2577
  %v2606 = vpack.c.bf16 %v2578, %v2578
  %v2607 = vpack.c.bf16 %v2579, %v2579
  %v2608 = vpack.c.bf16 %v2580, %v2580
  %v2609 = vpack.c.bf16 %v2581, %v2581
  %v2610 = vpack.c.bf16 %v2582, %v2582
  %v2618 = vunpack.c.l.b16 %v2583
  %v2619 = vunpack.c.l.b16 %v2584
  %v2620 = vunpack.c.l.b16 %v2585
  %v2621 = vunpack.c.l.b16 %v2586
  %v2622 = vunpack.c.l.b16 %v2587
  %v2623 = vunpack.c.l.b16 %v2588
  %v2624 = vunpack.c.l.b16 %v2589
  %v2625 = vpack.c.b16 %v2619, %v2618
  %v2626 = vpack.c.b16 %v2621, %v2620
  %v2627 = vpack.c.b16 %v2623, %v2622
  %v2628 = vpack.c.b16 %v2624, %v2624
  %2629 = vrot.lane.b32.xlu0 %v1998, 64
  %v2630 = vpop.permute.xlu0 %2629
  %2631 = vrot.lane.b32.xlu0 %v1999, 64
  %v2632 = vpop.permute.xlu0 %2631
  %2633 = vrot.lane.b32.xlu0 %v2000, 64
  %v2634 = vpop.permute.xlu0 %2633
  %2635 = vrot.lane.b32.xlu0 %v2001, 64
  %v2636 = vpop.permute.xlu0 %2635
  %v2641 = vsel %vm560, %v2625, 0
  %v2644 = vsel %vm560, %v2626, 0
  %v2647 = vsel %vm560, %v2627, 0
  %v2650 = vsel %vm560, %v2628, 0
  %v2653 = vsel %vm76, %v2636, 0
  %2655 = vmatpush.bf16.msra.mxu0 0
  %2656 = vmatpush.bf16.msra.mxu0 0
  %2657 = vmatpush.bf16.msra.mxu0 0
  %2658 = vmatpush.bf16.msra.mxu0 0
  %2659 = vmatpush.bf16.msra.mxu0 %v2653
  %2660 = vmatpush.bf16.msra.mxu0 %v2634
  %2661 = vmatpush.bf16.msra.mxu0 %v2632
  %2662 = vmatpush.bf16.msra.mxu0 %v2630
  %2663 = vmatmul.bf16.gmra.mxu0 %v2641
  %v2664 = vpop.f32.mrf.mxu0
  %v2665 = vadd.f32 0.0, %v2664
  %v2666 = vpop.f32.mrf.mxu0
  %v2667 = vadd.f32 0.0, %v2666
  %2668 = vmatmul.bf16.gmra.mxu0 %v2644
  %v2669 = vpop.f32.mrf.mxu0
  %v2670 = vadd.f32 0.0, %v2669
  %v2671 = vpop.f32.mrf.mxu0
  %v2672 = vadd.f32 0.0, %v2671
  %2673 = vmatmul.bf16.gmra.mxu0 %v2647
  %v2674 = vpop.f32.mrf.mxu0
  %v2675 = vadd.f32 0.0, %v2674
  %v2676 = vpop.f32.mrf.mxu0
  %v2677 = vadd.f32 0.0, %v2676
  %2678 = vmatmul.bf16.gmra.mxu0 %v2650
  %v2679 = vpop.f32.mrf.mxu0
  %v2680 = vadd.f32 0.0, %v2679
  %v2681 = vpop.f32.mrf.mxu0
  %2682 = vdwg.mxu0
  %v2690 = vunpack.c.l.b16 %v2590
  %v2691 = vunpack.c.l.b16 %v2591
  %v2692 = vunpack.c.l.b16 %v2592
  %v2693 = vunpack.c.l.b16 %v2593
  %v2694 = vunpack.c.l.b16 %v2594
  %v2695 = vunpack.c.l.b16 %v2595
  %v2696 = vunpack.c.l.b16 %v2596
  %v2697 = vpack.c.b16 %v2691, %v2690
  %v2698 = vpack.c.b16 %v2693, %v2692
  %v2699 = vpack.c.b16 %v2695, %v2694
  %v2700 = vpack.c.b16 %v2696, %v2696
  %2701 = vrot.lane.b32.xlu0 %v2069, 64
  %v2702 = vpop.permute.xlu0 %2701
  %2703 = vrot.lane.b32.xlu0 %v2070, 64
  %v2704 = vpop.permute.xlu0 %2703
  %2705 = vrot.lane.b32.xlu0 %v2071, 64
  %v2706 = vpop.permute.xlu0 %2705
  %2707 = vrot.lane.b32.xlu0 %v2072, 64
  %v2708 = vpop.permute.xlu0 %2707
  %v2713 = vsel %vm560, %v2697, 0
  %v2716 = vsel %vm560, %v2698, 0
  %v2719 = vsel %vm560, %v2699, 0
  %v2722 = vsel %vm560, %v2700, 0
  %v2725 = vsel %vm76, %v2708, 0
  %2727 = vmatpush.bf16.msra.mxu0 0
  %2728 = vmatpush.bf16.msra.mxu0 0
  %2729 = vmatpush.bf16.msra.mxu0 0
  %2730 = vmatpush.bf16.msra.mxu0 0
  %2731 = vmatpush.bf16.msra.mxu0 %v2725
  %2732 = vmatpush.bf16.msra.mxu0 %v2706
  %2733 = vmatpush.bf16.msra.mxu0 %v2704
  %2734 = vmatpush.bf16.msra.mxu0 %v2702
  %2735 = vmatmul.bf16.gmra.mxu0 %v2713
  %v2736 = vpop.f32.mrf.mxu0
  %v2737 = vadd.f32 0.0, %v2736
  %v2738 = vpop.f32.mrf.mxu0
  %v2739 = vadd.f32 0.0, %v2738
  %2740 = vmatmul.bf16.gmra.mxu0 %v2716
  %v2741 = vpop.f32.mrf.mxu0
  %v2742 = vadd.f32 0.0, %v2741
  %v2743 = vpop.f32.mrf.mxu0
  %v2744 = vadd.f32 0.0, %v2743
  %2745 = vmatmul.bf16.gmra.mxu0 %v2719
  %v2746 = vpop.f32.mrf.mxu0
  %v2747 = vadd.f32 0.0, %v2746
  %v2748 = vpop.f32.mrf.mxu0
  %v2749 = vadd.f32 0.0, %v2748
  %2750 = vmatmul.bf16.gmra.mxu0 %v2722
  %v2751 = vpop.f32.mrf.mxu0
  %v2752 = vadd.f32 0.0, %v2751
  %v2753 = vpop.f32.mrf.mxu0
  %2754 = vdwg.mxu0
  %v2762 = vunpack.c.l.b16 %v2597
  %v2763 = vunpack.c.l.b16 %v2598
  %v2764 = vunpack.c.l.b16 %v2599
  %v2765 = vunpack.c.l.b16 %v2600
  %v2766 = vunpack.c.l.b16 %v2601
  %v2767 = vunpack.c.l.b16 %v2602
  %v2768 = vunpack.c.l.b16 %v2603
  %v2769 = vpack.c.b16 %v2763, %v2762
  %v2770 = vpack.c.b16 %v2765, %v2764
  %v2771 = vpack.c.b16 %v2767, %v2766
  %v2772 = vpack.c.b16 %v2768, %v2768
  %2773 = vrot.lane.b32.xlu0 %v2140, 64
  %v2774 = vpop.permute.xlu0 %2773
  %2775 = vrot.lane.b32.xlu0 %v2141, 64
  %v2776 = vpop.permute.xlu0 %2775
  %2777 = vrot.lane.b32.xlu0 %v2142, 64
  %v2778 = vpop.permute.xlu0 %2777
  %2779 = vrot.lane.b32.xlu0 %v2143, 64
  %v2780 = vpop.permute.xlu0 %2779
  %v2785 = vsel %vm560, %v2769, 0
  %v2788 = vsel %vm560, %v2770, 0
  %v2791 = vsel %vm560, %v2771, 0
  %v2794 = vsel %vm560, %v2772, 0
  %v2797 = vsel %vm76, %v2780, 0
  %2799 = vmatpush.bf16.msra.mxu0 0
  %2800 = vmatpush.bf16.msra.mxu0 0
  %2801 = vmatpush.bf16.msra.mxu0 0
  %2802 = vmatpush.bf16.msra.mxu0 0
  %2803 = vmatpush.bf16.msra.mxu0 %v2797
  %2804 = vmatpush.bf16.msra.mxu0 %v2778
  %2805 = vmatpush.bf16.msra.mxu0 %v2776
  %2806 = vmatpush.bf16.msra.mxu0 %v2774
  %2807 = vmatmul.bf16.gmra.mxu0 %v2785
  %v2808 = vpop.f32.mrf.mxu0
  %v2809 = vadd.f32 0.0, %v2808
  %v2810 = vpop.f32.mrf.mxu0
  %v2811 = vadd.f32 0.0, %v2810
  %2812 = vmatmul.bf16.gmra.mxu0 %v2788
  %v2813 = vpop.f32.mrf.mxu0
  %v2814 = vadd.f32 0.0, %v2813
  %v2815 = vpop.f32.mrf.mxu0
  %v2816 = vadd.f32 0.0, %v2815
  %2817 = vmatmul.bf16.gmra.mxu0 %v2791
  %v2818 = vpop.f32.mrf.mxu0
  %v2819 = vadd.f32 0.0, %v2818
  %v2820 = vpop.f32.mrf.mxu0
  %v2821 = vadd.f32 0.0, %v2820
  %2822 = vmatmul.bf16.gmra.mxu0 %v2794
  %v2823 = vpop.f32.mrf.mxu0
  %v2824 = vadd.f32 0.0, %v2823
  %v2825 = vpop.f32.mrf.mxu0
  %2826 = vdwg.mxu0
  %v2834 = vunpack.c.l.b16 %v2604
  %v2835 = vunpack.c.l.b16 %v2605
  %v2836 = vunpack.c.l.b16 %v2606
  %v2837 = vunpack.c.l.b16 %v2607
  %v2838 = vunpack.c.l.b16 %v2608
  %v2839 = vunpack.c.l.b16 %v2609
  %v2840 = vunpack.c.l.b16 %v2610
  %v2841 = vpack.c.b16 %v2835, %v2834
  %v2842 = vpack.c.b16 %v2837, %v2836
  %v2843 = vpack.c.b16 %v2839, %v2838
  %v2844 = vpack.c.b16 %v2840, %v2840
  %2845 = vrot.lane.b32.xlu0 %v2211, 64
  %v2846 = vpop.permute.xlu0 %2845
  %2847 = vrot.lane.b32.xlu0 %v2212, 64
  %v2848 = vpop.permute.xlu0 %2847
  %2849 = vrot.lane.b32.xlu0 %v2213, 64
  %v2850 = vpop.permute.xlu0 %2849
  %2851 = vrot.lane.b32.xlu0 %v2214, 64
  %v2852 = vpop.permute.xlu0 %2851
  %v2857 = vsel %vm560, %v2841, 0
  %v2860 = vsel %vm560, %v2842, 0
  %v2863 = vsel %vm560, %v2843, 0
  %v2866 = vsel %vm560, %v2844, 0
  %v2869 = vsel %vm76, %v2852, 0
  %2871 = vmatpush.bf16.msra.mxu0 0
  %2872 = vmatpush.bf16.msra.mxu0 0
  %2873 = vmatpush.bf16.msra.mxu0 0
  %2874 = vmatpush.bf16.msra.mxu0 0
  %2875 = vmatpush.bf16.msra.mxu0 %v2869
  %2876 = vmatpush.bf16.msra.mxu0 %v2850
  %2877 = vmatpush.bf16.msra.mxu0 %v2848
  %2878 = vmatpush.bf16.msra.mxu0 %v2846
  %2879 = vmatmul.bf16.gmra.mxu0 %v2857
  %v2880 = vpop.f32.mrf.mxu0
  %v2881 = vadd.f32 0.0, %v2880
  %v2882 = vpop.f32.mrf.mxu0
  %v2883 = vadd.f32 0.0, %v2882
  %2884 = vmatmul.bf16.gmra.mxu0 %v2860
  %v2885 = vpop.f32.mrf.mxu0
  %v2886 = vadd.f32 0.0, %v2885
  %v2887 = vpop.f32.mrf.mxu0
  %v2888 = vadd.f32 0.0, %v2887
  %2889 = vmatmul.bf16.gmra.mxu0 %v2863
  %v2890 = vpop.f32.mrf.mxu0
  %v2891 = vadd.f32 0.0, %v2890
  %v2892 = vpop.f32.mrf.mxu0
  %v2893 = vadd.f32 0.0, %v2892
  %2894 = vmatmul.bf16.gmra.mxu0 %v2866
  %v2895 = vpop.f32.mrf.mxu0
  %v2896 = vadd.f32 0.0, %v2895
  %v2897 = vpop.f32.mrf.mxu0
  %2898 = vdwg.mxu0
  %2906 = vrot.lane.b32.xlu0 %v2737, 8
  %v2907 = vpop.permute.xlu0 %2906
  %2908 = vrot.lane.b32.xlu0 %v2739, 8
  %v2909 = vpop.permute.xlu0 %2908
  %2910 = vrot.lane.b32.xlu0 %v2742, 8
  %v2911 = vpop.permute.xlu0 %2910
  %2912 = vrot.lane.b32.xlu0 %v2744, 8
  %v2913 = vpop.permute.xlu0 %2912
  %2914 = vrot.lane.b32.xlu0 %v2747, 8
  %v2915 = vpop.permute.xlu0 %2914
  %2916 = vrot.lane.b32.xlu0 %v2749, 8
  %v2917 = vpop.permute.xlu0 %2916
  %2918 = vrot.lane.b32.xlu0 %v2752, 8
  %v2919 = vpop.permute.xlu0 %2918
  %2934 = vrot.lane.b32.xlu0 %v2809, 16
  %v2935 = vpop.permute.xlu0 %2934
  %2936 = vrot.lane.b32.xlu0 %v2811, 16
  %v2937 = vpop.permute.xlu0 %2936
  %2938 = vrot.lane.b32.xlu0 %v2814, 16
  %v2939 = vpop.permute.xlu0 %2938
  %2940 = vrot.lane.b32.xlu0 %v2816, 16
  %v2941 = vpop.permute.xlu0 %2940
  %2942 = vrot.lane.b32.xlu0 %v2819, 16
  %v2943 = vpop.permute.xlu0 %2942
  %2944 = vrot.lane.b32.xlu0 %v2821, 16
  %v2945 = vpop.permute.xlu0 %2944
  %2946 = vrot.lane.b32.xlu0 %v2824, 16
  %v2947 = vpop.permute.xlu0 %2946
  %2962 = vrot.lane.b32.xlu0 %v2881, 24
  %v2963 = vpop.permute.xlu0 %2962
  %2964 = vrot.lane.b32.xlu0 %v2883, 24
  %v2965 = vpop.permute.xlu0 %2964
  %2966 = vrot.lane.b32.xlu0 %v2886, 24
  %v2967 = vpop.permute.xlu0 %2966
  %2968 = vrot.lane.b32.xlu0 %v2888, 24
  %v2969 = vpop.permute.xlu0 %2968
  %2970 = vrot.lane.b32.xlu0 %v2891, 24
  %v2971 = vpop.permute.xlu0 %2970
  %2972 = vrot.lane.b32.xlu0 %v2893, 24
  %v2973 = vpop.permute.xlu0 %2972
  %2974 = vrot.lane.b32.xlu0 %v2896, 24
  %v2975 = vpop.permute.xlu0 %2974
  %v2983 = vsel %vm294, %v2665, %v2907
  %v2984 = vsel %vm294, %v2667, %v2909
  %v2985 = vsel %vm294, %v2670, %v2911
  %v2986 = vsel %vm294, %v2672, %v2913
  %v2987 = vsel %vm294, %v2675, %v2915
  %v2988 = vsel %vm294, %v2677, %v2917
  %v2989 = vsel %vm294, %v2680, %v2919
  %v2990 = vsel %vm1277, %v2983, %v2935
  %v2991 = vsel %vm1277, %v2984, %v2937
  %v2992 = vsel %vm1277, %v2985, %v2939
  %v2993 = vsel %vm1277, %v2986, %v2941
  %v2994 = vsel %vm1277, %v2987, %v2943
  %v2995 = vsel %vm1277, %v2988, %v2945
  %v2996 = vsel %vm1277, %v2989, %v2947
  %v2997 = vsel %vm1285, %v2990, %v2963
  %v2998 = vsel %vm1285, %v2991, %v2965
  %v2999 = vsel %vm1285, %v2992, %v2967
  %v3000 = vsel %vm1285, %v2993, %v2969
  %v3001 = vsel %vm1285, %v2994, %v2971
  %v3002 = vsel %vm1285, %v2995, %v2973
  %v3003 = vsel %vm1285, %v2996, %v2975
  %v3004 = vpack.c.bf16 %v2998, %v2997
  %v3005 = vpack.c.bf16 %v3000, %v2999
  %v3006 = vpack.c.bf16 %v3002, %v3001
  %v3007 = vpack.c.bf16 %v3003, %v3003
  %v3008 = vperm.slane %v153, 1
  %v3013 = vunpack.c.l.b16 %v108
  %v3014 = vunpack.c.l.b16 %v109
  %v3015 = vunpack.c.l.b16 %v110
  %v3016 = vunpack.c.l.b16 %v111
  %v3017 = vpack.c.b16 %v3014, %v3013
  %v3018 = vpack.c.b16 %v3016, %v3015
  %v3022 = vsel %vm178, %v3004, 0
  %v3025 = vsel %vm178, %v3005, 0
  %v3028 = vsel %vm178, %v3006, 0
  %v3031 = vsel %vm178, %v3007, 0
  %3033 = vmatpush.bf16.msra.mxu0 0
  %3034 = vmatpush.bf16.msra.mxu0 0
  %3035 = vmatpush.bf16.msra.mxu0 0
  %3036 = vmatpush.bf16.msra.mxu0 0
  %3037 = vmatpush.bf16.msra.mxu0 0
  %3038 = vmatpush.bf16.msra.mxu0 0
  %3039 = vmatpush.bf16.msra.mxu0 %v3018
  %3040 = vmatpush.bf16.msra.mxu0 %v3017
  %3041 = vmatmul.bf16.gmra.mxu0 %v3022
  %v3042 = vpop.f32.mrf.mxu0
  %v3043 = vadd.f32 %v3008, %v3042
  %v3044 = vpop.f32.mrf.mxu0
  %v3045 = vadd.f32 %v3008, %v3044
  %3046 = vmatmul.bf16.gmra.mxu0 %v3025
  %v3047 = vpop.f32.mrf.mxu0
  %v3048 = vadd.f32 %v3008, %v3047
  %v3049 = vpop.f32.mrf.mxu0
  %v3050 = vadd.f32 %v3008, %v3049
  %3051 = vmatmul.bf16.gmra.mxu0 %v3028
  %v3052 = vpop.f32.mrf.mxu0
  %v3053 = vadd.f32 %v3008, %v3052
  %v3054 = vpop.f32.mrf.mxu0
  %v3055 = vadd.f32 %v3008, %v3054
  %3056 = vmatmul.bf16.gmra.mxu0 %v3031
  %v3057 = vpop.f32.mrf.mxu0
  %v3058 = vadd.f32 %v3008, %v3057
  %v3059 = vpop.f32.mrf.mxu0
  %3060 = vdwg.mxu0
  %v3061 = vadd.f32 %v1871, %v3043
  %v3062 = vadd.f32 %v1872, %v3045
  %v3063 = vadd.f32 %v1873, %v3048
  %v3064 = vadd.f32 %v1874, %v3050
  %v3065 = vadd.f32 %v1875, %v3053
  %v3066 = vadd.f32 %v1876, %v3055
  %v3067 = vadd.f32 %v1877, %v3058
  %v3068 = vsel %vm178, %v3061, 0.0
  %3069 = vadd.xlane.f32.xlu0 %v3068
  %v3070 = vpop.xlane.xlu0 %3069
  %v3071 = vsel %vm178, %v3062, 0.0
  %3072 = vadd.xlane.f32.xlu0 %v3071
  %v3073 = vpop.xlane.xlu0 %3072
  %v3074 = vsel %vm178, %v3063, 0.0
  %3075 = vadd.xlane.f32.xlu0 %v3074
  %v3076 = vpop.xlane.xlu0 %3075
  %v3077 = vsel %vm178, %v3064, 0.0
  %3078 = vadd.xlane.f32.xlu0 %v3077
  %v3079 = vpop.xlane.xlu0 %3078
  %v3080 = vsel %vm178, %v3065, 0.0
  %3081 = vadd.xlane.f32.xlu0 %v3080
  %v3082 = vpop.xlane.xlu0 %3081
  %v3083 = vsel %vm178, %v3066, 0.0
  %3084 = vadd.xlane.f32.xlu0 %v3083
  %v3085 = vpop.xlane.xlu0 %3084
  %v3086 = vsel %vm1375, %v3067, 0.0
  %3087 = vadd.xlane.f32.xlu0 %v3086
  %v3088 = vpop.xlane.xlu0 %3087
  %v3089 = vmul.f32 %v3070, 0.03125
  %v3090 = vmul.f32 %v3073, 0.03125
  %v3091 = vmul.f32 %v3076, 0.03125
  %v3092 = vmul.f32 %v3079, 0.03125
  %v3093 = vmul.f32 %v3082, 0.03125
  %v3094 = vmul.f32 %v3085, 0.03125
  %v3095 = vmul.f32 %v3088, 0.03125
  %v3096 = vmul.f32 %v3061, %v3061
  %v3097 = vmul.f32 %v3062, %v3062
  %v3098 = vmul.f32 %v3063, %v3063
  %v3099 = vmul.f32 %v3064, %v3064
  %v3100 = vmul.f32 %v3065, %v3065
  %v3101 = vmul.f32 %v3066, %v3066
  %v3102 = vmul.f32 %v3067, %v3067
  %v3103 = vsel %vm178, %v3096, 0.0
  %3104 = vadd.xlane.f32.xlu0 %v3103
  %v3105 = vpop.xlane.xlu0 %3104
  %v3106 = vsel %vm178, %v3097, 0.0
  %3107 = vadd.xlane.f32.xlu0 %v3106
  %v3108 = vpop.xlane.xlu0 %3107
  %v3109 = vsel %vm178, %v3098, 0.0
  %3110 = vadd.xlane.f32.xlu0 %v3109
  %v3111 = vpop.xlane.xlu0 %3110
  %v3112 = vsel %vm178, %v3099, 0.0
  %3113 = vadd.xlane.f32.xlu0 %v3112
  %v3114 = vpop.xlane.xlu0 %3113
  %v3115 = vsel %vm178, %v3100, 0.0
  %3116 = vadd.xlane.f32.xlu0 %v3115
  %v3117 = vpop.xlane.xlu0 %3116
  %v3118 = vsel %vm178, %v3101, 0.0
  %3119 = vadd.xlane.f32.xlu0 %v3118
  %v3120 = vpop.xlane.xlu0 %3119
  %v3121 = vsel %vm1375, %v3102, 0.0
  %3122 = vadd.xlane.f32.xlu0 %v3121
  %v3123 = vpop.xlane.xlu0 %3122
  %v3124 = vmul.f32 %v3105, 0.03125
  %v3125 = vmul.f32 %v3108, 0.03125
  %v3126 = vmul.f32 %v3111, 0.03125
  %v3127 = vmul.f32 %v3114, 0.03125
  %v3128 = vmul.f32 %v3117, 0.03125
  %v3129 = vmul.f32 %v3120, 0.03125
  %v3130 = vmul.f32 %v3123, 0.03125
  %v3131 = vmul.f32 %v3089, %v3089
  %v3132 = vmul.f32 %v3090, %v3090
  %v3133 = vmul.f32 %v3091, %v3091
  %v3134 = vmul.f32 %v3092, %v3092
  %v3135 = vmul.f32 %v3093, %v3093
  %v3136 = vmul.f32 %v3094, %v3094
  %v3137 = vmul.f32 %v3095, %v3095
  %v3138 = vsub.f32 %v3124, %v3131
  %v3139 = vsub.f32 %v3125, %v3132
  %v3140 = vsub.f32 %v3126, %v3133
  %v3141 = vsub.f32 %v3127, %v3134
  %v3142 = vsub.f32 %v3128, %v3135
  %v3143 = vsub.f32 %v3129, %v3136
  %v3144 = vsub.f32 %v3130, %v3137
  %v3145 = vsub.f32 %v3061, %v3089
  %v3146 = vsub.f32 %v3062, %v3090
  %v3147 = vsub.f32 %v3063, %v3091
  %v3148 = vsub.f32 %v3064, %v3092
  %v3149 = vsub.f32 %v3065, %v3093
  %v3150 = vsub.f32 %v3066, %v3094
  %v3151 = vsub.f32 %v3067, %v3095
  %v3152 = vadd.f32 %v3138, 1e-05
  %v3153 = vadd.f32 %v3139, 1e-05
  %v3154 = vadd.f32 %v3140, 1e-05
  %v3155 = vadd.f32 %v3141, 1e-05
  %v3156 = vadd.f32 %v3142, 1e-05
  %v3157 = vadd.f32 %v3143, 1e-05
  %v3158 = vadd.f32 %v3144, 1e-05
  %v3159 = vrsqrt.pop %v3152
  %v3160 = vmul.f32 %v3159, %v3152
  %v3161 = vmul.f32 %v3160, %v3159
  %v3162 = vmul.f32 0.5, %v3161
  %v3163 = vsub.f32 1.5, %v3162
  %v3164 = vmul.f32 %v3159, %v3163
  %vm3165 = vweird.f32 %v3152
  %vm3166 = vweird.f32 %v3159
  %vm3167 = vmor %vm3165, %vm3166
  %v3168 = vsel %vm3167, %v3159, %v3164
  %v3169 = vrsqrt.pop %v3153
  %v3170 = vmul.f32 %v3169, %v3153
  %v3171 = vmul.f32 %v3170, %v3169
  %v3172 = vmul.f32 0.5, %v3171
  %v3173 = vsub.f32 1.5, %v3172
  %v3174 = vmul.f32 %v3169, %v3173
  %vm3175 = vweird.f32 %v3153
  %vm3176 = vweird.f32 %v3169
  %vm3177 = vmor %vm3175, %vm3176
  %v3178 = vsel %vm3177, %v3169, %v3174
  %v3179 = vrsqrt.pop %v3154
  %v3180 = vmul.f32 %v3179, %v3154
  %v3181 = vmul.f32 %v3180, %v3179
  %v3182 = vmul.f32 0.5, %v3181
  %v3183 = vsub.f32 1.5, %v3182
  %v3184 = vmul.f32 %v3179, %v3183
  %vm3185 = vweird.f32 %v3154
  %vm3186 = vweird.f32 %v3179
  %vm3187 = vmor %vm3185, %vm3186
  %v3188 = vsel %vm3187, %v3179, %v3184
  %v3189 = vrsqrt.pop %v3155
  %v3190 = vmul.f32 %v3189, %v3155
  %v3191 = vmul.f32 %v3190, %v3189
  %v3192 = vmul.f32 0.5, %v3191
  %v3193 = vsub.f32 1.5, %v3192
  %v3194 = vmul.f32 %v3189, %v3193
  %vm3195 = vweird.f32 %v3155
  %vm3196 = vweird.f32 %v3189
  %vm3197 = vmor %vm3195, %vm3196
  %v3198 = vsel %vm3197, %v3189, %v3194
  %v3199 = vrsqrt.pop %v3156
  %v3200 = vmul.f32 %v3199, %v3156
  %v3201 = vmul.f32 %v3200, %v3199
  %v3202 = vmul.f32 0.5, %v3201
  %v3203 = vsub.f32 1.5, %v3202
  %v3204 = vmul.f32 %v3199, %v3203
  %vm3205 = vweird.f32 %v3156
  %vm3206 = vweird.f32 %v3199
  %vm3207 = vmor %vm3205, %vm3206
  %v3208 = vsel %vm3207, %v3199, %v3204
  %v3209 = vrsqrt.pop %v3157
  %v3210 = vmul.f32 %v3209, %v3157
  %v3211 = vmul.f32 %v3210, %v3209
  %v3212 = vmul.f32 0.5, %v3211
  %v3213 = vsub.f32 1.5, %v3212
  %v3214 = vmul.f32 %v3209, %v3213
  %vm3215 = vweird.f32 %v3157
  %vm3216 = vweird.f32 %v3209
  %vm3217 = vmor %vm3215, %vm3216
  %v3218 = vsel %vm3217, %v3209, %v3214
  %v3219 = vrsqrt.pop %v3158
  %v3220 = vmul.f32 %v3219, %v3158
  %v3221 = vmul.f32 %v3220, %v3219
  %v3222 = vmul.f32 0.5, %v3221
  %v3223 = vsub.f32 1.5, %v3222
  %v3224 = vmul.f32 %v3219, %v3223
  %vm3225 = vweird.f32 %v3158
  %vm3226 = vweird.f32 %v3219
  %vm3227 = vmor %vm3225, %vm3226
  %v3228 = vsel %vm3227, %v3219, %v3224
  %v3229 = vmul.f32 %v3145, %v3168
  %v3230 = vmul.f32 %v3146, %v3178
  %v3231 = vmul.f32 %v3147, %v3188
  %v3232 = vmul.f32 %v3148, %v3198
  %v3233 = vmul.f32 %v3149, %v3208
  %v3234 = vmul.f32 %v3150, %v3218
  %v3235 = vmul.f32 %v3151, %v3228
  %v3236 = vperm.slane %v153, 4
  %v3237 = vmul.f32 %v3229, %v3236
  %v3238 = vmul.f32 %v3230, %v3236
  %v3239 = vmul.f32 %v3231, %v3236
  %v3240 = vmul.f32 %v3232, %v3236
  %v3241 = vmul.f32 %v3233, %v3236
  %v3242 = vmul.f32 %v3234, %v3236
  %v3243 = vmul.f32 %v3235, %v3236
  %v3244 = vperm.slane %v153, 5
  %v3245 = vadd.f32 %v3237, %v3244
  %v3246 = vadd.f32 %v3238, %v3244
  %v3247 = vadd.f32 %v3239, %v3244
  %v3248 = vadd.f32 %v3240, %v3244
  %v3249 = vadd.f32 %v3241, %v3244
  %v3250 = vadd.f32 %v3242, %v3244
  %v3251 = vadd.f32 %v3243, %v3244
  %v3252 = vpack.c.bf16 %v3246, %v3245
  %v3253 = vpack.c.bf16 %v3248, %v3247
  %v3254 = vpack.c.bf16 %v3250, %v3249
  %v3255 = vpack.c.bf16 %v3251, %v3251
  %v3256 = vperm.slane %v153, 2
  %v3261 = vunpack.c.l.b16 %v116
  %v3262 = vunpack.c.l.b16 %v117
  %v3263 = vunpack.c.l.b16 %v118
  %v3264 = vunpack.c.l.b16 %v119
  %v3265 = vpack.c.b16 %v3262, %v3261
  %v3266 = vpack.c.b16 %v3264, %v3263
  %v3270 = vsel %vm178, %v3252, 0
  %v3273 = vsel %vm178, %v3253, 0
  %v3276 = vsel %vm178, %v3254, 0
  %v3279 = vsel %vm178, %v3255, 0
  %3281 = vmatpush.bf16.msra.mxu0 0
  %3282 = vmatpush.bf16.msra.mxu0 0
  %3283 = vmatpush.bf16.msra.mxu0 0
  %3284 = vmatpush.bf16.msra.mxu0 0
  %3285 = vmatpush.bf16.msra.mxu0 0
  %3286 = vmatpush.bf16.msra.mxu0 0
  %3287 = vmatpush.bf16.msra.mxu0 %v3266
  %3288 = vmatpush.bf16.msra.mxu0 %v3265
  %3289 = vmatmul.bf16.gmra.mxu0 %v3270
  %v3290 = vpop.f32.mrf.mxu0
  %v3291 = vadd.f32 %v3256, %v3290
  %v3292 = vpop.f32.mrf.mxu0
  %v3293 = vadd.f32 %v3256, %v3292
  %3294 = vmatmul.bf16.gmra.mxu0 %v3273
  %v3295 = vpop.f32.mrf.mxu0
  %v3296 = vadd.f32 %v3256, %v3295
  %v3297 = vpop.f32.mrf.mxu0
  %v3298 = vadd.f32 %v3256, %v3297
  %3299 = vmatmul.bf16.gmra.mxu0 %v3276
  %v3300 = vpop.f32.mrf.mxu0
  %v3301 = vadd.f32 %v3256, %v3300
  %v3302 = vpop.f32.mrf.mxu0
  %v3303 = vadd.f32 %v3256, %v3302
  %3304 = vmatmul.bf16.gmra.mxu0 %v3279
  %v3305 = vpop.f32.mrf.mxu0
  %v3306 = vadd.f32 %v3256, %v3305
  %v3307 = vpop.f32.mrf.mxu0
  %3308 = vdwg.mxu0
  %v3309 = vmax.f32 %v3291, 0.0
  %v3310 = vmax.f32 %v3293, 0.0
  %v3311 = vmax.f32 %v3296, 0.0
  %v3312 = vmax.f32 %v3298, 0.0
  %v3313 = vmax.f32 %v3301, 0.0
  %v3314 = vmax.f32 %v3303, 0.0
  %v3315 = vmax.f32 %v3306, 0.0
  %v3316 = vpack.c.bf16 %v3310, %v3309
  %v3317 = vpack.c.bf16 %v3312, %v3311
  %v3318 = vpack.c.bf16 %v3314, %v3313
  %v3319 = vpack.c.bf16 %v3315, %v3315
  %v3320 = vperm.slane %v153, 3
  %v3337 = vunpack.c.l.b16 %v136
  %v3338 = vunpack.c.l.b16 %v137
  %v3339 = vunpack.c.l.b16 %v138
  %v3340 = vunpack.c.l.b16 %v139
  %v3341 = vunpack.c.l.b16 %v140
  %v3342 = vunpack.c.l.b16 %v141
  %v3343 = vunpack.c.l.b16 %v142
  %v3344 = vunpack.c.l.b16 %v143
  %v3345 = vunpack.c.l.b16 %v144
  %v3346 = vunpack.c.l.b16 %v145
  %v3347 = vunpack.c.l.b16 %v146
  %v3348 = vunpack.c.l.b16 %v147
  %v3349 = vunpack.c.l.b16 %v148
  %v3350 = vunpack.c.l.b16 %v149
  %v3351 = vunpack.c.l.b16 %v150
  %v3352 = vunpack.c.l.b16 %v151
  %v3353 = vpack.c.b16 %v3338, %v3337
  %v3354 = vpack.c.b16 %v3340, %v3339
  %v3355 = vpack.c.b16 %v3342, %v3341
  %v3356 = vpack.c.b16 %v3344, %v3343
  %v3357 = vpack.c.b16 %v3346, %v3345
  %v3358 = vpack.c.b16 %v3348, %v3347
  %v3359 = vpack.c.b16 %v3350, %v3349
  %v3360 = vpack.c.b16 %v3352, %v3351
  %3369 = vmatpush.bf16.msra.mxu0 %v3360
  %3370 = vmatpush.bf16.msra.mxu0 %v3359
  %3371 = vmatpush.bf16.msra.mxu0 %v3358
  %3372 = vmatpush.bf16.msra.mxu0 %v3357
  %3373 = vmatpush.bf16.msra.mxu0 %v3356
  %3374 = vmatpush.bf16.msra.mxu0 %v3355
  %3375 = vmatpush.bf16.msra.mxu0 %v3354
  %3376 = vmatpush.bf16.msra.mxu0 %v3353
  %3377 = vmatmul.bf16.gmra.mxu0 %v3316
  %v3378 = vpop.f32.mrf.mxu0
  %v3379 = vadd.f32 %v3320, %v3378
  %v3380 = vpop.f32.mrf.mxu0
  %v3381 = vadd.f32 %v3320, %v3380
  %3382 = vmatmul.bf16.gmra.mxu0 %v3317
  %v3383 = vpop.f32.mrf.mxu0
  %v3384 = vadd.f32 %v3320, %v3383
  %v3385 = vpop.f32.mrf.mxu0
  %v3386 = vadd.f32 %v3320, %v3385
  %3387 = vmatmul.bf16.gmra.mxu0 %v3318
  %v3388 = vpop.f32.mrf.mxu0
  %v3389 = vadd.f32 %v3320, %v3388
  %v3390 = vpop.f32.mrf.mxu0
  %v3391 = vadd.f32 %v3320, %v3390
  %3392 = vmatmul.bf16.gmra.mxu0 %v3319
  %v3393 = vpop.f32.mrf.mxu0
  %v3394 = vadd.f32 %v3320, %v3393
  %v3395 = vpop.f32.mrf.mxu0
  %3396 = vdwg.mxu0
  %v3397 = vadd.f32 %v3245, %v3379
  %v3398 = vadd.f32 %v3246, %v3381
  %v3399 = vadd.f32 %v3247, %v3384
  %v3400 = vadd.f32 %v3248, %v3386
  %v3401 = vadd.f32 %v3249, %v3389
  %v3402 = vadd.f32 %v3250, %v3391
  %v3403 = vadd.f32 %v3251, %v3394
  %v3404 = vsel %vm178, %v3397, 0.0
  %3405 = vadd.xlane.f32.xlu0 %v3404
  %v3406 = vpop.xlane.xlu0 %3405
  %v3407 = vsel %vm178, %v3398, 0.0
  %3408 = vadd.xlane.f32.xlu0 %v3407
  %v3409 = vpop.xlane.xlu0 %3408
  %v3410 = vsel %vm178, %v3399, 0.0
  %3411 = vadd.xlane.f32.xlu0 %v3410
  %v3412 = vpop.xlane.xlu0 %3411
  %v3413 = vsel %vm178, %v3400, 0.0
  %3414 = vadd.xlane.f32.xlu0 %v3413
  %v3415 = vpop.xlane.xlu0 %3414
  %v3416 = vsel %vm178, %v3401, 0.0
  %3417 = vadd.xlane.f32.xlu0 %v3416
  %v3418 = vpop.xlane.xlu0 %3417
  %v3419 = vsel %vm178, %v3402, 0.0
  %3420 = vadd.xlane.f32.xlu0 %v3419
  %v3421 = vpop.xlane.xlu0 %3420
  %v3422 = vsel %vm1375, %v3403, 0.0
  %3423 = vadd.xlane.f32.xlu0 %v3422
  %v3424 = vpop.xlane.xlu0 %3423
  %v3425 = vmul.f32 %v3406, 0.03125
  %v3426 = vmul.f32 %v3409, 0.03125
  %v3427 = vmul.f32 %v3412, 0.03125
  %v3428 = vmul.f32 %v3415, 0.03125
  %v3429 = vmul.f32 %v3418, 0.03125
  %v3430 = vmul.f32 %v3421, 0.03125
  %v3431 = vmul.f32 %v3424, 0.03125
  %v3432 = vmul.f32 %v3397, %v3397
  %v3433 = vmul.f32 %v3398, %v3398
  %v3434 = vmul.f32 %v3399, %v3399
  %v3435 = vmul.f32 %v3400, %v3400
  %v3436 = vmul.f32 %v3401, %v3401
  %v3437 = vmul.f32 %v3402, %v3402
  %v3438 = vmul.f32 %v3403, %v3403
  %v3439 = vsel %vm178, %v3432, 0.0
  %3440 = vadd.xlane.f32.xlu0 %v3439
  %v3441 = vpop.xlane.xlu0 %3440
  %v3442 = vsel %vm178, %v3433, 0.0
  %3443 = vadd.xlane.f32.xlu0 %v3442
  %v3444 = vpop.xlane.xlu0 %3443
  %v3445 = vsel %vm178, %v3434, 0.0
  %3446 = vadd.xlane.f32.xlu0 %v3445
  %v3447 = vpop.xlane.xlu0 %3446
  %v3448 = vsel %vm178, %v3435, 0.0
  %3449 = vadd.xlane.f32.xlu0 %v3448
  %v3450 = vpop.xlane.xlu0 %3449
  %v3451 = vsel %vm178, %v3436, 0.0
  %3452 = vadd.xlane.f32.xlu0 %v3451
  %v3453 = vpop.xlane.xlu0 %3452
  %v3454 = vsel %vm178, %v3437, 0.0
  %3455 = vadd.xlane.f32.xlu0 %v3454
  %v3456 = vpop.xlane.xlu0 %3455
  %v3457 = vsel %vm1375, %v3438, 0.0
  %3458 = vadd.xlane.f32.xlu0 %v3457
  %v3459 = vpop.xlane.xlu0 %3458
  %v3460 = vmul.f32 %v3441, 0.03125
  %v3461 = vmul.f32 %v3444, 0.03125
  %v3462 = vmul.f32 %v3447, 0.03125
  %v3463 = vmul.f32 %v3450, 0.03125
  %v3464 = vmul.f32 %v3453, 0.03125
  %v3465 = vmul.f32 %v3456, 0.03125
  %v3466 = vmul.f32 %v3459, 0.03125
  %v3467 = vmul.f32 %v3425, %v3425
  %v3468 = vmul.f32 %v3426, %v3426
  %v3469 = vmul.f32 %v3427, %v3427
  %v3470 = vmul.f32 %v3428, %v3428
  %v3471 = vmul.f32 %v3429, %v3429
  %v3472 = vmul.f32 %v3430, %v3430
  %v3473 = vmul.f32 %v3431, %v3431
  %v3474 = vsub.f32 %v3460, %v3467
  %v3475 = vsub.f32 %v3461, %v3468
  %v3476 = vsub.f32 %v3462, %v3469
  %v3477 = vsub.f32 %v3463, %v3470
  %v3478 = vsub.f32 %v3464, %v3471
  %v3479 = vsub.f32 %v3465, %v3472
  %v3480 = vsub.f32 %v3466, %v3473
  %v3481 = vsub.f32 %v3397, %v3425
  %v3482 = vsub.f32 %v3398, %v3426
  %v3483 = vsub.f32 %v3399, %v3427
  %v3484 = vsub.f32 %v3400, %v3428
  %v3485 = vsub.f32 %v3401, %v3429
  %v3486 = vsub.f32 %v3402, %v3430
  %v3487 = vsub.f32 %v3403, %v3431
  %v3488 = vadd.f32 %v3474, 1e-05
  %v3489 = vadd.f32 %v3475, 1e-05
  %v3490 = vadd.f32 %v3476, 1e-05
  %v3491 = vadd.f32 %v3477, 1e-05
  %v3492 = vadd.f32 %v3478, 1e-05
  %v3493 = vadd.f32 %v3479, 1e-05
  %v3494 = vadd.f32 %v3480, 1e-05
  %v3495 = vrsqrt.pop %v3488
  %v3496 = vmul.f32 %v3495, %v3488
  %v3497 = vmul.f32 %v3496, %v3495
  %v3498 = vmul.f32 0.5, %v3497
  %v3499 = vsub.f32 1.5, %v3498
  %v3500 = vmul.f32 %v3495, %v3499
  %vm3501 = vweird.f32 %v3488
  %vm3502 = vweird.f32 %v3495
  %vm3503 = vmor %vm3501, %vm3502
  %v3504 = vsel %vm3503, %v3495, %v3500
  %v3505 = vrsqrt.pop %v3489
  %v3506 = vmul.f32 %v3505, %v3489
  %v3507 = vmul.f32 %v3506, %v3505
  %v3508 = vmul.f32 0.5, %v3507
  %v3509 = vsub.f32 1.5, %v3508
  %v3510 = vmul.f32 %v3505, %v3509
  %vm3511 = vweird.f32 %v3489
  %vm3512 = vweird.f32 %v3505
  %vm3513 = vmor %vm3511, %vm3512
  %v3514 = vsel %vm3513, %v3505, %v3510
  %v3515 = vrsqrt.pop %v3490
  %v3516 = vmul.f32 %v3515, %v3490
  %v3517 = vmul.f32 %v3516, %v3515
  %v3518 = vmul.f32 0.5, %v3517
  %v3519 = vsub.f32 1.5, %v3518
  %v3520 = vmul.f32 %v3515, %v3519
  %vm3521 = vweird.f32 %v3490
  %vm3522 = vweird.f32 %v3515
  %vm3523 = vmor %vm3521, %vm3522
  %v3524 = vsel %vm3523, %v3515, %v3520
  %v3525 = vrsqrt.pop %v3491
  %v3526 = vmul.f32 %v3525, %v3491
  %v3527 = vmul.f32 %v3526, %v3525
  %v3528 = vmul.f32 0.5, %v3527
  %v3529 = vsub.f32 1.5, %v3528
  %v3530 = vmul.f32 %v3525, %v3529
  %vm3531 = vweird.f32 %v3491
  %vm3532 = vweird.f32 %v3525
  %vm3533 = vmor %vm3531, %vm3532
  %v3534 = vsel %vm3533, %v3525, %v3530
  %v3535 = vrsqrt.pop %v3492
  %v3536 = vmul.f32 %v3535, %v3492
  %v3537 = vmul.f32 %v3536, %v3535
  %v3538 = vmul.f32 0.5, %v3537
  %v3539 = vsub.f32 1.5, %v3538
  %v3540 = vmul.f32 %v3535, %v3539
  %vm3541 = vweird.f32 %v3492
  %vm3542 = vweird.f32 %v3535
  %vm3543 = vmor %vm3541, %vm3542
  %v3544 = vsel %vm3543, %v3535, %v3540
  %v3545 = vrsqrt.pop %v3493
  %v3546 = vmul.f32 %v3545, %v3493
  %v3547 = vmul.f32 %v3546, %v3545
  %v3548 = vmul.f32 0.5, %v3547
  %v3549 = vsub.f32 1.5, %v3548
  %v3550 = vmul.f32 %v3545, %v3549
  %vm3551 = vweird.f32 %v3493
  %vm3552 = vweird.f32 %v3545
  %vm3553 = vmor %vm3551, %vm3552
  %v3554 = vsel %vm3553, %v3545, %v3550
  %v3555 = vrsqrt.pop %v3494
  %v3556 = vmul.f32 %v3555, %v3494
  %v3557 = vmul.f32 %v3556, %v3555
  %v3558 = vmul.f32 0.5, %v3557
  %v3559 = vsub.f32 1.5, %v3558
  %v3560 = vmul.f32 %v3555, %v3559
  %vm3561 = vweird.f32 %v3494
  %vm3562 = vweird.f32 %v3555
  %vm3563 = vmor %vm3561, %vm3562
  %v3564 = vsel %vm3563, %v3555, %v3560
  %v3565 = vmul.f32 %v3481, %v3504
  %v3566 = vmul.f32 %v3482, %v3514
  %v3567 = vmul.f32 %v3483, %v3524
  %v3568 = vmul.f32 %v3484, %v3534
  %v3569 = vmul.f32 %v3485, %v3544
  %v3570 = vmul.f32 %v3486, %v3554
  %v3571 = vmul.f32 %v3487, %v3564
  %v3572 = vperm.slane %v153, 6
  %v3573 = vmul.f32 %v3565, %v3572
  %v3574 = vmul.f32 %v3566, %v3572
  %v3575 = vmul.f32 %v3567, %v3572
  %v3576 = vmul.f32 %v3568, %v3572
  %v3577 = vmul.f32 %v3569, %v3572
  %v3578 = vmul.f32 %v3570, %v3572
  %v3579 = vmul.f32 %v3571, %v3572
  %v3580 = vperm.slane %v153, 7
  %v3581 = vadd.f32 %v3573, %v3580
  %v3582 = vadd.f32 %v3574, %v3580
  %v3583 = vadd.f32 %v3575, %v3580
  %v3584 = vadd.f32 %v3576, %v3580
  %v3585 = vadd.f32 %v3577, %v3580
  %v3586 = vadd.f32 %v3578, %v3580
  %v3587 = vadd.f32 %v3579, %v3580
  %3588 = vst.msk [vmem:[%s17] sm:$0xff] %vm178, %v3581
  %3589 = vst.msk [vmem:[%s17 + $0x8] sm:$0xff] %vm178, %v3582
  %3590 = vst.msk [vmem:[%s17 + $0x10] sm:$0xff] %vm178, %v3583
  %3591 = vst.msk [vmem:[%s17 + $0x18] sm:$0xff] %vm178, %v3584
  %3592 = vst.msk [vmem:[%s17 + $0x20] sm:$0xff] %vm178, %v3585
  %3593 = vst.msk [vmem:[%s17 + $0x28] sm:$0xff] %vm178, %v3586
  %3594 = vst.msk [vmem:[%s17 + $0x30] sm:$0x3] %vm1375, %v3587
  %v3595 = vsel %vm76, %v3581, %v3584
  %v3596 = vld [vmem:[%s8] sm:$0x3]
  %v3597 = vld [vmem:[%s8 + $0x2] sm:$0x3]
  %v3598 = vld [vmem:[%s8 + $0x4] sm:$0x3]
  %v3599 = vpack.c.bf16 %v3596, %v3596
  %v3600 = vpack.c.bf16 %v3597, %v3597
  %v3601 = vpack.c.bf16 %v3598, %v3598
  %v3602 = vld [vmem:[%s9] sm:$0xf]
  %v3603 = vld [vmem:[%s9 + $0x4] sm:$0xf]
  %v3604 = vld [vmem:[%s9 + $0x8] sm:$0xf]
  %v3605 = vld [vmem:[%s9 + $0xc] sm:$0xf]
  %v3606 = vld [vmem:[%s9 + $0x10] sm:$0xf]
  %v3607 = vld [vmem:[%s9 + $0x14] sm:$0xf]
  %v3608 = vld [vmem:[%s9 + $0x18] sm:$0xf]
  %v3609 = vld [vmem:[%s9 + $0x1c] sm:$0xf]
  %v3610 = vld [vmem:[%s9 + $0x20] sm:$0xf]
  %v3611 = vld [vmem:[%s9 + $0x24] sm:$0xf]
  %v3612 = vld [vmem:[%s9 + $0x28] sm:$0xf]
  %v3613 = vld [vmem:[%s9 + $0x2c] sm:$0xf]
  %v3614 = vld [vmem:[%s10] sm:$0x1]
  %v3615 = vld [vmem:[%s10 + $0x1] sm:$0x1]
  %v3616 = vld [vmem:[%s10 + $0x2] sm:$0x1]
  %v3620 = vperm.slane %v3614, 0
  %v3621 = vperm.slane %v3615, 0
  %v3622 = vperm.slane %v3616, 0
  %v3630 = vunpack.c.l.b16 %v3602
  %v3631 = vunpack.c.l.b16 %v3603
  %v3632 = vunpack.c.l.b16 %v3604
  %v3633 = vunpack.c.l.b16 %v3605
  %v3634 = vpack.c.b16 %v3631, %v3630
  %v3635 = vpack.c.b16 %v3633, %v3632
  %v3639 = vsel %vm178, %v3599, 0
  %3641 = vmatpush.bf16.msra.mxu0 0
  %3642 = vmatpush.bf16.msra.mxu0 0
  %3643 = vmatpush.bf16.msra.mxu0 0
  %3644 = vmatpush.bf16.msra.mxu0 0
  %3645 = vmatpush.bf16.msra.mxu0 0
  %3646 = vmatpush.bf16.msra.mxu0 0
  %3647 = vmatpush.bf16.msra.mxu0 %v3635
  %3648 = vmatpush.bf16.msra.mxu0 %v3634
  %3649 = vmatmul.bf16.gmra.mxu0 %v3639
  %v3650 = vpop.f32.mrf.mxu0
  %v3651 = vadd.f32 %v3620, %v3650
  %v3652 = vpop.f32.mrf.mxu0
  %3653 = vdwg.mxu0
  %v3658 = vunpack.c.l.b16 %v3606
  %v3659 = vunpack.c.l.b16 %v3607
  %v3660 = vunpack.c.l.b16 %v3608
  %v3661 = vunpack.c.l.b16 %v3609
  %v3662 = vpack.c.b16 %v3659, %v3658
  %v3663 = vpack.c.b16 %v3661, %v3660
  %v3667 = vsel %vm178, %v3600, 0
  %3669 = vmatpush.bf16.msra.mxu0 0
  %3670 = vmatpush.bf16.msra.mxu0 0
  %3671 = vmatpush.bf16.msra.mxu0 0
  %3672 = vmatpush.bf16.msra.mxu0 0
  %3673 = vmatpush.bf16.msra.mxu0 0
  %3674 = vmatpush.bf16.msra.mxu0 0
  %3675 = vmatpush.bf16.msra.mxu0 %v3663
  %3676 = vmatpush.bf16.msra.mxu0 %v3662
  %3677 = vmatmul.bf16.gmra.mxu0 %v3667
  %v3678 = vpop.f32.mrf.mxu0
  %v3679 = vadd.f32 %v3621, %v3678
  %v3680 = vpop.f32.mrf.mxu0
  %3681 = vdwg.mxu0
  %v3686 = vunpack.c.l.b16 %v3610
  %v3687 = vunpack.c.l.b16 %v3611
  %v3688 = vunpack.c.l.b16 %v3612
  %v3689 = vunpack.c.l.b16 %v3613
  %v3690 = vpack.c.b16 %v3687, %v3686
  %v3691 = vpack.c.b16 %v3689, %v3688
  %v3695 = vsel %vm178, %v3601, 0
  %3697 = vmatpush.bf16.msra.mxu0 0
  %3698 = vmatpush.bf16.msra.mxu0 0
  %3699 = vmatpush.bf16.msra.mxu0 0
  %3700 = vmatpush.bf16.msra.mxu0 0
  %3701 = vmatpush.bf16.msra.mxu0 0
  %3702 = vmatpush.bf16.msra.mxu0 0
  %3703 = vmatpush.bf16.msra.mxu0 %v3691
  %3704 = vmatpush.bf16.msra.mxu0 %v3690
  %3705 = vmatmul.bf16.gmra.mxu0 %v3695
  %v3706 = vpop.f32.mrf.mxu0
  %v3707 = vadd.f32 %v3622, %v3706
  %v3708 = vpop.f32.mrf.mxu0
  %3709 = vdwg.mxu0
  %v3710 = vmax.f32 %v3651, 0.0
  %v3711 = vmax.f32 %v3679, 0.0
  %v3712 = vmax.f32 %v3707, 0.0
  %v3713 = vpack.c.bf16 %v3710, %v3710
  %v3714 = vpack.c.bf16 %v3711, %v3711
  %v3715 = vpack.c.bf16 %v3712, %v3712
  %v3716 = vld [vmem:[%s11] sm:$0xf]
  %v3717 = vld [vmem:[%s11 + $0x4] sm:$0xf]
  %v3718 = vld [vmem:[%s11 + $0x8] sm:$0xf]
  %v3719 = vld [vmem:[%s11 + $0xc] sm:$0xf]
  %v3720 = vld [vmem:[%s11 + $0x10] sm:$0xf]
  %v3721 = vld [vmem:[%s11 + $0x14] sm:$0xf]
  %v3722 = vld [vmem:[%s12] sm:$0x1]
  %v3723 = vld [vmem:[%s12 + $0x1] sm:$0x1]
  %v3724 = vld [vmem:[%s12 + $0x2] sm:$0x1]
  %v3728 = vperm.slane %v3722, 0
  %v3729 = vperm.slane %v3723, 0
  %v3730 = vperm.slane %v3724, 0
  %v3736 = vunpack.c.l.b16 %v3716
  %v3737 = vunpack.c.l.b16 %v3717
  %v3738 = vpack.c.b16 %v3737, %v3736
  %v3741 = vsel %vm1277, %v3713, 0
  %3743 = vmatpush.bf16.msra.mxu0 0
  %3744 = vmatpush.bf16.msra.mxu0 0
  %3745 = vmatpush.bf16.msra.mxu0 0
  %3746 = vmatpush.bf16.msra.mxu0 0
  %3747 = vmatpush.bf16.msra.mxu0 0
  %3748 = vmatpush.bf16.msra.mxu0 0
  %3749 = vmatpush.bf16.msra.mxu0 0
  %3750 = vmatpush.bf16.msra.mxu0 %v3738
  %3751 = vmatmul.bf16.gmra.mxu0 %v3741
  %v3752 = vpop.f32.mrf.mxu0
  %v3753 = vadd.f32 %v3728, %v3752
  %v3754 = vpop.f32.mrf.mxu0
  %3755 = vdwg.mxu0
  %v3758 = vunpack.c.l.b16 %v3718
  %v3759 = vunpack.c.l.b16 %v3719
  %v3760 = vpack.c.b16 %v3759, %v3758
  %v3763 = vsel %vm1277, %v3714, 0
  %3765 = vmatpush.bf16.msra.mxu0 0
  %3766 = vmatpush.bf16.msra.mxu0 0
  %3767 = vmatpush.bf16.msra.mxu0 0
  %3768 = vmatpush.bf16.msra.mxu0 0
  %3769 = vmatpush.bf16.msra.mxu0 0
  %3770 = vmatpush.bf16.msra.mxu0 0
  %3771 = vmatpush.bf16.msra.mxu0 0
  %3772 = vmatpush.bf16.msra.mxu0 %v3760
  %3773 = vmatmul.bf16.gmra.mxu0 %v3763
  %v3774 = vpop.f32.mrf.mxu0
  %v3775 = vadd.f32 %v3729, %v3774
  %v3776 = vpop.f32.mrf.mxu0
  %3777 = vdwg.mxu0
  %v3780 = vunpack.c.l.b16 %v3720
  %v3781 = vunpack.c.l.b16 %v3721
  %v3782 = vpack.c.b16 %v3781, %v3780
  %v3785 = vsel %vm1277, %v3715, 0
  %3787 = vmatpush.bf16.msra.mxu0 0
  %3788 = vmatpush.bf16.msra.mxu0 0
  %3789 = vmatpush.bf16.msra.mxu0 0
  %3790 = vmatpush.bf16.msra.mxu0 0
  %3791 = vmatpush.bf16.msra.mxu0 0
  %3792 = vmatpush.bf16.msra.mxu0 0
  %3793 = vmatpush.bf16.msra.mxu0 0
  %3794 = vmatpush.bf16.msra.mxu0 %v3782
  %3795 = vmatmul.bf16.gmra.mxu0 %v3785
  %v3796 = vpop.f32.mrf.mxu0
  %v3797 = vadd.f32 %v3730, %v3796
  %v3798 = vpop.f32.mrf.mxu0
  %3799 = vdwg.mxu0
  %v3800 = vmax.f32 %v3753, 0.0
  %v3801 = vmax.f32 %v3775, 0.0
  %v3802 = vmax.f32 %v3797, 0.0
  %v3803 = vpack.c.bf16 %v3800, %v3800
  %v3804 = vpack.c.bf16 %v3801, %v3801
  %v3805 = vpack.c.bf16 %v3802, %v3802
  %v3806 = vld [vmem:[%s13] sm:$0xf]
  %v3807 = vld [vmem:[%s13 + $0x4] sm:$0xf]
  %v3808 = vld [vmem:[%s13 + $0x8] sm:$0xf]
  %v3809 = vld [vmem:[%s13 + $0xc] sm:$0xf]
  %v3810 = vld [vmem:[%s13 + $0x10] sm:$0xf]
  %v3811 = vld [vmem:[%s13 + $0x14] sm:$0xf]
  %v3812 = vld [vmem:[%s14] sm:$0x1]
  %v3813 = vld [vmem:[%s14 + $0x1] sm:$0x1]
  %v3814 = vld [vmem:[%s14 + $0x2] sm:$0x1]
  %v3818 = vperm.slane %v3812, 0
  %v3819 = vperm.slane %v3813, 0
  %v3820 = vperm.slane %v3814, 0
  %v3826 = vunpack.c.l.b16 %v3806
  %v3827 = vunpack.c.l.b16 %v3807
  %v3828 = vpack.c.b16 %v3827, %v3826
  %v3831 = vsel %vm1277, %v3803, 0
  %3833 = vmatpush.bf16.msra.mxu0 0
  %3834 = vmatpush.bf16.msra.mxu0 0
  %3835 = vmatpush.bf16.msra.mxu0 0
  %3836 = vmatpush.bf16.msra.mxu0 0
  %3837 = vmatpush.bf16.msra.mxu0 0
  %3838 = vmatpush.bf16.msra.mxu0 0
  %3839 = vmatpush.bf16.msra.mxu0 0
  %3840 = vmatpush.bf16.msra.mxu0 %v3828
  %3841 = vmatmul.bf16.gmra.mxu0 %v3831
  %v3842 = vpop.f32.mrf.mxu0
  %v3843 = vadd.f32 %v3818, %v3842
  %v3844 = vpop.f32.mrf.mxu0
  %3845 = vdwg.mxu0
  %v3848 = vunpack.c.l.b16 %v3808
  %v3849 = vunpack.c.l.b16 %v3809
  %v3850 = vpack.c.b16 %v3849, %v3848
  %v3853 = vsel %vm1277, %v3804, 0
  %3855 = vmatpush.bf16.msra.mxu0 0
  %3856 = vmatpush.bf16.msra.mxu0 0
  %3857 = vmatpush.bf16.msra.mxu0 0
  %3858 = vmatpush.bf16.msra.mxu0 0
  %3859 = vmatpush.bf16.msra.mxu0 0
  %3860 = vmatpush.bf16.msra.mxu0 0
  %3861 = vmatpush.bf16.msra.mxu0 0
  %3862 = vmatpush.bf16.msra.mxu0 %v3850
  %3863 = vmatmul.bf16.gmra.mxu0 %v3853
  %v3864 = vpop.f32.mrf.mxu0
  %v3865 = vadd.f32 %v3819, %v3864
  %v3866 = vpop.f32.mrf.mxu0
  %3867 = vdwg.mxu0
  %v3870 = vunpack.c.l.b16 %v3810
  %v3871 = vunpack.c.l.b16 %v3811
  %v3872 = vpack.c.b16 %v3871, %v3870
  %v3875 = vsel %vm1277, %v3805, 0
  %3877 = vmatpush.bf16.msra.mxu0 0
  %3878 = vmatpush.bf16.msra.mxu0 0
  %3879 = vmatpush.bf16.msra.mxu0 0
  %3880 = vmatpush.bf16.msra.mxu0 0
  %3881 = vmatpush.bf16.msra.mxu0 0
  %3882 = vmatpush.bf16.msra.mxu0 0
  %3883 = vmatpush.bf16.msra.mxu0 0
  %3884 = vmatpush.bf16.msra.mxu0 %v3872
  %3885 = vmatmul.bf16.gmra.mxu0 %v3875
  %v3886 = vpop.f32.mrf.mxu0
  %v3887 = vadd.f32 %v3820, %v3886
  %v3888 = vpop.f32.mrf.mxu0
  %3889 = vdwg.mxu0
  %v3890 = vpack.c.bf16 %v3595, %v3595
  %v3891 = vld [vmem:[%s15] sm:$0xf]
  %v3892 = vld [vmem:[%s15 + $0x4] sm:$0xf]
  %v3893 = vld [vmem:[%s15 + $0x8] sm:$0xf]
  %v3894 = vld [vmem:[%s15 + $0xc] sm:$0xf]
  %v3895 = vld [vmem:[#allocation2] sm:$0x1]
  %v3897 = vperm.slane %v3895, 0
  %v3903 = vunpack.c.l.b16 %v3891
  %v3904 = vunpack.c.l.b16 %v3892
  %v3905 = vunpack.c.l.b16 %v3893
  %v3906 = vunpack.c.l.b16 %v3894
  %v3907 = vpack.c.b16 %v3904, %v3903
  %v3908 = vpack.c.b16 %v3906, %v3905
  %v3912 = vsel %vm178, %v3890, 0
  %3914 = vmatpush.bf16.msra.mxu0 0
  %3915 = vmatpush.bf16.msra.mxu0 0
  %3916 = vmatpush.bf16.msra.mxu0 0
  %3917 = vmatpush.bf16.msra.mxu0 0
  %3918 = vmatpush.bf16.msra.mxu0 0
  %3919 = vmatpush.bf16.msra.mxu0 0
  %3920 = vmatpush.bf16.msra.mxu0 %v3908
  %3921 = vmatpush.bf16.msra.mxu0 %v3907
  %3922 = vmatmul.bf16.gmra.mxu0 %v3912
  %v3923 = vpop.f32.mrf.mxu0
  %v3924 = vadd.f32 %v3897, %v3923
  %v3925 = vpop.f32.mrf.mxu0
  %3926 = vdwg.mxu0
  %v3927 = vxor.u32 %v3865, 2147483648
  %v3928 = vmul.f32 %v3927, 1.442695
  %v3929 = vpow.pop %v3928
  %v3930 = vadd.f32 %v3929, 1.0
  %v3931 = vrcp.pop %v3930
  %v3932 = vmul.f32 %v3930, %v3931
  %v3933 = vsub.f32 1.0, %v3932
  %v3934 = vmul.f32 %v3931, %v3933
  %v3935 = vadd.f32 %v3931, %v3934
  %vm3936 = vweird.f32 %v3930
  %vm3937 = vweird.f32 %v3931
  %vm3938 = vmor %vm3936, %vm3937
  %v3939 = vsel %vm3938, %v3931, %v3935
  %v3940 = vand.u32 2147483647, %v3930
  %vm3941 = vcmp.eq.f32.partialorder %v3940, 8.507059e+37
  %v3942 = vand.u32 %v3930, 2147483648
  %v3943 = vor.u32 1.1754944e-38, %v3942
  %v3944 = vsel %vm3941, %v3943, %v3939
  %v3945 = vmul.f32 1.0, %v3944
  %v3946 = vmul.f32 %v3945, 2.0
  %v3947 = vsub.f32 %v3946, 1.0
  %v3948 = vxor.u32 %v3887, 2147483648
  %v3949 = vmul.f32 %v3948, 1.442695
  %v3950 = vpow.pop %v3949
  %v3951 = vadd.f32 %v3950, 1.0
  %v3952 = vrcp.pop %v3951
  %v3953 = vmul.f32 %v3951, %v3952
  %v3954 = vsub.f32 1.0, %v3953
  %v3955 = vmul.f32 %v3952, %v3954
  %v3956 = vadd.f32 %v3952, %v3955
  %vm3957 = vweird.f32 %v3951
  %vm3958 = vweird.f32 %v3952
  %vm3959 = vmor %vm3957, %vm3958
  %v3960 = vsel %vm3959, %v3952, %v3956
  %v3961 = vand.u32 2147483647, %v3951
  %vm3962 = vcmp.eq.f32.partialorder %v3961, 8.507059e+37
  %v3963 = vand.u32 %v3951, 2147483648
  %v3964 = vor.u32 1.1754944e-38, %v3963
  %v3965 = vsel %vm3962, %v3964, %v3960
  %v3966 = vmul.f32 1.0, %v3965
  %v3967 = vmul.f32 %v3966, 2.0
  %v3968 = vsub.f32 %v3967, 1.0
  %v3969 = vxor.u32 %v3924, 2147483648
  %v3970 = vmul.f32 %v3969, 1.442695
  %v3971 = vpow.pop %v3970
  %v3972 = vadd.f32 %v3971, 1.0
  %v3973 = vrcp.pop %v3972
  %v3974 = vmul.f32 %v3972, %v3973
  %v3975 = vsub.f32 1.0, %v3974
  %v3976 = vmul.f32 %v3973, %v3975
  %v3977 = vadd.f32 %v3973, %v3976
  %vm3978 = vweird.f32 %v3972
  %vm3979 = vweird.f32 %v3973
  %vm3980 = vmor %vm3978, %vm3979
  %v3981 = vsel %vm3980, %v3973, %v3977
  %v3982 = vand.u32 2147483647, %v3972
  %vm3983 = vcmp.eq.f32.partialorder %v3982, 8.507059e+37
  %v3984 = vand.u32 %v3972, 2147483648
  %v3985 = vor.u32 1.1754944e-38, %v3984
  %v3986 = vsel %vm3983, %v3985, %v3981
  %v3987 = vmul.f32 1.0, %v3986
  %v3988 = vmul.f32 %v3987, 2.0
  %v3989 = vsub.f32 %v3988, 1.0
  %3991 = vrot.lane.b32.xlu0 %v3947, 1
  %v3992 = vpop.permute.xlu0 %3991
  %3995 = vrot.lane.b32.xlu0 %v3968, 2
  %v3996 = vpop.permute.xlu0 %3995
  %3999 = vrot.lane.b32.xlu0 %v3989, 3
  %v4000 = vpop.permute.xlu0 %3999
  %vm4002 = vcmask 7168
  %v4003 = vsel %vm4002, %v3843, %v3992
  %vm4004 = vcmask 15360
  %v4005 = vsel %vm4004, %v4003, %v3996
  %vm4006 = vcmask 23552
  %v4007 = vsel %vm4006, %v4005, %v4000
  %vm4008 = vcmask 25600
  %4009 = vst.msk [vmem:[%s18] sm:$0x3] %vm4008, %v4007
  // Predicated region
  $region70: #{_lambda_.3} parent=0 // pred_check
    _
  $region71: #{_lambda_.3} parent=0 // pred_check_branch
    %4011 = sbr.rel (0) target = $region73
  $region72: #{_lambda_.3} parent=0 // pred_region
    _
  $region73: #{_lambda_.3} parent=0 // pred_fallthru
    _
  // Predicated region
  $region74: #{_lambda_.3} parent=0 // pred_check
    _
  $region75: #{_lambda_.3} parent=0 // pred_check_branch
    %4013 = sbr.rel (0) target = $region77
  $region76: #{_lambda_.3} parent=0 // pred_region
    _
  $region77: #{_lambda_.3} parent=0 // pred_fallthru
    _
  // Predicated region
  $region78: #{_lambda_.3} parent=0 // pred_check
    _
  $region79: #{_lambda_.3} parent=0 // pred_check_branch
    %4015 = sbr.rel (0) target = $region81
  $region80: #{_lambda_.3} parent=0 // pred_region
    _
  $region81: #{_lambda_.3} parent=0 // pred_fallthru
    _
  // Predicated region
  $region82: #{_lambda_.3} parent=0 // pred_check
    _
  $region83: #{_lambda_.3} parent=0 // pred_check_branch
    %4017 = sbr.rel (0) target = $region85
  $region84: #{_lambda_.3} parent=0 // pred_region
    _
  $region85: #{_lambda_.3} parent=0 // pred_fallthru
    _

</llo_original>
